<compile_context>
chip_gen: v7x
topology: tpu7x:2x2x1
jax: 0.10.0
libtpu: 0.0.40
codegen_flags: <defaults>
</compile_context>

<pallas_src>
import functools

import jax
import jax.numpy as jnp
from jax import lax
from jax.experimental import pallas as pl
from jax.experimental.pallas import tpu as pltpu


# ------------------------------- Pallas kernel ------------------------------- #

def fused_basic_block_kernel(*refs, th, dil, w_img, padl, has_downsample):
    """One (batch-element, row-block) step of the whole BasicBlock."""
    if has_downsample:
        x_ref, w1_ref, b1_ref, w2_ref, b2_ref, wd_ref, o_ref, h_ref = refs
    else:
        x_ref, w1_ref, b1_ref, w2_ref, b2_ref, o_ref, h_ref = refs
        wd_ref = None

    d = dil
    ri = pl.program_id(1)
    r0 = ri * th                          # first output row of this row-block
    rows1 = th + 2 * d                    # stage-1 rows needed: [r0 - d, r0 + th + d)
    cin = x_ref.shape[-1]
    cmid = h_ref.shape[-1]
    cout = o_ref.shape[-1]
    wpad = h_ref.shape[1]                 # padl + w_img + d

    # -------- stage 1: conv1 (3x3, dilation d) + bn1 (scale in w1) + relu --------
    m1 = rows1 * w_img
    acc1 = jnp.zeros((m1, cmid), jnp.float32)
    for kh in range(3):
        for kw in range(3):
            # per-tap ref slice: just-in-time load, no big band value kept live
            win = x_ref[pl.ds(r0 + kh * d, rows1), d + kw * d: d + kw * d + w_img, :]
            acc1 = acc1 + jnp.dot(win.reshape(m1, cin), w1_ref[kh * 3 + kw],
                                  preferred_element_type=jnp.float32)
    h_val = jnp.maximum(acc1 + b1_ref[...], 0.0)                 # (m1, Cmid) f32

    # Zero only the d-wide column halos that conv2 reads (not the whole scratch).
    h_ref[:, padl - d: padl, :] = jnp.zeros((rows1, d, cmid), h_ref.dtype)
    h_ref[:, padl + w_img: padl + w_img + d, :] = jnp.zeros((rows1, d, cmid), h_ref.dtype)
    # Sublane-aligned interior store (padl is a multiple of 8).
    h_ref[:, padl: padl + w_img, :] = h_val.reshape(rows1, w_img, cmid).astype(h_ref.dtype)

    # Stage-1 band rows outside the image are conv2's zero padding, not conv1 output.
    # Only the first / last row block can have such rows (row tile >= dilation).
    @pl.when(ri == 0)
    def _():
        h_ref[0:d, :, :] = jnp.zeros((d, wpad, cmid), h_ref.dtype)

    @pl.when(ri == pl.num_programs(1) - 1)
    def _():
        h_ref[th + d: th + 2 * d, :, :] = jnp.zeros((d, wpad, cmid), h_ref.dtype)

    # ------- stage 2: conv2 (3x3, dilation d) + bn2 + residual + relu -------
    m2 = th * w_img
    acc2 = jnp.zeros((m2, cout), jnp.float32)
    for kh in range(3):
        for kw in range(3):
            c0 = padl - d + kw * d
            win = h_ref[kh * d: kh * d + th, c0: c0 + w_img, :]   # ref slice per tap
            acc2 = acc2 + jnp.dot(win.reshape(m2, cmid), w2_ref[kh * 3 + kw],
                                  preferred_element_type=jnp.float32)
    acc2 = acc2 + b2_ref[...]                                     # bn2 bias (+ bnd bias)

    x_center = x_ref[pl.ds(r0 + 2 * d, th), 2 * d: 2 * d + w_img, :].reshape(m2, cin)
    if has_downsample:
        acc2 = acc2 + jnp.dot(x_center, wd_ref[...], preferred_element_type=jnp.float32)
    else:
        acc2 = acc2 + x_center.astype(jnp.float32)                # identity shortcut

    o_ref[...] = jnp.maximum(acc2, 0.0).reshape(th, w_img, cout).astype(o_ref.dtype)


# --------------------------------- wrapper ----------------------------------- #

def _round_up(v, m):
    return (v + m - 1) // m * m


def _vmem_capacity_bytes():
    try:
        return int(pltpu.get_tpu_info().vmem_capacity_bytes)
    except Exception:
        return 64 * 1024 * 1024    # conservative: v7x per-TensorCore VMEM


def _pick_row_tile(h, d, per_row_bytes, avail_bytes, cap=128):
    """Largest divisor of h (prefer multiple of 8, >= dilation) fitting the budget."""
    cap = int(max(8, min(cap, h, avail_bytes // max(per_row_bytes, 1))))
    divs = [t for t in range(1, h + 1) if h % t == 0 and t <= cap and (t >= d or t == h)]
    mult8 = [t for t in divs if t % 8 == 0]
    if mult8:
        return max(mult8)
    if divs:
        return max(divs)
    return h


def basic_block_forward(x, params, stride=1, dilation=1, row_tile=None,
                        out_dtype=jnp.float32):
    """x: (N, H, W, Cin) float32 NHWC -> (N, H, W, Cout) out_dtype."""
    if stride != 1:
        # TODO(synk): strided BasicBlock (stride=2 downsampling) not implemented.
        raise NotImplementedError("stride > 1 is not supported by this Pallas kernel")
    n, h, w, cin = x.shape
    d = int(dilation)
    cmid = params["w1"].shape[-1]
    cout = cmid                                   # expansion == 1
    has_downsample = params["wd"] is not None
    if not has_downsample:
        assert cin == cout, "identity shortcut requires in_channels == out_channels"

    LANE = 128
    cin_p, cmid_p, cout_p = (_round_up(c, LANE) for c in (cin, cmid, cout))

    # Fold BN scale into the conv weights (bias stays separate), lane-pad, cast bf16.
    w1f = (params["w1"] * params["s1"]).reshape(9, cin, cmid)
    w1f = jnp.pad(w1f, ((0, 0), (0, cin_p - cin), (0, cmid_p - cmid))).astype(jnp.bfloat16)
    b1 = jnp.pad(params["b1"][None, :], ((0, 0), (0, cmid_p - cmid)))

    w2f = (params["w2"] * params["s2"]).reshape(9, cmid, cout)
    w2f = jnp.pad(w2f, ((0, 0), (0, cmid_p - cmid), (0, cout_p - cout))).astype(jnp.bfloat16)
    b2 = params["b2"]
    if has_downsample:
        wdf = jnp.pad(params["wd"] * params["sd"],
                      ((0, cin_p - cin), (0, cout_p - cout))).astype(jnp.bfloat16)
        b2 = b2 + params["bd"]                    # combined stage-2 bias
    b2 = jnp.pad(b2[None, :], ((0, 0), (0, cout_p - cout)))

    # Pre-pad x: 2*d-wide spatial zero halo (covers both stacked 3x3 convs),
    # channel pad to a lane multiple, bf16 (halves DMA, MXU-native).
    xp = jnp.pad(x, ((0, 0), (2 * d, 2 * d), (2 * d, 2 * d), (0, cin_p - cin)))
    xp = xp.astype(jnp.bfloat16)
    hp, wp = h + 4 * d, w + 4 * d

    padl = max(8, _round_up(d, 8))                # aligned interior column of h scratch
    out_bytes = jnp.dtype(out_dtype).itemsize

    # ---- VMEM accounting: derive row tile and vmem limit from actual block sizes ----
    vmem_cap = _vmem_capacity_bytes()
    x_block = hp * wp * cin_p * 2
    w_bytes = (9 * cin_p * cmid_p + 9 * cmid_p * cout_p
               + (cin_p * cout_p if has_downsample else 0)) * 2 + (cmid_p + cout_p) * 4
    fixed = 2 * x_block + 2 * w_bytes             # double-buffered input / constant blocks
    per_row = ((padl + w + d) * cmid_p * 2        # h scratch (bf16)
               + 2 * w * cout_p * out_bytes       # double-buffered output block
               + 2 * w * (cmid_p + cout_p) * 4)   # f32 accumulators / spill headroom

    if row_tile is None:
        th = _pick_row_tile(h, d, per_row, vmem_cap - fixed - (4 << 20))
    else:
        th = int(row_tile)
    assert h % th == 0, f"row tile {th} must divide H={h}"
    assert th >= d or th == h, f"row tile {th} must be >= dilation {d}"
    grid = (n, h // th)

    vmem_limit = int(min(max(fixed + per_row * (th + 2 * d) + (4 << 20), 16 << 20),
                         vmem_cap))

    kernel = functools.partial(
        fused_basic_block_kernel, th=th, dil=d, w_img=w, padl=padl,
        has_downsample=has_downsample)

    in_specs = [
        pl.BlockSpec((None, hp, wp, cin_p), lambda ni, ri: (ni, 0, 0, 0)),
        pl.BlockSpec((9, cin_p, cmid_p), lambda ni, ri: (0, 0, 0)),
        pl.BlockSpec((1, cmid_p), lambda ni, ri: (0, 0)),
        pl.BlockSpec((9, cmid_p, cout_p), lambda ni, ri: (0, 0, 0)),
        pl.BlockSpec((1, cout_p), lambda ni, ri: (0, 0)),
    ]
    args = [xp, w1f, b1, w2f, b2]
    if has_downsample:
        in_specs.append(pl.BlockSpec((cin_p, cout_p), lambda ni, ri: (0, 0)))
        args.append(wdf)

    flops = 2 * n * h * w * (9 * cin_p * cmid_p + 9 * cmid_p * cout_p
                             + (cin_p * cout_p if has_downsample else 0))
    bytes_accessed = (xp.size * 2 + w1f.size * 2 + w2f.size * 2
                      + (cin_p * cout_p * 2 if has_downsample else 0)
                      + (b1.size + b2.size) * 4 + n * h * w * cout_p * out_bytes)

    out_padded = pl.pallas_call(
        kernel,
        out_shape=jax.ShapeDtypeStruct((n, h, w, cout_p), out_dtype),
        grid=grid,
        in_specs=in_specs,
        out_specs=pl.BlockSpec((None, th, w, cout_p), lambda ni, ri: (ni, ri, 0, 0)),
        scratch_shapes=[pltpu.VMEM((th + 2 * d, padl + w + d, cmid_p), jnp.bfloat16)],
        compiler_params=pltpu.CompilerParams(
            dimension_semantics=("parallel", "parallel"),
            vmem_limit_bytes=vmem_limit),
        cost_estimate=pl.CostEstimate(flops=int(flops), transcendentals=0,
                                      bytes_accessed=int(bytes_accessed)),
    )(*args)

    return out_padded if cout_p == cout else out_padded[..., :cout]


# ---------------------------- parameter construction -------------------------- #

def fold_bn(gamma, beta, mean, var, eps=1e-5):
    scale = gamma / jnp.sqrt(var + eps)
    bias = beta - mean * scale
    return scale.astype(jnp.float32), bias.astype(jnp.float32)


def make_params(key, in_channels, channels):
    out_channels = channels                        # expansion == 1
    k1, k2, k3 = jax.random.split(key, 3)
    w1 = (0.1 * jax.random.normal(k1, (3, 3, in_channels, channels))).astype(jnp.float32)
    w2 = (0.1 * jax.random.normal(k2, (3, 3, channels, channels))).astype(jnp.float32)

    def bn_stats(c, base):
        gamma = 1.0 + 0.01 * jnp.arange(c, dtype=jnp.float32) + base
        beta = 0.02 * jnp.arange(c, dtype=jnp.float32) - base
        mean = 0.05 * jnp.arange(c, dtype=jnp.float32)
        var = 1.0 + 0.03 * jnp.arange(c, dtype=jnp.float32)
        return fold_bn(gamma, beta, mean, var)

    s1, b1 = bn_stats(channels, 0.0)
    s2, b2 = bn_stats(channels, 0.1)

    if in_channels != out_channels:
        wd = (0.1 * jax.random.normal(k3, (in_channels, out_channels))).astype(jnp.float32)
        sd, bd = bn_stats(out_channels, 0.2)
    else:
        wd, sd, bd = None, None, None              # nn.Sequential(): identity shortcut
    return dict(w1=w1, s1=s1, b1=b1, w2=w2, s2=s2, b2=b2, wd=wd, sd=sd, bd=bd)


# ------------------------------ pure-JAX references ---------------------------- #

def ref_forward_f32(x, p, dilation=1):
    """Exact f32 BasicBlock semantics (inference-mode BN)."""
    d = dilation

    def conv3(inp, wgt):
        return lax.conv_general_dilated(
            inp, wgt, window_strides=(1, 1), padding=[(d, d), (d, d)],
            rhs_dilation=(d, d), dimension_numbers=("NHWC", "HWIO", "NHWC"))

    h = jnp.maximum(conv3(x, p["w1"]) * p["s1"] + p["b1"], 0.0)
    out = conv3(h, p["w2"]) * p["s2"] + p["b2"]
    if p["wd"] is not None:
        res = jnp.einsum("nhwc,cd->nhwd", x, p["wd"]) * p["sd"] + p["bd"]
    else:
        res = x
    return jnp.maximum(out + res, 0.0)


def ref_forward_bf16(x, p, dilation=1):
    """Reference matching kernel numerics (bf16 operands, f32 accumulate)."""
    d = dilation

    def conv3(inp, wgt):
        return lax.conv_general_dilated(
            inp, wgt, window_strides=(1, 1), padding=[(d, d), (d, d)],
            rhs_dilation=(d, d), dimension_numbers=("NHWC", "HWIO", "NHWC"),
            preferred_element_type=jnp.float32)

    xb = x.astype(jnp.bfloat16)
    w1 = (p["w1"] * p["s1"]).astype(jnp.bfloat16)
    w2 = (p["w2"] * p["s2"]).astype(jnp.bfloat16)
    h = jnp.maximum(conv3(xb, w1) + p["b1"], 0.0)
    out = conv3(h.astype(jnp.bfloat16), w2) + p["b2"]
    if p["wd"] is not None:
        wd = (p["wd"] * p["sd"]).astype(jnp.bfloat16)
        res = jnp.einsum("nhwc,cd->nhwd", xb, wd,
                         preferred_element_type=jnp.float32) + p["bd"]
    else:
        res = xb.astype(jnp.float32)
    return jnp.maximum(out + res, 0.0)


# ------------------------------------ main ------------------------------------- #

if __name__ == "__main__":
    key = jax.random.PRNGKey(0)
    ka, kb, kc, kd = jax.random.split(key, 4)

    # Config A: in_channels != channels -> 1x1-conv + BN downsample branch.
    N, Cin, Ch, H, W = 2, 4, 8, 16, 16
    xa = jax.random.normal(ka, (N, H, W, Cin), dtype=jnp.float32)
    pa = make_params(kb, Cin, Ch)
    fwd_a = jax.jit(functools.partial(basic_block_forward, dilation=1))
    out_a = jax.block_until_ready(fwd_a(xa, pa))
    assert out_a.shape == (N, H, W, Ch), out_a.shape
    err_a = float(jnp.max(jnp.abs(out_a - ref_forward_bf16(xa, pa, 1))))
    err_a32 = float(jnp.max(jnp.abs(out_a - ref_forward_f32(xa, pa, 1))))
    assert err_a < 5e-3, f"config A mismatch vs bf16-matched reference: {err_a}"
    assert err_a32 < 0.25, f"config A mismatch vs f32 reference: {err_a32}"

    # Config B: identity shortcut (in == out channels), dilation=2, two row blocks.
    Cb = 8
    xb = jax.random.normal(kc, (N, H, W, Cb), dtype=jnp.float32)
    pb = make_params(kd, Cb, Cb)
    fwd_b = jax.jit(functools.partial(basic_block_forward, dilation=2, row_tile=8))
    out_b = jax.block_until_ready(fwd_b(xb, pb))
    assert out_b.shape == (N, H, W, Cb), out_b.shape
    err_b = float(jnp.max(jnp.abs(out_b - ref_forward_bf16(xb, pb, 2))))
    err_b32 = float(jnp.max(jnp.abs(out_b - ref_forward_f32(xb, pb, 2))))
    assert err_b < 5e-3, f"config B mismatch vs bf16-matched reference: {err_b}"
    assert err_b32 < 0.25, f"config B mismatch vs f32 reference: {err_b32}"

    print("KERNEL_OK")
</pallas_src>

<mosaic_0001>
module attributes {stable_mosaic.version = 11 : i64} {
  func.func @fused_basic_block_kernel(%arg0: i32, %arg1: i32, %arg2: memref<1x20x20x128xbf16, #tpu.memory_space<vmem>>, %arg3: memref<9x128x128xbf16, #tpu.memory_space<vmem>>, %arg4: memref<1x128xf32, #tpu.memory_space<vmem>>, %arg5: memref<9x128x128xbf16, #tpu.memory_space<vmem>>, %arg6: memref<1x128xf32, #tpu.memory_space<vmem>>, %arg7: memref<128x128xbf16, #tpu.memory_space<vmem>>, %arg8: memref<1x16x16x128xf32, #tpu.memory_space<vmem>>, %arg9: memref<18x25x128xbf16, #tpu.memory_space<vmem>>) attributes {dimension_semantics = [#tpu.dimension_semantics<parallel>, #tpu.dimension_semantics<parallel>], iteration_bounds = array<i64: 2, 1>, scalar_prefetch = 0 : i64, scratch_operands = 1 : i64, tpu.core_type = #tpu.core_type<tc>, window_params = [{transform_indices = @transform_0, window_bounds = array<i64: 1, 20, 20, 128>}, {pipeline_mode = #tpu.pipeline_mode<synchronous>, transform_indices = @transform_1, window_bounds = array<i64: 9, 128, 128>}, {pipeline_mode = #tpu.pipeline_mode<synchronous>, transform_indices = @transform_2, window_bounds = array<i64: 1, 128>}, {pipeline_mode = #tpu.pipeline_mode<synchronous>, transform_indices = @transform_3, window_bounds = array<i64: 9, 128, 128>}, {pipeline_mode = #tpu.pipeline_mode<synchronous>, transform_indices = @transform_4, window_bounds = array<i64: 1, 128>}, {pipeline_mode = #tpu.pipeline_mode<synchronous>, transform_indices = @transform_5, window_bounds = array<i64: 128, 128>}, {transform_indices = @transform_6, window_bounds = array<i64: 1, 16, 16, 128>}]} {
    %c16_i32 = arith.constant 16 : i32
    %0 = arith.muli %arg1, %c16_i32 : i32
    %cst = arith.constant 0.000000e+00 : f32
    %1 = vector.broadcast %cst : f32 to vector<288x128xf32>
    %c0_i32 = arith.constant 0 : i32
    %2 = arith.addi %0, %c0_i32 : i32
    %c0 = arith.constant 0 : index
    %3 = arith.index_cast %2 : i32 to index
    %c1 = arith.constant 1 : index
    %c0_0 = arith.constant 0 : index
    %4 = vector.load %arg2[%c0, %3, %c1, %c0_0] : memref<1x20x20x128xbf16, #tpu.memory_space<vmem>>, vector<1x18x16x128xbf16>
    %5 = vector.shape_cast %4 : vector<1x18x16x128xbf16> to vector<18x16x128xbf16>
    %6 = vector.shape_cast %5 : vector<18x16x128xbf16> to vector<288x128xbf16>
    %c0_1 = arith.constant 0 : index
    %c0_2 = arith.constant 0 : index
    %c0_3 = arith.constant 0 : index
    %7 = vector.load %arg3[%c0_1, %c0_2, %c0_3] : memref<9x128x128xbf16, #tpu.memory_space<vmem>>, vector<1x128x128xbf16>
    %8 = vector.shape_cast %7 : vector<1x128x128xbf16> to vector<128x128xbf16>
    %cst_4 = arith.constant dense<0.000000e+00> : vector<288x128xf32>
    %9 = tpu.matmul %6, %8, %cst_4 {dimension_numbers = #tpu.dot_dimension_numbers<[1], [0], [0], [1], [0, 0, 1, 1], [], []>} : vector<288x128xbf16>, vector<128x128xbf16>, vector<288x128xf32> -> vector<288x128xf32>
    %10 = arith.addf %1, %9 : vector<288x128xf32>
    %c0_i32_5 = arith.constant 0 : i32
    %11 = arith.addi %0, %c0_i32_5 : i32
    %c0_6 = arith.constant 0 : index
    %12 = arith.index_cast %11 : i32 to index
    %c2 = arith.constant 2 : index
    %c0_7 = arith.constant 0 : index
    %13 = vector.load %arg2[%c0_6, %12, %c2, %c0_7] : memref<1x20x20x128xbf16, #tpu.memory_space<vmem>>, vector<1x18x16x128xbf16>
    %14 = vector.shape_cast %13 : vector<1x18x16x128xbf16> to vector<18x16x128xbf16>
    %15 = vector.shape_cast %14 : vector<18x16x128xbf16> to vector<288x128xbf16>
    %c1_8 = arith.constant 1 : index
    %c0_9 = arith.constant 0 : index
    %c0_10 = arith.constant 0 : index
    %16 = vector.load %arg3[%c1_8, %c0_9, %c0_10] : memref<9x128x128xbf16, #tpu.memory_space<vmem>>, vector<1x128x128xbf16>
    %17 = vector.shape_cast %16 : vector<1x128x128xbf16> to vector<128x128xbf16>
    %cst_11 = arith.constant dense<0.000000e+00> : vector<288x128xf32>
    %18 = tpu.matmul %15, %17, %cst_11 {dimension_numbers = #tpu.dot_dimension_numbers<[1], [0], [0], [1], [0, 0, 1, 1], [], []>} : vector<288x128xbf16>, vector<128x128xbf16>, vector<288x128xf32> -> vector<288x128xf32>
    %19 = arith.addf %10, %18 : vector<288x128xf32>
    %c0_i32_12 = arith.constant 0 : i32
    %20 = arith.addi %0, %c0_i32_12 : i32
    %c0_13 = arith.constant 0 : index
    %21 = arith.index_cast %20 : i32 to index
    %c3 = arith.constant 3 : index
    %c0_14 = arith.constant 0 : index
    %22 = vector.load %arg2[%c0_13, %21, %c3, %c0_14] : memref<1x20x20x128xbf16, #tpu.memory_space<vmem>>, vector<1x18x16x128xbf16>
    %23 = vector.shape_cast %22 : vector<1x18x16x128xbf16> to vector<18x16x128xbf16>
    %24 = vector.shape_cast %23 : vector<18x16x128xbf16> to vector<288x128xbf16>
    %c2_15 = arith.constant 2 : index
    %c0_16 = arith.constant 0 : index
    %c0_17 = arith.constant 0 : index
    %25 = vector.load %arg3[%c2_15, %c0_16, %c0_17] : memref<9x128x128xbf16, #tpu.memory_space<vmem>>, vector<1x128x128xbf16>
    %26 = vector.shape_cast %25 : vector<1x128x128xbf16> to vector<128x128xbf16>
    %cst_18 = arith.constant dense<0.000000e+00> : vector<288x128xf32>
    %27 = tpu.matmul %24, %26, %cst_18 {dimension_numbers = #tpu.dot_dimension_numbers<[1], [0], [0], [1], [0, 0, 1, 1], [], []>} : vector<288x128xbf16>, vector<128x128xbf16>, vector<288x128xf32> -> vector<288x128xf32>
    %28 = arith.addf %19, %27 : vector<288x128xf32>
    %c1_i32 = arith.constant 1 : i32
    %29 = arith.addi %0, %c1_i32 : i32
    %c0_19 = arith.constant 0 : index
    %30 = arith.index_cast %29 : i32 to index
    %c1_20 = arith.constant 1 : index
    %c0_21 = arith.constant 0 : index
    %31 = vector.load %arg2[%c0_19, %30, %c1_20, %c0_21] : memref<1x20x20x128xbf16, #tpu.memory_space<vmem>>, vector<1x18x16x128xbf16>
    %32 = vector.shape_cast %31 : vector<1x18x16x128xbf16> to vector<18x16x128xbf16>
    %33 = vector.shape_cast %32 : vector<18x16x128xbf16> to vector<288x128xbf16>
    %c3_22 = arith.constant 3 : index
    %c0_23 = arith.constant 0 : index
    %c0_24 = arith.constant 0 : index
    %34 = vector.load %arg3[%c3_22, %c0_23, %c0_24] : memref<9x128x128xbf16, #tpu.memory_space<vmem>>, vector<1x128x128xbf16>
    %35 = vector.shape_cast %34 : vector<1x128x128xbf16> to vector<128x128xbf16>
    %cst_25 = arith.constant dense<0.000000e+00> : vector<288x128xf32>
    %36 = tpu.matmul %33, %35, %cst_25 {dimension_numbers = #tpu.dot_dimension_numbers<[1], [0], [0], [1], [0, 0, 1, 1], [], []>} : vector<288x128xbf16>, vector<128x128xbf16>, vector<288x128xf32> -> vector<288x128xf32>
    %37 = arith.addf %28, %36 : vector<288x128xf32>
    %c1_i32_26 = arith.constant 1 : i32
    %38 = arith.addi %0, %c1_i32_26 : i32
    %c0_27 = arith.constant 0 : index
    %39 = arith.index_cast %38 : i32 to index
    %c2_28 = arith.constant 2 : index
    %c0_29 = arith.constant 0 : index
    %40 = vector.load %arg2[%c0_27, %39, %c2_28, %c0_29] : memref<1x20x20x128xbf16, #tpu.memory_space<vmem>>, vector<1x18x16x128xbf16>
    %41 = vector.shape_cast %40 : vector<1x18x16x128xbf16> to vector<18x16x128xbf16>
    %42 = vector.shape_cast %41 : vector<18x16x128xbf16> to vector<288x128xbf16>
    %c4 = arith.constant 4 : index
    %c0_30 = arith.constant 0 : index
    %c0_31 = arith.constant 0 : index
    %43 = vector.load %arg3[%c4, %c0_30, %c0_31] : memref<9x128x128xbf16, #tpu.memory_space<vmem>>, vector<1x128x128xbf16>
    %44 = vector.shape_cast %43 : vector<1x128x128xbf16> to vector<128x128xbf16>
    %cst_32 = arith.constant dense<0.000000e+00> : vector<288x128xf32>
    %45 = tpu.matmul %42, %44, %cst_32 {dimension_numbers = #tpu.dot_dimension_numbers<[1], [0], [0], [1], [0, 0, 1, 1], [], []>} : vector<288x128xbf16>, vector<128x128xbf16>, vector<288x128xf32> -> vector<288x128xf32>
    %46 = arith.addf %37, %45 : vector<288x128xf32>
    %c1_i32_33 = arith.constant 1 : i32
    %47 = arith.addi %0, %c1_i32_33 : i32
    %c0_34 = arith.constant 0 : index
    %48 = arith.index_cast %47 : i32 to index
    %c3_35 = arith.constant 3 : index
    %c0_36 = arith.constant 0 : index
    %49 = vector.load %arg2[%c0_34, %48, %c3_35, %c0_36] : memref<1x20x20x128xbf16, #tpu.memory_space<vmem>>, vector<1x18x16x128xbf16>
    %50 = vector.shape_cast %49 : vector<1x18x16x128xbf16> to vector<18x16x128xbf16>
    %51 = vector.shape_cast %50 : vector<18x16x128xbf16> to vector<288x128xbf16>
    %c5 = arith.constant 5 : index
    %c0_37 = arith.constant 0 : index
    %c0_38 = arith.constant 0 : index
    %52 = vector.load %arg3[%c5, %c0_37, %c0_38] : memref<9x128x128xbf16, #tpu.memory_space<vmem>>, vector<1x128x128xbf16>
    %53 = vector.shape_cast %52 : vector<1x128x128xbf16> to vector<128x128xbf16>
    %cst_39 = arith.constant dense<0.000000e+00> : vector<288x128xf32>
    %54 = tpu.matmul %51, %53, %cst_39 {dimension_numbers = #tpu.dot_dimension_numbers<[1], [0], [0], [1], [0, 0, 1, 1], [], []>} : vector<288x128xbf16>, vector<128x128xbf16>, vector<288x128xf32> -> vector<288x128xf32>
    %55 = arith.addf %46, %54 : vector<288x128xf32>
    %c2_i32 = arith.constant 2 : i32
    %56 = arith.addi %0, %c2_i32 : i32
    %c0_40 = arith.constant 0 : index
    %57 = arith.index_cast %56 : i32 to index
    %c1_41 = arith.constant 1 : index
    %c0_42 = arith.constant 0 : index
    %58 = vector.load %arg2[%c0_40, %57, %c1_41, %c0_42] : memref<1x20x20x128xbf16, #tpu.memory_space<vmem>>, vector<1x18x16x128xbf16>
    %59 = vector.shape_cast %58 : vector<1x18x16x128xbf16> to vector<18x16x128xbf16>
    %60 = vector.shape_cast %59 : vector<18x16x128xbf16> to vector<288x128xbf16>
    %c6 = arith.constant 6 : index
    %c0_43 = arith.constant 0 : index
    %c0_44 = arith.constant 0 : index
    %61 = vector.load %arg3[%c6, %c0_43, %c0_44] : memref<9x128x128xbf16, #tpu.memory_space<vmem>>, vector<1x128x128xbf16>
    %62 = vector.shape_cast %61 : vector<1x128x128xbf16> to vector<128x128xbf16>
    %cst_45 = arith.constant dense<0.000000e+00> : vector<288x128xf32>
    %63 = tpu.matmul %60, %62, %cst_45 {dimension_numbers = #tpu.dot_dimension_numbers<[1], [0], [0], [1], [0, 0, 1, 1], [], []>} : vector<288x128xbf16>, vector<128x128xbf16>, vector<288x128xf32> -> vector<288x128xf32>
    %64 = arith.addf %55, %63 : vector<288x128xf32>
    %c2_i32_46 = arith.constant 2 : i32
    %65 = arith.addi %0, %c2_i32_46 : i32
    %c0_47 = arith.constant 0 : index
    %66 = arith.index_cast %65 : i32 to index
    %c2_48 = arith.constant 2 : index
    %c0_49 = arith.constant 0 : index
    %67 = vector.load %arg2[%c0_47, %66, %c2_48, %c0_49] : memref<1x20x20x128xbf16, #tpu.memory_space<vmem>>, vector<1x18x16x128xbf16>
    %68 = vector.shape_cast %67 : vector<1x18x16x128xbf16> to vector<18x16x128xbf16>
    %69 = vector.shape_cast %68 : vector<18x16x128xbf16> to vector<288x128xbf16>
    %c7 = arith.constant 7 : index
    %c0_50 = arith.constant 0 : index
    %c0_51 = arith.constant 0 : index
    %70 = vector.load %arg3[%c7, %c0_50, %c0_51] : memref<9x128x128xbf16, #tpu.memory_space<vmem>>, vector<1x128x128xbf16>
    %71 = vector.shape_cast %70 : vector<1x128x128xbf16> to vector<128x128xbf16>
    %cst_52 = arith.constant dense<0.000000e+00> : vector<288x128xf32>
    %72 = tpu.matmul %69, %71, %cst_52 {dimension_numbers = #tpu.dot_dimension_numbers<[1], [0], [0], [1], [0, 0, 1, 1], [], []>} : vector<288x128xbf16>, vector<128x128xbf16>, vector<288x128xf32> -> vector<288x128xf32>
    %73 = arith.addf %64, %72 : vector<288x128xf32>
    %c2_i32_53 = arith.constant 2 : i32
    %74 = arith.addi %0, %c2_i32_53 : i32
    %c0_54 = arith.constant 0 : index
    %75 = arith.index_cast %74 : i32 to index
    %c3_55 = arith.constant 3 : index
    %c0_56 = arith.constant 0 : index
    %76 = vector.load %arg2[%c0_54, %75, %c3_55, %c0_56] : memref<1x20x20x128xbf16, #tpu.memory_space<vmem>>, vector<1x18x16x128xbf16>
    %77 = vector.shape_cast %76 : vector<1x18x16x128xbf16> to vector<18x16x128xbf16>
    %78 = vector.shape_cast %77 : vector<18x16x128xbf16> to vector<288x128xbf16>
    %c8 = arith.constant 8 : index
    %c0_57 = arith.constant 0 : index
    %c0_58 = arith.constant 0 : index
    %79 = vector.load %arg3[%c8, %c0_57, %c0_58] : memref<9x128x128xbf16, #tpu.memory_space<vmem>>, vector<1x128x128xbf16>
    %80 = vector.shape_cast %79 : vector<1x128x128xbf16> to vector<128x128xbf16>
    %cst_59 = arith.constant dense<0.000000e+00> : vector<288x128xf32>
    %81 = tpu.matmul %78, %80, %cst_59 {dimension_numbers = #tpu.dot_dimension_numbers<[1], [0], [0], [1], [0, 0, 1, 1], [], []>} : vector<288x128xbf16>, vector<128x128xbf16>, vector<288x128xf32> -> vector<288x128xf32>
    %82 = arith.addf %73, %81 : vector<288x128xf32>
    %c0_60 = arith.constant 0 : index
    %c0_61 = arith.constant 0 : index
    %83 = vector.load %arg4[%c0_60, %c0_61] : memref<1x128xf32, #tpu.memory_space<vmem>>, vector<1x128xf32>
    %84 = vector.broadcast %83 : vector<1x128xf32> to vector<288x128xf32>
    %85 = arith.addf %82, %84 : vector<288x128xf32>
    %cst_62 = arith.constant 0.000000e+00 : f32
    %86 = vector.broadcast %cst_62 : f32 to vector<288x128xf32>
    %87 = arith.maximumf %85, %86 : vector<288x128xf32>
    %cst_63 = arith.constant 0.000000e+00 : bf16
    %88 = vector.broadcast %cst_63 : bf16 to vector<18x1x128xbf16>
    %c0_64 = arith.constant 0 : index
    %c7_65 = arith.constant 7 : index
    %c0_66 = arith.constant 0 : index
    %89 = vector.load %arg9[%c0_64, %c7_65, %c0_66] : memref<18x25x128xbf16, #tpu.memory_space<vmem>>, vector<18x1x128xbf16>
    tpu.vector_store %arg9[%c0_64, %c7_65, %c0_66], %88 {strides = array<i32>} : memref<18x25x128xbf16, #tpu.memory_space<vmem>>, vector<18x1x128xbf16>,
    %cst_67 = arith.constant 0.000000e+00 : bf16
    %90 = vector.broadcast %cst_67 : bf16 to vector<18x1x128xbf16>
    %c0_68 = arith.constant 0 : index
    %c24 = arith.constant 24 : index
    %c0_69 = arith.constant 0 : index
    %91 = vector.load %arg9[%c0_68, %c24, %c0_69] : memref<18x25x128xbf16, #tpu.memory_space<vmem>>, vector<18x1x128xbf16>
    tpu.vector_store %arg9[%c0_68, %c24, %c0_69], %90 {strides = array<i32>} : memref<18x25x128xbf16, #tpu.memory_space<vmem>>, vector<18x1x128xbf16>,
    %92 = vector.shape_cast %87 : vector<288x128xf32> to vector<18x16x128xf32>
    %93 = arith.truncf %92 : vector<18x16x128xf32> to vector<18x16x128xbf16>
    %c0_70 = arith.constant 0 : index
    %c8_71 = arith.constant 8 : index
    %c0_72 = arith.constant 0 : index
    %94 = vector.load %arg9[%c0_70, %c8_71, %c0_72] : memref<18x25x128xbf16, #tpu.memory_space<vmem>>, vector<18x16x128xbf16>
    tpu.vector_store %arg9[%c0_70, %c8_71, %c0_72], %93 {strides = array<i32>} : memref<18x25x128xbf16, #tpu.memory_space<vmem>>, vector<18x16x128xbf16>,
    %c0_i32_73 = arith.constant 0 : i32
    %95 = arith.cmpi eq, %arg1, %c0_i32_73 : i32
    %96 = arith.extui %95 : i1 to i32
    %c0_i32_74 = arith.constant 0 : i32
    %97 = arith.cmpi ne, %96, %c0_i32_74 : i32
    scf.if %97 {
      %cst_154 = arith.constant 0.000000e+00 : bf16
      %173 = vector.broadcast %cst_154 : bf16 to vector<1x25x128xbf16>
      %c0_155 = arith.constant 0 : index
      %c0_156 = arith.constant 0 : index
      %c0_157 = arith.constant 0 : index
      %174 = vector.load %arg9[%c0_155, %c0_156, %c0_157] : memref<18x25x128xbf16, #tpu.memory_space<vmem>>, vector<1x25x128xbf16>
      tpu.vector_store %arg9[%c0_155, %c0_156, %c0_157], %173 {strides = array<i32>} : memref<18x25x128xbf16, #tpu.memory_space<vmem>>, vector<1x25x128xbf16>,
    } else {
    }
    %c0_i32_75 = arith.constant 0 : i32
    %98 = arith.cmpi eq, %arg1, %c0_i32_75 : i32
    %99 = arith.extui %98 : i1 to i32
    %c0_i32_76 = arith.constant 0 : i32
    %100 = arith.cmpi ne, %99, %c0_i32_76 : i32
    scf.if %100 {
      %cst_154 = arith.constant 0.000000e+00 : bf16
      %173 = vector.broadcast %cst_154 : bf16 to vector<1x25x128xbf16>
      %c17 = arith.constant 17 : index
      %c0_155 = arith.constant 0 : index
      %c0_156 = arith.constant 0 : index
      %174 = vector.load %arg9[%c17, %c0_155, %c0_156] : memref<18x25x128xbf16, #tpu.memory_space<vmem>>, vector<1x25x128xbf16>
      tpu.vector_store %arg9[%c17, %c0_155, %c0_156], %173 {strides = array<i32>} : memref<18x25x128xbf16, #tpu.memory_space<vmem>>, vector<1x25x128xbf16>,
    } else {
    }
    %cst_77 = arith.constant 0.000000e+00 : f32
    %101 = vector.broadcast %cst_77 : f32 to vector<256x128xf32>
    %c0_78 = arith.constant 0 : index
    %c7_79 = arith.constant 7 : index
    %c0_80 = arith.constant 0 : index
    %102 = vector.load %arg9[%c0_78, %c7_79, %c0_80] : memref<18x25x128xbf16, #tpu.memory_space<vmem>>, vector<16x16x128xbf16>
    %103 = vector.shape_cast %102 : vector<16x16x128xbf16> to vector<256x128xbf16>
    %c0_81 = arith.constant 0 : index
    %c0_82 = arith.constant 0 : index
    %c0_83 = arith.constant 0 : index
    %104 = vector.load %arg5[%c0_81, %c0_82, %c0_83] : memref<9x128x128xbf16, #tpu.memory_space<vmem>>, vector<1x128x128xbf16>
    %105 = vector.shape_cast %104 : vector<1x128x128xbf16> to vector<128x128xbf16>
    %cst_84 = arith.constant dense<0.000000e+00> : vector<256x128xf32>
    %106 = tpu.matmul %103, %105, %cst_84 {dimension_numbers = #tpu.dot_dimension_numbers<[1], [0], [0], [1], [0, 0, 1, 1], [], []>} : vector<256x128xbf16>, vector<128x128xbf16>, vector<256x128xf32> -> vector<256x128xf32>
    %107 = arith.addf %101, %106 : vector<256x128xf32>
    %c0_85 = arith.constant 0 : index
    %c8_86 = arith.constant 8 : index
    %c0_87 = arith.constant 0 : index
    %108 = vector.load %arg9[%c0_85, %c8_86, %c0_87] : memref<18x25x128xbf16, #tpu.memory_space<vmem>>, vector<16x16x128xbf16>
    %109 = vector.shape_cast %108 : vector<16x16x128xbf16> to vector<256x128xbf16>
    %c1_88 = arith.constant 1 : index
    %c0_89 = arith.constant 0 : index
    %c0_90 = arith.constant 0 : index
    %110 = vector.load %arg5[%c1_88, %c0_89, %c0_90] : memref<9x128x128xbf16, #tpu.memory_space<vmem>>, vector<1x128x128xbf16>
    %111 = vector.shape_cast %110 : vector<1x128x128xbf16> to vector<128x128xbf16>
    %cst_91 = arith.constant dense<0.000000e+00> : vector<256x128xf32>
    %112 = tpu.matmul %109, %111, %cst_91 {dimension_numbers = #tpu.dot_dimension_numbers<[1], [0], [0], [1], [0, 0, 1, 1], [], []>} : vector<256x128xbf16>, vector<128x128xbf16>, vector<256x128xf32> -> vector<256x128xf32>
    %113 = arith.addf %107, %112 : vector<256x128xf32>
    %c0_92 = arith.constant 0 : index
    %c9 = arith.constant 9 : index
    %c0_93 = arith.constant 0 : index
    %114 = vector.load %arg9[%c0_92, %c9, %c0_93] : memref<18x25x128xbf16, #tpu.memory_space<vmem>>, vector<16x16x128xbf16>
    %115 = vector.shape_cast %114 : vector<16x16x128xbf16> to vector<256x128xbf16>
    %c2_94 = arith.constant 2 : index
    %c0_95 = arith.constant 0 : index
    %c0_96 = arith.constant 0 : index
    %116 = vector.load %arg5[%c2_94, %c0_95, %c0_96] : memref<9x128x128xbf16, #tpu.memory_space<vmem>>, vector<1x128x128xbf16>
    %117 = vector.shape_cast %116 : vector<1x128x128xbf16> to vector<128x128xbf16>
    %cst_97 = arith.constant dense<0.000000e+00> : vector<256x128xf32>
    %118 = tpu.matmul %115, %117, %cst_97 {dimension_numbers = #tpu.dot_dimension_numbers<[1], [0], [0], [1], [0, 0, 1, 1], [], []>} : vector<256x128xbf16>, vector<128x128xbf16>, vector<256x128xf32> -> vector<256x128xf32>
    %119 = arith.addf %113, %118 : vector<256x128xf32>
    %c1_98 = arith.constant 1 : index
    %c7_99 = arith.constant 7 : index
    %c0_100 = arith.constant 0 : index
    %120 = vector.load %arg9[%c1_98, %c7_99, %c0_100] : memref<18x25x128xbf16, #tpu.memory_space<vmem>>, vector<16x16x128xbf16>
    %121 = vector.shape_cast %120 : vector<16x16x128xbf16> to vector<256x128xbf16>
    %c3_101 = arith.constant 3 : index
    %c0_102 = arith.constant 0 : index
    %c0_103 = arith.constant 0 : index
    %122 = vector.load %arg5[%c3_101, %c0_102, %c0_103] : memref<9x128x128xbf16, #tpu.memory_space<vmem>>, vector<1x128x128xbf16>
    %123 = vector.shape_cast %122 : vector<1x128x128xbf16> to vector<128x128xbf16>
    %cst_104 = arith.constant dense<0.000000e+00> : vector<256x128xf32>
    %124 = tpu.matmul %121, %123, %cst_104 {dimension_numbers = #tpu.dot_dimension_numbers<[1], [0], [0], [1], [0, 0, 1, 1], [], []>} : vector<256x128xbf16>, vector<128x128xbf16>, vector<256x128xf32> -> vector<256x128xf32>
    %125 = arith.addf %119, %124 : vector<256x128xf32>
    %c1_105 = arith.constant 1 : index
    %c8_106 = arith.constant 8 : index
    %c0_107 = arith.constant 0 : index
    %126 = vector.load %arg9[%c1_105, %c8_106, %c0_107] : memref<18x25x128xbf16, #tpu.memory_space<vmem>>, vector<16x16x128xbf16>
    %127 = vector.shape_cast %126 : vector<16x16x128xbf16> to vector<256x128xbf16>
    %c4_108 = arith.constant 4 : index
    %c0_109 = arith.constant 0 : index
    %c0_110 = arith.constant 0 : index
    %128 = vector.load %arg5[%c4_108, %c0_109, %c0_110] : memref<9x128x128xbf16, #tpu.memory_space<vmem>>, vector<1x128x128xbf16>
    %129 = vector.shape_cast %128 : vector<1x128x128xbf16> to vector<128x128xbf16>
    %cst_111 = arith.constant dense<0.000000e+00> : vector<256x128xf32>
    %130 = tpu.matmul %127, %129, %cst_111 {dimension_numbers = #tpu.dot_dimension_numbers<[1], [0], [0], [1], [0, 0, 1, 1], [], []>} : vector<256x128xbf16>, vector<128x128xbf16>, vector<256x128xf32> -> vector<256x128xf32>
    %131 = arith.addf %125, %130 : vector<256x128xf32>
    %c1_112 = arith.constant 1 : index
    %c9_113 = arith.constant 9 : index
    %c0_114 = arith.constant 0 : index
    %132 = vector.load %arg9[%c1_112, %c9_113, %c0_114] : memref<18x25x128xbf16, #tpu.memory_space<vmem>>, vector<16x16x128xbf16>
    %133 = vector.shape_cast %132 : vector<16x16x128xbf16> to vector<256x128xbf16>
    %c5_115 = arith.constant 5 : index
    %c0_116 = arith.constant 0 : index
    %c0_117 = arith.constant 0 : index
    %134 = vector.load %arg5[%c5_115, %c0_116, %c0_117] : memref<9x128x128xbf16, #tpu.memory_space<vmem>>, vector<1x128x128xbf16>
    %135 = vector.shape_cast %134 : vector<1x128x128xbf16> to vector<128x128xbf16>
    %cst_118 = arith.constant dense<0.000000e+00> : vector<256x128xf32>
    %136 = tpu.matmul %133, %135, %cst_118 {dimension_numbers = #tpu.dot_dimension_numbers<[1], [0], [0], [1], [0, 0, 1, 1], [], []>} : vector<256x128xbf16>, vector<128x128xbf16>, vector<256x128xf32> -> vector<256x128xf32>
    %137 = arith.addf %131, %136 : vector<256x128xf32>
    %c2_119 = arith.constant 2 : index
    %c7_120 = arith.constant 7 : index
    %c0_121 = arith.constant 0 : index
    %138 = vector.load %arg9[%c2_119, %c7_120, %c0_121] : memref<18x25x128xbf16, #tpu.memory_space<vmem>>, vector<16x16x128xbf16>
    %139 = vector.shape_cast %138 : vector<16x16x128xbf16> to vector<256x128xbf16>
    %c6_122 = arith.constant 6 : index
    %c0_123 = arith.constant 0 : index
    %c0_124 = arith.constant 0 : index
    %140 = vector.load %arg5[%c6_122, %c0_123, %c0_124] : memref<9x128x128xbf16, #tpu.memory_space<vmem>>, vector<1x128x128xbf16>
    %141 = vector.shape_cast %140 : vector<1x128x128xbf16> to vector<128x128xbf16>
    %cst_125 = arith.constant dense<0.000000e+00> : vector<256x128xf32>
    %142 = tpu.matmul %139, %141, %cst_125 {dimension_numbers = #tpu.dot_dimension_numbers<[1], [0], [0], [1], [0, 0, 1, 1], [], []>} : vector<256x128xbf16>, vector<128x128xbf16>, vector<256x128xf32> -> vector<256x128xf32>
    %143 = arith.addf %137, %142 : vector<256x128xf32>
    %c2_126 = arith.constant 2 : index
    %c8_127 = arith.constant 8 : index
    %c0_128 = arith.constant 0 : index
    %144 = vector.load %arg9[%c2_126, %c8_127, %c0_128] : memref<18x25x128xbf16, #tpu.memory_space<vmem>>, vector<16x16x128xbf16>
    %145 = vector.shape_cast %144 : vector<16x16x128xbf16> to vector<256x128xbf16>
    %c7_129 = arith.constant 7 : index
    %c0_130 = arith.constant 0 : index
    %c0_131 = arith.constant 0 : index
    %146 = vector.load %arg5[%c7_129, %c0_130, %c0_131] : memref<9x128x128xbf16, #tpu.memory_space<vmem>>, vector<1x128x128xbf16>
    %147 = vector.shape_cast %146 : vector<1x128x128xbf16> to vector<128x128xbf16>
    %cst_132 = arith.constant dense<0.000000e+00> : vector<256x128xf32>
    %148 = tpu.matmul %145, %147, %cst_132 {dimension_numbers = #tpu.dot_dimension_numbers<[1], [0], [0], [1], [0, 0, 1, 1], [], []>} : vector<256x128xbf16>, vector<128x128xbf16>, vector<256x128xf32> -> vector<256x128xf32>
    %149 = arith.addf %143, %148 : vector<256x128xf32>
    %c2_133 = arith.constant 2 : index
    %c9_134 = arith.constant 9 : index
    %c0_135 = arith.constant 0 : index
    %150 = vector.load %arg9[%c2_133, %c9_134, %c0_135] : memref<18x25x128xbf16, #tpu.memory_space<vmem>>, vector<16x16x128xbf16>
    %151 = vector.shape_cast %150 : vector<16x16x128xbf16> to vector<256x128xbf16>
    %c8_136 = arith.constant 8 : index
    %c0_137 = arith.constant 0 : index
    %c0_138 = arith.constant 0 : index
    %152 = vector.load %arg5[%c8_136, %c0_137, %c0_138] : memref<9x128x128xbf16, #tpu.memory_space<vmem>>, vector<1x128x128xbf16>
    %153 = vector.shape_cast %152 : vector<1x128x128xbf16> to vector<128x128xbf16>
    %cst_139 = arith.constant dense<0.000000e+00> : vector<256x128xf32>
    %154 = tpu.matmul %151, %153, %cst_139 {dimension_numbers = #tpu.dot_dimension_numbers<[1], [0], [0], [1], [0, 0, 1, 1], [], []>} : vector<256x128xbf16>, vector<128x128xbf16>, vector<256x128xf32> -> vector<256x128xf32>
    %155 = arith.addf %149, %154 : vector<256x128xf32>
    %c0_140 = arith.constant 0 : index
    %c0_141 = arith.constant 0 : index
    %156 = vector.load %arg6[%c0_140, %c0_141] : memref<1x128xf32, #tpu.memory_space<vmem>>, vector<1x128xf32>
    %157 = vector.broadcast %156 : vector<1x128xf32> to vector<256x128xf32>
    %158 = arith.addf %155, %157 : vector<256x128xf32>
    %c2_i32_142 = arith.constant 2 : i32
    %159 = arith.addi %0, %c2_i32_142 : i32
    %c0_143 = arith.constant 0 : index
    %160 = arith.index_cast %159 : i32 to index
    %c2_144 = arith.constant 2 : index
    %c0_145 = arith.constant 0 : index
    %161 = vector.load %arg2[%c0_143, %160, %c2_144, %c0_145] : memref<1x20x20x128xbf16, #tpu.memory_space<vmem>>, vector<1x16x16x128xbf16>
    %162 = vector.shape_cast %161 : vector<1x16x16x128xbf16> to vector<16x16x128xbf16>
    %163 = vector.shape_cast %162 : vector<16x16x128xbf16> to vector<256x128xbf16>
    %c0_146 = arith.constant 0 : index
    %c0_147 = arith.constant 0 : index
    %164 = vector.load %arg7[%c0_146, %c0_147] : memref<128x128xbf16, #tpu.memory_space<vmem>>, vector<128x128xbf16>
    %cst_148 = arith.constant dense<0.000000e+00> : vector<256x128xf32>
    %165 = tpu.matmul %163, %164, %cst_148 {dimension_numbers = #tpu.dot_dimension_numbers<[1], [0], [0], [1], [0, 0, 1, 1], [], []>} : vector<256x128xbf16>, vector<128x128xbf16>, vector<256x128xf32> -> vector<256x128xf32>
    %166 = arith.addf %158, %165 : vector<256x128xf32>
    %cst_149 = arith.constant 0.000000e+00 : f32
    %167 = vector.broadcast %cst_149 : f32 to vector<256x128xf32>
    %168 = arith.maximumf %166, %167 : vector<256x128xf32>
    %169 = vector.shape_cast %168 : vector<256x128xf32> to vector<16x16x128xf32>
    %c0_150 = arith.constant 0 : index
    %c0_151 = arith.constant 0 : index
    %c0_152 = arith.constant 0 : index
    %c0_153 = arith.constant 0 : index
    %170 = vector.load %arg8[%c0_150, %c0_151, %c0_152, %c0_153] : memref<1x16x16x128xf32, #tpu.memory_space<vmem>>, vector<1x16x16x128xf32>
    %171 = vector.shape_cast %170 : vector<1x16x16x128xf32> to vector<16x16x128xf32>
    %172 = vector.shape_cast %169 : vector<16x16x128xf32> to vector<1x16x16x128xf32>
    tpu.vector_store %arg8[%c0_150, %c0_151, %c0_152, %c0_153], %172 {strides = array<i32>} : memref<1x16x16x128xf32, #tpu.memory_space<vmem>>, vector<1x16x16x128xf32>,
    return
  }
  func.func @transform_0(%arg0: i32, %arg1: i32) -> (i32, i32, i32, i32) {
    %c0_i32 = arith.constant 0 : i32
    %c0_i32_0 = arith.constant 0 : i32
    %c0_i32_1 = arith.constant 0 : i32
    %c0_i32_2 = arith.constant 0 : i32
    return %arg0, %c0_i32, %c0_i32_0, %c0_i32_1 : i32, i32, i32, i32
  }
  func.func @transform_1(%arg0: i32, %arg1: i32) -> (i32, i32, i32) {
    %c0_i32 = arith.constant 0 : i32
    %c0_i32_0 = arith.constant 0 : i32
    %c0_i32_1 = arith.constant 0 : i32
    %c0_i32_2 = arith.constant 0 : i32
    return %c0_i32, %c0_i32_0, %c0_i32_1 : i32, i32, i32
  }
  func.func @transform_2(%arg0: i32, %arg1: i32) -> (i32, i32) {
    %c0_i32 = arith.constant 0 : i32
    %c0_i32_0 = arith.constant 0 : i32
    %c0_i32_1 = arith.constant 0 : i32
    return %c0_i32, %c0_i32_0 : i32, i32
  }
  func.func @transform_3(%arg0: i32, %arg1: i32) -> (i32, i32, i32) {
    %c0_i32 = arith.constant 0 : i32
    %c0_i32_0 = arith.constant 0 : i32
    %c0_i32_1 = arith.constant 0 : i32
    %c0_i32_2 = arith.constant 0 : i32
    return %c0_i32, %c0_i32_0, %c0_i32_1 : i32, i32, i32
  }
  func.func @transform_4(%arg0: i32, %arg1: i32) -> (i32, i32) {
    %c0_i32 = arith.constant 0 : i32
    %c0_i32_0 = arith.constant 0 : i32
    %c0_i32_1 = arith.constant 0 : i32
    return %c0_i32, %c0_i32_0 : i32, i32
  }
  func.func @transform_5(%arg0: i32, %arg1: i32) -> (i32, i32) {
    %c0_i32 = arith.constant 0 : i32
    %c0_i32_0 = arith.constant 0 : i32
    %c0_i32_1 = arith.constant 0 : i32
    return %c0_i32, %c0_i32_0 : i32, i32
  }
  func.func @transform_6(%arg0: i32, %arg1: i32) -> (i32, i32, i32, i32) {
    %c0_i32 = arith.constant 0 : i32
    %c0_i32_0 = arith.constant 0 : i32
    %c0_i32_1 = arith.constant 0 : i32
    return %arg0, %arg1, %c0_i32, %c0_i32_0 : i32, i32, i32, i32
  }
}

</mosaic_0001>

<llo_original>
// kernel: basic_block_forward.1
$region0: #{basic_block_forward.1}
  #allocation0 [shape = 'u32[]', space=smem, size = 0x4, offset = 0x4, fixed_abs, tag = 'smem constant byte address 0x4 - core index']
  #allocation1 [shape = 'u32[144,128]{1,0:T(1,128)}', space=vmem, size = 0x12000, scoped, tag = 'internal scratch']
  #allocation2 [shape = 'bf16[18,25,128]{2,1,0:T(8,128)(2,1)}', space=vmem, size = 0x24000, scoped, tag = 'scratch operand']
  %s0 = inlined_call_operand.vmem [shape: bf16[2,20,20,128], index: 0, kind: input, shape index: {}]
  %s1 = inlined_call_operand.vmem [shape: bf16[9,128,128], index: 1, kind: input, shape index: {}]
  %s2 = inlined_call_operand.vmem [shape: f32[1,128], index: 2, kind: input, shape index: {}]
  %s3 = inlined_call_operand.vmem [shape: bf16[9,128,128], index: 3, kind: input, shape index: {}]
  %s4 = inlined_call_operand.vmem [shape: f32[1,128], index: 4, kind: input, shape index: {}]
  %s5 = inlined_call_operand.vmem [shape: bf16[128,128], index: 5, kind: input, shape index: {}]
  %s6 = inlined_call_operand.vmem [shape: f32[2,16,16,128], index: 6, kind: output, shape index: {}]
  %s7 = sld [smem:[#allocation0]]
  $region61: #{basic_block_forward.1} parent=0
    _
  %s9 = ssub.s32 1, %s7
  %s10 = scalar_select 0, %s9, %s7
  loop: start=0, step=1, limit=4
  $region2: #{basic_block_forward.1} parent=0 // loop_pre_header
    _
  $region3: #{basic_block_forward.1} parent=0 // loop_header
    %s12 = sphi 0, %s16
    %p13 = scmp.ge.s32.totalorder %s12, 4
    %s19 = sphi 0, %s31
    %s20 = sphi 0, %s27
    %s21 = sphi 0, %s19
    %s22 = sphi 0, %s20
    %s23 = sphi 0, %s21
    %s24 = sphi 0, %s22
    %s34 = sphi 0, %s36
    %s37 = sphi 0, %s34
    %s38 = sphi 0, %s37
    %s54 = sphi 0, %s38
    %s58 = sphi 0, %s58
    %s60 = sphi 0, %s58
    %s61 = sphi 0, %s60
    %s75 = sphi 0, %s61
    %s79 = sphi 0, %s79
    %s81 = sphi 0, %s79
    %s82 = sphi 0, %s81
    %s96 = sphi 0, %s82
    %s100 = sphi 0, %s100
    %s102 = sphi 0, %s100
    %s103 = sphi 0, %s102
    %s117 = sphi 0, %s103
    %s121 = sphi 0, %s121
    %s123 = sphi 0, %s121
    %s124 = sphi 0, %s123
    %s138 = sphi 0, %s124
    %s142 = sphi 0, %s142
    %s144 = sphi 0, %s142
    %s145 = sphi 0, %s144
    %s159 = sphi 0, %s145
    %s167 = sphi 0, %s169
    %s170 = sphi 0, %s167
    %s171 = sphi 0, %s170
    %s187 = sphi 0, %s171
  $region4: #{basic_block_forward.1} parent=0 // loop_header_branch
    %15 = sbr.rel (%p13) target = $region8
  $region5: #{basic_block_forward.1} parent=0 // loop_body
    %s17 = ssub.s32 %s12, 1
    %s18 = ssub.s32 %s12, 2
    %s25 = sadd.s32 1, %s20
    %p26 = scmp.ge.s32.totalorder %s25, 1
    %s27 = scalar_select %p26, 0, %s25
    %s28 = sadd.s32 1, %s19
    %s29 = scalar_select %p26, %s28, %s19
    %p30 = scmp.ge.s32.totalorder %s29, 2
    %s31 = scalar_select %p30, 0, %s29
    %s32 = ssub.s32 %s19, %s31
    %p33 = scmp.eq.s32.totalorder %s32, 0
    %s35 = sadd.s32 %s34, 1
    %s36 = scalar_select %p33, %s34, %s35
    %p39 = pneg %p33
    %p40 = scmp.eq.s32.totalorder %s12, 1
    %p41 = por %p39, %p40
    %p42 = scmp.ne.s32.totalorder %s34, %s37
    %p43 = scmp.eq.s32.totalorder %s12, 0
    %p44 = por %p42, %p43
    %p45 = scmp.ne.s32.totalorder %s34, %s37
    %p46 = scmp.eq.s32.totalorder %s17, 1
    %p47 = por %p45, %p46
    %p48 = scmp.ne.s32.totalorder %s37, %s38
    %p49 = scmp.eq.s32.totalorder %s17, 0
    %p50 = por %p48, %p49
    %p51 = scmp.ne.s32.totalorder %s37, %s38
    %p52 = scmp.eq.s32.totalorder %s18, 1
    %p53 = por %p51, %p52
    %p55 = scmp.ne.s32.totalorder %s38, %s54
    %p56 = scmp.eq.s32.totalorder %s18, 0
    %p57 = por %p55, %p56
    %s59 = sadd.s32 %s58, 1
    %p62 = scmp.eq.s32.totalorder %s12, 1
    %p63 = scmp.ne.s32.totalorder %s58, %s60
    %p64 = scmp.eq.s32.totalorder %s12, 0
    %p65 = por %p63, %p64
    %p66 = scmp.ne.s32.totalorder %s58, %s60
    %p67 = scmp.eq.s32.totalorder %s17, 1
    %p68 = por %p66, %p67
    %p69 = scmp.ne.s32.totalorder %s60, %s61
    %p70 = scmp.eq.s32.totalorder %s17, 0
    %p71 = por %p69, %p70
    %p72 = scmp.ne.s32.totalorder %s60, %s61
    %p73 = scmp.eq.s32.totalorder %s18, 1
    %p74 = por %p72, %p73
    %p76 = scmp.ne.s32.totalorder %s61, %s75
    %p77 = scmp.eq.s32.totalorder %s18, 0
    %p78 = por %p76, %p77
    %s80 = sadd.s32 %s79, 1
    %p83 = scmp.eq.s32.totalorder %s12, 1
    %p84 = scmp.ne.s32.totalorder %s79, %s81
    %p85 = scmp.eq.s32.totalorder %s12, 0
    %p86 = por %p84, %p85
    %p87 = scmp.ne.s32.totalorder %s79, %s81
    %p88 = scmp.eq.s32.totalorder %s17, 1
    %p89 = por %p87, %p88
    %p90 = scmp.ne.s32.totalorder %s81, %s82
    %p91 = scmp.eq.s32.totalorder %s17, 0
    %p92 = por %p90, %p91
    %p93 = scmp.ne.s32.totalorder %s81, %s82
    %p94 = scmp.eq.s32.totalorder %s18, 1
    %p95 = por %p93, %p94
    %p97 = scmp.ne.s32.totalorder %s82, %s96
    %p98 = scmp.eq.s32.totalorder %s18, 0
    %p99 = por %p97, %p98
    %s101 = sadd.s32 %s100, 1
    %p104 = scmp.eq.s32.totalorder %s12, 1
    %p105 = scmp.ne.s32.totalorder %s100, %s102
    %p106 = scmp.eq.s32.totalorder %s12, 0
    %p107 = por %p105, %p106
    %p108 = scmp.ne.s32.totalorder %s100, %s102
    %p109 = scmp.eq.s32.totalorder %s17, 1
    %p110 = por %p108, %p109
    %p111 = scmp.ne.s32.totalorder %s102, %s103
    %p112 = scmp.eq.s32.totalorder %s17, 0
    %p113 = por %p111, %p112
    %p114 = scmp.ne.s32.totalorder %s102, %s103
    %p115 = scmp.eq.s32.totalorder %s18, 1
    %p116 = por %p114, %p115
    %p118 = scmp.ne.s32.totalorder %s103, %s117
    %p119 = scmp.eq.s32.totalorder %s18, 0
    %p120 = por %p118, %p119
    %s122 = sadd.s32 %s121, 1
    %p125 = scmp.eq.s32.totalorder %s12, 1
    %p126 = scmp.ne.s32.totalorder %s121, %s123
    %p127 = scmp.eq.s32.totalorder %s12, 0
    %p128 = por %p126, %p127
    %p129 = scmp.ne.s32.totalorder %s121, %s123
    %p130 = scmp.eq.s32.totalorder %s17, 1
    %p131 = por %p129, %p130
    %p132 = scmp.ne.s32.totalorder %s123, %s124
    %p133 = scmp.eq.s32.totalorder %s17, 0
    %p134 = por %p132, %p133
    %p135 = scmp.ne.s32.totalorder %s123, %s124
    %p136 = scmp.eq.s32.totalorder %s18, 1
    %p137 = por %p135, %p136
    %p139 = scmp.ne.s32.totalorder %s124, %s138
    %p140 = scmp.eq.s32.totalorder %s18, 0
    %p141 = por %p139, %p140
    %s143 = sadd.s32 %s142, 1
    %p146 = scmp.eq.s32.totalorder %s12, 1
    %p147 = scmp.ne.s32.totalorder %s142, %s144
    %p148 = scmp.eq.s32.totalorder %s12, 0
    %p149 = por %p147, %p148
    %p150 = scmp.ne.s32.totalorder %s142, %s144
    %p151 = scmp.eq.s32.totalorder %s17, 1
    %p152 = por %p150, %p151
    %p153 = scmp.ne.s32.totalorder %s144, %s145
    %p154 = scmp.eq.s32.totalorder %s17, 0
    %p155 = por %p153, %p154
    %p156 = scmp.ne.s32.totalorder %s144, %s145
    %p157 = scmp.eq.s32.totalorder %s18, 1
    %p158 = por %p156, %p157
    %p160 = scmp.ne.s32.totalorder %s145, %s159
    %p161 = scmp.eq.s32.totalorder %s18, 0
    %p162 = por %p160, %p161
    %s163 = ssub.s32 %s19, %s31
    %s164 = ssub.s32 %s20, %s27
    %s165 = sor.u32 %s163, %s164
    %p166 = scmp.eq.s32.totalorder %s165, 0
    %s168 = sadd.s32 %s167, 1
    %s169 = scalar_select %p166, %s167, %s168
    %p172 = pneg %p166
    %p173 = scmp.eq.s32.totalorder %s12, 1
    %p174 = por %p172, %p173
    %p175 = scmp.ne.s32.totalorder %s167, %s170
    %p176 = scmp.eq.s32.totalorder %s12, 0
    %p177 = por %p175, %p176
    %p178 = scmp.ne.s32.totalorder %s167, %s170
    %p179 = scmp.eq.s32.totalorder %s17, 1
    %p180 = por %p178, %p179
    %p181 = scmp.ne.s32.totalorder %s170, %s171
    %p182 = scmp.eq.s32.totalorder %s17, 0
    %p183 = por %p181, %p182
    %p184 = scmp.ne.s32.totalorder %s170, %s171
    %p185 = scmp.eq.s32.totalorder %s18, 1
    %p186 = por %p184, %p185
    %p188 = scmp.ne.s32.totalorder %s171, %s187
    %p189 = scmp.eq.s32.totalorder %s18, 0
    %p190 = por %p188, %p189
    %p191 = scmp.le.s32.totalorder 1, %s12
    %p192 = scmp.lt.s32.totalorder %s12, 3
    %p193 = pnand %p191, %p192
    %p194 = pneg %p193
    // Predicated region
    $region9: #{basic_block_forward.1} parent=5 // pred_check
      _
    $region10: #{basic_block_forward.1} parent=5 // pred_check_branch
      %196 = sbr.rel (%p193) target = $region12
    $region11: #{basic_block_forward.1} parent=5 // pred_region
      %s197 = ssub.s32 %s12, 1
      // Predicated region
      $region13: #{basic_block_forward.1} parent=11 // pred_check
        %p198 = pneg %p71
      $region14: #{basic_block_forward.1} parent=11 // pred_check_branch
        %200 = sbr.rel (%p198) target = $region16
      $region15: #{basic_block_forward.1} parent=11 // pred_region
        _
      $region16: #{basic_block_forward.1} parent=11 // pred_fallthru
        _
      // Predicated region
      $region17: #{basic_block_forward.1} parent=11 // pred_check
        %p201 = pneg %p92
      $region18: #{basic_block_forward.1} parent=11 // pred_check_branch
        %203 = sbr.rel (%p201) target = $region20
      $region19: #{basic_block_forward.1} parent=11 // pred_region
        _
      $region20: #{basic_block_forward.1} parent=11 // pred_fallthru
        _
      // Predicated region
      $region21: #{basic_block_forward.1} parent=11 // pred_check
        %p204 = pneg %p113
      $region22: #{basic_block_forward.1} parent=11 // pred_check_branch
        %206 = sbr.rel (%p204) target = $region24
      $region23: #{basic_block_forward.1} parent=11 // pred_region
        _
      $region24: #{basic_block_forward.1} parent=11 // pred_fallthru
        _
      // Predicated region
      $region25: #{basic_block_forward.1} parent=11 // pred_check
        %p207 = pneg %p134
      $region26: #{basic_block_forward.1} parent=11 // pred_check_branch
        %209 = sbr.rel (%p207) target = $region28
      $region27: #{basic_block_forward.1} parent=11 // pred_region
        _
      $region28: #{basic_block_forward.1} parent=11 // pred_fallthru
        _
      // Predicated region
      $region29: #{basic_block_forward.1} parent=11 // pred_check
        %p210 = pneg %p155
      $region30: #{basic_block_forward.1} parent=11 // pred_check_branch
        %212 = sbr.rel (%p210) target = $region32
      $region31: #{basic_block_forward.1} parent=11 // pred_region
        _
      $region32: #{basic_block_forward.1} parent=11 // pred_fallthru
        _
    $region12: #{basic_block_forward.1} parent=5 // pred_fallthru
      _
    %p213 = scmp.lt.s32.totalorder %s12, 2
    // Predicated region
    $region33: #{basic_block_forward.1} parent=5 // pred_check
      %p214 = pneg %p213
    $region34: #{basic_block_forward.1} parent=5 // pred_check_branch
      %216 = sbr.rel (%p214) target = $region36
    $region35: #{basic_block_forward.1} parent=5 // pred_region
      // Predicated region
      $region37: #{basic_block_forward.1} parent=35 // pred_check
        %p217 = pneg %p44
      $region38: #{basic_block_forward.1} parent=35 // pred_check_branch
        %219 = sbr.rel (%p217) target = $region40
      $region39: #{basic_block_forward.1} parent=35 // pred_region
        %p220 = scmp.lt.s32.totalorder %s19, 1
        %s221 = scalar_select %p220, %s19, 1
        %s222 = smul.addr %s221, 60
        %s223 = smul.addr %s222, 4
        %s224 = scalar_lea.vmem %s0, %s223
      $region40: #{basic_block_forward.1} parent=35 // pred_fallthru
        _
    $region36: #{basic_block_forward.1} parent=5 // pred_fallthru
      _
    %p225 = scmp.le.s32.totalorder 1, %s12
    %p226 = scmp.lt.s32.totalorder %s12, 3
    %p227 = pnand %p225, %p226
    %p228 = pneg %p227
    // Predicated region
    $region41: #{basic_block_forward.1} parent=5 // pred_check
      _
    $region42: #{basic_block_forward.1} parent=5 // pred_check_branch
      %230 = sbr.rel (%p227) target = $region44
    $region43: #{basic_block_forward.1} parent=5 // pred_region
      %s231 = ssub.s32 %s12, 1
      %p232 = scmp.lt.s32.totalorder %s21, 1
      %s233 = scalar_select %p232, %s21, 1
      %s234 = smul.addr %s233, 60
      %s235 = smul.addr %s234, 4
      %s236 = scalar_lea.vmem %s0, %s235
      %p237 = pneg %p50
      %p238 = pneg %p47
      %p239 = pneg %p71
      %p240 = pneg %p68
      %p241 = pneg %p92
      %p242 = pneg %p89
      %p243 = pneg %p113
      %p244 = pneg %p110
      %p245 = pneg %p134
      %p246 = pneg %p131
      %p247 = pneg %p155
      %p248 = pneg %p152
      %p249 = pneg %p183
      %p250 = pneg %p180
      %s251 = smul.u32 16, %s22
      %p252 = scmp.lt.s32.totalorder %s21, 1
      %s253 = scalar_select %p252, %s21, 1
      %p254 = scmp.lt.s32.totalorder %s251, 15
      %s255 = scalar_select %p254, %s251, 15
      %s256 = smul.addr %s255, 2
      %s257 = smul.addr %s253, 32
      %s258 = sadd.s32 %s256, %s257
      %s259 = smul.addr %s258, 8
      %s260 = scalar_lea.vmem %s6, %s259
      %p261 = scmp.lt.s32.totalorder %s21, 1
      %s262 = scalar_select %p261, %s21, 1
      %s263 = smul.addr %s262, 60
      %s264 = smul.addr %s263, 4
      %s265 = scalar_lea.vmem %s0, %s264
      %s266 = smul.u32 16, %s22
      %p267 = scmp.lt.s32.totalorder %s21, 1
      %s268 = scalar_select %p267, %s21, 1
      %p269 = scmp.lt.s32.totalorder %s266, 15
      %s270 = scalar_select %p269, %s266, 15
      %s271 = smul.addr %s270, 2
      %s272 = smul.addr %s268, 32
      %s273 = sadd.s32 %s271, %s272
      %s274 = smul.addr %s273, 8
      %s275 = scalar_lea.vmem %s6, %s274
      %s276 = smul.u32 16, %s22
      %s278 = smul.u32 %s22, 16
      %s279 = smul.u32 %s278, 3
      %s280 = smul.addr %s279, 4
      %s281 = scalar_lea.vmem %s265, %s280
      %v282 = vld [vmem:[%s281] sm:$0xf]
      %v283 = vld [vmem:[%s281 + $0x4] sm:$0xf]
      %v284 = vld [vmem:[%s281 + $0x8] sm:$0x1]
      %v285 = vld [vmem:[%s281 + $0xc] sm:$0xf]
      %v286 = vld [vmem:[%s281 + $0x10] sm:$0xf]
      %v287 = vld [vmem:[%s281 + $0x14] sm:$0x1]
      %v288 = vld [vmem:[%s281 + $0x18] sm:$0xf]
      %v289 = vld [vmem:[%s281 + $0x1c] sm:$0xf]
      %v290 = vld [vmem:[%s281 + $0x20] sm:$0x1]
      %v291 = vld [vmem:[%s281 + $0x24] sm:$0xf]
      %v292 = vld [vmem:[%s281 + $0x28] sm:$0xf]
      %v293 = vld [vmem:[%s281 + $0x2c] sm:$0x1]
      %v294 = vld [vmem:[%s281 + $0x30] sm:$0xf]
      %v295 = vld [vmem:[%s281 + $0x34] sm:$0xf]
      %v296 = vld [vmem:[%s281 + $0x38] sm:$0x1]
      %v297 = vld [vmem:[%s281 + $0x3c] sm:$0xf]
      %v298 = vld [vmem:[%s281 + $0x40] sm:$0xf]
      %v299 = vld [vmem:[%s281 + $0x44] sm:$0x1]
      %v300 = vld [vmem:[%s281 + $0x48] sm:$0xf]
      %v301 = vld [vmem:[%s281 + $0x4c] sm:$0xf]
      %v302 = vld [vmem:[%s281 + $0x50] sm:$0x1]
      %v303 = vld [vmem:[%s281 + $0x54] sm:$0xf]
      %v304 = vld [vmem:[%s281 + $0x58] sm:$0xf]
      %v305 = vld [vmem:[%s281 + $0x5c] sm:$0x1]
      %v306 = vld [vmem:[%s281 + $0x60] sm:$0xf]
      %v307 = vld [vmem:[%s281 + $0x64] sm:$0xf]
      %v308 = vld [vmem:[%s281 + $0x68] sm:$0x1]
      %v309 = vld [vmem:[%s281 + $0x6c] sm:$0xf]
      %v310 = vld [vmem:[%s281 + $0x70] sm:$0xf]
      %v311 = vld [vmem:[%s281 + $0x74] sm:$0x1]
      %v312 = vld [vmem:[%s281 + $0x78] sm:$0xf]
      %v313 = vld [vmem:[%s281 + $0x7c] sm:$0xf]
      %v314 = vld [vmem:[%s281 + $0x80] sm:$0x1]
      %v315 = vld [vmem:[%s281 + $0x84] sm:$0xf]
      %v316 = vld [vmem:[%s281 + $0x88] sm:$0xf]
      %v317 = vld [vmem:[%s281 + $0x8c] sm:$0x1]
      %v318 = vld [vmem:[%s281 + $0x90] sm:$0xf]
      %v319 = vld [vmem:[%s281 + $0x94] sm:$0xf]
      %v320 = vld [vmem:[%s281 + $0x98] sm:$0x1]
      %v321 = vld [vmem:[%s281 + $0x9c] sm:$0xf]
      %v322 = vld [vmem:[%s281 + $0xa0] sm:$0xf]
      %v323 = vld [vmem:[%s281 + $0xa4] sm:$0x1]
      %v324 = vld [vmem:[%s281 + $0xa8] sm:$0xf]
      %v325 = vld [vmem:[%s281 + $0xac] sm:$0xf]
      %v326 = vld [vmem:[%s281 + $0xb0] sm:$0x1]
      %v327 = vld [vmem:[%s281 + $0xb4] sm:$0xf]
      %v328 = vld [vmem:[%s281 + $0xb8] sm:$0xf]
      %v329 = vld [vmem:[%s281 + $0xbc] sm:$0x1]
      %v330 = vld [vmem:[%s281 + $0xc0] sm:$0xf]
      %v331 = vld [vmem:[%s281 + $0xc4] sm:$0xf]
      %v332 = vld [vmem:[%s281 + $0xc8] sm:$0x1]
      %v333 = vld [vmem:[%s281 + $0xcc] sm:$0xf]
      %v334 = vld [vmem:[%s281 + $0xd0] sm:$0xf]
      %v335 = vld [vmem:[%s281 + $0xd4] sm:$0x1]
      %vm336 = vsmask.f32 3328
      %vm337 = vsmask.f32 7440
      %vm338 = vmor %vm336, %vm337
      %v340 = vshrl.u32 %v282, 16
      %v342 = vrot.slane %v340, 4
      %v343 = vshll.u32 %v282, 16
      %v345 = vrot.slane %v343, 5
      %v346 = vor.u32 %v342, %v345
      %v347 = vrot.slane %v346, 4
      %v349 = vshll.u32 %v283, 16
      %v351 = vrot.slane %v349, 5
      %v352 = vsel %vm338, %v347, %v351
      %v353 = vshrl.u32 %v283, 16
      %v355 = vrot.slane %v353, 4
      %v356 = vor.u32 %v355, %v351
      %v357 = vrot.slane %v356, 4
      %v359 = vshll.u32 %v284, 16
      %v361 = vrot.slane %v359, 5
      %v362 = vsel %vm338, %v357, %v361
      %v364 = vshrl.u32 %v285, 16
      %v366 = vrot.slane %v364, 4
      %v367 = vshll.u32 %v285, 16
      %v369 = vrot.slane %v367, 5
      %v370 = vor.u32 %v366, %v369
      %v371 = vrot.slane %v370, 4
      %v373 = vshll.u32 %v286, 16
      %v375 = vrot.slane %v373, 5
      %v376 = vsel %vm338, %v371, %v375
      %v377 = vshrl.u32 %v286, 16
      %v379 = vrot.slane %v377, 4
      %v380 = vor.u32 %v379, %v375
      %v381 = vrot.slane %v380, 4
      %v383 = vshll.u32 %v287, 16
      %v385 = vrot.slane %v383, 5
      %v386 = vsel %vm338, %v381, %v385
      %v388 = vshrl.u32 %v288, 16
      %v390 = vrot.slane %v388, 4
      %v391 = vshll.u32 %v288, 16
      %v393 = vrot.slane %v391, 5
      %v394 = vor.u32 %v390, %v393
      %v395 = vrot.slane %v394, 4
      %v397 = vshll.u32 %v289, 16
      %v399 = vrot.slane %v397, 5
      %v400 = vsel %vm338, %v395, %v399
      %v401 = vshrl.u32 %v289, 16
      %v403 = vrot.slane %v401, 4
      %v404 = vor.u32 %v403, %v399
      %v405 = vrot.slane %v404, 4
      %v407 = vshll.u32 %v290, 16
      %v409 = vrot.slane %v407, 5
      %v410 = vsel %vm338, %v405, %v409
      %v412 = vshrl.u32 %v291, 16
      %v414 = vrot.slane %v412, 4
      %v415 = vshll.u32 %v291, 16
      %v417 = vrot.slane %v415, 5
      %v418 = vor.u32 %v414, %v417
      %v419 = vrot.slane %v418, 4
      %v421 = vshll.u32 %v292, 16
      %v423 = vrot.slane %v421, 5
      %v424 = vsel %vm338, %v419, %v423
      %v425 = vshrl.u32 %v292, 16
      %v427 = vrot.slane %v425, 4
      %v428 = vor.u32 %v427, %v423
      %v429 = vrot.slane %v428, 4
      %v431 = vshll.u32 %v293, 16
      %v433 = vrot.slane %v431, 5
      %v434 = vsel %vm338, %v429, %v433
      %v436 = vshrl.u32 %v294, 16
      %v438 = vrot.slane %v436, 4
      %v439 = vshll.u32 %v294, 16
      %v441 = vrot.slane %v439, 5
      %v442 = vor.u32 %v438, %v441
      %v443 = vrot.slane %v442, 4
      %v445 = vshll.u32 %v295, 16
      %v447 = vrot.slane %v445, 5
      %v448 = vsel %vm338, %v443, %v447
      %v449 = vshrl.u32 %v295, 16
      %v451 = vrot.slane %v449, 4
      %v452 = vor.u32 %v451, %v447
      %v453 = vrot.slane %v452, 4
      %v455 = vshll.u32 %v296, 16
      %v457 = vrot.slane %v455, 5
      %v458 = vsel %vm338, %v453, %v457
      %v460 = vshrl.u32 %v297, 16
      %v462 = vrot.slane %v460, 4
      %v463 = vshll.u32 %v297, 16
      %v465 = vrot.slane %v463, 5
      %v466 = vor.u32 %v462, %v465
      %v467 = vrot.slane %v466, 4
      %v469 = vshll.u32 %v298, 16
      %v471 = vrot.slane %v469, 5
      %v472 = vsel %vm338, %v467, %v471
      %v473 = vshrl.u32 %v298, 16
      %v475 = vrot.slane %v473, 4
      %v476 = vor.u32 %v475, %v471
      %v477 = vrot.slane %v476, 4
      %v479 = vshll.u32 %v299, 16
      %v481 = vrot.slane %v479, 5
      %v482 = vsel %vm338, %v477, %v481
      %v484 = vshrl.u32 %v300, 16
      %v486 = vrot.slane %v484, 4
      %v487 = vshll.u32 %v300, 16
      %v489 = vrot.slane %v487, 5
      %v490 = vor.u32 %v486, %v489
      %v491 = vrot.slane %v490, 4
      %v493 = vshll.u32 %v301, 16
      %v495 = vrot.slane %v493, 5
      %v496 = vsel %vm338, %v491, %v495
      %v497 = vshrl.u32 %v301, 16
      %v499 = vrot.slane %v497, 4
      %v500 = vor.u32 %v499, %v495
      %v501 = vrot.slane %v500, 4
      %v503 = vshll.u32 %v302, 16
      %v505 = vrot.slane %v503, 5
      %v506 = vsel %vm338, %v501, %v505
      %v508 = vshrl.u32 %v303, 16
      %v510 = vrot.slane %v508, 4
      %v511 = vshll.u32 %v303, 16
      %v513 = vrot.slane %v511, 5
      %v514 = vor.u32 %v510, %v513
      %v515 = vrot.slane %v514, 4
      %v517 = vshll.u32 %v304, 16
      %v519 = vrot.slane %v517, 5
      %v520 = vsel %vm338, %v515, %v519
      %v521 = vshrl.u32 %v304, 16
      %v523 = vrot.slane %v521, 4
      %v524 = vor.u32 %v523, %v519
      %v525 = vrot.slane %v524, 4
      %v527 = vshll.u32 %v305, 16
      %v529 = vrot.slane %v527, 5
      %v530 = vsel %vm338, %v525, %v529
      %v532 = vshrl.u32 %v306, 16
      %v534 = vrot.slane %v532, 4
      %v535 = vshll.u32 %v306, 16
      %v537 = vrot.slane %v535, 5
      %v538 = vor.u32 %v534, %v537
      %v539 = vrot.slane %v538, 4
      %v541 = vshll.u32 %v307, 16
      %v543 = vrot.slane %v541, 5
      %v544 = vsel %vm338, %v539, %v543
      %v545 = vshrl.u32 %v307, 16
      %v547 = vrot.slane %v545, 4
      %v548 = vor.u32 %v547, %v543
      %v549 = vrot.slane %v548, 4
      %v551 = vshll.u32 %v308, 16
      %v553 = vrot.slane %v551, 5
      %v554 = vsel %vm338, %v549, %v553
      %v556 = vshrl.u32 %v309, 16
      %v558 = vrot.slane %v556, 4
      %v559 = vshll.u32 %v309, 16
      %v561 = vrot.slane %v559, 5
      %v562 = vor.u32 %v558, %v561
      %v563 = vrot.slane %v562, 4
      %v565 = vshll.u32 %v310, 16
      %v567 = vrot.slane %v565, 5
      %v568 = vsel %vm338, %v563, %v567
      %v569 = vshrl.u32 %v310, 16
      %v571 = vrot.slane %v569, 4
      %v572 = vor.u32 %v571, %v567
      %v573 = vrot.slane %v572, 4
      %v575 = vshll.u32 %v311, 16
      %v577 = vrot.slane %v575, 5
      %v578 = vsel %vm338, %v573, %v577
      %v580 = vshrl.u32 %v312, 16
      %v582 = vrot.slane %v580, 4
      %v583 = vshll.u32 %v312, 16
      %v585 = vrot.slane %v583, 5
      %v586 = vor.u32 %v582, %v585
      %v587 = vrot.slane %v586, 4
      %v589 = vshll.u32 %v313, 16
      %v591 = vrot.slane %v589, 5
      %v592 = vsel %vm338, %v587, %v591
      %v593 = vshrl.u32 %v313, 16
      %v595 = vrot.slane %v593, 4
      %v596 = vor.u32 %v595, %v591
      %v597 = vrot.slane %v596, 4
      %v599 = vshll.u32 %v314, 16
      %v601 = vrot.slane %v599, 5
      %v602 = vsel %vm338, %v597, %v601
      %v604 = vshrl.u32 %v315, 16
      %v606 = vrot.slane %v604, 4
      %v607 = vshll.u32 %v315, 16
      %v609 = vrot.slane %v607, 5
      %v610 = vor.u32 %v606, %v609
      %v611 = vrot.slane %v610, 4
      %v613 = vshll.u32 %v316, 16
      %v615 = vrot.slane %v613, 5
      %v616 = vsel %vm338, %v611, %v615
      %v617 = vshrl.u32 %v316, 16
      %v619 = vrot.slane %v617, 4
      %v620 = vor.u32 %v619, %v615
      %v621 = vrot.slane %v620, 4
      %v623 = vshll.u32 %v317, 16
      %v625 = vrot.slane %v623, 5
      %v626 = vsel %vm338, %v621, %v625
      %v628 = vshrl.u32 %v318, 16
      %v630 = vrot.slane %v628, 4
      %v631 = vshll.u32 %v318, 16
      %v633 = vrot.slane %v631, 5
      %v634 = vor.u32 %v630, %v633
      %v635 = vrot.slane %v634, 4
      %v637 = vshll.u32 %v319, 16
      %v639 = vrot.slane %v637, 5
      %v640 = vsel %vm338, %v635, %v639
      %v641 = vshrl.u32 %v319, 16
      %v643 = vrot.slane %v641, 4
      %v644 = vor.u32 %v643, %v639
      %v645 = vrot.slane %v644, 4
      %v647 = vshll.u32 %v320, 16
      %v649 = vrot.slane %v647, 5
      %v650 = vsel %vm338, %v645, %v649
      %v652 = vshrl.u32 %v321, 16
      %v654 = vrot.slane %v652, 4
      %v655 = vshll.u32 %v321, 16
      %v657 = vrot.slane %v655, 5
      %v658 = vor.u32 %v654, %v657
      %v659 = vrot.slane %v658, 4
      %v661 = vshll.u32 %v322, 16
      %v663 = vrot.slane %v661, 5
      %v664 = vsel %vm338, %v659, %v663
      %v665 = vshrl.u32 %v322, 16
      %v667 = vrot.slane %v665, 4
      %v668 = vor.u32 %v667, %v663
      %v669 = vrot.slane %v668, 4
      %v671 = vshll.u32 %v323, 16
      %v673 = vrot.slane %v671, 5
      %v674 = vsel %vm338, %v669, %v673
      %v676 = vshrl.u32 %v324, 16
      %v678 = vrot.slane %v676, 4
      %v679 = vshll.u32 %v324, 16
      %v681 = vrot.slane %v679, 5
      %v682 = vor.u32 %v678, %v681
      %v683 = vrot.slane %v682, 4
      %v685 = vshll.u32 %v325, 16
      %v687 = vrot.slane %v685, 5
      %v688 = vsel %vm338, %v683, %v687
      %v689 = vshrl.u32 %v325, 16
      %v691 = vrot.slane %v689, 4
      %v692 = vor.u32 %v691, %v687
      %v693 = vrot.slane %v692, 4
      %v695 = vshll.u32 %v326, 16
      %v697 = vrot.slane %v695, 5
      %v698 = vsel %vm338, %v693, %v697
      %v700 = vshrl.u32 %v327, 16
      %v702 = vrot.slane %v700, 4
      %v703 = vshll.u32 %v327, 16
      %v705 = vrot.slane %v703, 5
      %v706 = vor.u32 %v702, %v705
      %v707 = vrot.slane %v706, 4
      %v709 = vshll.u32 %v328, 16
      %v711 = vrot.slane %v709, 5
      %v712 = vsel %vm338, %v707, %v711
      %v713 = vshrl.u32 %v328, 16
      %v715 = vrot.slane %v713, 4
      %v716 = vor.u32 %v715, %v711
      %v717 = vrot.slane %v716, 4
      %v719 = vshll.u32 %v329, 16
      %v721 = vrot.slane %v719, 5
      %v722 = vsel %vm338, %v717, %v721
      %v724 = vshrl.u32 %v330, 16
      %v726 = vrot.slane %v724, 4
      %v727 = vshll.u32 %v330, 16
      %v729 = vrot.slane %v727, 5
      %v730 = vor.u32 %v726, %v729
      %v731 = vrot.slane %v730, 4
      %v733 = vshll.u32 %v331, 16
      %v735 = vrot.slane %v733, 5
      %v736 = vsel %vm338, %v731, %v735
      %v737 = vshrl.u32 %v331, 16
      %v739 = vrot.slane %v737, 4
      %v740 = vor.u32 %v739, %v735
      %v741 = vrot.slane %v740, 4
      %v743 = vshll.u32 %v332, 16
      %v745 = vrot.slane %v743, 5
      %v746 = vsel %vm338, %v741, %v745
      %v748 = vshrl.u32 %v333, 16
      %v750 = vrot.slane %v748, 4
      %v751 = vshll.u32 %v333, 16
      %v753 = vrot.slane %v751, 5
      %v754 = vor.u32 %v750, %v753
      %v755 = vrot.slane %v754, 4
      %v757 = vshll.u32 %v334, 16
      %v759 = vrot.slane %v757, 5
      %v760 = vsel %vm338, %v755, %v759
      %v761 = vshrl.u32 %v334, 16
      %v763 = vrot.slane %v761, 4
      %v764 = vor.u32 %v763, %v759
      %v765 = vrot.slane %v764, 4
      %v767 = vshll.u32 %v335, 16
      %v769 = vrot.slane %v767, 5
      %v770 = vsel %vm338, %v765, %v769
      %v771 = vld [vmem:[%s1] sm:$0xf]
      %v772 = vld [vmem:[%s1 + $0x4] sm:$0xf]
      %v773 = vld [vmem:[%s1 + $0x8] sm:$0xf]
      %v774 = vld [vmem:[%s1 + $0xc] sm:$0xf]
      %v775 = vld [vmem:[%s1 + $0x10] sm:$0xf]
      %v776 = vld [vmem:[%s1 + $0x14] sm:$0xf]
      %v777 = vld [vmem:[%s1 + $0x18] sm:$0xf]
      %v778 = vld [vmem:[%s1 + $0x1c] sm:$0xf]
      %v779 = vld [vmem:[%s1 + $0x20] sm:$0xf]
      %v780 = vld [vmem:[%s1 + $0x24] sm:$0xf]
      %v781 = vld [vmem:[%s1 + $0x28] sm:$0xf]
      %v782 = vld [vmem:[%s1 + $0x2c] sm:$0xf]
      %v783 = vld [vmem:[%s1 + $0x30] sm:$0xf]
      %v784 = vld [vmem:[%s1 + $0x34] sm:$0xf]
      %v785 = vld [vmem:[%s1 + $0x38] sm:$0xf]
      %v786 = vld [vmem:[%s1 + $0x3c] sm:$0xf]
      %v787 = vld [vmem:[%s281] sm:$0xe]
      %v788 = vld [vmem:[%s281 + $0xc] sm:$0xe]
      %v789 = vld [vmem:[%s281 + $0x18] sm:$0xe]
      %v790 = vld [vmem:[%s281 + $0x24] sm:$0xe]
      %v791 = vld [vmem:[%s281 + $0x30] sm:$0xe]
      %v792 = vld [vmem:[%s281 + $0x3c] sm:$0xe]
      %v793 = vld [vmem:[%s281 + $0x48] sm:$0xe]
      %v794 = vld [vmem:[%s281 + $0x54] sm:$0xe]
      %v795 = vld [vmem:[%s281 + $0x60] sm:$0xe]
      %v796 = vld [vmem:[%s281 + $0x6c] sm:$0xe]
      %v797 = vld [vmem:[%s281 + $0x78] sm:$0xe]
      %v798 = vld [vmem:[%s281 + $0x84] sm:$0xe]
      %v799 = vld [vmem:[%s281 + $0x90] sm:$0xe]
      %v800 = vld [vmem:[%s281 + $0x9c] sm:$0xe]
      %v801 = vld [vmem:[%s281 + $0xa8] sm:$0xe]
      %v802 = vld [vmem:[%s281 + $0xb4] sm:$0xe]
      %v803 = vld [vmem:[%s281 + $0xc0] sm:$0xe]
      %v804 = vld [vmem:[%s281 + $0xcc] sm:$0xe]
      %vm859 = vcmask 1042432
      %vm860 = vcmask 1046532
      %vm861 = vmor %vm859, %vm860
      %v862 = vrot.slane %v787, 5
      %v863 = vrot.slane %v862, 4
      %v864 = vrot.slane %v283, 5
      %v865 = vsel %vm861, %v863, %v864
      %v866 = vrot.slane %v864, 4
      %v867 = vrot.slane %v284, 5
      %v868 = vsel %vm861, %v866, %v867
      %v869 = vrot.slane %v788, 5
      %v870 = vrot.slane %v869, 4
      %v871 = vrot.slane %v286, 5
      %v872 = vsel %vm861, %v870, %v871
      %v873 = vrot.slane %v871, 4
      %v874 = vrot.slane %v287, 5
      %v875 = vsel %vm861, %v873, %v874
      %v876 = vrot.slane %v789, 5
      %v877 = vrot.slane %v876, 4
      %v878 = vrot.slane %v289, 5
      %v879 = vsel %vm861, %v877, %v878
      %v880 = vrot.slane %v878, 4
      %v881 = vrot.slane %v290, 5
      %v882 = vsel %vm861, %v880, %v881
      %v883 = vrot.slane %v790, 5
      %v884 = vrot.slane %v883, 4
      %v885 = vrot.slane %v292, 5
      %v886 = vsel %vm861, %v884, %v885
      %v887 = vrot.slane %v885, 4
      %v888 = vrot.slane %v293, 5
      %v889 = vsel %vm861, %v887, %v888
      %v890 = vrot.slane %v791, 5
      %v891 = vrot.slane %v890, 4
      %v892 = vrot.slane %v295, 5
      %v893 = vsel %vm861, %v891, %v892
      %v894 = vrot.slane %v892, 4
      %v895 = vrot.slane %v296, 5
      %v896 = vsel %vm861, %v894, %v895
      %v897 = vrot.slane %v792, 5
      %v898 = vrot.slane %v897, 4
      %v899 = vrot.slane %v298, 5
      %v900 = vsel %vm861, %v898, %v899
      %v901 = vrot.slane %v899, 4
      %v902 = vrot.slane %v299, 5
      %v903 = vsel %vm861, %v901, %v902
      %v904 = vrot.slane %v793, 5
      %v905 = vrot.slane %v904, 4
      %v906 = vrot.slane %v301, 5
      %v907 = vsel %vm861, %v905, %v906
      %v908 = vrot.slane %v906, 4
      %v909 = vrot.slane %v302, 5
      %v910 = vsel %vm861, %v908, %v909
      %v911 = vrot.slane %v794, 5
      %v912 = vrot.slane %v911, 4
      %v913 = vrot.slane %v304, 5
      %v914 = vsel %vm861, %v912, %v913
      %v915 = vrot.slane %v913, 4
      %v916 = vrot.slane %v305, 5
      %v917 = vsel %vm861, %v915, %v916
      %v918 = vrot.slane %v795, 5
      %v919 = vrot.slane %v918, 4
      %v920 = vrot.slane %v307, 5
      %v921 = vsel %vm861, %v919, %v920
      %v922 = vrot.slane %v920, 4
      %v923 = vrot.slane %v308, 5
      %v924 = vsel %vm861, %v922, %v923
      %v925 = vrot.slane %v796, 5
      %v926 = vrot.slane %v925, 4
      %v927 = vrot.slane %v310, 5
      %v928 = vsel %vm861, %v926, %v927
      %v929 = vrot.slane %v927, 4
      %v930 = vrot.slane %v311, 5
      %v931 = vsel %vm861, %v929, %v930
      %v932 = vrot.slane %v797, 5
      %v933 = vrot.slane %v932, 4
      %v934 = vrot.slane %v313, 5
      %v935 = vsel %vm861, %v933, %v934
      %v936 = vrot.slane %v934, 4
      %v937 = vrot.slane %v314, 5
      %v938 = vsel %vm861, %v936, %v937
      %v939 = vrot.slane %v798, 5
      %v940 = vrot.slane %v939, 4
      %v941 = vrot.slane %v316, 5
      %v942 = vsel %vm861, %v940, %v941
      %v943 = vrot.slane %v941, 4
      %v944 = vrot.slane %v317, 5
      %v945 = vsel %vm861, %v943, %v944
      %v946 = vrot.slane %v799, 5
      %v947 = vrot.slane %v946, 4
      %v948 = vrot.slane %v319, 5
      %v949 = vsel %vm861, %v947, %v948
      %v950 = vrot.slane %v948, 4
      %v951 = vrot.slane %v320, 5
      %v952 = vsel %vm861, %v950, %v951
      %v953 = vrot.slane %v800, 5
      %v954 = vrot.slane %v953, 4
      %v955 = vrot.slane %v322, 5
      %v956 = vsel %vm861, %v954, %v955
      %v957 = vrot.slane %v955, 4
      %v958 = vrot.slane %v323, 5
      %v959 = vsel %vm861, %v957, %v958
      %v960 = vrot.slane %v801, 5
      %v961 = vrot.slane %v960, 4
      %v962 = vrot.slane %v325, 5
      %v963 = vsel %vm861, %v961, %v962
      %v964 = vrot.slane %v962, 4
      %v965 = vrot.slane %v326, 5
      %v966 = vsel %vm861, %v964, %v965
      %v967 = vrot.slane %v802, 5
      %v968 = vrot.slane %v967, 4
      %v969 = vrot.slane %v328, 5
      %v970 = vsel %vm861, %v968, %v969
      %v971 = vrot.slane %v969, 4
      %v972 = vrot.slane %v329, 5
      %v973 = vsel %vm861, %v971, %v972
      %v974 = vrot.slane %v803, 5
      %v975 = vrot.slane %v974, 4
      %v976 = vrot.slane %v331, 5
      %v977 = vsel %vm861, %v975, %v976
      %v978 = vrot.slane %v976, 4
      %v979 = vrot.slane %v332, 5
      %v980 = vsel %vm861, %v978, %v979
      %v981 = vrot.slane %v804, 5
      %v982 = vrot.slane %v981, 4
      %v983 = vrot.slane %v334, 5
      %v984 = vsel %vm861, %v982, %v983
      %v985 = vrot.slane %v983, 4
      %v986 = vrot.slane %v335, 5
      %v987 = vsel %vm861, %v985, %v986
      %s988 = scalar_lea.vmem %s1, 64
      %v989 = vld [vmem:[%s988] sm:$0xf]
      %v990 = vld [vmem:[%s988 + $0x4] sm:$0xf]
      %v991 = vld [vmem:[%s988 + $0x8] sm:$0xf]
      %v992 = vld [vmem:[%s988 + $0xc] sm:$0xf]
      %v993 = vld [vmem:[%s988 + $0x10] sm:$0xf]
      %v994 = vld [vmem:[%s988 + $0x14] sm:$0xf]
      %v995 = vld [vmem:[%s988 + $0x18] sm:$0xf]
      %v996 = vld [vmem:[%s988 + $0x1c] sm:$0xf]
      %v997 = vld [vmem:[%s988 + $0x20] sm:$0xf]
      %v998 = vld [vmem:[%s988 + $0x24] sm:$0xf]
      %v999 = vld [vmem:[%s988 + $0x28] sm:$0xf]
      %v1000 = vld [vmem:[%s988 + $0x2c] sm:$0xf]
      %v1001 = vld [vmem:[%s988 + $0x30] sm:$0xf]
      %v1002 = vld [vmem:[%s988 + $0x34] sm:$0xf]
      %v1003 = vld [vmem:[%s988 + $0x38] sm:$0xf]
      %v1004 = vld [vmem:[%s988 + $0x3c] sm:$0xf]
      %v1005 = vunpack.c.l.b16 %v865
      %v1006 = vunpack.c.l.b16 %v868
      %v1007 = vunpack.c.l.b16 %v872
      %v1008 = vunpack.c.l.b16 %v875
      %v1009 = vunpack.c.l.b16 %v879
      %v1010 = vunpack.c.l.b16 %v882
      %v1011 = vunpack.c.l.b16 %v886
      %v1012 = vunpack.c.l.b16 %v889
      %v1013 = vunpack.c.l.b16 %v893
      %v1014 = vunpack.c.l.b16 %v896
      %v1015 = vunpack.c.l.b16 %v900
      %v1016 = vunpack.c.l.b16 %v903
      %v1017 = vunpack.c.l.b16 %v907
      %v1018 = vunpack.c.l.b16 %v910
      %v1019 = vunpack.c.l.b16 %v914
      %v1020 = vunpack.c.l.b16 %v917
      %v1021 = vunpack.c.l.b16 %v921
      %v1022 = vunpack.c.l.b16 %v924
      %v1023 = vunpack.c.l.b16 %v928
      %v1024 = vunpack.c.l.b16 %v931
      %v1025 = vunpack.c.l.b16 %v935
      %v1026 = vunpack.c.l.b16 %v938
      %v1027 = vunpack.c.l.b16 %v942
      %v1028 = vunpack.c.l.b16 %v945
      %v1029 = vunpack.c.l.b16 %v949
      %v1030 = vunpack.c.l.b16 %v952
      %v1031 = vunpack.c.l.b16 %v956
      %v1032 = vunpack.c.l.b16 %v959
      %v1033 = vunpack.c.l.b16 %v963
      %v1034 = vunpack.c.l.b16 %v966
      %v1035 = vunpack.c.l.b16 %v970
      %v1036 = vunpack.c.l.b16 %v973
      %v1037 = vunpack.c.l.b16 %v977
      %v1038 = vunpack.c.l.b16 %v980
      %v1039 = vunpack.c.l.b16 %v984
      %v1040 = vunpack.c.l.b16 %v987
      %v1041 = vpack.c.b16 %v1006, %v1005
      %v1042 = vpack.c.b16 %v1008, %v1007
      %v1043 = vpack.c.b16 %v1010, %v1009
      %v1044 = vpack.c.b16 %v1012, %v1011
      %v1045 = vpack.c.b16 %v1014, %v1013
      %v1046 = vpack.c.b16 %v1016, %v1015
      %v1047 = vpack.c.b16 %v1018, %v1017
      %v1048 = vpack.c.b16 %v1020, %v1019
      %v1049 = vpack.c.b16 %v1022, %v1021
      %v1050 = vpack.c.b16 %v1024, %v1023
      %v1051 = vpack.c.b16 %v1026, %v1025
      %v1052 = vpack.c.b16 %v1028, %v1027
      %v1053 = vpack.c.b16 %v1030, %v1029
      %v1054 = vpack.c.b16 %v1032, %v1031
      %v1055 = vpack.c.b16 %v1034, %v1033
      %v1056 = vpack.c.b16 %v1036, %v1035
      %v1057 = vpack.c.b16 %v1038, %v1037
      %v1058 = vpack.c.b16 %v1040, %v1039
      %v1093 = vunpack.c.l.b16 %v989
      %v1094 = vunpack.c.l.b16 %v990
      %v1095 = vunpack.c.l.b16 %v991
      %v1096 = vunpack.c.l.b16 %v992
      %v1097 = vunpack.c.l.b16 %v993
      %v1098 = vunpack.c.l.b16 %v994
      %v1099 = vunpack.c.l.b16 %v995
      %v1100 = vunpack.c.l.b16 %v996
      %v1101 = vunpack.c.l.b16 %v997
      %v1102 = vunpack.c.l.b16 %v998
      %v1103 = vunpack.c.l.b16 %v999
      %v1104 = vunpack.c.l.b16 %v1000
      %v1105 = vunpack.c.l.b16 %v1001
      %v1106 = vunpack.c.l.b16 %v1002
      %v1107 = vunpack.c.l.b16 %v1003
      %v1108 = vunpack.c.l.b16 %v1004
      %v1109 = vpack.c.b16 %v1094, %v1093
      %v1110 = vpack.c.b16 %v1096, %v1095
      %v1111 = vpack.c.b16 %v1098, %v1097
      %v1112 = vpack.c.b16 %v1100, %v1099
      %v1113 = vpack.c.b16 %v1102, %v1101
      %v1114 = vpack.c.b16 %v1104, %v1103
      %v1115 = vpack.c.b16 %v1106, %v1105
      %v1116 = vpack.c.b16 %v1108, %v1107
      %1125 = vmatprep.subr.bf16.mxu0 0
      %1126 = vmatpush1.bf16.msra.mxu0 %v1109
      %1127 = vmatprep.subr.bf16.mxu0 0
      %1128 = vmatpush1.bf16.msra.mxu0 %v1110
      %1129 = vmatprep.subr.bf16.mxu0 0
      %1130 = vmatpush1.bf16.msra.mxu0 %v1111
      %1131 = vmatprep.subr.bf16.mxu0 0
      %1132 = vmatpush1.bf16.msra.mxu0 %v1112
      %1133 = vmatprep.subr.bf16.mxu0 0
      %1134 = vmatpush1.bf16.msra.mxu0 %v1113
      %1135 = vmatprep.subr.bf16.mxu0 0
      %1136 = vmatpush1.bf16.msra.mxu0 %v1114
      %1137 = vmatprep.subr.bf16.mxu0 0
      %1138 = vmatpush1.bf16.msra.mxu0 %v1115
      %1139 = vmatprep.subr.bf16.mxu0 0
      %1140 = vmatpush1.bf16.msra.mxu0 %v1116
      %1141 = vmatprep.subr.bf16.mxu0 0
      %1142 = vmatpush1.bf16.msra.mxu0 0
      %1143 = vmatprep.subr.bf16.mxu0 0
      %1144 = vmatpush1.bf16.msra.mxu0 0
      %1145 = vmatprep.subr.bf16.mxu0 0
      %1146 = vmatpush1.bf16.msra.mxu0 0
      %1147 = vmatprep.subr.bf16.mxu0 0
      %1148 = vmatpush1.bf16.msra.mxu0 0
      %1149 = vmatprep.subr.bf16.mxu0 0
      %1150 = vmatpush1.bf16.msra.mxu0 0
      %1151 = vmatprep.subr.bf16.mxu0 0
      %1152 = vmatpush1.bf16.msra.mxu0 0
      %1153 = vmatprep.subr.bf16.mxu0 0
      %1154 = vmatpush1.bf16.msra.mxu0 0
      %1155 = vmatprep.subr.bf16.mxu0 0
      %1156 = vmatpush1.bf16.msra.mxu0 0
      %1157 = vmatprep.mubr.bf16.mxu0 0
      %1158 = vmatmul.mubr.bf16.gmra.mrb[0].mxu0 %v1041
      %v1159 = vpop.f32.mrb[0].mxu0
      %v1160 = vadd.f32 0.0, %v1159
      %v1161 = vpop.f32.mrb[0].mxu0
      %v1162 = vpop.f32.mrb[0].mxu0
      %v1163 = vadd.f32 0.0, %v1162
      %v1164 = vpop.f32.mrb[0].mxu0
      %1165 = vmatprep.mubr.bf16.mxu0 0
      %1166 = vmatmul.mubr.bf16.gmra.mrb[0].mxu0 %v1042
      %v1167 = vpop.f32.mrb[0].mxu0
      %v1168 = vadd.f32 0.0, %v1167
      %v1169 = vpop.f32.mrb[0].mxu0
      %v1170 = vpop.f32.mrb[0].mxu0
      %v1171 = vadd.f32 0.0, %v1170
      %v1172 = vpop.f32.mrb[0].mxu0
      %1173 = vmatprep.mubr.bf16.mxu0 0
      %1174 = vmatmul.mubr.bf16.gmra.mrb[0].mxu0 %v1043
      %v1175 = vpop.f32.mrb[0].mxu0
      %v1176 = vadd.f32 0.0, %v1175
      %v1177 = vpop.f32.mrb[0].mxu0
      %v1178 = vpop.f32.mrb[0].mxu0
      %v1179 = vadd.f32 0.0, %v1178
      %v1180 = vpop.f32.mrb[0].mxu0
      %1181 = vmatprep.mubr.bf16.mxu0 0
      %1182 = vmatmul.mubr.bf16.gmra.mrb[0].mxu0 %v1044
      %v1183 = vpop.f32.mrb[0].mxu0
      %v1184 = vadd.f32 0.0, %v1183
      %v1185 = vpop.f32.mrb[0].mxu0
      %v1186 = vpop.f32.mrb[0].mxu0
      %v1187 = vadd.f32 0.0, %v1186
      %v1188 = vpop.f32.mrb[0].mxu0
      %1189 = vmatprep.mubr.bf16.mxu0 0
      %1190 = vmatmul.mubr.bf16.gmra.mrb[0].mxu0 %v1045
      %v1191 = vpop.f32.mrb[0].mxu0
      %v1192 = vadd.f32 0.0, %v1191
      %v1193 = vpop.f32.mrb[0].mxu0
      %v1194 = vpop.f32.mrb[0].mxu0
      %v1195 = vadd.f32 0.0, %v1194
      %v1196 = vpop.f32.mrb[0].mxu0
      %1197 = vmatprep.mubr.bf16.mxu0 0
      %1198 = vmatmul.mubr.bf16.gmra.mrb[0].mxu0 %v1046
      %v1199 = vpop.f32.mrb[0].mxu0
      %v1200 = vadd.f32 0.0, %v1199
      %v1201 = vpop.f32.mrb[0].mxu0
      %v1202 = vpop.f32.mrb[0].mxu0
      %v1203 = vadd.f32 0.0, %v1202
      %v1204 = vpop.f32.mrb[0].mxu0
      %1205 = vmatprep.mubr.bf16.mxu0 0
      %1206 = vmatmul.mubr.bf16.gmra.mrb[0].mxu0 %v1047
      %v1207 = vpop.f32.mrb[0].mxu0
      %v1208 = vadd.f32 0.0, %v1207
      %v1209 = vpop.f32.mrb[0].mxu0
      %v1210 = vpop.f32.mrb[0].mxu0
      %v1211 = vadd.f32 0.0, %v1210
      %v1212 = vpop.f32.mrb[0].mxu0
      %1213 = vmatprep.mubr.bf16.mxu0 0
      %1214 = vmatmul.mubr.bf16.gmra.mrb[0].mxu0 %v1048
      %v1215 = vpop.f32.mrb[0].mxu0
      %v1216 = vadd.f32 0.0, %v1215
      %v1217 = vpop.f32.mrb[0].mxu0
      %v1218 = vpop.f32.mrb[0].mxu0
      %v1219 = vadd.f32 0.0, %v1218
      %v1220 = vpop.f32.mrb[0].mxu0
      %1221 = vmatprep.mubr.bf16.mxu0 0
      %1222 = vmatmul.mubr.bf16.gmra.mrb[0].mxu0 %v1049
      %v1223 = vpop.f32.mrb[0].mxu0
      %v1224 = vadd.f32 0.0, %v1223
      %v1225 = vpop.f32.mrb[0].mxu0
      %v1226 = vpop.f32.mrb[0].mxu0
      %v1227 = vadd.f32 0.0, %v1226
      %v1228 = vpop.f32.mrb[0].mxu0
      %1229 = vmatprep.mubr.bf16.mxu0 0
      %1230 = vmatmul.mubr.bf16.gmra.mrb[0].mxu0 %v1050
      %v1231 = vpop.f32.mrb[0].mxu0
      %v1232 = vadd.f32 0.0, %v1231
      %v1233 = vpop.f32.mrb[0].mxu0
      %v1234 = vpop.f32.mrb[0].mxu0
      %v1235 = vadd.f32 0.0, %v1234
      %v1236 = vpop.f32.mrb[0].mxu0
      %1237 = vmatprep.mubr.bf16.mxu0 0
      %1238 = vmatmul.mubr.bf16.gmra.mrb[0].mxu0 %v1051
      %v1239 = vpop.f32.mrb[0].mxu0
      %v1240 = vadd.f32 0.0, %v1239
      %v1241 = vpop.f32.mrb[0].mxu0
      %v1242 = vpop.f32.mrb[0].mxu0
      %v1243 = vadd.f32 0.0, %v1242
      %v1244 = vpop.f32.mrb[0].mxu0
      %1245 = vmatprep.mubr.bf16.mxu0 0
      %1246 = vmatmul.mubr.bf16.gmra.mrb[0].mxu0 %v1052
      %v1247 = vpop.f32.mrb[0].mxu0
      %v1248 = vadd.f32 0.0, %v1247
      %v1249 = vpop.f32.mrb[0].mxu0
      %v1250 = vpop.f32.mrb[0].mxu0
      %v1251 = vadd.f32 0.0, %v1250
      %v1252 = vpop.f32.mrb[0].mxu0
      %1253 = vmatprep.mubr.bf16.mxu0 0
      %1254 = vmatmul.mubr.bf16.gmra.mrb[0].mxu0 %v1053
      %v1255 = vpop.f32.mrb[0].mxu0
      %v1256 = vadd.f32 0.0, %v1255
      %v1257 = vpop.f32.mrb[0].mxu0
      %v1258 = vpop.f32.mrb[0].mxu0
      %v1259 = vadd.f32 0.0, %v1258
      %v1260 = vpop.f32.mrb[0].mxu0
      %1261 = vmatprep.mubr.bf16.mxu0 0
      %1262 = vmatmul.mubr.bf16.gmra.mrb[0].mxu0 %v1054
      %v1263 = vpop.f32.mrb[0].mxu0
      %v1264 = vadd.f32 0.0, %v1263
      %v1265 = vpop.f32.mrb[0].mxu0
      %v1266 = vpop.f32.mrb[0].mxu0
      %v1267 = vadd.f32 0.0, %v1266
      %v1268 = vpop.f32.mrb[0].mxu0
      %1269 = vmatprep.mubr.bf16.mxu0 0
      %1270 = vmatmul.mubr.bf16.gmra.mrb[0].mxu0 %v1055
      %v1271 = vpop.f32.mrb[0].mxu0
      %v1272 = vadd.f32 0.0, %v1271
      %v1273 = vpop.f32.mrb[0].mxu0
      %v1274 = vpop.f32.mrb[0].mxu0
      %v1275 = vadd.f32 0.0, %v1274
      %v1276 = vpop.f32.mrb[0].mxu0
      %1277 = vmatprep.mubr.bf16.mxu0 0
      %1278 = vmatmul.mubr.bf16.gmra.mrb[0].mxu0 %v1056
      %v1279 = vpop.f32.mrb[0].mxu0
      %v1280 = vadd.f32 0.0, %v1279
      %v1281 = vpop.f32.mrb[0].mxu0
      %v1282 = vpop.f32.mrb[0].mxu0
      %v1283 = vadd.f32 0.0, %v1282
      %v1284 = vpop.f32.mrb[0].mxu0
      %1285 = vmatprep.mubr.bf16.mxu0 0
      %1286 = vmatmul.mubr.bf16.gmra.mrb[0].mxu0 %v1057
      %v1287 = vpop.f32.mrb[0].mxu0
      %v1288 = vadd.f32 0.0, %v1287
      %v1289 = vpop.f32.mrb[0].mxu0
      %v1290 = vpop.f32.mrb[0].mxu0
      %v1291 = vadd.f32 0.0, %v1290
      %v1292 = vpop.f32.mrb[0].mxu0
      %1293 = vmatprep.mubr.bf16.mxu0 0
      %1294 = vmatmul.mubr.bf16.gmra.mrb[0].mxu0 %v1058
      %v1295 = vpop.f32.mrb[0].mxu0
      %v1296 = vadd.f32 0.0, %v1295
      %v1297 = vpop.f32.mrb[0].mxu0
      %v1298 = vpop.f32.mrb[0].mxu0
      %v1299 = vadd.f32 0.0, %v1298
      %v1300 = vpop.f32.mrb[0].mxu0
      %1301 = vdwg.mxu0
      %v1302 = vunpack.c.l.b16 %v352
      %v1303 = vunpack.c.l.b16 %v362
      %v1304 = vunpack.c.l.b16 %v376
      %v1305 = vunpack.c.l.b16 %v386
      %v1306 = vunpack.c.l.b16 %v400
      %v1307 = vunpack.c.l.b16 %v410
      %v1308 = vunpack.c.l.b16 %v424
      %v1309 = vunpack.c.l.b16 %v434
      %v1310 = vunpack.c.l.b16 %v448
      %v1311 = vunpack.c.l.b16 %v458
      %v1312 = vunpack.c.l.b16 %v472
      %v1313 = vunpack.c.l.b16 %v482
      %v1314 = vunpack.c.l.b16 %v496
      %v1315 = vunpack.c.l.b16 %v506
      %v1316 = vunpack.c.l.b16 %v520
      %v1317 = vunpack.c.l.b16 %v530
      %v1318 = vunpack.c.l.b16 %v544
      %v1319 = vunpack.c.l.b16 %v554
      %v1320 = vunpack.c.l.b16 %v568
      %v1321 = vunpack.c.l.b16 %v578
      %v1322 = vunpack.c.l.b16 %v592
      %v1323 = vunpack.c.l.b16 %v602
      %v1324 = vunpack.c.l.b16 %v616
      %v1325 = vunpack.c.l.b16 %v626
      %v1326 = vunpack.c.l.b16 %v640
      %v1327 = vunpack.c.l.b16 %v650
      %v1328 = vunpack.c.l.b16 %v664
      %v1329 = vunpack.c.l.b16 %v674
      %v1330 = vunpack.c.l.b16 %v688
      %v1331 = vunpack.c.l.b16 %v698
      %v1332 = vunpack.c.l.b16 %v712
      %v1333 = vunpack.c.l.b16 %v722
      %v1334 = vunpack.c.l.b16 %v736
      %v1335 = vunpack.c.l.b16 %v746
      %v1336 = vunpack.c.l.b16 %v760
      %v1337 = vunpack.c.l.b16 %v770
      %v1338 = vpack.c.b16 %v1303, %v1302
      %v1339 = vpack.c.b16 %v1305, %v1304
      %v1340 = vpack.c.b16 %v1307, %v1306
      %v1341 = vpack.c.b16 %v1309, %v1308
      %v1342 = vpack.c.b16 %v1311, %v1310
      %v1343 = vpack.c.b16 %v1313, %v1312
      %v1344 = vpack.c.b16 %v1315, %v1314
      %v1345 = vpack.c.b16 %v1317, %v1316
      %v1346 = vpack.c.b16 %v1319, %v1318
      %v1347 = vpack.c.b16 %v1321, %v1320
      %v1348 = vpack.c.b16 %v1323, %v1322
      %v1349 = vpack.c.b16 %v1325, %v1324
      %v1350 = vpack.c.b16 %v1327, %v1326
      %v1351 = vpack.c.b16 %v1329, %v1328
      %v1352 = vpack.c.b16 %v1331, %v1330
      %v1353 = vpack.c.b16 %v1333, %v1332
      %v1354 = vpack.c.b16 %v1335, %v1334
      %v1355 = vpack.c.b16 %v1337, %v1336
      %v1390 = vunpack.c.l.b16 %v771
      %v1391 = vunpack.c.l.b16 %v772
      %v1392 = vunpack.c.l.b16 %v773
      %v1393 = vunpack.c.l.b16 %v774
      %v1394 = vunpack.c.l.b16 %v775
      %v1395 = vunpack.c.l.b16 %v776
      %v1396 = vunpack.c.l.b16 %v777
      %v1397 = vunpack.c.l.b16 %v778
      %v1398 = vunpack.c.l.b16 %v779
      %v1399 = vunpack.c.l.b16 %v780
      %v1400 = vunpack.c.l.b16 %v781
      %v1401 = vunpack.c.l.b16 %v782
      %v1402 = vunpack.c.l.b16 %v783
      %v1403 = vunpack.c.l.b16 %v784
      %v1404 = vunpack.c.l.b16 %v785
      %v1405 = vunpack.c.l.b16 %v786
      %v1406 = vpack.c.b16 %v1391, %v1390
      %v1407 = vpack.c.b16 %v1393, %v1392
      %v1408 = vpack.c.b16 %v1395, %v1394
      %v1409 = vpack.c.b16 %v1397, %v1396
      %v1410 = vpack.c.b16 %v1399, %v1398
      %v1411 = vpack.c.b16 %v1401, %v1400
      %v1412 = vpack.c.b16 %v1403, %v1402
      %v1413 = vpack.c.b16 %v1405, %v1404
      %1422 = vmatprep.subr.bf16.mxu0 0
      %1423 = vmatpush1.bf16.msra.mxu0 %v1406
      %1424 = vmatprep.subr.bf16.mxu0 0
      %1425 = vmatpush1.bf16.msra.mxu0 %v1407
      %1426 = vmatprep.subr.bf16.mxu0 0
      %1427 = vmatpush1.bf16.msra.mxu0 %v1408
      %1428 = vmatprep.subr.bf16.mxu0 0
      %1429 = vmatpush1.bf16.msra.mxu0 %v1409
      %1430 = vmatprep.subr.bf16.mxu0 0
      %1431 = vmatpush1.bf16.msra.mxu0 %v1410
      %1432 = vmatprep.subr.bf16.mxu0 0
      %1433 = vmatpush1.bf16.msra.mxu0 %v1411
      %1434 = vmatprep.subr.bf16.mxu0 0
      %1435 = vmatpush1.bf16.msra.mxu0 %v1412
      %1436 = vmatprep.subr.bf16.mxu0 0
      %1437 = vmatpush1.bf16.msra.mxu0 %v1413
      %1438 = vmatprep.subr.bf16.mxu0 0
      %1439 = vmatpush1.bf16.msra.mxu0 0
      %1440 = vmatprep.subr.bf16.mxu0 0
      %1441 = vmatpush1.bf16.msra.mxu0 0
      %1442 = vmatprep.subr.bf16.mxu0 0
      %1443 = vmatpush1.bf16.msra.mxu0 0
      %1444 = vmatprep.subr.bf16.mxu0 0
      %1445 = vmatpush1.bf16.msra.mxu0 0
      %1446 = vmatprep.subr.bf16.mxu0 0
      %1447 = vmatpush1.bf16.msra.mxu0 0
      %1448 = vmatprep.subr.bf16.mxu0 0
      %1449 = vmatpush1.bf16.msra.mxu0 0
      %1450 = vmatprep.subr.bf16.mxu0 0
      %1451 = vmatpush1.bf16.msra.mxu0 0
      %1452 = vmatprep.subr.bf16.mxu0 0
      %1453 = vmatpush1.bf16.msra.mxu0 0
      %1454 = vmatprep.mubr.bf16.mxu0 0
      %1455 = vmatmul.mubr.bf16.gmra.mrb[0].mxu0 %v1338
      %v1456 = vpop.f32.mrb[0].mxu0
      %v1457 = vadd.f32 %v1160, %v1456
      %v1458 = vpop.f32.mrb[0].mxu0
      %v1459 = vpop.f32.mrb[0].mxu0
      %v1460 = vadd.f32 %v1163, %v1459
      %v1461 = vpop.f32.mrb[0].mxu0
      %1462 = vmatprep.mubr.bf16.mxu0 0
      %1463 = vmatmul.mubr.bf16.gmra.mrb[0].mxu0 %v1339
      %v1464 = vpop.f32.mrb[0].mxu0
      %v1465 = vadd.f32 %v1168, %v1464
      %v1466 = vpop.f32.mrb[0].mxu0
      %v1467 = vpop.f32.mrb[0].mxu0
      %v1468 = vadd.f32 %v1171, %v1467
      %v1469 = vpop.f32.mrb[0].mxu0
      %1470 = vmatprep.mubr.bf16.mxu0 0
      %1471 = vmatmul.mubr.bf16.gmra.mrb[0].mxu0 %v1340
      %v1472 = vpop.f32.mrb[0].mxu0
      %v1473 = vadd.f32 %v1176, %v1472
      %v1474 = vpop.f32.mrb[0].mxu0
      %v1475 = vpop.f32.mrb[0].mxu0
      %v1476 = vadd.f32 %v1179, %v1475
      %v1477 = vpop.f32.mrb[0].mxu0
      %1478 = vmatprep.mubr.bf16.mxu0 0
      %1479 = vmatmul.mubr.bf16.gmra.mrb[0].mxu0 %v1341
      %v1480 = vpop.f32.mrb[0].mxu0
      %v1481 = vadd.f32 %v1184, %v1480
      %v1482 = vpop.f32.mrb[0].mxu0
      %v1483 = vpop.f32.mrb[0].mxu0
      %v1484 = vadd.f32 %v1187, %v1483
      %v1485 = vpop.f32.mrb[0].mxu0
      %1486 = vmatprep.mubr.bf16.mxu0 0
      %1487 = vmatmul.mubr.bf16.gmra.mrb[0].mxu0 %v1342
      %v1488 = vpop.f32.mrb[0].mxu0
      %v1489 = vadd.f32 %v1192, %v1488
      %v1490 = vpop.f32.mrb[0].mxu0
      %v1491 = vpop.f32.mrb[0].mxu0
      %v1492 = vadd.f32 %v1195, %v1491
      %v1493 = vpop.f32.mrb[0].mxu0
      %1494 = vmatprep.mubr.bf16.mxu0 0
      %1495 = vmatmul.mubr.bf16.gmra.mrb[0].mxu0 %v1343
      %v1496 = vpop.f32.mrb[0].mxu0
      %v1497 = vadd.f32 %v1200, %v1496
      %v1498 = vpop.f32.mrb[0].mxu0
      %v1499 = vpop.f32.mrb[0].mxu0
      %v1500 = vadd.f32 %v1203, %v1499
      %v1501 = vpop.f32.mrb[0].mxu0
      %1502 = vmatprep.mubr.bf16.mxu0 0
      %1503 = vmatmul.mubr.bf16.gmra.mrb[0].mxu0 %v1344
      %v1504 = vpop.f32.mrb[0].mxu0
      %v1505 = vadd.f32 %v1208, %v1504
      %v1506 = vpop.f32.mrb[0].mxu0
      %v1507 = vpop.f32.mrb[0].mxu0
      %v1508 = vadd.f32 %v1211, %v1507
      %v1509 = vpop.f32.mrb[0].mxu0
      %1510 = vmatprep.mubr.bf16.mxu0 0
      %1511 = vmatmul.mubr.bf16.gmra.mrb[0].mxu0 %v1345
      %v1512 = vpop.f32.mrb[0].mxu0
      %v1513 = vadd.f32 %v1216, %v1512
      %v1514 = vpop.f32.mrb[0].mxu0
      %v1515 = vpop.f32.mrb[0].mxu0
      %v1516 = vadd.f32 %v1219, %v1515
      %v1517 = vpop.f32.mrb[0].mxu0
      %1518 = vmatprep.mubr.bf16.mxu0 0
      %1519 = vmatmul.mubr.bf16.gmra.mrb[0].mxu0 %v1346
      %v1520 = vpop.f32.mrb[0].mxu0
      %v1521 = vadd.f32 %v1224, %v1520
      %v1522 = vpop.f32.mrb[0].mxu0
      %v1523 = vpop.f32.mrb[0].mxu0
      %v1524 = vadd.f32 %v1227, %v1523
      %v1525 = vpop.f32.mrb[0].mxu0
      %1526 = vmatprep.mubr.bf16.mxu0 0
      %1527 = vmatmul.mubr.bf16.gmra.mrb[0].mxu0 %v1347
      %v1528 = vpop.f32.mrb[0].mxu0
      %v1529 = vadd.f32 %v1232, %v1528
      %v1530 = vpop.f32.mrb[0].mxu0
      %v1531 = vpop.f32.mrb[0].mxu0
      %v1532 = vadd.f32 %v1235, %v1531
      %v1533 = vpop.f32.mrb[0].mxu0
      %1534 = vmatprep.mubr.bf16.mxu0 0
      %1535 = vmatmul.mubr.bf16.gmra.mrb[0].mxu0 %v1348
      %v1536 = vpop.f32.mrb[0].mxu0
      %v1537 = vadd.f32 %v1240, %v1536
      %v1538 = vpop.f32.mrb[0].mxu0
      %v1539 = vpop.f32.mrb[0].mxu0
      %v1540 = vadd.f32 %v1243, %v1539
      %v1541 = vpop.f32.mrb[0].mxu0
      %1542 = vmatprep.mubr.bf16.mxu0 0
      %1543 = vmatmul.mubr.bf16.gmra.mrb[0].mxu0 %v1349
      %v1544 = vpop.f32.mrb[0].mxu0
      %v1545 = vadd.f32 %v1248, %v1544
      %v1546 = vpop.f32.mrb[0].mxu0
      %v1547 = vpop.f32.mrb[0].mxu0
      %v1548 = vadd.f32 %v1251, %v1547
      %v1549 = vpop.f32.mrb[0].mxu0
      %1550 = vmatprep.mubr.bf16.mxu0 0
      %1551 = vmatmul.mubr.bf16.gmra.mrb[0].mxu0 %v1350
      %v1552 = vpop.f32.mrb[0].mxu0
      %v1553 = vadd.f32 %v1256, %v1552
      %v1554 = vpop.f32.mrb[0].mxu0
      %v1555 = vpop.f32.mrb[0].mxu0
      %v1556 = vadd.f32 %v1259, %v1555
      %v1557 = vpop.f32.mrb[0].mxu0
      %1558 = vmatprep.mubr.bf16.mxu0 0
      %1559 = vmatmul.mubr.bf16.gmra.mrb[0].mxu0 %v1351
      %v1560 = vpop.f32.mrb[0].mxu0
      %v1561 = vadd.f32 %v1264, %v1560
      %v1562 = vpop.f32.mrb[0].mxu0
      %v1563 = vpop.f32.mrb[0].mxu0
      %v1564 = vadd.f32 %v1267, %v1563
      %v1565 = vpop.f32.mrb[0].mxu0
      %1566 = vmatprep.mubr.bf16.mxu0 0
      %1567 = vmatmul.mubr.bf16.gmra.mrb[0].mxu0 %v1352
      %v1568 = vpop.f32.mrb[0].mxu0
      %v1569 = vadd.f32 %v1272, %v1568
      %v1570 = vpop.f32.mrb[0].mxu0
      %v1571 = vpop.f32.mrb[0].mxu0
      %v1572 = vadd.f32 %v1275, %v1571
      %v1573 = vpop.f32.mrb[0].mxu0
      %1574 = vmatprep.mubr.bf16.mxu0 0
      %1575 = vmatmul.mubr.bf16.gmra.mrb[0].mxu0 %v1353
      %v1576 = vpop.f32.mrb[0].mxu0
      %v1577 = vadd.f32 %v1280, %v1576
      %v1578 = vpop.f32.mrb[0].mxu0
      %v1579 = vpop.f32.mrb[0].mxu0
      %v1580 = vadd.f32 %v1283, %v1579
      %v1581 = vpop.f32.mrb[0].mxu0
      %1582 = vmatprep.mubr.bf16.mxu0 0
      %1583 = vmatmul.mubr.bf16.gmra.mrb[0].mxu0 %v1354
      %v1584 = vpop.f32.mrb[0].mxu0
      %v1585 = vadd.f32 %v1288, %v1584
      %v1586 = vpop.f32.mrb[0].mxu0
      %v1587 = vpop.f32.mrb[0].mxu0
      %v1588 = vadd.f32 %v1291, %v1587
      %v1589 = vpop.f32.mrb[0].mxu0
      %1590 = vmatprep.mubr.bf16.mxu0 0
      %1591 = vmatmul.mubr.bf16.gmra.mrb[0].mxu0 %v1355
      %v1592 = vpop.f32.mrb[0].mxu0
      %v1593 = vadd.f32 %v1296, %v1592
      %v1594 = vpop.f32.mrb[0].mxu0
      %v1595 = vpop.f32.mrb[0].mxu0
      %v1596 = vadd.f32 %v1299, %v1595
      %v1597 = vpop.f32.mrb[0].mxu0
      %1598 = vdwg.mxu0
      %v1599 = vld [vmem:[%s281 + $0x8] sm:$0x3]
      %v1600 = vld [vmem:[%s281 + $0x14] sm:$0x3]
      %v1601 = vld [vmem:[%s281 + $0x20] sm:$0x3]
      %v1602 = vld [vmem:[%s281 + $0x2c] sm:$0x3]
      %v1603 = vld [vmem:[%s281 + $0x38] sm:$0x3]
      %v1604 = vld [vmem:[%s281 + $0x44] sm:$0x3]
      %v1605 = vld [vmem:[%s281 + $0x50] sm:$0x3]
      %v1606 = vld [vmem:[%s281 + $0x5c] sm:$0x3]
      %v1607 = vld [vmem:[%s281 + $0x68] sm:$0x3]
      %v1608 = vld [vmem:[%s281 + $0x74] sm:$0x3]
      %v1609 = vld [vmem:[%s281 + $0x80] sm:$0x3]
      %v1610 = vld [vmem:[%s281 + $0x8c] sm:$0x3]
      %v1611 = vld [vmem:[%s281 + $0x98] sm:$0x3]
      %v1612 = vld [vmem:[%s281 + $0xa4] sm:$0x3]
      %v1613 = vld [vmem:[%s281 + $0xb0] sm:$0x3]
      %v1614 = vld [vmem:[%s281 + $0xbc] sm:$0x3]
      %v1615 = vld [vmem:[%s281 + $0xc8] sm:$0x3]
      %v1616 = vld [vmem:[%s281 + $0xd4] sm:$0x3]
      %vm1617 = vsmask.f32 2304
      %vm1618 = vsmask.f32 6416
      %vm1619 = vmor %vm1617, %vm1618
      %v1621 = vshrl.u32 %v787, 16
      %v1623 = vrot.slane %v1621, 5
      %v1624 = vshll.u32 %v787, 16
      %v1626 = vrot.slane %v1624, 6
      %v1627 = vor.u32 %v1623, %v1626
      %v1628 = vrot.slane %v1627, 4
      %v1629 = vrot.slane %v353, 5
      %v1630 = vrot.slane %v349, 6
      %v1631 = vor.u32 %v1629, %v1630
      %v1632 = vsel %vm1619, %v1628, %v1631
      %v1633 = vrot.slane %v1631, 4
      %v1635 = vshrl.u32 %v1599, 16
      %v1637 = vrot.slane %v1635, 5
      %v1638 = vshll.u32 %v1599, 16
      %v1640 = vrot.slane %v1638, 6
      %v1641 = vor.u32 %v1637, %v1640
      %v1642 = vsel %vm1619, %v1633, %v1641
      %v1644 = vshrl.u32 %v788, 16
      %v1646 = vrot.slane %v1644, 5
      %v1647 = vshll.u32 %v788, 16
      %v1649 = vrot.slane %v1647, 6
      %v1650 = vor.u32 %v1646, %v1649
      %v1651 = vrot.slane %v1650, 4
      %v1652 = vrot.slane %v377, 5
      %v1653 = vrot.slane %v373, 6
      %v1654 = vor.u32 %v1652, %v1653
      %v1655 = vsel %vm1619, %v1651, %v1654
      %v1656 = vrot.slane %v1654, 4
      %v1658 = vshrl.u32 %v1600, 16
      %v1660 = vrot.slane %v1658, 5
      %v1661 = vshll.u32 %v1600, 16
      %v1663 = vrot.slane %v1661, 6
      %v1664 = vor.u32 %v1660, %v1663
      %v1665 = vsel %vm1619, %v1656, %v1664
      %v1667 = vshrl.u32 %v789, 16
      %v1669 = vrot.slane %v1667, 5
      %v1670 = vshll.u32 %v789, 16
      %v1672 = vrot.slane %v1670, 6
      %v1673 = vor.u32 %v1669, %v1672
      %v1674 = vrot.slane %v1673, 4
      %v1675 = vrot.slane %v401, 5
      %v1676 = vrot.slane %v397, 6
      %v1677 = vor.u32 %v1675, %v1676
      %v1678 = vsel %vm1619, %v1674, %v1677
      %v1679 = vrot.slane %v1677, 4
      %v1681 = vshrl.u32 %v1601, 16
      %v1683 = vrot.slane %v1681, 5
      %v1684 = vshll.u32 %v1601, 16
      %v1686 = vrot.slane %v1684, 6
      %v1687 = vor.u32 %v1683, %v1686
      %v1688 = vsel %vm1619, %v1679, %v1687
      %v1690 = vshrl.u32 %v790, 16
      %v1692 = vrot.slane %v1690, 5
      %v1693 = vshll.u32 %v790, 16
      %v1695 = vrot.slane %v1693, 6
      %v1696 = vor.u32 %v1692, %v1695
      %v1697 = vrot.slane %v1696, 4
      %v1698 = vrot.slane %v425, 5
      %v1699 = vrot.slane %v421, 6
      %v1700 = vor.u32 %v1698, %v1699
      %v1701 = vsel %vm1619, %v1697, %v1700
      %v1702 = vrot.slane %v1700, 4
      %v1704 = vshrl.u32 %v1602, 16
      %v1706 = vrot.slane %v1704, 5
      %v1707 = vshll.u32 %v1602, 16
      %v1709 = vrot.slane %v1707, 6
      %v1710 = vor.u32 %v1706, %v1709
      %v1711 = vsel %vm1619, %v1702, %v1710
      %v1713 = vshrl.u32 %v791, 16
      %v1715 = vrot.slane %v1713, 5
      %v1716 = vshll.u32 %v791, 16
      %v1718 = vrot.slane %v1716, 6
      %v1719 = vor.u32 %v1715, %v1718
      %v1720 = vrot.slane %v1719, 4
      %v1721 = vrot.slane %v449, 5
      %v1722 = vrot.slane %v445, 6
      %v1723 = vor.u32 %v1721, %v1722
      %v1724 = vsel %vm1619, %v1720, %v1723
      %v1725 = vrot.slane %v1723, 4
      %v1727 = vshrl.u32 %v1603, 16
      %v1729 = vrot.slane %v1727, 5
      %v1730 = vshll.u32 %v1603, 16
      %v1732 = vrot.slane %v1730, 6
      %v1733 = vor.u32 %v1729, %v1732
      %v1734 = vsel %vm1619, %v1725, %v1733
      %v1736 = vshrl.u32 %v792, 16
      %v1738 = vrot.slane %v1736, 5
      %v1739 = vshll.u32 %v792, 16
      %v1741 = vrot.slane %v1739, 6
      %v1742 = vor.u32 %v1738, %v1741
      %v1743 = vrot.slane %v1742, 4
      %v1744 = vrot.slane %v473, 5
      %v1745 = vrot.slane %v469, 6
      %v1746 = vor.u32 %v1744, %v1745
      %v1747 = vsel %vm1619, %v1743, %v1746
      %v1748 = vrot.slane %v1746, 4
      %v1750 = vshrl.u32 %v1604, 16
      %v1752 = vrot.slane %v1750, 5
      %v1753 = vshll.u32 %v1604, 16
      %v1755 = vrot.slane %v1753, 6
      %v1756 = vor.u32 %v1752, %v1755
      %v1757 = vsel %vm1619, %v1748, %v1756
      %v1759 = vshrl.u32 %v793, 16
      %v1761 = vrot.slane %v1759, 5
      %v1762 = vshll.u32 %v793, 16
      %v1764 = vrot.slane %v1762, 6
      %v1765 = vor.u32 %v1761, %v1764
      %v1766 = vrot.slane %v1765, 4
      %v1767 = vrot.slane %v497, 5
      %v1768 = vrot.slane %v493, 6
      %v1769 = vor.u32 %v1767, %v1768
      %v1770 = vsel %vm1619, %v1766, %v1769
      %v1771 = vrot.slane %v1769, 4
      %v1773 = vshrl.u32 %v1605, 16
      %v1775 = vrot.slane %v1773, 5
      %v1776 = vshll.u32 %v1605, 16
      %v1778 = vrot.slane %v1776, 6
      %v1779 = vor.u32 %v1775, %v1778
      %v1780 = vsel %vm1619, %v1771, %v1779
      %v1782 = vshrl.u32 %v794, 16
      %v1784 = vrot.slane %v1782, 5
      %v1785 = vshll.u32 %v794, 16
      %v1787 = vrot.slane %v1785, 6
      %v1788 = vor.u32 %v1784, %v1787
      %v1789 = vrot.slane %v1788, 4
      %v1790 = vrot.slane %v521, 5
      %v1791 = vrot.slane %v517, 6
      %v1792 = vor.u32 %v1790, %v1791
      %v1793 = vsel %vm1619, %v1789, %v1792
      %v1794 = vrot.slane %v1792, 4
      %v1796 = vshrl.u32 %v1606, 16
      %v1798 = vrot.slane %v1796, 5
      %v1799 = vshll.u32 %v1606, 16
      %v1801 = vrot.slane %v1799, 6
      %v1802 = vor.u32 %v1798, %v1801
      %v1803 = vsel %vm1619, %v1794, %v1802
      %v1805 = vshrl.u32 %v795, 16
      %v1807 = vrot.slane %v1805, 5
      %v1808 = vshll.u32 %v795, 16
      %v1810 = vrot.slane %v1808, 6
      %v1811 = vor.u32 %v1807, %v1810
      %v1812 = vrot.slane %v1811, 4
      %v1813 = vrot.slane %v545, 5
      %v1814 = vrot.slane %v541, 6
      %v1815 = vor.u32 %v1813, %v1814
      %v1816 = vsel %vm1619, %v1812, %v1815
      %v1817 = vrot.slane %v1815, 4
      %v1819 = vshrl.u32 %v1607, 16
      %v1821 = vrot.slane %v1819, 5
      %v1822 = vshll.u32 %v1607, 16
      %v1824 = vrot.slane %v1822, 6
      %v1825 = vor.u32 %v1821, %v1824
      %v1826 = vsel %vm1619, %v1817, %v1825
      %v1828 = vshrl.u32 %v796, 16
      %v1830 = vrot.slane %v1828, 5
      %v1831 = vshll.u32 %v796, 16
      %v1833 = vrot.slane %v1831, 6
      %v1834 = vor.u32 %v1830, %v1833
      %v1835 = vrot.slane %v1834, 4
      %v1836 = vrot.slane %v569, 5
      %v1837 = vrot.slane %v565, 6
      %v1838 = vor.u32 %v1836, %v1837
      %v1839 = vsel %vm1619, %v1835, %v1838
      %v1840 = vrot.slane %v1838, 4
      %v1842 = vshrl.u32 %v1608, 16
      %v1844 = vrot.slane %v1842, 5
      %v1845 = vshll.u32 %v1608, 16
      %v1847 = vrot.slane %v1845, 6
      %v1848 = vor.u32 %v1844, %v1847
      %v1849 = vsel %vm1619, %v1840, %v1848
      %v1851 = vshrl.u32 %v797, 16
      %v1853 = vrot.slane %v1851, 5
      %v1854 = vshll.u32 %v797, 16
      %v1856 = vrot.slane %v1854, 6
      %v1857 = vor.u32 %v1853, %v1856
      %v1858 = vrot.slane %v1857, 4
      %v1859 = vrot.slane %v593, 5
      %v1860 = vrot.slane %v589, 6
      %v1861 = vor.u32 %v1859, %v1860
      %v1862 = vsel %vm1619, %v1858, %v1861
      %v1863 = vrot.slane %v1861, 4
      %v1865 = vshrl.u32 %v1609, 16
      %v1867 = vrot.slane %v1865, 5
      %v1868 = vshll.u32 %v1609, 16
      %v1870 = vrot.slane %v1868, 6
      %v1871 = vor.u32 %v1867, %v1870
      %v1872 = vsel %vm1619, %v1863, %v1871
      %v1874 = vshrl.u32 %v798, 16
      %v1876 = vrot.slane %v1874, 5
      %v1877 = vshll.u32 %v798, 16
      %v1879 = vrot.slane %v1877, 6
      %v1880 = vor.u32 %v1876, %v1879
      %v1881 = vrot.slane %v1880, 4
      %v1882 = vrot.slane %v617, 5
      %v1883 = vrot.slane %v613, 6
      %v1884 = vor.u32 %v1882, %v1883
      %v1885 = vsel %vm1619, %v1881, %v1884
      %v1886 = vrot.slane %v1884, 4
      %v1888 = vshrl.u32 %v1610, 16
      %v1890 = vrot.slane %v1888, 5
      %v1891 = vshll.u32 %v1610, 16
      %v1893 = vrot.slane %v1891, 6
      %v1894 = vor.u32 %v1890, %v1893
      %v1895 = vsel %vm1619, %v1886, %v1894
      %v1897 = vshrl.u32 %v799, 16
      %v1899 = vrot.slane %v1897, 5
      %v1900 = vshll.u32 %v799, 16
      %v1902 = vrot.slane %v1900, 6
      %v1903 = vor.u32 %v1899, %v1902
      %v1904 = vrot.slane %v1903, 4
      %v1905 = vrot.slane %v641, 5
      %v1906 = vrot.slane %v637, 6
      %v1907 = vor.u32 %v1905, %v1906
      %v1908 = vsel %vm1619, %v1904, %v1907
      %v1909 = vrot.slane %v1907, 4
      %v1911 = vshrl.u32 %v1611, 16
      %v1913 = vrot.slane %v1911, 5
      %v1914 = vshll.u32 %v1611, 16
      %v1916 = vrot.slane %v1914, 6
      %v1917 = vor.u32 %v1913, %v1916
      %v1918 = vsel %vm1619, %v1909, %v1917
      %v1920 = vshrl.u32 %v800, 16
      %v1922 = vrot.slane %v1920, 5
      %v1923 = vshll.u32 %v800, 16
      %v1925 = vrot.slane %v1923, 6
      %v1926 = vor.u32 %v1922, %v1925
      %v1927 = vrot.slane %v1926, 4
      %v1928 = vrot.slane %v665, 5
      %v1929 = vrot.slane %v661, 6
      %v1930 = vor.u32 %v1928, %v1929
      %v1931 = vsel %vm1619, %v1927, %v1930
      %v1932 = vrot.slane %v1930, 4
      %v1934 = vshrl.u32 %v1612, 16
      %v1936 = vrot.slane %v1934, 5
      %v1937 = vshll.u32 %v1612, 16
      %v1939 = vrot.slane %v1937, 6
      %v1940 = vor.u32 %v1936, %v1939
      %v1941 = vsel %vm1619, %v1932, %v1940
      %v1943 = vshrl.u32 %v801, 16
      %v1945 = vrot.slane %v1943, 5
      %v1946 = vshll.u32 %v801, 16
      %v1948 = vrot.slane %v1946, 6
      %v1949 = vor.u32 %v1945, %v1948
      %v1950 = vrot.slane %v1949, 4
      %v1951 = vrot.slane %v689, 5
      %v1952 = vrot.slane %v685, 6
      %v1953 = vor.u32 %v1951, %v1952
      %v1954 = vsel %vm1619, %v1950, %v1953
      %v1955 = vrot.slane %v1953, 4
      %v1957 = vshrl.u32 %v1613, 16
      %v1959 = vrot.slane %v1957, 5
      %v1960 = vshll.u32 %v1613, 16
      %v1962 = vrot.slane %v1960, 6
      %v1963 = vor.u32 %v1959, %v1962
      %v1964 = vsel %vm1619, %v1955, %v1963
      %v1966 = vshrl.u32 %v802, 16
      %v1968 = vrot.slane %v1966, 5
      %v1969 = vshll.u32 %v802, 16
      %v1971 = vrot.slane %v1969, 6
      %v1972 = vor.u32 %v1968, %v1971
      %v1973 = vrot.slane %v1972, 4
      %v1974 = vrot.slane %v713, 5
      %v1975 = vrot.slane %v709, 6
      %v1976 = vor.u32 %v1974, %v1975
      %v1977 = vsel %vm1619, %v1973, %v1976
      %v1978 = vrot.slane %v1976, 4
      %v1980 = vshrl.u32 %v1614, 16
      %v1982 = vrot.slane %v1980, 5
      %v1983 = vshll.u32 %v1614, 16
      %v1985 = vrot.slane %v1983, 6
      %v1986 = vor.u32 %v1982, %v1985
      %v1987 = vsel %vm1619, %v1978, %v1986
      %v1989 = vshrl.u32 %v803, 16
      %v1991 = vrot.slane %v1989, 5
      %v1992 = vshll.u32 %v803, 16
      %v1994 = vrot.slane %v1992, 6
      %v1995 = vor.u32 %v1991, %v1994
      %v1996 = vrot.slane %v1995, 4
      %v1997 = vrot.slane %v737, 5
      %v1998 = vrot.slane %v733, 6
      %v1999 = vor.u32 %v1997, %v1998
      %v2000 = vsel %vm1619, %v1996, %v1999
      %v2001 = vrot.slane %v1999, 4
      %v2003 = vshrl.u32 %v1615, 16
      %v2005 = vrot.slane %v2003, 5
      %v2006 = vshll.u32 %v1615, 16
      %v2008 = vrot.slane %v2006, 6
      %v2009 = vor.u32 %v2005, %v2008
      %v2010 = vsel %vm1619, %v2001, %v2009
      %v2012 = vshrl.u32 %v804, 16
      %v2014 = vrot.slane %v2012, 5
      %v2015 = vshll.u32 %v804, 16
      %v2017 = vrot.slane %v2015, 6
      %v2018 = vor.u32 %v2014, %v2017
      %v2019 = vrot.slane %v2018, 4
      %v2020 = vrot.slane %v761, 5
      %v2021 = vrot.slane %v757, 6
      %v2022 = vor.u32 %v2020, %v2021
      %v2023 = vsel %vm1619, %v2019, %v2022
      %v2024 = vrot.slane %v2022, 4
      %v2026 = vshrl.u32 %v1616, 16
      %v2028 = vrot.slane %v2026, 5
      %v2029 = vshll.u32 %v1616, 16
      %v2031 = vrot.slane %v2029, 6
      %v2032 = vor.u32 %v2028, %v2031
      %v2033 = vsel %vm1619, %v2024, %v2032
      %s2034 = scalar_lea.vmem %s1, 128
      %v2035 = vld [vmem:[%s2034] sm:$0xf]
      %v2036 = vld [vmem:[%s2034 + $0x4] sm:$0xf]
      %v2037 = vld [vmem:[%s2034 + $0x8] sm:$0xf]
      %v2038 = vld [vmem:[%s2034 + $0xc] sm:$0xf]
      %v2039 = vld [vmem:[%s2034 + $0x10] sm:$0xf]
      %v2040 = vld [vmem:[%s2034 + $0x14] sm:$0xf]
      %v2041 = vld [vmem:[%s2034 + $0x18] sm:$0xf]
      %v2042 = vld [vmem:[%s2034 + $0x1c] sm:$0xf]
      %v2043 = vld [vmem:[%s2034 + $0x20] sm:$0xf]
      %v2044 = vld [vmem:[%s2034 + $0x24] sm:$0xf]
      %v2045 = vld [vmem:[%s2034 + $0x28] sm:$0xf]
      %v2046 = vld [vmem:[%s2034 + $0x2c] sm:$0xf]
      %v2047 = vld [vmem:[%s2034 + $0x30] sm:$0xf]
      %v2048 = vld [vmem:[%s2034 + $0x34] sm:$0xf]
      %v2049 = vld [vmem:[%s2034 + $0x38] sm:$0xf]
      %v2050 = vld [vmem:[%s2034 + $0x3c] sm:$0xf]
      %v2051 = vunpack.c.l.b16 %v1632
      %v2052 = vunpack.c.l.b16 %v1642
      %v2053 = vunpack.c.l.b16 %v1655
      %v2054 = vunpack.c.l.b16 %v1665
      %v2055 = vunpack.c.l.b16 %v1678
      %v2056 = vunpack.c.l.b16 %v1688
      %v2057 = vunpack.c.l.b16 %v1701
      %v2058 = vunpack.c.l.b16 %v1711
      %v2059 = vunpack.c.l.b16 %v1724
      %v2060 = vunpack.c.l.b16 %v1734
      %v2061 = vunpack.c.l.b16 %v1747
      %v2062 = vunpack.c.l.b16 %v1757
      %v2063 = vunpack.c.l.b16 %v1770
      %v2064 = vunpack.c.l.b16 %v1780
      %v2065 = vunpack.c.l.b16 %v1793
      %v2066 = vunpack.c.l.b16 %v1803
      %v2067 = vunpack.c.l.b16 %v1816
      %v2068 = vunpack.c.l.b16 %v1826
      %v2069 = vunpack.c.l.b16 %v1839
      %v2070 = vunpack.c.l.b16 %v1849
      %v2071 = vunpack.c.l.b16 %v1862
      %v2072 = vunpack.c.l.b16 %v1872
      %v2073 = vunpack.c.l.b16 %v1885
      %v2074 = vunpack.c.l.b16 %v1895
      %v2075 = vunpack.c.l.b16 %v1908
      %v2076 = vunpack.c.l.b16 %v1918
      %v2077 = vunpack.c.l.b16 %v1931
      %v2078 = vunpack.c.l.b16 %v1941
      %v2079 = vunpack.c.l.b16 %v1954
      %v2080 = vunpack.c.l.b16 %v1964
      %v2081 = vunpack.c.l.b16 %v1977
      %v2082 = vunpack.c.l.b16 %v1987
      %v2083 = vunpack.c.l.b16 %v2000
      %v2084 = vunpack.c.l.b16 %v2010
      %v2085 = vunpack.c.l.b16 %v2023
      %v2086 = vunpack.c.l.b16 %v2033
      %v2087 = vpack.c.b16 %v2052, %v2051
      %v2088 = vpack.c.b16 %v2054, %v2053
      %v2089 = vpack.c.b16 %v2056, %v2055
      %v2090 = vpack.c.b16 %v2058, %v2057
      %v2091 = vpack.c.b16 %v2060, %v2059
      %v2092 = vpack.c.b16 %v2062, %v2061
      %v2093 = vpack.c.b16 %v2064, %v2063
      %v2094 = vpack.c.b16 %v2066, %v2065
      %v2095 = vpack.c.b16 %v2068, %v2067
      %v2096 = vpack.c.b16 %v2070, %v2069
      %v2097 = vpack.c.b16 %v2072, %v2071
      %v2098 = vpack.c.b16 %v2074, %v2073
      %v2099 = vpack.c.b16 %v2076, %v2075
      %v2100 = vpack.c.b16 %v2078, %v2077
      %v2101 = vpack.c.b16 %v2080, %v2079
      %v2102 = vpack.c.b16 %v2082, %v2081
      %v2103 = vpack.c.b16 %v2084, %v2083
      %v2104 = vpack.c.b16 %v2086, %v2085
      %v2139 = vunpack.c.l.b16 %v2035
      %v2140 = vunpack.c.l.b16 %v2036
      %v2141 = vunpack.c.l.b16 %v2037
      %v2142 = vunpack.c.l.b16 %v2038
      %v2143 = vunpack.c.l.b16 %v2039
      %v2144 = vunpack.c.l.b16 %v2040
      %v2145 = vunpack.c.l.b16 %v2041
      %v2146 = vunpack.c.l.b16 %v2042
      %v2147 = vunpack.c.l.b16 %v2043
      %v2148 = vunpack.c.l.b16 %v2044
      %v2149 = vunpack.c.l.b16 %v2045
      %v2150 = vunpack.c.l.b16 %v2046
      %v2151 = vunpack.c.l.b16 %v2047
      %v2152 = vunpack.c.l.b16 %v2048
      %v2153 = vunpack.c.l.b16 %v2049
      %v2154 = vunpack.c.l.b16 %v2050
      %v2155 = vpack.c.b16 %v2140, %v2139
      %v2156 = vpack.c.b16 %v2142, %v2141
      %v2157 = vpack.c.b16 %v2144, %v2143
      %v2158 = vpack.c.b16 %v2146, %v2145
      %v2159 = vpack.c.b16 %v2148, %v2147
      %v2160 = vpack.c.b16 %v2150, %v2149
      %v2161 = vpack.c.b16 %v2152, %v2151
      %v2162 = vpack.c.b16 %v2154, %v2153
      %2171 = vmatprep.subr.bf16.mxu0 0
      %2172 = vmatpush1.bf16.msra.mxu0 %v2155
      %2173 = vmatprep.subr.bf16.mxu0 0
      %2174 = vmatpush1.bf16.msra.mxu0 %v2156
      %2175 = vmatprep.subr.bf16.mxu0 0
      %2176 = vmatpush1.bf16.msra.mxu0 %v2157
      %2177 = vmatprep.subr.bf16.mxu0 0
      %2178 = vmatpush1.bf16.msra.mxu0 %v2158
      %2179 = vmatprep.subr.bf16.mxu0 0
      %2180 = vmatpush1.bf16.msra.mxu0 %v2159
      %2181 = vmatprep.subr.bf16.mxu0 0
      %2182 = vmatpush1.bf16.msra.mxu0 %v2160
      %2183 = vmatprep.subr.bf16.mxu0 0
      %2184 = vmatpush1.bf16.msra.mxu0 %v2161
      %2185 = vmatprep.subr.bf16.mxu0 0
      %2186 = vmatpush1.bf16.msra.mxu0 %v2162
      %2187 = vmatprep.subr.bf16.mxu0 0
      %2188 = vmatpush1.bf16.msra.mxu0 0
      %2189 = vmatprep.subr.bf16.mxu0 0
      %2190 = vmatpush1.bf16.msra.mxu0 0
      %2191 = vmatprep.subr.bf16.mxu0 0
      %2192 = vmatpush1.bf16.msra.mxu0 0
      %2193 = vmatprep.subr.bf16.mxu0 0
      %2194 = vmatpush1.bf16.msra.mxu0 0
      %2195 = vmatprep.subr.bf16.mxu0 0
      %2196 = vmatpush1.bf16.msra.mxu0 0
      %2197 = vmatprep.subr.bf16.mxu0 0
      %2198 = vmatpush1.bf16.msra.mxu0 0
      %2199 = vmatprep.subr.bf16.mxu0 0
      %2200 = vmatpush1.bf16.msra.mxu0 0
      %2201 = vmatprep.subr.bf16.mxu0 0
      %2202 = vmatpush1.bf16.msra.mxu0 0
      %2203 = vmatprep.mubr.bf16.mxu0 0
      %2204 = vmatmul.mubr.bf16.gmra.mrb[0].mxu0 %v2087
      %v2205 = vpop.f32.mrb[0].mxu0
      %v2206 = vadd.f32 0.0, %v2205
      %v2207 = vpop.f32.mrb[0].mxu0
      %v2208 = vpop.f32.mrb[0].mxu0
      %v2209 = vadd.f32 0.0, %v2208
      %v2210 = vpop.f32.mrb[0].mxu0
      %2211 = vmatprep.mubr.bf16.mxu0 0
      %2212 = vmatmul.mubr.bf16.gmra.mrb[0].mxu0 %v2088
      %v2213 = vpop.f32.mrb[0].mxu0
      %v2214 = vadd.f32 0.0, %v2213
      %v2215 = vpop.f32.mrb[0].mxu0
      %v2216 = vpop.f32.mrb[0].mxu0
      %v2217 = vadd.f32 0.0, %v2216
      %v2218 = vpop.f32.mrb[0].mxu0
      %2219 = vmatprep.mubr.bf16.mxu0 0
      %2220 = vmatmul.mubr.bf16.gmra.mrb[0].mxu0 %v2089
      %v2221 = vpop.f32.mrb[0].mxu0
      %v2222 = vadd.f32 0.0, %v2221
      %v2223 = vpop.f32.mrb[0].mxu0
      %v2224 = vpop.f32.mrb[0].mxu0
      %v2225 = vadd.f32 0.0, %v2224
      %v2226 = vpop.f32.mrb[0].mxu0
      %2227 = vmatprep.mubr.bf16.mxu0 0
      %2228 = vmatmul.mubr.bf16.gmra.mrb[0].mxu0 %v2090
      %v2229 = vpop.f32.mrb[0].mxu0
      %v2230 = vadd.f32 0.0, %v2229
      %v2231 = vpop.f32.mrb[0].mxu0
      %v2232 = vpop.f32.mrb[0].mxu0
      %v2233 = vadd.f32 0.0, %v2232
      %v2234 = vpop.f32.mrb[0].mxu0
      %2235 = vmatprep.mubr.bf16.mxu0 0
      %2236 = vmatmul.mubr.bf16.gmra.mrb[0].mxu0 %v2091
      %v2237 = vpop.f32.mrb[0].mxu0
      %v2238 = vadd.f32 0.0, %v2237
      %v2239 = vpop.f32.mrb[0].mxu0
      %v2240 = vpop.f32.mrb[0].mxu0
      %v2241 = vadd.f32 0.0, %v2240
      %v2242 = vpop.f32.mrb[0].mxu0
      %2243 = vmatprep.mubr.bf16.mxu0 0
      %2244 = vmatmul.mubr.bf16.gmra.mrb[0].mxu0 %v2092
      %v2245 = vpop.f32.mrb[0].mxu0
      %v2246 = vadd.f32 0.0, %v2245
      %v2247 = vpop.f32.mrb[0].mxu0
      %v2248 = vpop.f32.mrb[0].mxu0
      %v2249 = vadd.f32 0.0, %v2248
      %v2250 = vpop.f32.mrb[0].mxu0
      %2251 = vmatprep.mubr.bf16.mxu0 0
      %2252 = vmatmul.mubr.bf16.gmra.mrb[0].mxu0 %v2093
      %v2253 = vpop.f32.mrb[0].mxu0
      %v2254 = vadd.f32 0.0, %v2253
      %v2255 = vpop.f32.mrb[0].mxu0
      %v2256 = vpop.f32.mrb[0].mxu0
      %v2257 = vadd.f32 0.0, %v2256
      %v2258 = vpop.f32.mrb[0].mxu0
      %2259 = vmatprep.mubr.bf16.mxu0 0
      %2260 = vmatmul.mubr.bf16.gmra.mrb[0].mxu0 %v2094
      %v2261 = vpop.f32.mrb[0].mxu0
      %v2262 = vadd.f32 0.0, %v2261
      %v2263 = vpop.f32.mrb[0].mxu0
      %v2264 = vpop.f32.mrb[0].mxu0
      %v2265 = vadd.f32 0.0, %v2264
      %v2266 = vpop.f32.mrb[0].mxu0
      %2267 = vmatprep.mubr.bf16.mxu0 0
      %2268 = vmatmul.mubr.bf16.gmra.mrb[0].mxu0 %v2095
      %v2269 = vpop.f32.mrb[0].mxu0
      %v2270 = vadd.f32 0.0, %v2269
      %v2271 = vpop.f32.mrb[0].mxu0
      %v2272 = vpop.f32.mrb[0].mxu0
      %v2273 = vadd.f32 0.0, %v2272
      %v2274 = vpop.f32.mrb[0].mxu0
      %2275 = vmatprep.mubr.bf16.mxu0 0
      %2276 = vmatmul.mubr.bf16.gmra.mrb[0].mxu0 %v2096
      %v2277 = vpop.f32.mrb[0].mxu0
      %v2278 = vadd.f32 0.0, %v2277
      %v2279 = vpop.f32.mrb[0].mxu0
      %v2280 = vpop.f32.mrb[0].mxu0
      %v2281 = vadd.f32 0.0, %v2280
      %v2282 = vpop.f32.mrb[0].mxu0
      %2283 = vmatprep.mubr.bf16.mxu0 0
      %2284 = vmatmul.mubr.bf16.gmra.mrb[0].mxu0 %v2097
      %v2285 = vpop.f32.mrb[0].mxu0
      %v2286 = vadd.f32 0.0, %v2285
      %v2287 = vpop.f32.mrb[0].mxu0
      %v2288 = vpop.f32.mrb[0].mxu0
      %v2289 = vadd.f32 0.0, %v2288
      %v2290 = vpop.f32.mrb[0].mxu0
      %2291 = vmatprep.mubr.bf16.mxu0 0
      %2292 = vmatmul.mubr.bf16.gmra.mrb[0].mxu0 %v2098
      %v2293 = vpop.f32.mrb[0].mxu0
      %v2294 = vadd.f32 0.0, %v2293
      %v2295 = vpop.f32.mrb[0].mxu0
      %v2296 = vpop.f32.mrb[0].mxu0
      %v2297 = vadd.f32 0.0, %v2296
      %v2298 = vpop.f32.mrb[0].mxu0
      %2299 = vmatprep.mubr.bf16.mxu0 0
      %2300 = vmatmul.mubr.bf16.gmra.mrb[0].mxu0 %v2099
      %v2301 = vpop.f32.mrb[0].mxu0
      %v2302 = vadd.f32 0.0, %v2301
      %v2303 = vpop.f32.mrb[0].mxu0
      %v2304 = vpop.f32.mrb[0].mxu0
      %v2305 = vadd.f32 0.0, %v2304
      %v2306 = vpop.f32.mrb[0].mxu0
      %2307 = vmatprep.mubr.bf16.mxu0 0
      %2308 = vmatmul.mubr.bf16.gmra.mrb[0].mxu0 %v2100
      %v2309 = vpop.f32.mrb[0].mxu0
      %v2310 = vadd.f32 0.0, %v2309
      %v2311 = vpop.f32.mrb[0].mxu0
      %v2312 = vpop.f32.mrb[0].mxu0
      %v2313 = vadd.f32 0.0, %v2312
      %v2314 = vpop.f32.mrb[0].mxu0
      %2315 = vmatprep.mubr.bf16.mxu0 0
      %2316 = vmatmul.mubr.bf16.gmra.mrb[0].mxu0 %v2101
      %v2317 = vpop.f32.mrb[0].mxu0
      %v2318 = vadd.f32 0.0, %v2317
      %v2319 = vpop.f32.mrb[0].mxu0
      %v2320 = vpop.f32.mrb[0].mxu0
      %v2321 = vadd.f32 0.0, %v2320
      %v2322 = vpop.f32.mrb[0].mxu0
      %2323 = vmatprep.mubr.bf16.mxu0 0
      %2324 = vmatmul.mubr.bf16.gmra.mrb[0].mxu0 %v2102
      %v2325 = vpop.f32.mrb[0].mxu0
      %v2326 = vadd.f32 0.0, %v2325
      %v2327 = vpop.f32.mrb[0].mxu0
      %v2328 = vpop.f32.mrb[0].mxu0
      %v2329 = vadd.f32 0.0, %v2328
      %v2330 = vpop.f32.mrb[0].mxu0
      %2331 = vmatprep.mubr.bf16.mxu0 0
      %2332 = vmatmul.mubr.bf16.gmra.mrb[0].mxu0 %v2103
      %v2333 = vpop.f32.mrb[0].mxu0
      %v2334 = vadd.f32 0.0, %v2333
      %v2335 = vpop.f32.mrb[0].mxu0
      %v2336 = vpop.f32.mrb[0].mxu0
      %v2337 = vadd.f32 0.0, %v2336
      %v2338 = vpop.f32.mrb[0].mxu0
      %2339 = vmatprep.mubr.bf16.mxu0 0
      %2340 = vmatmul.mubr.bf16.gmra.mrb[0].mxu0 %v2104
      %v2341 = vpop.f32.mrb[0].mxu0
      %v2342 = vadd.f32 0.0, %v2341
      %v2343 = vpop.f32.mrb[0].mxu0
      %v2344 = vpop.f32.mrb[0].mxu0
      %v2345 = vadd.f32 0.0, %v2344
      %v2346 = vpop.f32.mrb[0].mxu0
      %2347 = vdwg.mxu0
      %v2348 = vadd.f32 %v1457, %v2206
      %v2349 = vadd.f32 %v1460, %v2209
      %v2350 = vadd.f32 %v1465, %v2214
      %v2351 = vadd.f32 %v1468, %v2217
      %v2352 = vadd.f32 %v1473, %v2222
      %v2353 = vadd.f32 %v1476, %v2225
      %v2354 = vadd.f32 %v1481, %v2230
      %v2355 = vadd.f32 %v1484, %v2233
      %v2356 = vadd.f32 %v1489, %v2238
      %v2357 = vadd.f32 %v1492, %v2241
      %v2358 = vadd.f32 %v1497, %v2246
      %v2359 = vadd.f32 %v1500, %v2249
      %v2360 = vadd.f32 %v1505, %v2254
      %v2361 = vadd.f32 %v1508, %v2257
      %v2362 = vadd.f32 %v1513, %v2262
      %v2363 = vadd.f32 %v1516, %v2265
      %v2364 = vadd.f32 %v1521, %v2270
      %v2365 = vadd.f32 %v1524, %v2273
      %v2366 = vadd.f32 %v1529, %v2278
      %v2367 = vadd.f32 %v1532, %v2281
      %v2368 = vadd.f32 %v1537, %v2286
      %v2369 = vadd.f32 %v1540, %v2289
      %v2370 = vadd.f32 %v1545, %v2294
      %v2371 = vadd.f32 %v1548, %v2297
      %v2372 = vadd.f32 %v1553, %v2302
      %v2373 = vadd.f32 %v1556, %v2305
      %v2374 = vadd.f32 %v1561, %v2310
      %v2375 = vadd.f32 %v1564, %v2313
      %v2376 = vadd.f32 %v1569, %v2318
      %v2377 = vadd.f32 %v1572, %v2321
      %v2378 = vadd.f32 %v1577, %v2326
      %v2379 = vadd.f32 %v1580, %v2329
      %v2380 = vadd.f32 %v1585, %v2334
      %v2381 = vadd.f32 %v1588, %v2337
      %v2382 = vadd.f32 %v1593, %v2342
      %v2383 = vadd.f32 %v1596, %v2345
      %s2384 = sadd.s32 %s278, 1
      %s2385 = smul.u32 %s2384, 3
      %s2386 = smul.addr %s2385, 4
      %s2387 = scalar_lea.vmem %s265, %s2386
      %v2388 = vld [vmem:[%s2387] sm:$0xf]
      %v2389 = vld [vmem:[%s2387 + $0x4] sm:$0xf]
      %v2390 = vld [vmem:[%s2387 + $0x8] sm:$0x1]
      %v2391 = vld [vmem:[%s2387 + $0xc] sm:$0xf]
      %v2392 = vld [vmem:[%s2387 + $0x10] sm:$0xf]
      %v2393 = vld [vmem:[%s2387 + $0x14] sm:$0x1]
      %v2394 = vld [vmem:[%s2387 + $0x18] sm:$0xf]
      %v2395 = vld [vmem:[%s2387 + $0x1c] sm:$0xf]
      %v2396 = vld [vmem:[%s2387 + $0x20] sm:$0x1]
      %v2397 = vld [vmem:[%s2387 + $0x24] sm:$0xf]
      %v2398 = vld [vmem:[%s2387 + $0x28] sm:$0xf]
      %v2399 = vld [vmem:[%s2387 + $0x2c] sm:$0x1]
      %v2400 = vld [vmem:[%s2387 + $0x30] sm:$0xf]
      %v2401 = vld [vmem:[%s2387 + $0x34] sm:$0xf]
      %v2402 = vld [vmem:[%s2387 + $0x38] sm:$0x1]
      %v2403 = vld [vmem:[%s2387 + $0x3c] sm:$0xf]
      %v2404 = vld [vmem:[%s2387 + $0x40] sm:$0xf]
      %v2405 = vld [vmem:[%s2387 + $0x44] sm:$0x1]
      %v2406 = vld [vmem:[%s2387 + $0x48] sm:$0xf]
      %v2407 = vld [vmem:[%s2387 + $0x4c] sm:$0xf]
      %v2408 = vld [vmem:[%s2387 + $0x50] sm:$0x1]
      %v2409 = vld [vmem:[%s2387 + $0x54] sm:$0xf]
      %v2410 = vld [vmem:[%s2387 + $0x58] sm:$0xf]
      %v2411 = vld [vmem:[%s2387 + $0x5c] sm:$0x1]
      %v2412 = vld [vmem:[%s2387 + $0x60] sm:$0xf]
      %v2413 = vld [vmem:[%s2387 + $0x64] sm:$0xf]
      %v2414 = vld [vmem:[%s2387 + $0x68] sm:$0x1]
      %v2415 = vld [vmem:[%s2387 + $0x6c] sm:$0xf]
      %v2416 = vld [vmem:[%s2387 + $0x70] sm:$0xf]
      %v2417 = vld [vmem:[%s2387 + $0x74] sm:$0x1]
      %v2418 = vld [vmem:[%s2387 + $0x78] sm:$0xf]
      %v2419 = vld [vmem:[%s2387 + $0x7c] sm:$0xf]
      %v2420 = vld [vmem:[%s2387 + $0x80] sm:$0x1]
      %v2421 = vld [vmem:[%s2387 + $0x84] sm:$0xf]
      %v2422 = vld [vmem:[%s2387 + $0x88] sm:$0xf]
      %v2423 = vld [vmem:[%s2387 + $0x8c] sm:$0x1]
      %v2424 = vld [vmem:[%s2387 + $0x90] sm:$0xf]
      %v2425 = vld [vmem:[%s2387 + $0x94] sm:$0xf]
      %v2426 = vld [vmem:[%s2387 + $0x98] sm:$0x1]
      %v2427 = vld [vmem:[%s2387 + $0x9c] sm:$0xf]
      %v2428 = vld [vmem:[%s2387 + $0xa0] sm:$0xf]
      %v2429 = vld [vmem:[%s2387 + $0xa4] sm:$0x1]
      %v2430 = vld [vmem:[%s2387 + $0xa8] sm:$0xf]
      %v2431 = vld [vmem:[%s2387 + $0xac] sm:$0xf]
      %v2432 = vld [vmem:[%s2387 + $0xb0] sm:$0x1]
      %v2433 = vld [vmem:[%s2387 + $0xb4] sm:$0xf]
      %v2434 = vld [vmem:[%s2387 + $0xb8] sm:$0xf]
      %v2435 = vld [vmem:[%s2387 + $0xbc] sm:$0x1]
      %v2436 = vld [vmem:[%s2387 + $0xc0] sm:$0xf]
      %v2437 = vld [vmem:[%s2387 + $0xc4] sm:$0xf]
      %v2438 = vld [vmem:[%s2387 + $0xc8] sm:$0x1]
      %v2439 = vld [vmem:[%s2387 + $0xcc] sm:$0xf]
      %v2440 = vld [vmem:[%s2387 + $0xd0] sm:$0xf]
      %v2441 = vld [vmem:[%s2387 + $0xd4] sm:$0x1]
      %v2443 = vshrl.u32 %v2388, 16
      %v2445 = vrot.slane %v2443, 4
      %v2446 = vshll.u32 %v2388, 16
      %v2448 = vrot.slane %v2446, 5
      %v2449 = vor.u32 %v2445, %v2448
      %v2450 = vrot.slane %v2449, 4
      %v2452 = vshll.u32 %v2389, 16
      %v2454 = vrot.slane %v2452, 5
      %v2455 = vsel %vm338, %v2450, %v2454
      %v2456 = vshrl.u32 %v2389, 16
      %v2458 = vrot.slane %v2456, 4
      %v2459 = vor.u32 %v2458, %v2454
      %v2460 = vrot.slane %v2459, 4
      %v2462 = vshll.u32 %v2390, 16
      %v2464 = vrot.slane %v2462, 5
      %v2465 = vsel %vm338, %v2460, %v2464
      %v2467 = vshrl.u32 %v2391, 16
      %v2469 = vrot.slane %v2467, 4
      %v2470 = vshll.u32 %v2391, 16
      %v2472 = vrot.slane %v2470, 5
      %v2473 = vor.u32 %v2469, %v2472
      %v2474 = vrot.slane %v2473, 4
      %v2476 = vshll.u32 %v2392, 16
      %v2478 = vrot.slane %v2476, 5
      %v2479 = vsel %vm338, %v2474, %v2478
      %v2480 = vshrl.u32 %v2392, 16
      %v2482 = vrot.slane %v2480, 4
      %v2483 = vor.u32 %v2482, %v2478
      %v2484 = vrot.slane %v2483, 4
      %v2486 = vshll.u32 %v2393, 16
      %v2488 = vrot.slane %v2486, 5
      %v2489 = vsel %vm338, %v2484, %v2488
      %v2491 = vshrl.u32 %v2394, 16
      %v2493 = vrot.slane %v2491, 4
      %v2494 = vshll.u32 %v2394, 16
      %v2496 = vrot.slane %v2494, 5
      %v2497 = vor.u32 %v2493, %v2496
      %v2498 = vrot.slane %v2497, 4
      %v2500 = vshll.u32 %v2395, 16
      %v2502 = vrot.slane %v2500, 5
      %v2503 = vsel %vm338, %v2498, %v2502
      %v2504 = vshrl.u32 %v2395, 16
      %v2506 = vrot.slane %v2504, 4
      %v2507 = vor.u32 %v2506, %v2502
      %v2508 = vrot.slane %v2507, 4
      %v2510 = vshll.u32 %v2396, 16
      %v2512 = vrot.slane %v2510, 5
      %v2513 = vsel %vm338, %v2508, %v2512
      %v2515 = vshrl.u32 %v2397, 16
      %v2517 = vrot.slane %v2515, 4
      %v2518 = vshll.u32 %v2397, 16
      %v2520 = vrot.slane %v2518, 5
      %v2521 = vor.u32 %v2517, %v2520
      %v2522 = vrot.slane %v2521, 4
      %v2524 = vshll.u32 %v2398, 16
      %v2526 = vrot.slane %v2524, 5
      %v2527 = vsel %vm338, %v2522, %v2526
      %v2528 = vshrl.u32 %v2398, 16
      %v2530 = vrot.slane %v2528, 4
      %v2531 = vor.u32 %v2530, %v2526
      %v2532 = vrot.slane %v2531, 4
      %v2534 = vshll.u32 %v2399, 16
      %v2536 = vrot.slane %v2534, 5
      %v2537 = vsel %vm338, %v2532, %v2536
      %v2539 = vshrl.u32 %v2400, 16
      %v2541 = vrot.slane %v2539, 4
      %v2542 = vshll.u32 %v2400, 16
      %v2544 = vrot.slane %v2542, 5
      %v2545 = vor.u32 %v2541, %v2544
      %v2546 = vrot.slane %v2545, 4
      %v2548 = vshll.u32 %v2401, 16
      %v2550 = vrot.slane %v2548, 5
      %v2551 = vsel %vm338, %v2546, %v2550
      %v2552 = vshrl.u32 %v2401, 16
      %v2554 = vrot.slane %v2552, 4
      %v2555 = vor.u32 %v2554, %v2550
      %v2556 = vrot.slane %v2555, 4
      %v2558 = vshll.u32 %v2402, 16
      %v2560 = vrot.slane %v2558, 5
      %v2561 = vsel %vm338, %v2556, %v2560
      %v2563 = vshrl.u32 %v2403, 16
      %v2565 = vrot.slane %v2563, 4
      %v2566 = vshll.u32 %v2403, 16
      %v2568 = vrot.slane %v2566, 5
      %v2569 = vor.u32 %v2565, %v2568
      %v2570 = vrot.slane %v2569, 4
      %v2572 = vshll.u32 %v2404, 16
      %v2574 = vrot.slane %v2572, 5
      %v2575 = vsel %vm338, %v2570, %v2574
      %v2576 = vshrl.u32 %v2404, 16
      %v2578 = vrot.slane %v2576, 4
      %v2579 = vor.u32 %v2578, %v2574
      %v2580 = vrot.slane %v2579, 4
      %v2582 = vshll.u32 %v2405, 16
      %v2584 = vrot.slane %v2582, 5
      %v2585 = vsel %vm338, %v2580, %v2584
      %v2587 = vshrl.u32 %v2406, 16
      %v2589 = vrot.slane %v2587, 4
      %v2590 = vshll.u32 %v2406, 16
      %v2592 = vrot.slane %v2590, 5
      %v2593 = vor.u32 %v2589, %v2592
      %v2594 = vrot.slane %v2593, 4
      %v2596 = vshll.u32 %v2407, 16
      %v2598 = vrot.slane %v2596, 5
      %v2599 = vsel %vm338, %v2594, %v2598
      %v2600 = vshrl.u32 %v2407, 16
      %v2602 = vrot.slane %v2600, 4
      %v2603 = vor.u32 %v2602, %v2598
      %v2604 = vrot.slane %v2603, 4
      %v2606 = vshll.u32 %v2408, 16
      %v2608 = vrot.slane %v2606, 5
      %v2609 = vsel %vm338, %v2604, %v2608
      %v2611 = vshrl.u32 %v2409, 16
      %v2613 = vrot.slane %v2611, 4
      %v2614 = vshll.u32 %v2409, 16
      %v2616 = vrot.slane %v2614, 5
      %v2617 = vor.u32 %v2613, %v2616
      %v2618 = vrot.slane %v2617, 4
      %v2620 = vshll.u32 %v2410, 16
      %v2622 = vrot.slane %v2620, 5
      %v2623 = vsel %vm338, %v2618, %v2622
      %v2624 = vshrl.u32 %v2410, 16
      %v2626 = vrot.slane %v2624, 4
      %v2627 = vor.u32 %v2626, %v2622
      %v2628 = vrot.slane %v2627, 4
      %v2630 = vshll.u32 %v2411, 16
      %v2632 = vrot.slane %v2630, 5
      %v2633 = vsel %vm338, %v2628, %v2632
      %v2635 = vshrl.u32 %v2412, 16
      %v2637 = vrot.slane %v2635, 4
      %v2638 = vshll.u32 %v2412, 16
      %v2640 = vrot.slane %v2638, 5
      %v2641 = vor.u32 %v2637, %v2640
      %v2642 = vrot.slane %v2641, 4
      %v2644 = vshll.u32 %v2413, 16
      %v2646 = vrot.slane %v2644, 5
      %v2647 = vsel %vm338, %v2642, %v2646
      %v2648 = vshrl.u32 %v2413, 16
      %v2650 = vrot.slane %v2648, 4
      %v2651 = vor.u32 %v2650, %v2646
      %v2652 = vrot.slane %v2651, 4
      %v2654 = vshll.u32 %v2414, 16
      %v2656 = vrot.slane %v2654, 5
      %v2657 = vsel %vm338, %v2652, %v2656
      %v2659 = vshrl.u32 %v2415, 16
      %v2661 = vrot.slane %v2659, 4
      %v2662 = vshll.u32 %v2415, 16
      %v2664 = vrot.slane %v2662, 5
      %v2665 = vor.u32 %v2661, %v2664
      %v2666 = vrot.slane %v2665, 4
      %v2668 = vshll.u32 %v2416, 16
      %v2670 = vrot.slane %v2668, 5
      %v2671 = vsel %vm338, %v2666, %v2670
      %v2672 = vshrl.u32 %v2416, 16
      %v2674 = vrot.slane %v2672, 4
      %v2675 = vor.u32 %v2674, %v2670
      %v2676 = vrot.slane %v2675, 4
      %v2678 = vshll.u32 %v2417, 16
      %v2680 = vrot.slane %v2678, 5
      %v2681 = vsel %vm338, %v2676, %v2680
      %v2683 = vshrl.u32 %v2418, 16
      %v2685 = vrot.slane %v2683, 4
      %v2686 = vshll.u32 %v2418, 16
      %v2688 = vrot.slane %v2686, 5
      %v2689 = vor.u32 %v2685, %v2688
      %v2690 = vrot.slane %v2689, 4
      %v2692 = vshll.u32 %v2419, 16
      %v2694 = vrot.slane %v2692, 5
      %v2695 = vsel %vm338, %v2690, %v2694
      %v2696 = vshrl.u32 %v2419, 16
      %v2698 = vrot.slane %v2696, 4
      %v2699 = vor.u32 %v2698, %v2694
      %v2700 = vrot.slane %v2699, 4
      %v2702 = vshll.u32 %v2420, 16
      %v2704 = vrot.slane %v2702, 5
      %v2705 = vsel %vm338, %v2700, %v2704
      %v2707 = vshrl.u32 %v2421, 16
      %v2709 = vrot.slane %v2707, 4
      %v2710 = vshll.u32 %v2421, 16
      %v2712 = vrot.slane %v2710, 5
      %v2713 = vor.u32 %v2709, %v2712
      %v2714 = vrot.slane %v2713, 4
      %v2716 = vshll.u32 %v2422, 16
      %v2718 = vrot.slane %v2716, 5
      %v2719 = vsel %vm338, %v2714, %v2718
      %v2720 = vshrl.u32 %v2422, 16
      %v2722 = vrot.slane %v2720, 4
      %v2723 = vor.u32 %v2722, %v2718
      %v2724 = vrot.slane %v2723, 4
      %v2726 = vshll.u32 %v2423, 16
      %v2728 = vrot.slane %v2726, 5
      %v2729 = vsel %vm338, %v2724, %v2728
      %v2731 = vshrl.u32 %v2424, 16
      %v2733 = vrot.slane %v2731, 4
      %v2734 = vshll.u32 %v2424, 16
      %v2736 = vrot.slane %v2734, 5
      %v2737 = vor.u32 %v2733, %v2736
      %v2738 = vrot.slane %v2737, 4
      %v2740 = vshll.u32 %v2425, 16
      %v2742 = vrot.slane %v2740, 5
      %v2743 = vsel %vm338, %v2738, %v2742
      %v2744 = vshrl.u32 %v2425, 16
      %v2746 = vrot.slane %v2744, 4
      %v2747 = vor.u32 %v2746, %v2742
      %v2748 = vrot.slane %v2747, 4
      %v2750 = vshll.u32 %v2426, 16
      %v2752 = vrot.slane %v2750, 5
      %v2753 = vsel %vm338, %v2748, %v2752
      %v2755 = vshrl.u32 %v2427, 16
      %v2757 = vrot.slane %v2755, 4
      %v2758 = vshll.u32 %v2427, 16
      %v2760 = vrot.slane %v2758, 5
      %v2761 = vor.u32 %v2757, %v2760
      %v2762 = vrot.slane %v2761, 4
      %v2764 = vshll.u32 %v2428, 16
      %v2766 = vrot.slane %v2764, 5
      %v2767 = vsel %vm338, %v2762, %v2766
      %v2768 = vshrl.u32 %v2428, 16
      %v2770 = vrot.slane %v2768, 4
      %v2771 = vor.u32 %v2770, %v2766
      %v2772 = vrot.slane %v2771, 4
      %v2774 = vshll.u32 %v2429, 16
      %v2776 = vrot.slane %v2774, 5
      %v2777 = vsel %vm338, %v2772, %v2776
      %v2779 = vshrl.u32 %v2430, 16
      %v2781 = vrot.slane %v2779, 4
      %v2782 = vshll.u32 %v2430, 16
      %v2784 = vrot.slane %v2782, 5
      %v2785 = vor.u32 %v2781, %v2784
      %v2786 = vrot.slane %v2785, 4
      %v2788 = vshll.u32 %v2431, 16
      %v2790 = vrot.slane %v2788, 5
      %v2791 = vsel %vm338, %v2786, %v2790
      %v2792 = vshrl.u32 %v2431, 16
      %v2794 = vrot.slane %v2792, 4
      %v2795 = vor.u32 %v2794, %v2790
      %v2796 = vrot.slane %v2795, 4
      %v2798 = vshll.u32 %v2432, 16
      %v2800 = vrot.slane %v2798, 5
      %v2801 = vsel %vm338, %v2796, %v2800
      %v2803 = vshrl.u32 %v2433, 16
      %v2805 = vrot.slane %v2803, 4
      %v2806 = vshll.u32 %v2433, 16
      %v2808 = vrot.slane %v2806, 5
      %v2809 = vor.u32 %v2805, %v2808
      %v2810 = vrot.slane %v2809, 4
      %v2812 = vshll.u32 %v2434, 16
      %v2814 = vrot.slane %v2812, 5
      %v2815 = vsel %vm338, %v2810, %v2814
      %v2816 = vshrl.u32 %v2434, 16
      %v2818 = vrot.slane %v2816, 4
      %v2819 = vor.u32 %v2818, %v2814
      %v2820 = vrot.slane %v2819, 4
      %v2822 = vshll.u32 %v2435, 16
      %v2824 = vrot.slane %v2822, 5
      %v2825 = vsel %vm338, %v2820, %v2824
      %v2827 = vshrl.u32 %v2436, 16
      %v2829 = vrot.slane %v2827, 4
      %v2830 = vshll.u32 %v2436, 16
      %v2832 = vrot.slane %v2830, 5
      %v2833 = vor.u32 %v2829, %v2832
      %v2834 = vrot.slane %v2833, 4
      %v2836 = vshll.u32 %v2437, 16
      %v2838 = vrot.slane %v2836, 5
      %v2839 = vsel %vm338, %v2834, %v2838
      %v2840 = vshrl.u32 %v2437, 16
      %v2842 = vrot.slane %v2840, 4
      %v2843 = vor.u32 %v2842, %v2838
      %v2844 = vrot.slane %v2843, 4
      %v2846 = vshll.u32 %v2438, 16
      %v2848 = vrot.slane %v2846, 5
      %v2849 = vsel %vm338, %v2844, %v2848
      %v2851 = vshrl.u32 %v2439, 16
      %v2853 = vrot.slane %v2851, 4
      %v2854 = vshll.u32 %v2439, 16
      %v2856 = vrot.slane %v2854, 5
      %v2857 = vor.u32 %v2853, %v2856
      %v2858 = vrot.slane %v2857, 4
      %v2860 = vshll.u32 %v2440, 16
      %v2862 = vrot.slane %v2860, 5
      %v2863 = vsel %vm338, %v2858, %v2862
      %v2864 = vshrl.u32 %v2440, 16
      %v2866 = vrot.slane %v2864, 4
      %v2867 = vor.u32 %v2866, %v2862
      %v2868 = vrot.slane %v2867, 4
      %v2870 = vshll.u32 %v2441, 16
      %v2872 = vrot.slane %v2870, 5
      %v2873 = vsel %vm338, %v2868, %v2872
      %s2874 = scalar_lea.vmem %s1, 192
      %v2875 = vld [vmem:[%s2874] sm:$0xf]
      %v2876 = vld [vmem:[%s2874 + $0x4] sm:$0xf]
      %v2877 = vld [vmem:[%s2874 + $0x8] sm:$0xf]
      %v2878 = vld [vmem:[%s2874 + $0xc] sm:$0xf]
      %v2879 = vld [vmem:[%s2874 + $0x10] sm:$0xf]
      %v2880 = vld [vmem:[%s2874 + $0x14] sm:$0xf]
      %v2881 = vld [vmem:[%s2874 + $0x18] sm:$0xf]
      %v2882 = vld [vmem:[%s2874 + $0x1c] sm:$0xf]
      %v2883 = vld [vmem:[%s2874 + $0x20] sm:$0xf]
      %v2884 = vld [vmem:[%s2874 + $0x24] sm:$0xf]
      %v2885 = vld [vmem:[%s2874 + $0x28] sm:$0xf]
      %v2886 = vld [vmem:[%s2874 + $0x2c] sm:$0xf]
      %v2887 = vld [vmem:[%s2874 + $0x30] sm:$0xf]
      %v2888 = vld [vmem:[%s2874 + $0x34] sm:$0xf]
      %v2889 = vld [vmem:[%s2874 + $0x38] sm:$0xf]
      %v2890 = vld [vmem:[%s2874 + $0x3c] sm:$0xf]
      %v2891 = vunpack.c.l.b16 %v2455
      %v2892 = vunpack.c.l.b16 %v2465
      %v2893 = vunpack.c.l.b16 %v2479
      %v2894 = vunpack.c.l.b16 %v2489
      %v2895 = vunpack.c.l.b16 %v2503
      %v2896 = vunpack.c.l.b16 %v2513
      %v2897 = vunpack.c.l.b16 %v2527
      %v2898 = vunpack.c.l.b16 %v2537
      %v2899 = vunpack.c.l.b16 %v2551
      %v2900 = vunpack.c.l.b16 %v2561
      %v2901 = vunpack.c.l.b16 %v2575
      %v2902 = vunpack.c.l.b16 %v2585
      %v2903 = vunpack.c.l.b16 %v2599
      %v2904 = vunpack.c.l.b16 %v2609
      %v2905 = vunpack.c.l.b16 %v2623
      %v2906 = vunpack.c.l.b16 %v2633
      %v2907 = vunpack.c.l.b16 %v2647
      %v2908 = vunpack.c.l.b16 %v2657
      %v2909 = vunpack.c.l.b16 %v2671
      %v2910 = vunpack.c.l.b16 %v2681
      %v2911 = vunpack.c.l.b16 %v2695
      %v2912 = vunpack.c.l.b16 %v2705
      %v2913 = vunpack.c.l.b16 %v2719
      %v2914 = vunpack.c.l.b16 %v2729
      %v2915 = vunpack.c.l.b16 %v2743
      %v2916 = vunpack.c.l.b16 %v2753
      %v2917 = vunpack.c.l.b16 %v2767
      %v2918 = vunpack.c.l.b16 %v2777
      %v2919 = vunpack.c.l.b16 %v2791
      %v2920 = vunpack.c.l.b16 %v2801
      %v2921 = vunpack.c.l.b16 %v2815
      %v2922 = vunpack.c.l.b16 %v2825
      %v2923 = vunpack.c.l.b16 %v2839
      %v2924 = vunpack.c.l.b16 %v2849
      %v2925 = vunpack.c.l.b16 %v2863
      %v2926 = vunpack.c.l.b16 %v2873
      %v2927 = vpack.c.b16 %v2892, %v2891
      %v2928 = vpack.c.b16 %v2894, %v2893
      %v2929 = vpack.c.b16 %v2896, %v2895
      %v2930 = vpack.c.b16 %v2898, %v2897
      %v2931 = vpack.c.b16 %v2900, %v2899
      %v2932 = vpack.c.b16 %v2902, %v2901
      %v2933 = vpack.c.b16 %v2904, %v2903
      %v2934 = vpack.c.b16 %v2906, %v2905
      %v2935 = vpack.c.b16 %v2908, %v2907
      %v2936 = vpack.c.b16 %v2910, %v2909
      %v2937 = vpack.c.b16 %v2912, %v2911
      %v2938 = vpack.c.b16 %v2914, %v2913
      %v2939 = vpack.c.b16 %v2916, %v2915
      %v2940 = vpack.c.b16 %v2918, %v2917
      %v2941 = vpack.c.b16 %v2920, %v2919
      %v2942 = vpack.c.b16 %v2922, %v2921
      %v2943 = vpack.c.b16 %v2924, %v2923
      %v2944 = vpack.c.b16 %v2926, %v2925
      %v2979 = vunpack.c.l.b16 %v2875
      %v2980 = vunpack.c.l.b16 %v2876
      %v2981 = vunpack.c.l.b16 %v2877
      %v2982 = vunpack.c.l.b16 %v2878
      %v2983 = vunpack.c.l.b16 %v2879
      %v2984 = vunpack.c.l.b16 %v2880
      %v2985 = vunpack.c.l.b16 %v2881
      %v2986 = vunpack.c.l.b16 %v2882
      %v2987 = vunpack.c.l.b16 %v2883
      %v2988 = vunpack.c.l.b16 %v2884
      %v2989 = vunpack.c.l.b16 %v2885
      %v2990 = vunpack.c.l.b16 %v2886
      %v2991 = vunpack.c.l.b16 %v2887
      %v2992 = vunpack.c.l.b16 %v2888
      %v2993 = vunpack.c.l.b16 %v2889
      %v2994 = vunpack.c.l.b16 %v2890
      %v2995 = vpack.c.b16 %v2980, %v2979
      %v2996 = vpack.c.b16 %v2982, %v2981
      %v2997 = vpack.c.b16 %v2984, %v2983
      %v2998 = vpack.c.b16 %v2986, %v2985
      %v2999 = vpack.c.b16 %v2988, %v2987
      %v3000 = vpack.c.b16 %v2990, %v2989
      %v3001 = vpack.c.b16 %v2992, %v2991
      %v3002 = vpack.c.b16 %v2994, %v2993
      %3011 = vmatprep.subr.bf16.mxu0 0
      %3012 = vmatpush1.bf16.msra.mxu0 %v2995
      %3013 = vmatprep.subr.bf16.mxu0 0
      %3014 = vmatpush1.bf16.msra.mxu0 %v2996
      %3015 = vmatprep.subr.bf16.mxu0 0
      %3016 = vmatpush1.bf16.msra.mxu0 %v2997
      %3017 = vmatprep.subr.bf16.mxu0 0
      %3018 = vmatpush1.bf16.msra.mxu0 %v2998
      %3019 = vmatprep.subr.bf16.mxu0 0
      %3020 = vmatpush1.bf16.msra.mxu0 %v2999
      %3021 = vmatprep.subr.bf16.mxu0 0
      %3022 = vmatpush1.bf16.msra.mxu0 %v3000
      %3023 = vmatprep.subr.bf16.mxu0 0
      %3024 = vmatpush1.bf16.msra.mxu0 %v3001
      %3025 = vmatprep.subr.bf16.mxu0 0
      %3026 = vmatpush1.bf16.msra.mxu0 %v3002
      %3027 = vmatprep.subr.bf16.mxu0 0
      %3028 = vmatpush1.bf16.msra.mxu0 0
      %3029 = vmatprep.subr.bf16.mxu0 0
      %3030 = vmatpush1.bf16.msra.mxu0 0
      %3031 = vmatprep.subr.bf16.mxu0 0
      %3032 = vmatpush1.bf16.msra.mxu0 0
      %3033 = vmatprep.subr.bf16.mxu0 0
      %3034 = vmatpush1.bf16.msra.mxu0 0
      %3035 = vmatprep.subr.bf16.mxu0 0
      %3036 = vmatpush1.bf16.msra.mxu0 0
      %3037 = vmatprep.subr.bf16.mxu0 0
      %3038 = vmatpush1.bf16.msra.mxu0 0
      %3039 = vmatprep.subr.bf16.mxu0 0
      %3040 = vmatpush1.bf16.msra.mxu0 0
      %3041 = vmatprep.subr.bf16.mxu0 0
      %3042 = vmatpush1.bf16.msra.mxu0 0
      %3043 = vmatprep.mubr.bf16.mxu0 0
      %3044 = vmatmul.mubr.bf16.gmra.mrb[0].mxu0 %v2927
      %v3045 = vpop.f32.mrb[0].mxu0
      %v3046 = vadd.f32 0.0, %v3045
      %v3047 = vpop.f32.mrb[0].mxu0
      %v3048 = vpop.f32.mrb[0].mxu0
      %v3049 = vadd.f32 0.0, %v3048
      %v3050 = vpop.f32.mrb[0].mxu0
      %3051 = vmatprep.mubr.bf16.mxu0 0
      %3052 = vmatmul.mubr.bf16.gmra.mrb[0].mxu0 %v2928
      %v3053 = vpop.f32.mrb[0].mxu0
      %v3054 = vadd.f32 0.0, %v3053
      %v3055 = vpop.f32.mrb[0].mxu0
      %v3056 = vpop.f32.mrb[0].mxu0
      %v3057 = vadd.f32 0.0, %v3056
      %v3058 = vpop.f32.mrb[0].mxu0
      %3059 = vmatprep.mubr.bf16.mxu0 0
      %3060 = vmatmul.mubr.bf16.gmra.mrb[0].mxu0 %v2929
      %v3061 = vpop.f32.mrb[0].mxu0
      %v3062 = vadd.f32 0.0, %v3061
      %v3063 = vpop.f32.mrb[0].mxu0
      %v3064 = vpop.f32.mrb[0].mxu0
      %v3065 = vadd.f32 0.0, %v3064
      %v3066 = vpop.f32.mrb[0].mxu0
      %3067 = vmatprep.mubr.bf16.mxu0 0
      %3068 = vmatmul.mubr.bf16.gmra.mrb[0].mxu0 %v2930
      %v3069 = vpop.f32.mrb[0].mxu0
      %v3070 = vadd.f32 0.0, %v3069
      %v3071 = vpop.f32.mrb[0].mxu0
      %v3072 = vpop.f32.mrb[0].mxu0
      %v3073 = vadd.f32 0.0, %v3072
      %v3074 = vpop.f32.mrb[0].mxu0
      %3075 = vmatprep.mubr.bf16.mxu0 0
      %3076 = vmatmul.mubr.bf16.gmra.mrb[0].mxu0 %v2931
      %v3077 = vpop.f32.mrb[0].mxu0
      %v3078 = vadd.f32 0.0, %v3077
      %v3079 = vpop.f32.mrb[0].mxu0
      %v3080 = vpop.f32.mrb[0].mxu0
      %v3081 = vadd.f32 0.0, %v3080
      %v3082 = vpop.f32.mrb[0].mxu0
      %3083 = vmatprep.mubr.bf16.mxu0 0
      %3084 = vmatmul.mubr.bf16.gmra.mrb[0].mxu0 %v2932
      %v3085 = vpop.f32.mrb[0].mxu0
      %v3086 = vadd.f32 0.0, %v3085
      %v3087 = vpop.f32.mrb[0].mxu0
      %v3088 = vpop.f32.mrb[0].mxu0
      %v3089 = vadd.f32 0.0, %v3088
      %v3090 = vpop.f32.mrb[0].mxu0
      %3091 = vmatprep.mubr.bf16.mxu0 0
      %3092 = vmatmul.mubr.bf16.gmra.mrb[0].mxu0 %v2933
      %v3093 = vpop.f32.mrb[0].mxu0
      %v3094 = vadd.f32 0.0, %v3093
      %v3095 = vpop.f32.mrb[0].mxu0
      %v3096 = vpop.f32.mrb[0].mxu0
      %v3097 = vadd.f32 0.0, %v3096
      %v3098 = vpop.f32.mrb[0].mxu0
      %3099 = vmatprep.mubr.bf16.mxu0 0
      %3100 = vmatmul.mubr.bf16.gmra.mrb[0].mxu0 %v2934
      %v3101 = vpop.f32.mrb[0].mxu0
      %v3102 = vadd.f32 0.0, %v3101
      %v3103 = vpop.f32.mrb[0].mxu0
      %v3104 = vpop.f32.mrb[0].mxu0
      %v3105 = vadd.f32 0.0, %v3104
      %v3106 = vpop.f32.mrb[0].mxu0
      %3107 = vmatprep.mubr.bf16.mxu0 0
      %3108 = vmatmul.mubr.bf16.gmra.mrb[0].mxu0 %v2935
      %v3109 = vpop.f32.mrb[0].mxu0
      %v3110 = vadd.f32 0.0, %v3109
      %v3111 = vpop.f32.mrb[0].mxu0
      %v3112 = vpop.f32.mrb[0].mxu0
      %v3113 = vadd.f32 0.0, %v3112
      %v3114 = vpop.f32.mrb[0].mxu0
      %3115 = vmatprep.mubr.bf16.mxu0 0
      %3116 = vmatmul.mubr.bf16.gmra.mrb[0].mxu0 %v2936
      %v3117 = vpop.f32.mrb[0].mxu0
      %v3118 = vadd.f32 0.0, %v3117
      %v3119 = vpop.f32.mrb[0].mxu0
      %v3120 = vpop.f32.mrb[0].mxu0
      %v3121 = vadd.f32 0.0, %v3120
      %v3122 = vpop.f32.mrb[0].mxu0
      %3123 = vmatprep.mubr.bf16.mxu0 0
      %3124 = vmatmul.mubr.bf16.gmra.mrb[0].mxu0 %v2937
      %v3125 = vpop.f32.mrb[0].mxu0
      %v3126 = vadd.f32 0.0, %v3125
      %v3127 = vpop.f32.mrb[0].mxu0
      %v3128 = vpop.f32.mrb[0].mxu0
      %v3129 = vadd.f32 0.0, %v3128
      %v3130 = vpop.f32.mrb[0].mxu0
      %3131 = vmatprep.mubr.bf16.mxu0 0
      %3132 = vmatmul.mubr.bf16.gmra.mrb[0].mxu0 %v2938
      %v3133 = vpop.f32.mrb[0].mxu0
      %v3134 = vadd.f32 0.0, %v3133
      %v3135 = vpop.f32.mrb[0].mxu0
      %v3136 = vpop.f32.mrb[0].mxu0
      %v3137 = vadd.f32 0.0, %v3136
      %v3138 = vpop.f32.mrb[0].mxu0
      %3139 = vmatprep.mubr.bf16.mxu0 0
      %3140 = vmatmul.mubr.bf16.gmra.mrb[0].mxu0 %v2939
      %v3141 = vpop.f32.mrb[0].mxu0
      %v3142 = vadd.f32 0.0, %v3141
      %v3143 = vpop.f32.mrb[0].mxu0
      %v3144 = vpop.f32.mrb[0].mxu0
      %v3145 = vadd.f32 0.0, %v3144
      %v3146 = vpop.f32.mrb[0].mxu0
      %3147 = vmatprep.mubr.bf16.mxu0 0
      %3148 = vmatmul.mubr.bf16.gmra.mrb[0].mxu0 %v2940
      %v3149 = vpop.f32.mrb[0].mxu0
      %v3150 = vadd.f32 0.0, %v3149
      %v3151 = vpop.f32.mrb[0].mxu0
      %v3152 = vpop.f32.mrb[0].mxu0
      %v3153 = vadd.f32 0.0, %v3152
      %v3154 = vpop.f32.mrb[0].mxu0
      %3155 = vmatprep.mubr.bf16.mxu0 0
      %3156 = vmatmul.mubr.bf16.gmra.mrb[0].mxu0 %v2941
      %v3157 = vpop.f32.mrb[0].mxu0
      %v3158 = vadd.f32 0.0, %v3157
      %v3159 = vpop.f32.mrb[0].mxu0
      %v3160 = vpop.f32.mrb[0].mxu0
      %v3161 = vadd.f32 0.0, %v3160
      %v3162 = vpop.f32.mrb[0].mxu0
      %3163 = vmatprep.mubr.bf16.mxu0 0
      %3164 = vmatmul.mubr.bf16.gmra.mrb[0].mxu0 %v2942
      %v3165 = vpop.f32.mrb[0].mxu0
      %v3166 = vadd.f32 0.0, %v3165
      %v3167 = vpop.f32.mrb[0].mxu0
      %v3168 = vpop.f32.mrb[0].mxu0
      %v3169 = vadd.f32 0.0, %v3168
      %v3170 = vpop.f32.mrb[0].mxu0
      %3171 = vmatprep.mubr.bf16.mxu0 0
      %3172 = vmatmul.mubr.bf16.gmra.mrb[0].mxu0 %v2943
      %v3173 = vpop.f32.mrb[0].mxu0
      %v3174 = vadd.f32 0.0, %v3173
      %v3175 = vpop.f32.mrb[0].mxu0
      %v3176 = vpop.f32.mrb[0].mxu0
      %v3177 = vadd.f32 0.0, %v3176
      %v3178 = vpop.f32.mrb[0].mxu0
      %3179 = vmatprep.mubr.bf16.mxu0 0
      %3180 = vmatmul.mubr.bf16.gmra.mrb[0].mxu0 %v2944
      %v3181 = vpop.f32.mrb[0].mxu0
      %v3182 = vadd.f32 0.0, %v3181
      %v3183 = vpop.f32.mrb[0].mxu0
      %v3184 = vpop.f32.mrb[0].mxu0
      %v3185 = vadd.f32 0.0, %v3184
      %v3186 = vpop.f32.mrb[0].mxu0
      %3187 = vdwg.mxu0
      %v3188 = vadd.f32 %v2348, %v3046
      %v3189 = vadd.f32 %v2349, %v3049
      %v3190 = vadd.f32 %v2350, %v3054
      %v3191 = vadd.f32 %v2351, %v3057
      %v3192 = vadd.f32 %v2352, %v3062
      %v3193 = vadd.f32 %v2353, %v3065
      %v3194 = vadd.f32 %v2354, %v3070
      %v3195 = vadd.f32 %v2355, %v3073
      %v3196 = vadd.f32 %v2356, %v3078
      %v3197 = vadd.f32 %v2357, %v3081
      %v3198 = vadd.f32 %v2358, %v3086
      %v3199 = vadd.f32 %v2359, %v3089
      %v3200 = vadd.f32 %v2360, %v3094
      %v3201 = vadd.f32 %v2361, %v3097
      %v3202 = vadd.f32 %v2362, %v3102
      %v3203 = vadd.f32 %v2363, %v3105
      %v3204 = vadd.f32 %v2364, %v3110
      %v3205 = vadd.f32 %v2365, %v3113
      %v3206 = vadd.f32 %v2366, %v3118
      %v3207 = vadd.f32 %v2367, %v3121
      %v3208 = vadd.f32 %v2368, %v3126
      %v3209 = vadd.f32 %v2369, %v3129
      %v3210 = vadd.f32 %v2370, %v3134
      %v3211 = vadd.f32 %v2371, %v3137
      %v3212 = vadd.f32 %v2372, %v3142
      %v3213 = vadd.f32 %v2373, %v3145
      %v3214 = vadd.f32 %v2374, %v3150
      %v3215 = vadd.f32 %v2375, %v3153
      %v3216 = vadd.f32 %v2376, %v3158
      %v3217 = vadd.f32 %v2377, %v3161
      %v3218 = vadd.f32 %v2378, %v3166
      %v3219 = vadd.f32 %v2379, %v3169
      %v3220 = vadd.f32 %v2380, %v3174
      %v3221 = vadd.f32 %v2381, %v3177
      %v3222 = vadd.f32 %v2382, %v3182
      %v3223 = vadd.f32 %v2383, %v3185
      %v3224 = vld [vmem:[%s2387] sm:$0xe]
      %v3225 = vld [vmem:[%s2387 + $0xc] sm:$0xe]
      %v3226 = vld [vmem:[%s2387 + $0x18] sm:$0xe]
      %v3227 = vld [vmem:[%s2387 + $0x24] sm:$0xe]
      %v3228 = vld [vmem:[%s2387 + $0x30] sm:$0xe]
      %v3229 = vld [vmem:[%s2387 + $0x3c] sm:$0xe]
      %v3230 = vld [vmem:[%s2387 + $0x48] sm:$0xe]
      %v3231 = vld [vmem:[%s2387 + $0x54] sm:$0xe]
      %v3232 = vld [vmem:[%s2387 + $0x60] sm:$0xe]
      %v3233 = vld [vmem:[%s2387 + $0x6c] sm:$0xe]
      %v3234 = vld [vmem:[%s2387 + $0x78] sm:$0xe]
      %v3235 = vld [vmem:[%s2387 + $0x84] sm:$0xe]
      %v3236 = vld [vmem:[%s2387 + $0x90] sm:$0xe]
      %v3237 = vld [vmem:[%s2387 + $0x9c] sm:$0xe]
      %v3238 = vld [vmem:[%s2387 + $0xa8] sm:$0xe]
      %v3239 = vld [vmem:[%s2387 + $0xb4] sm:$0xe]
      %v3240 = vld [vmem:[%s2387 + $0xc0] sm:$0xe]
      %v3241 = vld [vmem:[%s2387 + $0xcc] sm:$0xe]
      %v3296 = vrot.slane %v3224, 5
      %v3297 = vrot.slane %v3296, 4
      %v3298 = vrot.slane %v2389, 5
      %v3299 = vsel %vm861, %v3297, %v3298
      %v3300 = vrot.slane %v3298, 4
      %v3301 = vrot.slane %v2390, 5
      %v3302 = vsel %vm861, %v3300, %v3301
      %v3303 = vrot.slane %v3225, 5
      %v3304 = vrot.slane %v3303, 4
      %v3305 = vrot.slane %v2392, 5
      %v3306 = vsel %vm861, %v3304, %v3305
      %v3307 = vrot.slane %v3305, 4
      %v3308 = vrot.slane %v2393, 5
      %v3309 = vsel %vm861, %v3307, %v3308
      %v3310 = vrot.slane %v3226, 5
      %v3311 = vrot.slane %v3310, 4
      %v3312 = vrot.slane %v2395, 5
      %v3313 = vsel %vm861, %v3311, %v3312
      %v3314 = vrot.slane %v3312, 4
      %v3315 = vrot.slane %v2396, 5
      %v3316 = vsel %vm861, %v3314, %v3315
      %v3317 = vrot.slane %v3227, 5
      %v3318 = vrot.slane %v3317, 4
      %v3319 = vrot.slane %v2398, 5
      %v3320 = vsel %vm861, %v3318, %v3319
      %v3321 = vrot.slane %v3319, 4
      %v3322 = vrot.slane %v2399, 5
      %v3323 = vsel %vm861, %v3321, %v3322
      %v3324 = vrot.slane %v3228, 5
      %v3325 = vrot.slane %v3324, 4
      %v3326 = vrot.slane %v2401, 5
      %v3327 = vsel %vm861, %v3325, %v3326
      %v3328 = vrot.slane %v3326, 4
      %v3329 = vrot.slane %v2402, 5
      %v3330 = vsel %vm861, %v3328, %v3329
      %v3331 = vrot.slane %v3229, 5
      %v3332 = vrot.slane %v3331, 4
      %v3333 = vrot.slane %v2404, 5
      %v3334 = vsel %vm861, %v3332, %v3333
      %v3335 = vrot.slane %v3333, 4
      %v3336 = vrot.slane %v2405, 5
      %v3337 = vsel %vm861, %v3335, %v3336
      %v3338 = vrot.slane %v3230, 5
      %v3339 = vrot.slane %v3338, 4
      %v3340 = vrot.slane %v2407, 5
      %v3341 = vsel %vm861, %v3339, %v3340
      %v3342 = vrot.slane %v3340, 4
      %v3343 = vrot.slane %v2408, 5
      %v3344 = vsel %vm861, %v3342, %v3343
      %v3345 = vrot.slane %v3231, 5
      %v3346 = vrot.slane %v3345, 4
      %v3347 = vrot.slane %v2410, 5
      %v3348 = vsel %vm861, %v3346, %v3347
      %v3349 = vrot.slane %v3347, 4
      %v3350 = vrot.slane %v2411, 5
      %v3351 = vsel %vm861, %v3349, %v3350
      %v3352 = vrot.slane %v3232, 5
      %v3353 = vrot.slane %v3352, 4
      %v3354 = vrot.slane %v2413, 5
      %v3355 = vsel %vm861, %v3353, %v3354
      %v3356 = vrot.slane %v3354, 4
      %v3357 = vrot.slane %v2414, 5
      %v3358 = vsel %vm861, %v3356, %v3357
      %v3359 = vrot.slane %v3233, 5
      %v3360 = vrot.slane %v3359, 4
      %v3361 = vrot.slane %v2416, 5
      %v3362 = vsel %vm861, %v3360, %v3361
      %v3363 = vrot.slane %v3361, 4
      %v3364 = vrot.slane %v2417, 5
      %v3365 = vsel %vm861, %v3363, %v3364
      %v3366 = vrot.slane %v3234, 5
      %v3367 = vrot.slane %v3366, 4
      %v3368 = vrot.slane %v2419, 5
      %v3369 = vsel %vm861, %v3367, %v3368
      %v3370 = vrot.slane %v3368, 4
      %v3371 = vrot.slane %v2420, 5
      %v3372 = vsel %vm861, %v3370, %v3371
      %v3373 = vrot.slane %v3235, 5
      %v3374 = vrot.slane %v3373, 4
      %v3375 = vrot.slane %v2422, 5
      %v3376 = vsel %vm861, %v3374, %v3375
      %v3377 = vrot.slane %v3375, 4
      %v3378 = vrot.slane %v2423, 5
      %v3379 = vsel %vm861, %v3377, %v3378
      %v3380 = vrot.slane %v3236, 5
      %v3381 = vrot.slane %v3380, 4
      %v3382 = vrot.slane %v2425, 5
      %v3383 = vsel %vm861, %v3381, %v3382
      %v3384 = vrot.slane %v3382, 4
      %v3385 = vrot.slane %v2426, 5
      %v3386 = vsel %vm861, %v3384, %v3385
      %v3387 = vrot.slane %v3237, 5
      %v3388 = vrot.slane %v3387, 4
      %v3389 = vrot.slane %v2428, 5
      %v3390 = vsel %vm861, %v3388, %v3389
      %v3391 = vrot.slane %v3389, 4
      %v3392 = vrot.slane %v2429, 5
      %v3393 = vsel %vm861, %v3391, %v3392
      %v3394 = vrot.slane %v3238, 5
      %v3395 = vrot.slane %v3394, 4
      %v3396 = vrot.slane %v2431, 5
      %v3397 = vsel %vm861, %v3395, %v3396
      %v3398 = vrot.slane %v3396, 4
      %v3399 = vrot.slane %v2432, 5
      %v3400 = vsel %vm861, %v3398, %v3399
      %v3401 = vrot.slane %v3239, 5
      %v3402 = vrot.slane %v3401, 4
      %v3403 = vrot.slane %v2434, 5
      %v3404 = vsel %vm861, %v3402, %v3403
      %v3405 = vrot.slane %v3403, 4
      %v3406 = vrot.slane %v2435, 5
      %v3407 = vsel %vm861, %v3405, %v3406
      %v3408 = vrot.slane %v3240, 5
      %v3409 = vrot.slane %v3408, 4
      %v3410 = vrot.slane %v2437, 5
      %v3411 = vsel %vm861, %v3409, %v3410
      %v3412 = vrot.slane %v3410, 4
      %v3413 = vrot.slane %v2438, 5
      %v3414 = vsel %vm861, %v3412, %v3413
      %v3415 = vrot.slane %v3241, 5
      %v3416 = vrot.slane %v3415, 4
      %v3417 = vrot.slane %v2440, 5
      %v3418 = vsel %vm861, %v3416, %v3417
      %v3419 = vrot.slane %v3417, 4
      %v3420 = vrot.slane %v2441, 5
      %v3421 = vsel %vm861, %v3419, %v3420
      %s3422 = scalar_lea.vmem %s1, 256
      %v3423 = vld [vmem:[%s3422] sm:$0xf]
      %v3424 = vld [vmem:[%s3422 + $0x4] sm:$0xf]
      %v3425 = vld [vmem:[%s3422 + $0x8] sm:$0xf]
      %v3426 = vld [vmem:[%s3422 + $0xc] sm:$0xf]
      %v3427 = vld [vmem:[%s3422 + $0x10] sm:$0xf]
      %v3428 = vld [vmem:[%s3422 + $0x14] sm:$0xf]
      %v3429 = vld [vmem:[%s3422 + $0x18] sm:$0xf]
      %v3430 = vld [vmem:[%s3422 + $0x1c] sm:$0xf]
      %v3431 = vld [vmem:[%s3422 + $0x20] sm:$0xf]
      %v3432 = vld [vmem:[%s3422 + $0x24] sm:$0xf]
      %v3433 = vld [vmem:[%s3422 + $0x28] sm:$0xf]
      %v3434 = vld [vmem:[%s3422 + $0x2c] sm:$0xf]
      %v3435 = vld [vmem:[%s3422 + $0x30] sm:$0xf]
      %v3436 = vld [vmem:[%s3422 + $0x34] sm:$0xf]
      %v3437 = vld [vmem:[%s3422 + $0x38] sm:$0xf]
      %v3438 = vld [vmem:[%s3422 + $0x3c] sm:$0xf]
      %v3439 = vunpack.c.l.b16 %v3299
      %v3440 = vunpack.c.l.b16 %v3302
      %v3441 = vunpack.c.l.b16 %v3306
      %v3442 = vunpack.c.l.b16 %v3309
      %v3443 = vunpack.c.l.b16 %v3313
      %v3444 = vunpack.c.l.b16 %v3316
      %v3445 = vunpack.c.l.b16 %v3320
      %v3446 = vunpack.c.l.b16 %v3323
      %v3447 = vunpack.c.l.b16 %v3327
      %v3448 = vunpack.c.l.b16 %v3330
      %v3449 = vunpack.c.l.b16 %v3334
      %v3450 = vunpack.c.l.b16 %v3337
      %v3451 = vunpack.c.l.b16 %v3341
      %v3452 = vunpack.c.l.b16 %v3344
      %v3453 = vunpack.c.l.b16 %v3348
      %v3454 = vunpack.c.l.b16 %v3351
      %v3455 = vunpack.c.l.b16 %v3355
      %v3456 = vunpack.c.l.b16 %v3358
      %v3457 = vunpack.c.l.b16 %v3362
      %v3458 = vunpack.c.l.b16 %v3365
      %v3459 = vunpack.c.l.b16 %v3369
      %v3460 = vunpack.c.l.b16 %v3372
      %v3461 = vunpack.c.l.b16 %v3376
      %v3462 = vunpack.c.l.b16 %v3379
      %v3463 = vunpack.c.l.b16 %v3383
      %v3464 = vunpack.c.l.b16 %v3386
      %v3465 = vunpack.c.l.b16 %v3390
      %v3466 = vunpack.c.l.b16 %v3393
      %v3467 = vunpack.c.l.b16 %v3397
      %v3468 = vunpack.c.l.b16 %v3400
      %v3469 = vunpack.c.l.b16 %v3404
      %v3470 = vunpack.c.l.b16 %v3407
      %v3471 = vunpack.c.l.b16 %v3411
      %v3472 = vunpack.c.l.b16 %v3414
      %v3473 = vunpack.c.l.b16 %v3418
      %v3474 = vunpack.c.l.b16 %v3421
      %v3475 = vpack.c.b16 %v3440, %v3439
      %v3476 = vpack.c.b16 %v3442, %v3441
      %v3477 = vpack.c.b16 %v3444, %v3443
      %v3478 = vpack.c.b16 %v3446, %v3445
      %v3479 = vpack.c.b16 %v3448, %v3447
      %v3480 = vpack.c.b16 %v3450, %v3449
      %v3481 = vpack.c.b16 %v3452, %v3451
      %v3482 = vpack.c.b16 %v3454, %v3453
      %v3483 = vpack.c.b16 %v3456, %v3455
      %v3484 = vpack.c.b16 %v3458, %v3457
      %v3485 = vpack.c.b16 %v3460, %v3459
      %v3486 = vpack.c.b16 %v3462, %v3461
      %v3487 = vpack.c.b16 %v3464, %v3463
      %v3488 = vpack.c.b16 %v3466, %v3465
      %v3489 = vpack.c.b16 %v3468, %v3467
      %v3490 = vpack.c.b16 %v3470, %v3469
      %v3491 = vpack.c.b16 %v3472, %v3471
      %v3492 = vpack.c.b16 %v3474, %v3473
      %v3527 = vunpack.c.l.b16 %v3423
      %v3528 = vunpack.c.l.b16 %v3424
      %v3529 = vunpack.c.l.b16 %v3425
      %v3530 = vunpack.c.l.b16 %v3426
      %v3531 = vunpack.c.l.b16 %v3427
      %v3532 = vunpack.c.l.b16 %v3428
      %v3533 = vunpack.c.l.b16 %v3429
      %v3534 = vunpack.c.l.b16 %v3430
      %v3535 = vunpack.c.l.b16 %v3431
      %v3536 = vunpack.c.l.b16 %v3432
      %v3537 = vunpack.c.l.b16 %v3433
      %v3538 = vunpack.c.l.b16 %v3434
      %v3539 = vunpack.c.l.b16 %v3435
      %v3540 = vunpack.c.l.b16 %v3436
      %v3541 = vunpack.c.l.b16 %v3437
      %v3542 = vunpack.c.l.b16 %v3438
      %v3543 = vpack.c.b16 %v3528, %v3527
      %v3544 = vpack.c.b16 %v3530, %v3529
      %v3545 = vpack.c.b16 %v3532, %v3531
      %v3546 = vpack.c.b16 %v3534, %v3533
      %v3547 = vpack.c.b16 %v3536, %v3535
      %v3548 = vpack.c.b16 %v3538, %v3537
      %v3549 = vpack.c.b16 %v3540, %v3539
      %v3550 = vpack.c.b16 %v3542, %v3541
      %3559 = vmatprep.subr.bf16.mxu0 0
      %3560 = vmatpush1.bf16.msra.mxu0 %v3543
      %3561 = vmatprep.subr.bf16.mxu0 0
      %3562 = vmatpush1.bf16.msra.mxu0 %v3544
      %3563 = vmatprep.subr.bf16.mxu0 0
      %3564 = vmatpush1.bf16.msra.mxu0 %v3545
      %3565 = vmatprep.subr.bf16.mxu0 0
      %3566 = vmatpush1.bf16.msra.mxu0 %v3546
      %3567 = vmatprep.subr.bf16.mxu0 0
      %3568 = vmatpush1.bf16.msra.mxu0 %v3547
      %3569 = vmatprep.subr.bf16.mxu0 0
      %3570 = vmatpush1.bf16.msra.mxu0 %v3548
      %3571 = vmatprep.subr.bf16.mxu0 0
      %3572 = vmatpush1.bf16.msra.mxu0 %v3549
      %3573 = vmatprep.subr.bf16.mxu0 0
      %3574 = vmatpush1.bf16.msra.mxu0 %v3550
      %3575 = vmatprep.subr.bf16.mxu0 0
      %3576 = vmatpush1.bf16.msra.mxu0 0
      %3577 = vmatprep.subr.bf16.mxu0 0
      %3578 = vmatpush1.bf16.msra.mxu0 0
      %3579 = vmatprep.subr.bf16.mxu0 0
      %3580 = vmatpush1.bf16.msra.mxu0 0
      %3581 = vmatprep.subr.bf16.mxu0 0
      %3582 = vmatpush1.bf16.msra.mxu0 0
      %3583 = vmatprep.subr.bf16.mxu0 0
      %3584 = vmatpush1.bf16.msra.mxu0 0
      %3585 = vmatprep.subr.bf16.mxu0 0
      %3586 = vmatpush1.bf16.msra.mxu0 0
      %3587 = vmatprep.subr.bf16.mxu0 0
      %3588 = vmatpush1.bf16.msra.mxu0 0
      %3589 = vmatprep.subr.bf16.mxu0 0
      %3590 = vmatpush1.bf16.msra.mxu0 0
      %3591 = vmatprep.mubr.bf16.mxu0 0
      %3592 = vmatmul.mubr.bf16.gmra.mrb[0].mxu0 %v3475
      %v3593 = vpop.f32.mrb[0].mxu0
      %v3594 = vadd.f32 0.0, %v3593
      %v3595 = vpop.f32.mrb[0].mxu0
      %v3596 = vpop.f32.mrb[0].mxu0
      %v3597 = vadd.f32 0.0, %v3596
      %v3598 = vpop.f32.mrb[0].mxu0
      %3599 = vmatprep.mubr.bf16.mxu0 0
      %3600 = vmatmul.mubr.bf16.gmra.mrb[0].mxu0 %v3476
      %v3601 = vpop.f32.mrb[0].mxu0
      %v3602 = vadd.f32 0.0, %v3601
      %v3603 = vpop.f32.mrb[0].mxu0
      %v3604 = vpop.f32.mrb[0].mxu0
      %v3605 = vadd.f32 0.0, %v3604
      %v3606 = vpop.f32.mrb[0].mxu0
      %3607 = vmatprep.mubr.bf16.mxu0 0
      %3608 = vmatmul.mubr.bf16.gmra.mrb[0].mxu0 %v3477
      %v3609 = vpop.f32.mrb[0].mxu0
      %v3610 = vadd.f32 0.0, %v3609
      %v3611 = vpop.f32.mrb[0].mxu0
      %v3612 = vpop.f32.mrb[0].mxu0
      %v3613 = vadd.f32 0.0, %v3612
      %v3614 = vpop.f32.mrb[0].mxu0
      %3615 = vmatprep.mubr.bf16.mxu0 0
      %3616 = vmatmul.mubr.bf16.gmra.mrb[0].mxu0 %v3478
      %v3617 = vpop.f32.mrb[0].mxu0
      %v3618 = vadd.f32 0.0, %v3617
      %v3619 = vpop.f32.mrb[0].mxu0
      %v3620 = vpop.f32.mrb[0].mxu0
      %v3621 = vadd.f32 0.0, %v3620
      %v3622 = vpop.f32.mrb[0].mxu0
      %3623 = vmatprep.mubr.bf16.mxu0 0
      %3624 = vmatmul.mubr.bf16.gmra.mrb[0].mxu0 %v3479
      %v3625 = vpop.f32.mrb[0].mxu0
      %v3626 = vadd.f32 0.0, %v3625
      %v3627 = vpop.f32.mrb[0].mxu0
      %v3628 = vpop.f32.mrb[0].mxu0
      %v3629 = vadd.f32 0.0, %v3628
      %v3630 = vpop.f32.mrb[0].mxu0
      %3631 = vmatprep.mubr.bf16.mxu0 0
      %3632 = vmatmul.mubr.bf16.gmra.mrb[0].mxu0 %v3480
      %v3633 = vpop.f32.mrb[0].mxu0
      %v3634 = vadd.f32 0.0, %v3633
      %v3635 = vpop.f32.mrb[0].mxu0
      %v3636 = vpop.f32.mrb[0].mxu0
      %v3637 = vadd.f32 0.0, %v3636
      %v3638 = vpop.f32.mrb[0].mxu0
      %3639 = vmatprep.mubr.bf16.mxu0 0
      %3640 = vmatmul.mubr.bf16.gmra.mrb[0].mxu0 %v3481
      %v3641 = vpop.f32.mrb[0].mxu0
      %v3642 = vadd.f32 0.0, %v3641
      %v3643 = vpop.f32.mrb[0].mxu0
      %v3644 = vpop.f32.mrb[0].mxu0
      %v3645 = vadd.f32 0.0, %v3644
      %v3646 = vpop.f32.mrb[0].mxu0
      %3647 = vmatprep.mubr.bf16.mxu0 0
      %3648 = vmatmul.mubr.bf16.gmra.mrb[0].mxu0 %v3482
      %v3649 = vpop.f32.mrb[0].mxu0
      %v3650 = vadd.f32 0.0, %v3649
      %v3651 = vpop.f32.mrb[0].mxu0
      %v3652 = vpop.f32.mrb[0].mxu0
      %v3653 = vadd.f32 0.0, %v3652
      %v3654 = vpop.f32.mrb[0].mxu0
      %3655 = vmatprep.mubr.bf16.mxu0 0
      %3656 = vmatmul.mubr.bf16.gmra.mrb[0].mxu0 %v3483
      %v3657 = vpop.f32.mrb[0].mxu0
      %v3658 = vadd.f32 0.0, %v3657
      %v3659 = vpop.f32.mrb[0].mxu0
      %v3660 = vpop.f32.mrb[0].mxu0
      %v3661 = vadd.f32 0.0, %v3660
      %v3662 = vpop.f32.mrb[0].mxu0
      %3663 = vmatprep.mubr.bf16.mxu0 0
      %3664 = vmatmul.mubr.bf16.gmra.mrb[0].mxu0 %v3484
      %v3665 = vpop.f32.mrb[0].mxu0
      %v3666 = vadd.f32 0.0, %v3665
      %v3667 = vpop.f32.mrb[0].mxu0
      %v3668 = vpop.f32.mrb[0].mxu0
      %v3669 = vadd.f32 0.0, %v3668
      %v3670 = vpop.f32.mrb[0].mxu0
      %3671 = vmatprep.mubr.bf16.mxu0 0
      %3672 = vmatmul.mubr.bf16.gmra.mrb[0].mxu0 %v3485
      %v3673 = vpop.f32.mrb[0].mxu0
      %v3674 = vadd.f32 0.0, %v3673
      %v3675 = vpop.f32.mrb[0].mxu0
      %v3676 = vpop.f32.mrb[0].mxu0
      %v3677 = vadd.f32 0.0, %v3676
      %v3678 = vpop.f32.mrb[0].mxu0
      %3679 = vmatprep.mubr.bf16.mxu0 0
      %3680 = vmatmul.mubr.bf16.gmra.mrb[0].mxu0 %v3486
      %v3681 = vpop.f32.mrb[0].mxu0
      %v3682 = vadd.f32 0.0, %v3681
      %v3683 = vpop.f32.mrb[0].mxu0
      %v3684 = vpop.f32.mrb[0].mxu0
      %v3685 = vadd.f32 0.0, %v3684
      %v3686 = vpop.f32.mrb[0].mxu0
      %3687 = vmatprep.mubr.bf16.mxu0 0
      %3688 = vmatmul.mubr.bf16.gmra.mrb[0].mxu0 %v3487
      %v3689 = vpop.f32.mrb[0].mxu0
      %v3690 = vadd.f32 0.0, %v3689
      %v3691 = vpop.f32.mrb[0].mxu0
      %v3692 = vpop.f32.mrb[0].mxu0
      %v3693 = vadd.f32 0.0, %v3692
      %v3694 = vpop.f32.mrb[0].mxu0
      %3695 = vmatprep.mubr.bf16.mxu0 0
      %3696 = vmatmul.mubr.bf16.gmra.mrb[0].mxu0 %v3488
      %v3697 = vpop.f32.mrb[0].mxu0
      %v3698 = vadd.f32 0.0, %v3697
      %v3699 = vpop.f32.mrb[0].mxu0
      %v3700 = vpop.f32.mrb[0].mxu0
      %v3701 = vadd.f32 0.0, %v3700
      %v3702 = vpop.f32.mrb[0].mxu0
      %3703 = vmatprep.mubr.bf16.mxu0 0
      %3704 = vmatmul.mubr.bf16.gmra.mrb[0].mxu0 %v3489
      %v3705 = vpop.f32.mrb[0].mxu0
      %v3706 = vadd.f32 0.0, %v3705
      %v3707 = vpop.f32.mrb[0].mxu0
      %v3708 = vpop.f32.mrb[0].mxu0
      %v3709 = vadd.f32 0.0, %v3708
      %v3710 = vpop.f32.mrb[0].mxu0
      %3711 = vmatprep.mubr.bf16.mxu0 0
      %3712 = vmatmul.mubr.bf16.gmra.mrb[0].mxu0 %v3490
      %v3713 = vpop.f32.mrb[0].mxu0
      %v3714 = vadd.f32 0.0, %v3713
      %v3715 = vpop.f32.mrb[0].mxu0
      %v3716 = vpop.f32.mrb[0].mxu0
      %v3717 = vadd.f32 0.0, %v3716
      %v3718 = vpop.f32.mrb[0].mxu0
      %3719 = vmatprep.mubr.bf16.mxu0 0
      %3720 = vmatmul.mubr.bf16.gmra.mrb[0].mxu0 %v3491
      %v3721 = vpop.f32.mrb[0].mxu0
      %v3722 = vadd.f32 0.0, %v3721
      %v3723 = vpop.f32.mrb[0].mxu0
      %v3724 = vpop.f32.mrb[0].mxu0
      %v3725 = vadd.f32 0.0, %v3724
      %v3726 = vpop.f32.mrb[0].mxu0
      %3727 = vmatprep.mubr.bf16.mxu0 0
      %3728 = vmatmul.mubr.bf16.gmra.mrb[0].mxu0 %v3492
      %v3729 = vpop.f32.mrb[0].mxu0
      %v3730 = vadd.f32 0.0, %v3729
      %v3731 = vpop.f32.mrb[0].mxu0
      %v3732 = vpop.f32.mrb[0].mxu0
      %v3733 = vadd.f32 0.0, %v3732
      %v3734 = vpop.f32.mrb[0].mxu0
      %3735 = vdwg.mxu0
      %v3736 = vadd.f32 %v3188, %v3594
      %v3737 = vadd.f32 %v3189, %v3597
      %v3738 = vadd.f32 %v3190, %v3602
      %v3739 = vadd.f32 %v3191, %v3605
      %v3740 = vadd.f32 %v3192, %v3610
      %v3741 = vadd.f32 %v3193, %v3613
      %v3742 = vadd.f32 %v3194, %v3618
      %v3743 = vadd.f32 %v3195, %v3621
      %v3744 = vadd.f32 %v3196, %v3626
      %v3745 = vadd.f32 %v3197, %v3629
      %v3746 = vadd.f32 %v3198, %v3634
      %v3747 = vadd.f32 %v3199, %v3637
      %v3748 = vadd.f32 %v3200, %v3642
      %v3749 = vadd.f32 %v3201, %v3645
      %v3750 = vadd.f32 %v3202, %v3650
      %v3751 = vadd.f32 %v3203, %v3653
      %v3752 = vadd.f32 %v3204, %v3658
      %v3753 = vadd.f32 %v3205, %v3661
      %v3754 = vadd.f32 %v3206, %v3666
      %v3755 = vadd.f32 %v3207, %v3669
      %v3756 = vadd.f32 %v3208, %v3674
      %v3757 = vadd.f32 %v3209, %v3677
      %v3758 = vadd.f32 %v3210, %v3682
      %v3759 = vadd.f32 %v3211, %v3685
      %v3760 = vadd.f32 %v3212, %v3690
      %v3761 = vadd.f32 %v3213, %v3693
      %v3762 = vadd.f32 %v3214, %v3698
      %v3763 = vadd.f32 %v3215, %v3701
      %v3764 = vadd.f32 %v3216, %v3706
      %v3765 = vadd.f32 %v3217, %v3709
      %v3766 = vadd.f32 %v3218, %v3714
      %v3767 = vadd.f32 %v3219, %v3717
      %v3768 = vadd.f32 %v3220, %v3722
      %v3769 = vadd.f32 %v3221, %v3725
      %v3770 = vadd.f32 %v3222, %v3730
      %v3771 = vadd.f32 %v3223, %v3733
      %v3772 = vld [vmem:[%s2387 + $0x8] sm:$0x3]
      %v3773 = vld [vmem:[%s2387 + $0x14] sm:$0x3]
      %v3774 = vld [vmem:[%s2387 + $0x20] sm:$0x3]
      %v3775 = vld [vmem:[%s2387 + $0x2c] sm:$0x3]
      %v3776 = vld [vmem:[%s2387 + $0x38] sm:$0x3]
      %v3777 = vld [vmem:[%s2387 + $0x44] sm:$0x3]
      %v3778 = vld [vmem:[%s2387 + $0x50] sm:$0x3]
      %v3779 = vld [vmem:[%s2387 + $0x5c] sm:$0x3]
      %v3780 = vld [vmem:[%s2387 + $0x68] sm:$0x3]
      %v3781 = vld [vmem:[%s2387 + $0x74] sm:$0x3]
      %v3782 = vld [vmem:[%s2387 + $0x80] sm:$0x3]
      %v3783 = vld [vmem:[%s2387 + $0x8c] sm:$0x3]
      %v3784 = vld [vmem:[%s2387 + $0x98] sm:$0x3]
      %v3785 = vld [vmem:[%s2387 + $0xa4] sm:$0x3]
      %v3786 = vld [vmem:[%s2387 + $0xb0] sm:$0x3]
      %v3787 = vld [vmem:[%s2387 + $0xbc] sm:$0x3]
      %v3788 = vld [vmem:[%s2387 + $0xc8] sm:$0x3]
      %v3789 = vld [vmem:[%s2387 + $0xd4] sm:$0x3]
      %v3791 = vshrl.u32 %v3224, 16
      %v3793 = vrot.slane %v3791, 5
      %v3794 = vshll.u32 %v3224, 16
      %v3796 = vrot.slane %v3794, 6
      %v3797 = vor.u32 %v3793, %v3796
      %v3798 = vrot.slane %v3797, 4
      %v3799 = vrot.slane %v2456, 5
      %v3800 = vrot.slane %v2452, 6
      %v3801 = vor.u32 %v3799, %v3800
      %v3802 = vsel %vm1619, %v3798, %v3801
      %v3803 = vrot.slane %v3801, 4
      %v3805 = vshrl.u32 %v3772, 16
      %v3807 = vrot.slane %v3805, 5
      %v3808 = vshll.u32 %v3772, 16
      %v3810 = vrot.slane %v3808, 6
      %v3811 = vor.u32 %v3807, %v3810
      %v3812 = vsel %vm1619, %v3803, %v3811
      %v3814 = vshrl.u32 %v3225, 16
      %v3816 = vrot.slane %v3814, 5
      %v3817 = vshll.u32 %v3225, 16
      %v3819 = vrot.slane %v3817, 6
      %v3820 = vor.u32 %v3816, %v3819
      %v3821 = vrot.slane %v3820, 4
      %v3822 = vrot.slane %v2480, 5
      %v3823 = vrot.slane %v2476, 6
      %v3824 = vor.u32 %v3822, %v3823
      %v3825 = vsel %vm1619, %v3821, %v3824
      %v3826 = vrot.slane %v3824, 4
      %v3828 = vshrl.u32 %v3773, 16
      %v3830 = vrot.slane %v3828, 5
      %v3831 = vshll.u32 %v3773, 16
      %v3833 = vrot.slane %v3831, 6
      %v3834 = vor.u32 %v3830, %v3833
      %v3835 = vsel %vm1619, %v3826, %v3834
      %v3837 = vshrl.u32 %v3226, 16
      %v3839 = vrot.slane %v3837, 5
      %v3840 = vshll.u32 %v3226, 16
      %v3842 = vrot.slane %v3840, 6
      %v3843 = vor.u32 %v3839, %v3842
      %v3844 = vrot.slane %v3843, 4
      %v3845 = vrot.slane %v2504, 5
      %v3846 = vrot.slane %v2500, 6
      %v3847 = vor.u32 %v3845, %v3846
      %v3848 = vsel %vm1619, %v3844, %v3847
      %v3849 = vrot.slane %v3847, 4
      %v3851 = vshrl.u32 %v3774, 16
      %v3853 = vrot.slane %v3851, 5
      %v3854 = vshll.u32 %v3774, 16
      %v3856 = vrot.slane %v3854, 6
      %v3857 = vor.u32 %v3853, %v3856
      %v3858 = vsel %vm1619, %v3849, %v3857
      %v3860 = vshrl.u32 %v3227, 16
      %v3862 = vrot.slane %v3860, 5
      %v3863 = vshll.u32 %v3227, 16
      %v3865 = vrot.slane %v3863, 6
      %v3866 = vor.u32 %v3862, %v3865
      %v3867 = vrot.slane %v3866, 4
      %v3868 = vrot.slane %v2528, 5
      %v3869 = vrot.slane %v2524, 6
      %v3870 = vor.u32 %v3868, %v3869
      %v3871 = vsel %vm1619, %v3867, %v3870
      %v3872 = vrot.slane %v3870, 4
      %v3874 = vshrl.u32 %v3775, 16
      %v3876 = vrot.slane %v3874, 5
      %v3877 = vshll.u32 %v3775, 16
      %v3879 = vrot.slane %v3877, 6
      %v3880 = vor.u32 %v3876, %v3879
      %v3881 = vsel %vm1619, %v3872, %v3880
      %v3883 = vshrl.u32 %v3228, 16
      %v3885 = vrot.slane %v3883, 5
      %v3886 = vshll.u32 %v3228, 16
      %v3888 = vrot.slane %v3886, 6
      %v3889 = vor.u32 %v3885, %v3888
      %v3890 = vrot.slane %v3889, 4
      %v3891 = vrot.slane %v2552, 5
      %v3892 = vrot.slane %v2548, 6
      %v3893 = vor.u32 %v3891, %v3892
      %v3894 = vsel %vm1619, %v3890, %v3893
      %v3895 = vrot.slane %v3893, 4
      %v3897 = vshrl.u32 %v3776, 16
      %v3899 = vrot.slane %v3897, 5
      %v3900 = vshll.u32 %v3776, 16
      %v3902 = vrot.slane %v3900, 6
      %v3903 = vor.u32 %v3899, %v3902
      %v3904 = vsel %vm1619, %v3895, %v3903
      %v3906 = vshrl.u32 %v3229, 16
      %v3908 = vrot.slane %v3906, 5
      %v3909 = vshll.u32 %v3229, 16
      %v3911 = vrot.slane %v3909, 6
      %v3912 = vor.u32 %v3908, %v3911
      %v3913 = vrot.slane %v3912, 4
      %v3914 = vrot.slane %v2576, 5
      %v3915 = vrot.slane %v2572, 6
      %v3916 = vor.u32 %v3914, %v3915
      %v3917 = vsel %vm1619, %v3913, %v3916
      %v3918 = vrot.slane %v3916, 4
      %v3920 = vshrl.u32 %v3777, 16
      %v3922 = vrot.slane %v3920, 5
      %v3923 = vshll.u32 %v3777, 16
      %v3925 = vrot.slane %v3923, 6
      %v3926 = vor.u32 %v3922, %v3925
      %v3927 = vsel %vm1619, %v3918, %v3926
      %v3929 = vshrl.u32 %v3230, 16
      %v3931 = vrot.slane %v3929, 5
      %v3932 = vshll.u32 %v3230, 16
      %v3934 = vrot.slane %v3932, 6
      %v3935 = vor.u32 %v3931, %v3934
      %v3936 = vrot.slane %v3935, 4
      %v3937 = vrot.slane %v2600, 5
      %v3938 = vrot.slane %v2596, 6
      %v3939 = vor.u32 %v3937, %v3938
      %v3940 = vsel %vm1619, %v3936, %v3939
      %v3941 = vrot.slane %v3939, 4
      %v3943 = vshrl.u32 %v3778, 16
      %v3945 = vrot.slane %v3943, 5
      %v3946 = vshll.u32 %v3778, 16
      %v3948 = vrot.slane %v3946, 6
      %v3949 = vor.u32 %v3945, %v3948
      %v3950 = vsel %vm1619, %v3941, %v3949
      %v3952 = vshrl.u32 %v3231, 16
      %v3954 = vrot.slane %v3952, 5
      %v3955 = vshll.u32 %v3231, 16
      %v3957 = vrot.slane %v3955, 6
      %v3958 = vor.u32 %v3954, %v3957
      %v3959 = vrot.slane %v3958, 4
      %v3960 = vrot.slane %v2624, 5
      %v3961 = vrot.slane %v2620, 6
      %v3962 = vor.u32 %v3960, %v3961
      %v3963 = vsel %vm1619, %v3959, %v3962
      %v3964 = vrot.slane %v3962, 4
      %v3966 = vshrl.u32 %v3779, 16
      %v3968 = vrot.slane %v3966, 5
      %v3969 = vshll.u32 %v3779, 16
      %v3971 = vrot.slane %v3969, 6
      %v3972 = vor.u32 %v3968, %v3971
      %v3973 = vsel %vm1619, %v3964, %v3972
      %v3975 = vshrl.u32 %v3232, 16
      %v3977 = vrot.slane %v3975, 5
      %v3978 = vshll.u32 %v3232, 16
      %v3980 = vrot.slane %v3978, 6
      %v3981 = vor.u32 %v3977, %v3980
      %v3982 = vrot.slane %v3981, 4
      %v3983 = vrot.slane %v2648, 5
      %v3984 = vrot.slane %v2644, 6
      %v3985 = vor.u32 %v3983, %v3984
      %v3986 = vsel %vm1619, %v3982, %v3985
      %v3987 = vrot.slane %v3985, 4
      %v3989 = vshrl.u32 %v3780, 16
      %v3991 = vrot.slane %v3989, 5
      %v3992 = vshll.u32 %v3780, 16
      %v3994 = vrot.slane %v3992, 6
      %v3995 = vor.u32 %v3991, %v3994
      %v3996 = vsel %vm1619, %v3987, %v3995
      %v3998 = vshrl.u32 %v3233, 16
      %v4000 = vrot.slane %v3998, 5
      %v4001 = vshll.u32 %v3233, 16
      %v4003 = vrot.slane %v4001, 6
      %v4004 = vor.u32 %v4000, %v4003
      %v4005 = vrot.slane %v4004, 4
      %v4006 = vrot.slane %v2672, 5
      %v4007 = vrot.slane %v2668, 6
      %v4008 = vor.u32 %v4006, %v4007
      %v4009 = vsel %vm1619, %v4005, %v4008
      %v4010 = vrot.slane %v4008, 4
      %v4012 = vshrl.u32 %v3781, 16
      %v4014 = vrot.slane %v4012, 5
      %v4015 = vshll.u32 %v3781, 16
      %v4017 = vrot.slane %v4015, 6
      %v4018 = vor.u32 %v4014, %v4017
      %v4019 = vsel %vm1619, %v4010, %v4018
      %v4021 = vshrl.u32 %v3234, 16
      %v4023 = vrot.slane %v4021, 5
      %v4024 = vshll.u32 %v3234, 16
      %v4026 = vrot.slane %v4024, 6
      %v4027 = vor.u32 %v4023, %v4026
      %v4028 = vrot.slane %v4027, 4
      %v4029 = vrot.slane %v2696, 5
      %v4030 = vrot.slane %v2692, 6
      %v4031 = vor.u32 %v4029, %v4030
      %v4032 = vsel %vm1619, %v4028, %v4031
      %v4033 = vrot.slane %v4031, 4
      %v4035 = vshrl.u32 %v3782, 16
      %v4037 = vrot.slane %v4035, 5
      %v4038 = vshll.u32 %v3782, 16
      %v4040 = vrot.slane %v4038, 6
      %v4041 = vor.u32 %v4037, %v4040
      %v4042 = vsel %vm1619, %v4033, %v4041
      %v4044 = vshrl.u32 %v3235, 16
      %v4046 = vrot.slane %v4044, 5
      %v4047 = vshll.u32 %v3235, 16
      %v4049 = vrot.slane %v4047, 6
      %v4050 = vor.u32 %v4046, %v4049
      %v4051 = vrot.slane %v4050, 4
      %v4052 = vrot.slane %v2720, 5
      %v4053 = vrot.slane %v2716, 6
      %v4054 = vor.u32 %v4052, %v4053
      %v4055 = vsel %vm1619, %v4051, %v4054
      %v4056 = vrot.slane %v4054, 4
      %v4058 = vshrl.u32 %v3783, 16
      %v4060 = vrot.slane %v4058, 5
      %v4061 = vshll.u32 %v3783, 16
      %v4063 = vrot.slane %v4061, 6
      %v4064 = vor.u32 %v4060, %v4063
      %v4065 = vsel %vm1619, %v4056, %v4064
      %v4067 = vshrl.u32 %v3236, 16
      %v4069 = vrot.slane %v4067, 5
      %v4070 = vshll.u32 %v3236, 16
      %v4072 = vrot.slane %v4070, 6
      %v4073 = vor.u32 %v4069, %v4072
      %v4074 = vrot.slane %v4073, 4
      %v4075 = vrot.slane %v2744, 5
      %v4076 = vrot.slane %v2740, 6
      %v4077 = vor.u32 %v4075, %v4076
      %v4078 = vsel %vm1619, %v4074, %v4077
      %v4079 = vrot.slane %v4077, 4
      %v4081 = vshrl.u32 %v3784, 16
      %v4083 = vrot.slane %v4081, 5
      %v4084 = vshll.u32 %v3784, 16
      %v4086 = vrot.slane %v4084, 6
      %v4087 = vor.u32 %v4083, %v4086
      %v4088 = vsel %vm1619, %v4079, %v4087
      %v4090 = vshrl.u32 %v3237, 16
      %v4092 = vrot.slane %v4090, 5
      %v4093 = vshll.u32 %v3237, 16
      %v4095 = vrot.slane %v4093, 6
      %v4096 = vor.u32 %v4092, %v4095
      %v4097 = vrot.slane %v4096, 4
      %v4098 = vrot.slane %v2768, 5
      %v4099 = vrot.slane %v2764, 6
      %v4100 = vor.u32 %v4098, %v4099
      %v4101 = vsel %vm1619, %v4097, %v4100
      %v4102 = vrot.slane %v4100, 4
      %v4104 = vshrl.u32 %v3785, 16
      %v4106 = vrot.slane %v4104, 5
      %v4107 = vshll.u32 %v3785, 16
      %v4109 = vrot.slane %v4107, 6
      %v4110 = vor.u32 %v4106, %v4109
      %v4111 = vsel %vm1619, %v4102, %v4110
      %v4113 = vshrl.u32 %v3238, 16
      %v4115 = vrot.slane %v4113, 5
      %v4116 = vshll.u32 %v3238, 16
      %v4118 = vrot.slane %v4116, 6
      %v4119 = vor.u32 %v4115, %v4118
      %v4120 = vrot.slane %v4119, 4
      %v4121 = vrot.slane %v2792, 5
      %v4122 = vrot.slane %v2788, 6
      %v4123 = vor.u32 %v4121, %v4122
      %v4124 = vsel %vm1619, %v4120, %v4123
      %v4125 = vrot.slane %v4123, 4
      %v4127 = vshrl.u32 %v3786, 16
      %v4129 = vrot.slane %v4127, 5
      %v4130 = vshll.u32 %v3786, 16
      %v4132 = vrot.slane %v4130, 6
      %v4133 = vor.u32 %v4129, %v4132
      %v4134 = vsel %vm1619, %v4125, %v4133
      %v4136 = vshrl.u32 %v3239, 16
      %v4138 = vrot.slane %v4136, 5
      %v4139 = vshll.u32 %v3239, 16
      %v4141 = vrot.slane %v4139, 6
      %v4142 = vor.u32 %v4138, %v4141
      %v4143 = vrot.slane %v4142, 4
      %v4144 = vrot.slane %v2816, 5
      %v4145 = vrot.slane %v2812, 6
      %v4146 = vor.u32 %v4144, %v4145
      %v4147 = vsel %vm1619, %v4143, %v4146
      %v4148 = vrot.slane %v4146, 4
      %v4150 = vshrl.u32 %v3787, 16
      %v4152 = vrot.slane %v4150, 5
      %v4153 = vshll.u32 %v3787, 16
      %v4155 = vrot.slane %v4153, 6
      %v4156 = vor.u32 %v4152, %v4155
      %v4157 = vsel %vm1619, %v4148, %v4156
      %v4159 = vshrl.u32 %v3240, 16
      %v4161 = vrot.slane %v4159, 5
      %v4162 = vshll.u32 %v3240, 16
      %v4164 = vrot.slane %v4162, 6
      %v4165 = vor.u32 %v4161, %v4164
      %v4166 = vrot.slane %v4165, 4
      %v4167 = vrot.slane %v2840, 5
      %v4168 = vrot.slane %v2836, 6
      %v4169 = vor.u32 %v4167, %v4168
      %v4170 = vsel %vm1619, %v4166, %v4169
      %v4171 = vrot.slane %v4169, 4
      %v4173 = vshrl.u32 %v3788, 16
      %v4175 = vrot.slane %v4173, 5
      %v4176 = vshll.u32 %v3788, 16
      %v4178 = vrot.slane %v4176, 6
      %v4179 = vor.u32 %v4175, %v4178
      %v4180 = vsel %vm1619, %v4171, %v4179
      %v4182 = vshrl.u32 %v3241, 16
      %v4184 = vrot.slane %v4182, 5
      %v4185 = vshll.u32 %v3241, 16
      %v4187 = vrot.slane %v4185, 6
      %v4188 = vor.u32 %v4184, %v4187
      %v4189 = vrot.slane %v4188, 4
      %v4190 = vrot.slane %v2864, 5
      %v4191 = vrot.slane %v2860, 6
      %v4192 = vor.u32 %v4190, %v4191
      %v4193 = vsel %vm1619, %v4189, %v4192
      %v4194 = vrot.slane %v4192, 4
      %v4196 = vshrl.u32 %v3789, 16
      %v4198 = vrot.slane %v4196, 5
      %v4199 = vshll.u32 %v3789, 16
      %v4201 = vrot.slane %v4199, 6
      %v4202 = vor.u32 %v4198, %v4201
      %v4203 = vsel %vm1619, %v4194, %v4202
      %s4204 = scalar_lea.vmem %s1, 320
      %v4205 = vld [vmem:[%s4204] sm:$0xf]
      %v4206 = vld [vmem:[%s4204 + $0x4] sm:$0xf]
      %v4207 = vld [vmem:[%s4204 + $0x8] sm:$0xf]
      %v4208 = vld [vmem:[%s4204 + $0xc] sm:$0xf]
      %v4209 = vld [vmem:[%s4204 + $0x10] sm:$0xf]
      %v4210 = vld [vmem:[%s4204 + $0x14] sm:$0xf]
      %v4211 = vld [vmem:[%s4204 + $0x18] sm:$0xf]
      %v4212 = vld [vmem:[%s4204 + $0x1c] sm:$0xf]
      %v4213 = vld [vmem:[%s4204 + $0x20] sm:$0xf]
      %v4214 = vld [vmem:[%s4204 + $0x24] sm:$0xf]
      %v4215 = vld [vmem:[%s4204 + $0x28] sm:$0xf]
      %v4216 = vld [vmem:[%s4204 + $0x2c] sm:$0xf]
      %v4217 = vld [vmem:[%s4204 + $0x30] sm:$0xf]
      %v4218 = vld [vmem:[%s4204 + $0x34] sm:$0xf]
      %v4219 = vld [vmem:[%s4204 + $0x38] sm:$0xf]
      %v4220 = vld [vmem:[%s4204 + $0x3c] sm:$0xf]
      %v4221 = vunpack.c.l.b16 %v3802
      %v4222 = vunpack.c.l.b16 %v3812
      %v4223 = vunpack.c.l.b16 %v3825
      %v4224 = vunpack.c.l.b16 %v3835
      %v4225 = vunpack.c.l.b16 %v3848
      %v4226 = vunpack.c.l.b16 %v3858
      %v4227 = vunpack.c.l.b16 %v3871
      %v4228 = vunpack.c.l.b16 %v3881
      %v4229 = vunpack.c.l.b16 %v3894
      %v4230 = vunpack.c.l.b16 %v3904
      %v4231 = vunpack.c.l.b16 %v3917
      %v4232 = vunpack.c.l.b16 %v3927
      %v4233 = vunpack.c.l.b16 %v3940
      %v4234 = vunpack.c.l.b16 %v3950
      %v4235 = vunpack.c.l.b16 %v3963
      %v4236 = vunpack.c.l.b16 %v3973
      %v4237 = vunpack.c.l.b16 %v3986
      %v4238 = vunpack.c.l.b16 %v3996
      %v4239 = vunpack.c.l.b16 %v4009
      %v4240 = vunpack.c.l.b16 %v4019
      %v4241 = vunpack.c.l.b16 %v4032
      %v4242 = vunpack.c.l.b16 %v4042
      %v4243 = vunpack.c.l.b16 %v4055
      %v4244 = vunpack.c.l.b16 %v4065
      %v4245 = vunpack.c.l.b16 %v4078
      %v4246 = vunpack.c.l.b16 %v4088
      %v4247 = vunpack.c.l.b16 %v4101
      %v4248 = vunpack.c.l.b16 %v4111
      %v4249 = vunpack.c.l.b16 %v4124
      %v4250 = vunpack.c.l.b16 %v4134
      %v4251 = vunpack.c.l.b16 %v4147
      %v4252 = vunpack.c.l.b16 %v4157
      %v4253 = vunpack.c.l.b16 %v4170
      %v4254 = vunpack.c.l.b16 %v4180
      %v4255 = vunpack.c.l.b16 %v4193
      %v4256 = vunpack.c.l.b16 %v4203
      %v4257 = vpack.c.b16 %v4222, %v4221
      %v4258 = vpack.c.b16 %v4224, %v4223
      %v4259 = vpack.c.b16 %v4226, %v4225
      %v4260 = vpack.c.b16 %v4228, %v4227
      %v4261 = vpack.c.b16 %v4230, %v4229
      %v4262 = vpack.c.b16 %v4232, %v4231
      %v4263 = vpack.c.b16 %v4234, %v4233
      %v4264 = vpack.c.b16 %v4236, %v4235
      %v4265 = vpack.c.b16 %v4238, %v4237
      %v4266 = vpack.c.b16 %v4240, %v4239
      %v4267 = vpack.c.b16 %v4242, %v4241
      %v4268 = vpack.c.b16 %v4244, %v4243
      %v4269 = vpack.c.b16 %v4246, %v4245
      %v4270 = vpack.c.b16 %v4248, %v4247
      %v4271 = vpack.c.b16 %v4250, %v4249
      %v4272 = vpack.c.b16 %v4252, %v4251
      %v4273 = vpack.c.b16 %v4254, %v4253
      %v4274 = vpack.c.b16 %v4256, %v4255
      %v4309 = vunpack.c.l.b16 %v4205
      %v4310 = vunpack.c.l.b16 %v4206
      %v4311 = vunpack.c.l.b16 %v4207
      %v4312 = vunpack.c.l.b16 %v4208
      %v4313 = vunpack.c.l.b16 %v4209
      %v4314 = vunpack.c.l.b16 %v4210
      %v4315 = vunpack.c.l.b16 %v4211
      %v4316 = vunpack.c.l.b16 %v4212
      %v4317 = vunpack.c.l.b16 %v4213
      %v4318 = vunpack.c.l.b16 %v4214
      %v4319 = vunpack.c.l.b16 %v4215
      %v4320 = vunpack.c.l.b16 %v4216
      %v4321 = vunpack.c.l.b16 %v4217
      %v4322 = vunpack.c.l.b16 %v4218
      %v4323 = vunpack.c.l.b16 %v4219
      %v4324 = vunpack.c.l.b16 %v4220
      %v4325 = vpack.c.b16 %v4310, %v4309
      %v4326 = vpack.c.b16 %v4312, %v4311
      %v4327 = vpack.c.b16 %v4314, %v4313
      %v4328 = vpack.c.b16 %v4316, %v4315
      %v4329 = vpack.c.b16 %v4318, %v4317
      %v4330 = vpack.c.b16 %v4320, %v4319
      %v4331 = vpack.c.b16 %v4322, %v4321
      %v4332 = vpack.c.b16 %v4324, %v4323
      %4341 = vmatprep.subr.bf16.mxu0 0
      %4342 = vmatpush1.bf16.msra.mxu0 %v4325
      %4343 = vmatprep.subr.bf16.mxu0 0
      %4344 = vmatpush1.bf16.msra.mxu0 %v4326
      %4345 = vmatprep.subr.bf16.mxu0 0
      %4346 = vmatpush1.bf16.msra.mxu0 %v4327
      %4347 = vmatprep.subr.bf16.mxu0 0
      %4348 = vmatpush1.bf16.msra.mxu0 %v4328
      %4349 = vmatprep.subr.bf16.mxu0 0
      %4350 = vmatpush1.bf16.msra.mxu0 %v4329
      %4351 = vmatprep.subr.bf16.mxu0 0
      %4352 = vmatpush1.bf16.msra.mxu0 %v4330
      %4353 = vmatprep.subr.bf16.mxu0 0
      %4354 = vmatpush1.bf16.msra.mxu0 %v4331
      %4355 = vmatprep.subr.bf16.mxu0 0
      %4356 = vmatpush1.bf16.msra.mxu0 %v4332
      %4357 = vmatprep.subr.bf16.mxu0 0
      %4358 = vmatpush1.bf16.msra.mxu0 0
      %4359 = vmatprep.subr.bf16.mxu0 0
      %4360 = vmatpush1.bf16.msra.mxu0 0
      %4361 = vmatprep.subr.bf16.mxu0 0
      %4362 = vmatpush1.bf16.msra.mxu0 0
      %4363 = vmatprep.subr.bf16.mxu0 0
      %4364 = vmatpush1.bf16.msra.mxu0 0
      %4365 = vmatprep.subr.bf16.mxu0 0
      %4366 = vmatpush1.bf16.msra.mxu0 0
      %4367 = vmatprep.subr.bf16.mxu0 0
      %4368 = vmatpush1.bf16.msra.mxu0 0
      %4369 = vmatprep.subr.bf16.mxu0 0
      %4370 = vmatpush1.bf16.msra.mxu0 0
      %4371 = vmatprep.subr.bf16.mxu0 0
      %4372 = vmatpush1.bf16.msra.mxu0 0
      %4373 = vmatprep.mubr.bf16.mxu0 0
      %4374 = vmatmul.mubr.bf16.gmra.mrb[0].mxu0 %v4257
      %v4375 = vpop.f32.mrb[0].mxu0
      %v4376 = vadd.f32 0.0, %v4375
      %v4377 = vpop.f32.mrb[0].mxu0
      %v4378 = vpop.f32.mrb[0].mxu0
      %v4379 = vadd.f32 0.0, %v4378
      %v4380 = vpop.f32.mrb[0].mxu0
      %4381 = vmatprep.mubr.bf16.mxu0 0
      %4382 = vmatmul.mubr.bf16.gmra.mrb[0].mxu0 %v4258
      %v4383 = vpop.f32.mrb[0].mxu0
      %v4384 = vadd.f32 0.0, %v4383
      %v4385 = vpop.f32.mrb[0].mxu0
      %v4386 = vpop.f32.mrb[0].mxu0
      %v4387 = vadd.f32 0.0, %v4386
      %v4388 = vpop.f32.mrb[0].mxu0
      %4389 = vmatprep.mubr.bf16.mxu0 0
      %4390 = vmatmul.mubr.bf16.gmra.mrb[0].mxu0 %v4259
      %v4391 = vpop.f32.mrb[0].mxu0
      %v4392 = vadd.f32 0.0, %v4391
      %v4393 = vpop.f32.mrb[0].mxu0
      %v4394 = vpop.f32.mrb[0].mxu0
      %v4395 = vadd.f32 0.0, %v4394
      %v4396 = vpop.f32.mrb[0].mxu0
      %4397 = vmatprep.mubr.bf16.mxu0 0
      %4398 = vmatmul.mubr.bf16.gmra.mrb[0].mxu0 %v4260
      %v4399 = vpop.f32.mrb[0].mxu0
      %v4400 = vadd.f32 0.0, %v4399
      %v4401 = vpop.f32.mrb[0].mxu0
      %v4402 = vpop.f32.mrb[0].mxu0
      %v4403 = vadd.f32 0.0, %v4402
      %v4404 = vpop.f32.mrb[0].mxu0
      %4405 = vmatprep.mubr.bf16.mxu0 0
      %4406 = vmatmul.mubr.bf16.gmra.mrb[0].mxu0 %v4261
      %v4407 = vpop.f32.mrb[0].mxu0
      %v4408 = vadd.f32 0.0, %v4407
      %v4409 = vpop.f32.mrb[0].mxu0
      %v4410 = vpop.f32.mrb[0].mxu0
      %v4411 = vadd.f32 0.0, %v4410
      %v4412 = vpop.f32.mrb[0].mxu0
      %4413 = vmatprep.mubr.bf16.mxu0 0
      %4414 = vmatmul.mubr.bf16.gmra.mrb[0].mxu0 %v4262
      %v4415 = vpop.f32.mrb[0].mxu0
      %v4416 = vadd.f32 0.0, %v4415
      %v4417 = vpop.f32.mrb[0].mxu0
      %v4418 = vpop.f32.mrb[0].mxu0
      %v4419 = vadd.f32 0.0, %v4418
      %v4420 = vpop.f32.mrb[0].mxu0
      %4421 = vmatprep.mubr.bf16.mxu0 0
      %4422 = vmatmul.mubr.bf16.gmra.mrb[0].mxu0 %v4263
      %v4423 = vpop.f32.mrb[0].mxu0
      %v4424 = vadd.f32 0.0, %v4423
      %v4425 = vpop.f32.mrb[0].mxu0
      %v4426 = vpop.f32.mrb[0].mxu0
      %v4427 = vadd.f32 0.0, %v4426
      %v4428 = vpop.f32.mrb[0].mxu0
      %4429 = vmatprep.mubr.bf16.mxu0 0
      %4430 = vmatmul.mubr.bf16.gmra.mrb[0].mxu0 %v4264
      %v4431 = vpop.f32.mrb[0].mxu0
      %v4432 = vadd.f32 0.0, %v4431
      %v4433 = vpop.f32.mrb[0].mxu0
      %v4434 = vpop.f32.mrb[0].mxu0
      %v4435 = vadd.f32 0.0, %v4434
      %v4436 = vpop.f32.mrb[0].mxu0
      %4437 = vmatprep.mubr.bf16.mxu0 0
      %4438 = vmatmul.mubr.bf16.gmra.mrb[0].mxu0 %v4265
      %v4439 = vpop.f32.mrb[0].mxu0
      %v4440 = vadd.f32 0.0, %v4439
      %v4441 = vpop.f32.mrb[0].mxu0
      %v4442 = vpop.f32.mrb[0].mxu0
      %v4443 = vadd.f32 0.0, %v4442
      %v4444 = vpop.f32.mrb[0].mxu0
      %4445 = vmatprep.mubr.bf16.mxu0 0
      %4446 = vmatmul.mubr.bf16.gmra.mrb[0].mxu0 %v4266
      %v4447 = vpop.f32.mrb[0].mxu0
      %v4448 = vadd.f32 0.0, %v4447
      %v4449 = vpop.f32.mrb[0].mxu0
      %v4450 = vpop.f32.mrb[0].mxu0
      %v4451 = vadd.f32 0.0, %v4450
      %v4452 = vpop.f32.mrb[0].mxu0
      %4453 = vmatprep.mubr.bf16.mxu0 0
      %4454 = vmatmul.mubr.bf16.gmra.mrb[0].mxu0 %v4267
      %v4455 = vpop.f32.mrb[0].mxu0
      %v4456 = vadd.f32 0.0, %v4455
      %v4457 = vpop.f32.mrb[0].mxu0
      %v4458 = vpop.f32.mrb[0].mxu0
      %v4459 = vadd.f32 0.0, %v4458
      %v4460 = vpop.f32.mrb[0].mxu0
      %4461 = vmatprep.mubr.bf16.mxu0 0
      %4462 = vmatmul.mubr.bf16.gmra.mrb[0].mxu0 %v4268
      %v4463 = vpop.f32.mrb[0].mxu0
      %v4464 = vadd.f32 0.0, %v4463
      %v4465 = vpop.f32.mrb[0].mxu0
      %v4466 = vpop.f32.mrb[0].mxu0
      %v4467 = vadd.f32 0.0, %v4466
      %v4468 = vpop.f32.mrb[0].mxu0
      %4469 = vmatprep.mubr.bf16.mxu0 0
      %4470 = vmatmul.mubr.bf16.gmra.mrb[0].mxu0 %v4269
      %v4471 = vpop.f32.mrb[0].mxu0
      %v4472 = vadd.f32 0.0, %v4471
      %v4473 = vpop.f32.mrb[0].mxu0
      %v4474 = vpop.f32.mrb[0].mxu0
      %v4475 = vadd.f32 0.0, %v4474
      %v4476 = vpop.f32.mrb[0].mxu0
      %4477 = vmatprep.mubr.bf16.mxu0 0
      %4478 = vmatmul.mubr.bf16.gmra.mrb[0].mxu0 %v4270
      %v4479 = vpop.f32.mrb[0].mxu0
      %v4480 = vadd.f32 0.0, %v4479
      %v4481 = vpop.f32.mrb[0].mxu0
      %v4482 = vpop.f32.mrb[0].mxu0
      %v4483 = vadd.f32 0.0, %v4482
      %v4484 = vpop.f32.mrb[0].mxu0
      %4485 = vmatprep.mubr.bf16.mxu0 0
      %4486 = vmatmul.mubr.bf16.gmra.mrb[0].mxu0 %v4271
      %v4487 = vpop.f32.mrb[0].mxu0
      %v4488 = vadd.f32 0.0, %v4487
      %v4489 = vpop.f32.mrb[0].mxu0
      %v4490 = vpop.f32.mrb[0].mxu0
      %v4491 = vadd.f32 0.0, %v4490
      %v4492 = vpop.f32.mrb[0].mxu0
      %4493 = vmatprep.mubr.bf16.mxu0 0
      %4494 = vmatmul.mubr.bf16.gmra.mrb[0].mxu0 %v4272
      %v4495 = vpop.f32.mrb[0].mxu0
      %v4496 = vadd.f32 0.0, %v4495
      %v4497 = vpop.f32.mrb[0].mxu0
      %v4498 = vpop.f32.mrb[0].mxu0
      %v4499 = vadd.f32 0.0, %v4498
      %v4500 = vpop.f32.mrb[0].mxu0
      %4501 = vmatprep.mubr.bf16.mxu0 0
      %4502 = vmatmul.mubr.bf16.gmra.mrb[0].mxu0 %v4273
      %v4503 = vpop.f32.mrb[0].mxu0
      %v4504 = vadd.f32 0.0, %v4503
      %v4505 = vpop.f32.mrb[0].mxu0
      %v4506 = vpop.f32.mrb[0].mxu0
      %v4507 = vadd.f32 0.0, %v4506
      %v4508 = vpop.f32.mrb[0].mxu0
      %4509 = vmatprep.mubr.bf16.mxu0 0
      %4510 = vmatmul.mubr.bf16.gmra.mrb[0].mxu0 %v4274
      %v4511 = vpop.f32.mrb[0].mxu0
      %v4512 = vadd.f32 0.0, %v4511
      %v4513 = vpop.f32.mrb[0].mxu0
      %v4514 = vpop.f32.mrb[0].mxu0
      %v4515 = vadd.f32 0.0, %v4514
      %v4516 = vpop.f32.mrb[0].mxu0
      %4517 = vdwg.mxu0
      %v4518 = vadd.f32 %v3736, %v4376
      %v4519 = vadd.f32 %v3737, %v4379
      %v4520 = vadd.f32 %v3738, %v4384
      %v4521 = vadd.f32 %v3739, %v4387
      %v4522 = vadd.f32 %v3740, %v4392
      %v4523 = vadd.f32 %v3741, %v4395
      %v4524 = vadd.f32 %v3742, %v4400
      %v4525 = vadd.f32 %v3743, %v4403
      %v4526 = vadd.f32 %v3744, %v4408
      %v4527 = vadd.f32 %v3745, %v4411
      %v4528 = vadd.f32 %v3746, %v4416
      %v4529 = vadd.f32 %v3747, %v4419
      %v4530 = vadd.f32 %v3748, %v4424
      %v4531 = vadd.f32 %v3749, %v4427
      %v4532 = vadd.f32 %v3750, %v4432
      %v4533 = vadd.f32 %v3751, %v4435
      %v4534 = vadd.f32 %v3752, %v4440
      %v4535 = vadd.f32 %v3753, %v4443
      %v4536 = vadd.f32 %v3754, %v4448
      %v4537 = vadd.f32 %v3755, %v4451
      %v4538 = vadd.f32 %v3756, %v4456
      %v4539 = vadd.f32 %v3757, %v4459
      %v4540 = vadd.f32 %v3758, %v4464
      %v4541 = vadd.f32 %v3759, %v4467
      %v4542 = vadd.f32 %v3760, %v4472
      %v4543 = vadd.f32 %v3761, %v4475
      %v4544 = vadd.f32 %v3762, %v4480
      %v4545 = vadd.f32 %v3763, %v4483
      %v4546 = vadd.f32 %v3764, %v4488
      %v4547 = vadd.f32 %v3765, %v4491
      %v4548 = vadd.f32 %v3766, %v4496
      %v4549 = vadd.f32 %v3767, %v4499
      %v4550 = vadd.f32 %v3768, %v4504
      %v4551 = vadd.f32 %v3769, %v4507
      %v4552 = vadd.f32 %v3770, %v4512
      %v4553 = vadd.f32 %v3771, %v4515
      %s4554 = sadd.s32 %s278, 2
      %s4555 = smul.u32 %s4554, 3
      %s4556 = smul.addr %s4555, 4
      %s4557 = scalar_lea.vmem %s265, %s4556
      %v4558 = vld [vmem:[%s4557] sm:$0xf]
      %v4559 = vld [vmem:[%s4557 + $0x4] sm:$0xf]
      %v4560 = vld [vmem:[%s4557 + $0x8] sm:$0x1]
      %v4561 = vld [vmem:[%s4557 + $0xc] sm:$0xf]
      %v4562 = vld [vmem:[%s4557 + $0x10] sm:$0xf]
      %v4563 = vld [vmem:[%s4557 + $0x14] sm:$0x1]
      %v4564 = vld [vmem:[%s4557 + $0x18] sm:$0xf]
      %v4565 = vld [vmem:[%s4557 + $0x1c] sm:$0xf]
      %v4566 = vld [vmem:[%s4557 + $0x20] sm:$0x1]
      %v4567 = vld [vmem:[%s4557 + $0x24] sm:$0xf]
      %v4568 = vld [vmem:[%s4557 + $0x28] sm:$0xf]
      %v4569 = vld [vmem:[%s4557 + $0x2c] sm:$0x1]
      %v4570 = vld [vmem:[%s4557 + $0x30] sm:$0xf]
      %v4571 = vld [vmem:[%s4557 + $0x34] sm:$0xf]
      %v4572 = vld [vmem:[%s4557 + $0x38] sm:$0x1]
      %v4573 = vld [vmem:[%s4557 + $0x3c] sm:$0xf]
      %v4574 = vld [vmem:[%s4557 + $0x40] sm:$0xf]
      %v4575 = vld [vmem:[%s4557 + $0x44] sm:$0x1]
      %v4576 = vld [vmem:[%s4557 + $0x48] sm:$0xf]
      %v4577 = vld [vmem:[%s4557 + $0x4c] sm:$0xf]
      %v4578 = vld [vmem:[%s4557 + $0x50] sm:$0x1]
      %v4579 = vld [vmem:[%s4557 + $0x54] sm:$0xf]
      %v4580 = vld [vmem:[%s4557 + $0x58] sm:$0xf]
      %v4581 = vld [vmem:[%s4557 + $0x5c] sm:$0x1]
      %v4582 = vld [vmem:[%s4557 + $0x60] sm:$0xf]
      %v4583 = vld [vmem:[%s4557 + $0x64] sm:$0xf]
      %v4584 = vld [vmem:[%s4557 + $0x68] sm:$0x1]
      %v4585 = vld [vmem:[%s4557 + $0x6c] sm:$0xf]
      %v4586 = vld [vmem:[%s4557 + $0x70] sm:$0xf]
      %v4587 = vld [vmem:[%s4557 + $0x74] sm:$0x1]
      %v4588 = vld [vmem:[%s4557 + $0x78] sm:$0xf]
      %v4589 = vld [vmem:[%s4557 + $0x7c] sm:$0xf]
      %v4590 = vld [vmem:[%s4557 + $0x80] sm:$0x1]
      %v4591 = vld [vmem:[%s4557 + $0x84] sm:$0xf]
      %v4592 = vld [vmem:[%s4557 + $0x88] sm:$0xf]
      %v4593 = vld [vmem:[%s4557 + $0x8c] sm:$0x1]
      %v4594 = vld [vmem:[%s4557 + $0x90] sm:$0xf]
      %v4595 = vld [vmem:[%s4557 + $0x94] sm:$0xf]
      %v4596 = vld [vmem:[%s4557 + $0x98] sm:$0x1]
      %v4597 = vld [vmem:[%s4557 + $0x9c] sm:$0xf]
      %v4598 = vld [vmem:[%s4557 + $0xa0] sm:$0xf]
      %v4599 = vld [vmem:[%s4557 + $0xa4] sm:$0x1]
      %v4600 = vld [vmem:[%s4557 + $0xa8] sm:$0xf]
      %v4601 = vld [vmem:[%s4557 + $0xac] sm:$0xf]
      %v4602 = vld [vmem:[%s4557 + $0xb0] sm:$0x1]
      %v4603 = vld [vmem:[%s4557 + $0xb4] sm:$0xf]
      %v4604 = vld [vmem:[%s4557 + $0xb8] sm:$0xf]
      %v4605 = vld [vmem:[%s4557 + $0xbc] sm:$0x1]
      %v4606 = vld [vmem:[%s4557 + $0xc0] sm:$0xf]
      %v4607 = vld [vmem:[%s4557 + $0xc4] sm:$0xf]
      %v4608 = vld [vmem:[%s4557 + $0xc8] sm:$0x1]
      %v4609 = vld [vmem:[%s4557 + $0xcc] sm:$0xf]
      %v4610 = vld [vmem:[%s4557 + $0xd0] sm:$0xf]
      %v4611 = vld [vmem:[%s4557 + $0xd4] sm:$0x1]
      %v4613 = vshrl.u32 %v4558, 16
      %v4615 = vrot.slane %v4613, 4
      %v4616 = vshll.u32 %v4558, 16
      %v4618 = vrot.slane %v4616, 5
      %v4619 = vor.u32 %v4615, %v4618
      %v4620 = vrot.slane %v4619, 4
      %v4622 = vshll.u32 %v4559, 16
      %v4624 = vrot.slane %v4622, 5
      %v4625 = vsel %vm338, %v4620, %v4624
      %v4626 = vshrl.u32 %v4559, 16
      %v4628 = vrot.slane %v4626, 4
      %v4629 = vor.u32 %v4628, %v4624
      %v4630 = vrot.slane %v4629, 4
      %v4632 = vshll.u32 %v4560, 16
      %v4634 = vrot.slane %v4632, 5
      %v4635 = vsel %vm338, %v4630, %v4634
      %v4637 = vshrl.u32 %v4561, 16
      %v4639 = vrot.slane %v4637, 4
      %v4640 = vshll.u32 %v4561, 16
      %v4642 = vrot.slane %v4640, 5
      %v4643 = vor.u32 %v4639, %v4642
      %v4644 = vrot.slane %v4643, 4
      %v4646 = vshll.u32 %v4562, 16
      %v4648 = vrot.slane %v4646, 5
      %v4649 = vsel %vm338, %v4644, %v4648
      %v4650 = vshrl.u32 %v4562, 16
      %v4652 = vrot.slane %v4650, 4
      %v4653 = vor.u32 %v4652, %v4648
      %v4654 = vrot.slane %v4653, 4
      %v4656 = vshll.u32 %v4563, 16
      %v4658 = vrot.slane %v4656, 5
      %v4659 = vsel %vm338, %v4654, %v4658
      %v4661 = vshrl.u32 %v4564, 16
      %v4663 = vrot.slane %v4661, 4
      %v4664 = vshll.u32 %v4564, 16
      %v4666 = vrot.slane %v4664, 5
      %v4667 = vor.u32 %v4663, %v4666
      %v4668 = vrot.slane %v4667, 4
      %v4670 = vshll.u32 %v4565, 16
      %v4672 = vrot.slane %v4670, 5
      %v4673 = vsel %vm338, %v4668, %v4672
      %v4674 = vshrl.u32 %v4565, 16
      %v4676 = vrot.slane %v4674, 4
      %v4677 = vor.u32 %v4676, %v4672
      %v4678 = vrot.slane %v4677, 4
      %v4680 = vshll.u32 %v4566, 16
      %v4682 = vrot.slane %v4680, 5
      %v4683 = vsel %vm338, %v4678, %v4682
      %v4685 = vshrl.u32 %v4567, 16
      %v4687 = vrot.slane %v4685, 4
      %v4688 = vshll.u32 %v4567, 16
      %v4690 = vrot.slane %v4688, 5
      %v4691 = vor.u32 %v4687, %v4690
      %v4692 = vrot.slane %v4691, 4
      %v4694 = vshll.u32 %v4568, 16
      %v4696 = vrot.slane %v4694, 5
      %v4697 = vsel %vm338, %v4692, %v4696
      %v4698 = vshrl.u32 %v4568, 16
      %v4700 = vrot.slane %v4698, 4
      %v4701 = vor.u32 %v4700, %v4696
      %v4702 = vrot.slane %v4701, 4
      %v4704 = vshll.u32 %v4569, 16
      %v4706 = vrot.slane %v4704, 5
      %v4707 = vsel %vm338, %v4702, %v4706
      %v4709 = vshrl.u32 %v4570, 16
      %v4711 = vrot.slane %v4709, 4
      %v4712 = vshll.u32 %v4570, 16
      %v4714 = vrot.slane %v4712, 5
      %v4715 = vor.u32 %v4711, %v4714
      %v4716 = vrot.slane %v4715, 4
      %v4718 = vshll.u32 %v4571, 16
      %v4720 = vrot.slane %v4718, 5
      %v4721 = vsel %vm338, %v4716, %v4720
      %v4722 = vshrl.u32 %v4571, 16
      %v4724 = vrot.slane %v4722, 4
      %v4725 = vor.u32 %v4724, %v4720
      %v4726 = vrot.slane %v4725, 4
      %v4728 = vshll.u32 %v4572, 16
      %v4730 = vrot.slane %v4728, 5
      %v4731 = vsel %vm338, %v4726, %v4730
      %v4733 = vshrl.u32 %v4573, 16
      %v4735 = vrot.slane %v4733, 4
      %v4736 = vshll.u32 %v4573, 16
      %v4738 = vrot.slane %v4736, 5
      %v4739 = vor.u32 %v4735, %v4738
      %v4740 = vrot.slane %v4739, 4
      %v4742 = vshll.u32 %v4574, 16
      %v4744 = vrot.slane %v4742, 5
      %v4745 = vsel %vm338, %v4740, %v4744
      %v4746 = vshrl.u32 %v4574, 16
      %v4748 = vrot.slane %v4746, 4
      %v4749 = vor.u32 %v4748, %v4744
      %v4750 = vrot.slane %v4749, 4
      %v4752 = vshll.u32 %v4575, 16
      %v4754 = vrot.slane %v4752, 5
      %v4755 = vsel %vm338, %v4750, %v4754
      %v4757 = vshrl.u32 %v4576, 16
      %v4759 = vrot.slane %v4757, 4
      %v4760 = vshll.u32 %v4576, 16
      %v4762 = vrot.slane %v4760, 5
      %v4763 = vor.u32 %v4759, %v4762
      %v4764 = vrot.slane %v4763, 4
      %v4766 = vshll.u32 %v4577, 16
      %v4768 = vrot.slane %v4766, 5
      %v4769 = vsel %vm338, %v4764, %v4768
      %v4770 = vshrl.u32 %v4577, 16
      %v4772 = vrot.slane %v4770, 4
      %v4773 = vor.u32 %v4772, %v4768
      %v4774 = vrot.slane %v4773, 4
      %v4776 = vshll.u32 %v4578, 16
      %v4778 = vrot.slane %v4776, 5
      %v4779 = vsel %vm338, %v4774, %v4778
      %v4781 = vshrl.u32 %v4579, 16
      %v4783 = vrot.slane %v4781, 4
      %v4784 = vshll.u32 %v4579, 16
      %v4786 = vrot.slane %v4784, 5
      %v4787 = vor.u32 %v4783, %v4786
      %v4788 = vrot.slane %v4787, 4
      %v4790 = vshll.u32 %v4580, 16
      %v4792 = vrot.slane %v4790, 5
      %v4793 = vsel %vm338, %v4788, %v4792
      %v4794 = vshrl.u32 %v4580, 16
      %v4796 = vrot.slane %v4794, 4
      %v4797 = vor.u32 %v4796, %v4792
      %v4798 = vrot.slane %v4797, 4
      %v4800 = vshll.u32 %v4581, 16
      %v4802 = vrot.slane %v4800, 5
      %v4803 = vsel %vm338, %v4798, %v4802
      %v4805 = vshrl.u32 %v4582, 16
      %v4807 = vrot.slane %v4805, 4
      %v4808 = vshll.u32 %v4582, 16
      %v4810 = vrot.slane %v4808, 5
      %v4811 = vor.u32 %v4807, %v4810
      %v4812 = vrot.slane %v4811, 4
      %v4814 = vshll.u32 %v4583, 16
      %v4816 = vrot.slane %v4814, 5
      %v4817 = vsel %vm338, %v4812, %v4816
      %v4818 = vshrl.u32 %v4583, 16
      %v4820 = vrot.slane %v4818, 4
      %v4821 = vor.u32 %v4820, %v4816
      %v4822 = vrot.slane %v4821, 4
      %v4824 = vshll.u32 %v4584, 16
      %v4826 = vrot.slane %v4824, 5
      %v4827 = vsel %vm338, %v4822, %v4826
      %v4829 = vshrl.u32 %v4585, 16
      %v4831 = vrot.slane %v4829, 4
      %v4832 = vshll.u32 %v4585, 16
      %v4834 = vrot.slane %v4832, 5
      %v4835 = vor.u32 %v4831, %v4834
      %v4836 = vrot.slane %v4835, 4
      %v4838 = vshll.u32 %v4586, 16
      %v4840 = vrot.slane %v4838, 5
      %v4841 = vsel %vm338, %v4836, %v4840
      %v4842 = vshrl.u32 %v4586, 16
      %v4844 = vrot.slane %v4842, 4
      %v4845 = vor.u32 %v4844, %v4840
      %v4846 = vrot.slane %v4845, 4
      %v4848 = vshll.u32 %v4587, 16
      %v4850 = vrot.slane %v4848, 5
      %v4851 = vsel %vm338, %v4846, %v4850
      %v4853 = vshrl.u32 %v4588, 16
      %v4855 = vrot.slane %v4853, 4
      %v4856 = vshll.u32 %v4588, 16
      %v4858 = vrot.slane %v4856, 5
      %v4859 = vor.u32 %v4855, %v4858
      %v4860 = vrot.slane %v4859, 4
      %v4862 = vshll.u32 %v4589, 16
      %v4864 = vrot.slane %v4862, 5
      %v4865 = vsel %vm338, %v4860, %v4864
      %v4866 = vshrl.u32 %v4589, 16
      %v4868 = vrot.slane %v4866, 4
      %v4869 = vor.u32 %v4868, %v4864
      %v4870 = vrot.slane %v4869, 4
      %v4872 = vshll.u32 %v4590, 16
      %v4874 = vrot.slane %v4872, 5
      %v4875 = vsel %vm338, %v4870, %v4874
      %v4877 = vshrl.u32 %v4591, 16
      %v4879 = vrot.slane %v4877, 4
      %v4880 = vshll.u32 %v4591, 16
      %v4882 = vrot.slane %v4880, 5
      %v4883 = vor.u32 %v4879, %v4882
      %v4884 = vrot.slane %v4883, 4
      %v4886 = vshll.u32 %v4592, 16
      %v4888 = vrot.slane %v4886, 5
      %v4889 = vsel %vm338, %v4884, %v4888
      %v4890 = vshrl.u32 %v4592, 16
      %v4892 = vrot.slane %v4890, 4
      %v4893 = vor.u32 %v4892, %v4888
      %v4894 = vrot.slane %v4893, 4
      %v4896 = vshll.u32 %v4593, 16
      %v4898 = vrot.slane %v4896, 5
      %v4899 = vsel %vm338, %v4894, %v4898
      %v4901 = vshrl.u32 %v4594, 16
      %v4903 = vrot.slane %v4901, 4
      %v4904 = vshll.u32 %v4594, 16
      %v4906 = vrot.slane %v4904, 5
      %v4907 = vor.u32 %v4903, %v4906
      %v4908 = vrot.slane %v4907, 4
      %v4910 = vshll.u32 %v4595, 16
      %v4912 = vrot.slane %v4910, 5
      %v4913 = vsel %vm338, %v4908, %v4912
      %v4914 = vshrl.u32 %v4595, 16
      %v4916 = vrot.slane %v4914, 4
      %v4917 = vor.u32 %v4916, %v4912
      %v4918 = vrot.slane %v4917, 4
      %v4920 = vshll.u32 %v4596, 16
      %v4922 = vrot.slane %v4920, 5
      %v4923 = vsel %vm338, %v4918, %v4922
      %v4925 = vshrl.u32 %v4597, 16
      %v4927 = vrot.slane %v4925, 4
      %v4928 = vshll.u32 %v4597, 16
      %v4930 = vrot.slane %v4928, 5
      %v4931 = vor.u32 %v4927, %v4930
      %v4932 = vrot.slane %v4931, 4
      %v4934 = vshll.u32 %v4598, 16
      %v4936 = vrot.slane %v4934, 5
      %v4937 = vsel %vm338, %v4932, %v4936
      %v4938 = vshrl.u32 %v4598, 16
      %v4940 = vrot.slane %v4938, 4
      %v4941 = vor.u32 %v4940, %v4936
      %v4942 = vrot.slane %v4941, 4
      %v4944 = vshll.u32 %v4599, 16
      %v4946 = vrot.slane %v4944, 5
      %v4947 = vsel %vm338, %v4942, %v4946
      %v4949 = vshrl.u32 %v4600, 16
      %v4951 = vrot.slane %v4949, 4
      %v4952 = vshll.u32 %v4600, 16
      %v4954 = vrot.slane %v4952, 5
      %v4955 = vor.u32 %v4951, %v4954
      %v4956 = vrot.slane %v4955, 4
      %v4958 = vshll.u32 %v4601, 16
      %v4960 = vrot.slane %v4958, 5
      %v4961 = vsel %vm338, %v4956, %v4960
      %v4962 = vshrl.u32 %v4601, 16
      %v4964 = vrot.slane %v4962, 4
      %v4965 = vor.u32 %v4964, %v4960
      %v4966 = vrot.slane %v4965, 4
      %v4968 = vshll.u32 %v4602, 16
      %v4970 = vrot.slane %v4968, 5
      %v4971 = vsel %vm338, %v4966, %v4970
      %v4973 = vshrl.u32 %v4603, 16
      %v4975 = vrot.slane %v4973, 4
      %v4976 = vshll.u32 %v4603, 16
      %v4978 = vrot.slane %v4976, 5
      %v4979 = vor.u32 %v4975, %v4978
      %v4980 = vrot.slane %v4979, 4
      %v4982 = vshll.u32 %v4604, 16
      %v4984 = vrot.slane %v4982, 5
      %v4985 = vsel %vm338, %v4980, %v4984
      %v4986 = vshrl.u32 %v4604, 16
      %v4988 = vrot.slane %v4986, 4
      %v4989 = vor.u32 %v4988, %v4984
      %v4990 = vrot.slane %v4989, 4
      %v4992 = vshll.u32 %v4605, 16
      %v4994 = vrot.slane %v4992, 5
      %v4995 = vsel %vm338, %v4990, %v4994
      %v4997 = vshrl.u32 %v4606, 16
      %v4999 = vrot.slane %v4997, 4
      %v5000 = vshll.u32 %v4606, 16
      %v5002 = vrot.slane %v5000, 5
      %v5003 = vor.u32 %v4999, %v5002
      %v5004 = vrot.slane %v5003, 4
      %v5006 = vshll.u32 %v4607, 16
      %v5008 = vrot.slane %v5006, 5
      %v5009 = vsel %vm338, %v5004, %v5008
      %v5010 = vshrl.u32 %v4607, 16
      %v5012 = vrot.slane %v5010, 4
      %v5013 = vor.u32 %v5012, %v5008
      %v5014 = vrot.slane %v5013, 4
      %v5016 = vshll.u32 %v4608, 16
      %v5018 = vrot.slane %v5016, 5
      %v5019 = vsel %vm338, %v5014, %v5018
      %v5021 = vshrl.u32 %v4609, 16
      %v5023 = vrot.slane %v5021, 4
      %v5024 = vshll.u32 %v4609, 16
      %v5026 = vrot.slane %v5024, 5
      %v5027 = vor.u32 %v5023, %v5026
      %v5028 = vrot.slane %v5027, 4
      %v5030 = vshll.u32 %v4610, 16
      %v5032 = vrot.slane %v5030, 5
      %v5033 = vsel %vm338, %v5028, %v5032
      %v5034 = vshrl.u32 %v4610, 16
      %v5036 = vrot.slane %v5034, 4
      %v5037 = vor.u32 %v5036, %v5032
      %v5038 = vrot.slane %v5037, 4
      %v5040 = vshll.u32 %v4611, 16
      %v5042 = vrot.slane %v5040, 5
      %v5043 = vsel %vm338, %v5038, %v5042
      %s5044 = scalar_lea.vmem %s1, 384
      %v5045 = vld [vmem:[%s5044] sm:$0xf]
      %v5046 = vld [vmem:[%s5044 + $0x4] sm:$0xf]
      %v5047 = vld [vmem:[%s5044 + $0x8] sm:$0xf]
      %v5048 = vld [vmem:[%s5044 + $0xc] sm:$0xf]
      %v5049 = vld [vmem:[%s5044 + $0x10] sm:$0xf]
      %v5050 = vld [vmem:[%s5044 + $0x14] sm:$0xf]
      %v5051 = vld [vmem:[%s5044 + $0x18] sm:$0xf]
      %v5052 = vld [vmem:[%s5044 + $0x1c] sm:$0xf]
      %v5053 = vld [vmem:[%s5044 + $0x20] sm:$0xf]
      %v5054 = vld [vmem:[%s5044 + $0x24] sm:$0xf]
      %v5055 = vld [vmem:[%s5044 + $0x28] sm:$0xf]
      %v5056 = vld [vmem:[%s5044 + $0x2c] sm:$0xf]
      %v5057 = vld [vmem:[%s5044 + $0x30] sm:$0xf]
      %v5058 = vld [vmem:[%s5044 + $0x34] sm:$0xf]
      %v5059 = vld [vmem:[%s5044 + $0x38] sm:$0xf]
      %v5060 = vld [vmem:[%s5044 + $0x3c] sm:$0xf]
      %v5061 = vunpack.c.l.b16 %v4625
      %v5062 = vunpack.c.l.b16 %v4635
      %v5063 = vunpack.c.l.b16 %v4649
      %v5064 = vunpack.c.l.b16 %v4659
      %v5065 = vunpack.c.l.b16 %v4673
      %v5066 = vunpack.c.l.b16 %v4683
      %v5067 = vunpack.c.l.b16 %v4697
      %v5068 = vunpack.c.l.b16 %v4707
      %v5069 = vunpack.c.l.b16 %v4721
      %v5070 = vunpack.c.l.b16 %v4731
      %v5071 = vunpack.c.l.b16 %v4745
      %v5072 = vunpack.c.l.b16 %v4755
      %v5073 = vunpack.c.l.b16 %v4769
      %v5074 = vunpack.c.l.b16 %v4779
      %v5075 = vunpack.c.l.b16 %v4793
      %v5076 = vunpack.c.l.b16 %v4803
      %v5077 = vunpack.c.l.b16 %v4817
      %v5078 = vunpack.c.l.b16 %v4827
      %v5079 = vunpack.c.l.b16 %v4841
      %v5080 = vunpack.c.l.b16 %v4851
      %v5081 = vunpack.c.l.b16 %v4865
      %v5082 = vunpack.c.l.b16 %v4875
      %v5083 = vunpack.c.l.b16 %v4889
      %v5084 = vunpack.c.l.b16 %v4899
      %v5085 = vunpack.c.l.b16 %v4913
      %v5086 = vunpack.c.l.b16 %v4923
      %v5087 = vunpack.c.l.b16 %v4937
      %v5088 = vunpack.c.l.b16 %v4947
      %v5089 = vunpack.c.l.b16 %v4961
      %v5090 = vunpack.c.l.b16 %v4971
      %v5091 = vunpack.c.l.b16 %v4985
      %v5092 = vunpack.c.l.b16 %v4995
      %v5093 = vunpack.c.l.b16 %v5009
      %v5094 = vunpack.c.l.b16 %v5019
      %v5095 = vunpack.c.l.b16 %v5033
      %v5096 = vunpack.c.l.b16 %v5043
      %v5097 = vpack.c.b16 %v5062, %v5061
      %v5098 = vpack.c.b16 %v5064, %v5063
      %v5099 = vpack.c.b16 %v5066, %v5065
      %v5100 = vpack.c.b16 %v5068, %v5067
      %v5101 = vpack.c.b16 %v5070, %v5069
      %v5102 = vpack.c.b16 %v5072, %v5071
      %v5103 = vpack.c.b16 %v5074, %v5073
      %v5104 = vpack.c.b16 %v5076, %v5075
      %v5105 = vpack.c.b16 %v5078, %v5077
      %v5106 = vpack.c.b16 %v5080, %v5079
      %v5107 = vpack.c.b16 %v5082, %v5081
      %v5108 = vpack.c.b16 %v5084, %v5083
      %v5109 = vpack.c.b16 %v5086, %v5085
      %v5110 = vpack.c.b16 %v5088, %v5087
      %v5111 = vpack.c.b16 %v5090, %v5089
      %v5112 = vpack.c.b16 %v5092, %v5091
      %v5113 = vpack.c.b16 %v5094, %v5093
      %v5114 = vpack.c.b16 %v5096, %v5095
      %v5149 = vunpack.c.l.b16 %v5045
      %v5150 = vunpack.c.l.b16 %v5046
      %v5151 = vunpack.c.l.b16 %v5047
      %v5152 = vunpack.c.l.b16 %v5048
      %v5153 = vunpack.c.l.b16 %v5049
      %v5154 = vunpack.c.l.b16 %v5050
      %v5155 = vunpack.c.l.b16 %v5051
      %v5156 = vunpack.c.l.b16 %v5052
      %v5157 = vunpack.c.l.b16 %v5053
      %v5158 = vunpack.c.l.b16 %v5054
      %v5159 = vunpack.c.l.b16 %v5055
      %v5160 = vunpack.c.l.b16 %v5056
      %v5161 = vunpack.c.l.b16 %v5057
      %v5162 = vunpack.c.l.b16 %v5058
      %v5163 = vunpack.c.l.b16 %v5059
      %v5164 = vunpack.c.l.b16 %v5060
      %v5165 = vpack.c.b16 %v5150, %v5149
      %v5166 = vpack.c.b16 %v5152, %v5151
      %v5167 = vpack.c.b16 %v5154, %v5153
      %v5168 = vpack.c.b16 %v5156, %v5155
      %v5169 = vpack.c.b16 %v5158, %v5157
      %v5170 = vpack.c.b16 %v5160, %v5159
      %v5171 = vpack.c.b16 %v5162, %v5161
      %v5172 = vpack.c.b16 %v5164, %v5163
      %5181 = vmatprep.subr.bf16.mxu0 0
      %5182 = vmatpush1.bf16.msra.mxu0 %v5165
      %5183 = vmatprep.subr.bf16.mxu0 0
      %5184 = vmatpush1.bf16.msra.mxu0 %v5166
      %5185 = vmatprep.subr.bf16.mxu0 0
      %5186 = vmatpush1.bf16.msra.mxu0 %v5167
      %5187 = vmatprep.subr.bf16.mxu0 0
      %5188 = vmatpush1.bf16.msra.mxu0 %v5168
      %5189 = vmatprep.subr.bf16.mxu0 0
      %5190 = vmatpush1.bf16.msra.mxu0 %v5169
      %5191 = vmatprep.subr.bf16.mxu0 0
      %5192 = vmatpush1.bf16.msra.mxu0 %v5170
      %5193 = vmatprep.subr.bf16.mxu0 0
      %5194 = vmatpush1.bf16.msra.mxu0 %v5171
      %5195 = vmatprep.subr.bf16.mxu0 0
      %5196 = vmatpush1.bf16.msra.mxu0 %v5172
      %5197 = vmatprep.subr.bf16.mxu0 0
      %5198 = vmatpush1.bf16.msra.mxu0 0
      %5199 = vmatprep.subr.bf16.mxu0 0
      %5200 = vmatpush1.bf16.msra.mxu0 0
      %5201 = vmatprep.subr.bf16.mxu0 0
      %5202 = vmatpush1.bf16.msra.mxu0 0
      %5203 = vmatprep.subr.bf16.mxu0 0
      %5204 = vmatpush1.bf16.msra.mxu0 0
      %5205 = vmatprep.subr.bf16.mxu0 0
      %5206 = vmatpush1.bf16.msra.mxu0 0
      %5207 = vmatprep.subr.bf16.mxu0 0
      %5208 = vmatpush1.bf16.msra.mxu0 0
      %5209 = vmatprep.subr.bf16.mxu0 0
      %5210 = vmatpush1.bf16.msra.mxu0 0
      %5211 = vmatprep.subr.bf16.mxu0 0
      %5212 = vmatpush1.bf16.msra.mxu0 0
      %5213 = vmatprep.mubr.bf16.mxu0 0
      %5214 = vmatmul.mubr.bf16.gmra.mrb[0].mxu0 %v5097
      %v5215 = vpop.f32.mrb[0].mxu0
      %v5216 = vadd.f32 0.0, %v5215
      %v5217 = vpop.f32.mrb[0].mxu0
      %v5218 = vpop.f32.mrb[0].mxu0
      %v5219 = vadd.f32 0.0, %v5218
      %v5220 = vpop.f32.mrb[0].mxu0
      %5221 = vmatprep.mubr.bf16.mxu0 0
      %5222 = vmatmul.mubr.bf16.gmra.mrb[0].mxu0 %v5098
      %v5223 = vpop.f32.mrb[0].mxu0
      %v5224 = vadd.f32 0.0, %v5223
      %v5225 = vpop.f32.mrb[0].mxu0
      %v5226 = vpop.f32.mrb[0].mxu0
      %v5227 = vadd.f32 0.0, %v5226
      %v5228 = vpop.f32.mrb[0].mxu0
      %5229 = vmatprep.mubr.bf16.mxu0 0
      %5230 = vmatmul.mubr.bf16.gmra.mrb[0].mxu0 %v5099
      %v5231 = vpop.f32.mrb[0].mxu0
      %v5232 = vadd.f32 0.0, %v5231
      %v5233 = vpop.f32.mrb[0].mxu0
      %v5234 = vpop.f32.mrb[0].mxu0
      %v5235 = vadd.f32 0.0, %v5234
      %v5236 = vpop.f32.mrb[0].mxu0
      %5237 = vmatprep.mubr.bf16.mxu0 0
      %5238 = vmatmul.mubr.bf16.gmra.mrb[0].mxu0 %v5100
      %v5239 = vpop.f32.mrb[0].mxu0
      %v5240 = vadd.f32 0.0, %v5239
      %v5241 = vpop.f32.mrb[0].mxu0
      %v5242 = vpop.f32.mrb[0].mxu0
      %v5243 = vadd.f32 0.0, %v5242
      %v5244 = vpop.f32.mrb[0].mxu0
      %5245 = vmatprep.mubr.bf16.mxu0 0
      %5246 = vmatmul.mubr.bf16.gmra.mrb[0].mxu0 %v5101
      %v5247 = vpop.f32.mrb[0].mxu0
      %v5248 = vadd.f32 0.0, %v5247
      %v5249 = vpop.f32.mrb[0].mxu0
      %v5250 = vpop.f32.mrb[0].mxu0
      %v5251 = vadd.f32 0.0, %v5250
      %v5252 = vpop.f32.mrb[0].mxu0
      %5253 = vmatprep.mubr.bf16.mxu0 0
      %5254 = vmatmul.mubr.bf16.gmra.mrb[0].mxu0 %v5102
      %v5255 = vpop.f32.mrb[0].mxu0
      %v5256 = vadd.f32 0.0, %v5255
      %v5257 = vpop.f32.mrb[0].mxu0
      %v5258 = vpop.f32.mrb[0].mxu0
      %v5259 = vadd.f32 0.0, %v5258
      %v5260 = vpop.f32.mrb[0].mxu0
      %5261 = vmatprep.mubr.bf16.mxu0 0
      %5262 = vmatmul.mubr.bf16.gmra.mrb[0].mxu0 %v5103
      %v5263 = vpop.f32.mrb[0].mxu0
      %v5264 = vadd.f32 0.0, %v5263
      %v5265 = vpop.f32.mrb[0].mxu0
      %v5266 = vpop.f32.mrb[0].mxu0
      %v5267 = vadd.f32 0.0, %v5266
      %v5268 = vpop.f32.mrb[0].mxu0
      %5269 = vmatprep.mubr.bf16.mxu0 0
      %5270 = vmatmul.mubr.bf16.gmra.mrb[0].mxu0 %v5104
      %v5271 = vpop.f32.mrb[0].mxu0
      %v5272 = vadd.f32 0.0, %v5271
      %v5273 = vpop.f32.mrb[0].mxu0
      %v5274 = vpop.f32.mrb[0].mxu0
      %v5275 = vadd.f32 0.0, %v5274
      %v5276 = vpop.f32.mrb[0].mxu0
      %5277 = vmatprep.mubr.bf16.mxu0 0
      %5278 = vmatmul.mubr.bf16.gmra.mrb[0].mxu0 %v5105
      %v5279 = vpop.f32.mrb[0].mxu0
      %v5280 = vadd.f32 0.0, %v5279
      %v5281 = vpop.f32.mrb[0].mxu0
      %v5282 = vpop.f32.mrb[0].mxu0
      %v5283 = vadd.f32 0.0, %v5282
      %v5284 = vpop.f32.mrb[0].mxu0
      %5285 = vmatprep.mubr.bf16.mxu0 0
      %5286 = vmatmul.mubr.bf16.gmra.mrb[0].mxu0 %v5106
      %v5287 = vpop.f32.mrb[0].mxu0
      %v5288 = vadd.f32 0.0, %v5287
      %v5289 = vpop.f32.mrb[0].mxu0
      %v5290 = vpop.f32.mrb[0].mxu0
      %v5291 = vadd.f32 0.0, %v5290
      %v5292 = vpop.f32.mrb[0].mxu0
      %5293 = vmatprep.mubr.bf16.mxu0 0
      %5294 = vmatmul.mubr.bf16.gmra.mrb[0].mxu0 %v5107
      %v5295 = vpop.f32.mrb[0].mxu0
      %v5296 = vadd.f32 0.0, %v5295
      %v5297 = vpop.f32.mrb[0].mxu0
      %v5298 = vpop.f32.mrb[0].mxu0
      %v5299 = vadd.f32 0.0, %v5298
      %v5300 = vpop.f32.mrb[0].mxu0
      %5301 = vmatprep.mubr.bf16.mxu0 0
      %5302 = vmatmul.mubr.bf16.gmra.mrb[0].mxu0 %v5108
      %v5303 = vpop.f32.mrb[0].mxu0
      %v5304 = vadd.f32 0.0, %v5303
      %v5305 = vpop.f32.mrb[0].mxu0
      %v5306 = vpop.f32.mrb[0].mxu0
      %v5307 = vadd.f32 0.0, %v5306
      %v5308 = vpop.f32.mrb[0].mxu0
      %5309 = vmatprep.mubr.bf16.mxu0 0
      %5310 = vmatmul.mubr.bf16.gmra.mrb[0].mxu0 %v5109
      %v5311 = vpop.f32.mrb[0].mxu0
      %v5312 = vadd.f32 0.0, %v5311
      %v5313 = vpop.f32.mrb[0].mxu0
      %v5314 = vpop.f32.mrb[0].mxu0
      %v5315 = vadd.f32 0.0, %v5314
      %v5316 = vpop.f32.mrb[0].mxu0
      %5317 = vmatprep.mubr.bf16.mxu0 0
      %5318 = vmatmul.mubr.bf16.gmra.mrb[0].mxu0 %v5110
      %v5319 = vpop.f32.mrb[0].mxu0
      %v5320 = vadd.f32 0.0, %v5319
      %v5321 = vpop.f32.mrb[0].mxu0
      %v5322 = vpop.f32.mrb[0].mxu0
      %v5323 = vadd.f32 0.0, %v5322
      %v5324 = vpop.f32.mrb[0].mxu0
      %5325 = vmatprep.mubr.bf16.mxu0 0
      %5326 = vmatmul.mubr.bf16.gmra.mrb[0].mxu0 %v5111
      %v5327 = vpop.f32.mrb[0].mxu0
      %v5328 = vadd.f32 0.0, %v5327
      %v5329 = vpop.f32.mrb[0].mxu0
      %v5330 = vpop.f32.mrb[0].mxu0
      %v5331 = vadd.f32 0.0, %v5330
      %v5332 = vpop.f32.mrb[0].mxu0
      %5333 = vmatprep.mubr.bf16.mxu0 0
      %5334 = vmatmul.mubr.bf16.gmra.mrb[0].mxu0 %v5112
      %v5335 = vpop.f32.mrb[0].mxu0
      %v5336 = vadd.f32 0.0, %v5335
      %v5337 = vpop.f32.mrb[0].mxu0
      %v5338 = vpop.f32.mrb[0].mxu0
      %v5339 = vadd.f32 0.0, %v5338
      %v5340 = vpop.f32.mrb[0].mxu0
      %5341 = vmatprep.mubr.bf16.mxu0 0
      %5342 = vmatmul.mubr.bf16.gmra.mrb[0].mxu0 %v5113
      %v5343 = vpop.f32.mrb[0].mxu0
      %v5344 = vadd.f32 0.0, %v5343
      %v5345 = vpop.f32.mrb[0].mxu0
      %v5346 = vpop.f32.mrb[0].mxu0
      %v5347 = vadd.f32 0.0, %v5346
      %v5348 = vpop.f32.mrb[0].mxu0
      %5349 = vmatprep.mubr.bf16.mxu0 0
      %5350 = vmatmul.mubr.bf16.gmra.mrb[0].mxu0 %v5114
      %v5351 = vpop.f32.mrb[0].mxu0
      %v5352 = vadd.f32 0.0, %v5351
      %v5353 = vpop.f32.mrb[0].mxu0
      %v5354 = vpop.f32.mrb[0].mxu0
      %v5355 = vadd.f32 0.0, %v5354
      %v5356 = vpop.f32.mrb[0].mxu0
      %5357 = vdwg.mxu0
      %v5358 = vadd.f32 %v4518, %v5216
      %v5359 = vadd.f32 %v4519, %v5219
      %v5360 = vadd.f32 %v4520, %v5224
      %v5361 = vadd.f32 %v4521, %v5227
      %v5362 = vadd.f32 %v4522, %v5232
      %v5363 = vadd.f32 %v4523, %v5235
      %v5364 = vadd.f32 %v4524, %v5240
      %v5365 = vadd.f32 %v4525, %v5243
      %v5366 = vadd.f32 %v4526, %v5248
      %v5367 = vadd.f32 %v4527, %v5251
      %v5368 = vadd.f32 %v4528, %v5256
      %v5369 = vadd.f32 %v4529, %v5259
      %v5370 = vadd.f32 %v4530, %v5264
      %v5371 = vadd.f32 %v4531, %v5267
      %v5372 = vadd.f32 %v4532, %v5272
      %v5373 = vadd.f32 %v4533, %v5275
      %v5374 = vadd.f32 %v4534, %v5280
      %v5375 = vadd.f32 %v4535, %v5283
      %v5376 = vadd.f32 %v4536, %v5288
      %v5377 = vadd.f32 %v4537, %v5291
      %v5378 = vadd.f32 %v4538, %v5296
      %v5379 = vadd.f32 %v4539, %v5299
      %v5380 = vadd.f32 %v4540, %v5304
      %v5381 = vadd.f32 %v4541, %v5307
      %v5382 = vadd.f32 %v4542, %v5312
      %v5383 = vadd.f32 %v4543, %v5315
      %v5384 = vadd.f32 %v4544, %v5320
      %v5385 = vadd.f32 %v4545, %v5323
      %v5386 = vadd.f32 %v4546, %v5328
      %v5387 = vadd.f32 %v4547, %v5331
      %v5388 = vadd.f32 %v4548, %v5336
      %v5389 = vadd.f32 %v4549, %v5339
      %v5390 = vadd.f32 %v4550, %v5344
      %v5391 = vadd.f32 %v4551, %v5347
      %v5392 = vadd.f32 %v4552, %v5352
      %v5393 = vadd.f32 %v4553, %v5355
      %v5394 = vld [vmem:[%s4557] sm:$0xe]
      %v5395 = vld [vmem:[%s4557 + $0xc] sm:$0xe]
      %v5396 = vld [vmem:[%s4557 + $0x18] sm:$0xe]
      %v5397 = vld [vmem:[%s4557 + $0x24] sm:$0xe]
      %v5398 = vld [vmem:[%s4557 + $0x30] sm:$0xe]
      %v5399 = vld [vmem:[%s4557 + $0x3c] sm:$0xe]
      %v5400 = vld [vmem:[%s4557 + $0x48] sm:$0xe]
      %v5401 = vld [vmem:[%s4557 + $0x54] sm:$0xe]
      %v5402 = vld [vmem:[%s4557 + $0x60] sm:$0xe]
      %v5403 = vld [vmem:[%s4557 + $0x6c] sm:$0xe]
      %v5404 = vld [vmem:[%s4557 + $0x78] sm:$0xe]
      %v5405 = vld [vmem:[%s4557 + $0x84] sm:$0xe]
      %v5406 = vld [vmem:[%s4557 + $0x90] sm:$0xe]
      %v5407 = vld [vmem:[%s4557 + $0x9c] sm:$0xe]
      %v5408 = vld [vmem:[%s4557 + $0xa8] sm:$0xe]
      %v5409 = vld [vmem:[%s4557 + $0xb4] sm:$0xe]
      %v5410 = vld [vmem:[%s4557 + $0xc0] sm:$0xe]
      %v5411 = vld [vmem:[%s4557 + $0xcc] sm:$0xe]
      %v5466 = vrot.slane %v5394, 5
      %v5467 = vrot.slane %v5466, 4
      %v5468 = vrot.slane %v4559, 5
      %v5469 = vsel %vm861, %v5467, %v5468
      %v5470 = vrot.slane %v5468, 4
      %v5471 = vrot.slane %v4560, 5
      %v5472 = vsel %vm861, %v5470, %v5471
      %v5473 = vrot.slane %v5395, 5
      %v5474 = vrot.slane %v5473, 4
      %v5475 = vrot.slane %v4562, 5
      %v5476 = vsel %vm861, %v5474, %v5475
      %v5477 = vrot.slane %v5475, 4
      %v5478 = vrot.slane %v4563, 5
      %v5479 = vsel %vm861, %v5477, %v5478
      %v5480 = vrot.slane %v5396, 5
      %v5481 = vrot.slane %v5480, 4
      %v5482 = vrot.slane %v4565, 5
      %v5483 = vsel %vm861, %v5481, %v5482
      %v5484 = vrot.slane %v5482, 4
      %v5485 = vrot.slane %v4566, 5
      %v5486 = vsel %vm861, %v5484, %v5485
      %v5487 = vrot.slane %v5397, 5
      %v5488 = vrot.slane %v5487, 4
      %v5489 = vrot.slane %v4568, 5
      %v5490 = vsel %vm861, %v5488, %v5489
      %v5491 = vrot.slane %v5489, 4
      %v5492 = vrot.slane %v4569, 5
      %v5493 = vsel %vm861, %v5491, %v5492
      %v5494 = vrot.slane %v5398, 5
      %v5495 = vrot.slane %v5494, 4
      %v5496 = vrot.slane %v4571, 5
      %v5497 = vsel %vm861, %v5495, %v5496
      %v5498 = vrot.slane %v5496, 4
      %v5499 = vrot.slane %v4572, 5
      %v5500 = vsel %vm861, %v5498, %v5499
      %v5501 = vrot.slane %v5399, 5
      %v5502 = vrot.slane %v5501, 4
      %v5503 = vrot.slane %v4574, 5
      %v5504 = vsel %vm861, %v5502, %v5503
      %v5505 = vrot.slane %v5503, 4
      %v5506 = vrot.slane %v4575, 5
      %v5507 = vsel %vm861, %v5505, %v5506
      %v5508 = vrot.slane %v5400, 5
      %v5509 = vrot.slane %v5508, 4
      %v5510 = vrot.slane %v4577, 5
      %v5511 = vsel %vm861, %v5509, %v5510
      %v5512 = vrot.slane %v5510, 4
      %v5513 = vrot.slane %v4578, 5
      %v5514 = vsel %vm861, %v5512, %v5513
      %v5515 = vrot.slane %v5401, 5
      %v5516 = vrot.slane %v5515, 4
      %v5517 = vrot.slane %v4580, 5
      %v5518 = vsel %vm861, %v5516, %v5517
      %v5519 = vrot.slane %v5517, 4
      %v5520 = vrot.slane %v4581, 5
      %v5521 = vsel %vm861, %v5519, %v5520
      %v5522 = vrot.slane %v5402, 5
      %v5523 = vrot.slane %v5522, 4
      %v5524 = vrot.slane %v4583, 5
      %v5525 = vsel %vm861, %v5523, %v5524
      %v5526 = vrot.slane %v5524, 4
      %v5527 = vrot.slane %v4584, 5
      %v5528 = vsel %vm861, %v5526, %v5527
      %v5529 = vrot.slane %v5403, 5
      %v5530 = vrot.slane %v5529, 4
      %v5531 = vrot.slane %v4586, 5
      %v5532 = vsel %vm861, %v5530, %v5531
      %v5533 = vrot.slane %v5531, 4
      %v5534 = vrot.slane %v4587, 5
      %v5535 = vsel %vm861, %v5533, %v5534
      %v5536 = vrot.slane %v5404, 5
      %v5537 = vrot.slane %v5536, 4
      %v5538 = vrot.slane %v4589, 5
      %v5539 = vsel %vm861, %v5537, %v5538
      %v5540 = vrot.slane %v5538, 4
      %v5541 = vrot.slane %v4590, 5
      %v5542 = vsel %vm861, %v5540, %v5541
      %v5543 = vrot.slane %v5405, 5
      %v5544 = vrot.slane %v5543, 4
      %v5545 = vrot.slane %v4592, 5
      %v5546 = vsel %vm861, %v5544, %v5545
      %v5547 = vrot.slane %v5545, 4
      %v5548 = vrot.slane %v4593, 5
      %v5549 = vsel %vm861, %v5547, %v5548
      %v5550 = vrot.slane %v5406, 5
      %v5551 = vrot.slane %v5550, 4
      %v5552 = vrot.slane %v4595, 5
      %v5553 = vsel %vm861, %v5551, %v5552
      %v5554 = vrot.slane %v5552, 4
      %v5555 = vrot.slane %v4596, 5
      %v5556 = vsel %vm861, %v5554, %v5555
      %v5557 = vrot.slane %v5407, 5
      %v5558 = vrot.slane %v5557, 4
      %v5559 = vrot.slane %v4598, 5
      %v5560 = vsel %vm861, %v5558, %v5559
      %v5561 = vrot.slane %v5559, 4
      %v5562 = vrot.slane %v4599, 5
      %v5563 = vsel %vm861, %v5561, %v5562
      %v5564 = vrot.slane %v5408, 5
      %v5565 = vrot.slane %v5564, 4
      %v5566 = vrot.slane %v4601, 5
      %v5567 = vsel %vm861, %v5565, %v5566
      %v5568 = vrot.slane %v5566, 4
      %v5569 = vrot.slane %v4602, 5
      %v5570 = vsel %vm861, %v5568, %v5569
      %v5571 = vrot.slane %v5409, 5
      %v5572 = vrot.slane %v5571, 4
      %v5573 = vrot.slane %v4604, 5
      %v5574 = vsel %vm861, %v5572, %v5573
      %v5575 = vrot.slane %v5573, 4
      %v5576 = vrot.slane %v4605, 5
      %v5577 = vsel %vm861, %v5575, %v5576
      %v5578 = vrot.slane %v5410, 5
      %v5579 = vrot.slane %v5578, 4
      %v5580 = vrot.slane %v4607, 5
      %v5581 = vsel %vm861, %v5579, %v5580
      %v5582 = vrot.slane %v5580, 4
      %v5583 = vrot.slane %v4608, 5
      %v5584 = vsel %vm861, %v5582, %v5583
      %v5585 = vrot.slane %v5411, 5
      %v5586 = vrot.slane %v5585, 4
      %v5587 = vrot.slane %v4610, 5
      %v5588 = vsel %vm861, %v5586, %v5587
      %v5589 = vrot.slane %v5587, 4
      %v5590 = vrot.slane %v4611, 5
      %v5591 = vsel %vm861, %v5589, %v5590
      %s5592 = scalar_lea.vmem %s1, 448
      %v5593 = vld [vmem:[%s5592] sm:$0xf]
      %v5594 = vld [vmem:[%s5592 + $0x4] sm:$0xf]
      %v5595 = vld [vmem:[%s5592 + $0x8] sm:$0xf]
      %v5596 = vld [vmem:[%s5592 + $0xc] sm:$0xf]
      %v5597 = vld [vmem:[%s5592 + $0x10] sm:$0xf]
      %v5598 = vld [vmem:[%s5592 + $0x14] sm:$0xf]
      %v5599 = vld [vmem:[%s5592 + $0x18] sm:$0xf]
      %v5600 = vld [vmem:[%s5592 + $0x1c] sm:$0xf]
      %v5601 = vld [vmem:[%s5592 + $0x20] sm:$0xf]
      %v5602 = vld [vmem:[%s5592 + $0x24] sm:$0xf]
      %v5603 = vld [vmem:[%s5592 + $0x28] sm:$0xf]
      %v5604 = vld [vmem:[%s5592 + $0x2c] sm:$0xf]
      %v5605 = vld [vmem:[%s5592 + $0x30] sm:$0xf]
      %v5606 = vld [vmem:[%s5592 + $0x34] sm:$0xf]
      %v5607 = vld [vmem:[%s5592 + $0x38] sm:$0xf]
      %v5608 = vld [vmem:[%s5592 + $0x3c] sm:$0xf]
      %v5609 = vunpack.c.l.b16 %v5469
      %v5610 = vunpack.c.l.b16 %v5472
      %v5611 = vunpack.c.l.b16 %v5476
      %v5612 = vunpack.c.l.b16 %v5479
      %v5613 = vunpack.c.l.b16 %v5483
      %v5614 = vunpack.c.l.b16 %v5486
      %v5615 = vunpack.c.l.b16 %v5490
      %v5616 = vunpack.c.l.b16 %v5493
      %v5617 = vunpack.c.l.b16 %v5497
      %v5618 = vunpack.c.l.b16 %v5500
      %v5619 = vunpack.c.l.b16 %v5504
      %v5620 = vunpack.c.l.b16 %v5507
      %v5621 = vunpack.c.l.b16 %v5511
      %v5622 = vunpack.c.l.b16 %v5514
      %v5623 = vunpack.c.l.b16 %v5518
      %v5624 = vunpack.c.l.b16 %v5521
      %v5625 = vunpack.c.l.b16 %v5525
      %v5626 = vunpack.c.l.b16 %v5528
      %v5627 = vunpack.c.l.b16 %v5532
      %v5628 = vunpack.c.l.b16 %v5535
      %v5629 = vunpack.c.l.b16 %v5539
      %v5630 = vunpack.c.l.b16 %v5542
      %v5631 = vunpack.c.l.b16 %v5546
      %v5632 = vunpack.c.l.b16 %v5549
      %v5633 = vunpack.c.l.b16 %v5553
      %v5634 = vunpack.c.l.b16 %v5556
      %v5635 = vunpack.c.l.b16 %v5560
      %v5636 = vunpack.c.l.b16 %v5563
      %v5637 = vunpack.c.l.b16 %v5567
      %v5638 = vunpack.c.l.b16 %v5570
      %v5639 = vunpack.c.l.b16 %v5574
      %v5640 = vunpack.c.l.b16 %v5577
      %v5641 = vunpack.c.l.b16 %v5581
      %v5642 = vunpack.c.l.b16 %v5584
      %v5643 = vunpack.c.l.b16 %v5588
      %v5644 = vunpack.c.l.b16 %v5591
      %v5645 = vpack.c.b16 %v5610, %v5609
      %v5646 = vpack.c.b16 %v5612, %v5611
      %v5647 = vpack.c.b16 %v5614, %v5613
      %v5648 = vpack.c.b16 %v5616, %v5615
      %v5649 = vpack.c.b16 %v5618, %v5617
      %v5650 = vpack.c.b16 %v5620, %v5619
      %v5651 = vpack.c.b16 %v5622, %v5621
      %v5652 = vpack.c.b16 %v5624, %v5623
      %v5653 = vpack.c.b16 %v5626, %v5625
      %v5654 = vpack.c.b16 %v5628, %v5627
      %v5655 = vpack.c.b16 %v5630, %v5629
      %v5656 = vpack.c.b16 %v5632, %v5631
      %v5657 = vpack.c.b16 %v5634, %v5633
      %v5658 = vpack.c.b16 %v5636, %v5635
      %v5659 = vpack.c.b16 %v5638, %v5637
      %v5660 = vpack.c.b16 %v5640, %v5639
      %v5661 = vpack.c.b16 %v5642, %v5641
      %v5662 = vpack.c.b16 %v5644, %v5643
      %v5697 = vunpack.c.l.b16 %v5593
      %v5698 = vunpack.c.l.b16 %v5594
      %v5699 = vunpack.c.l.b16 %v5595
      %v5700 = vunpack.c.l.b16 %v5596
      %v5701 = vunpack.c.l.b16 %v5597
      %v5702 = vunpack.c.l.b16 %v5598
      %v5703 = vunpack.c.l.b16 %v5599
      %v5704 = vunpack.c.l.b16 %v5600
      %v5705 = vunpack.c.l.b16 %v5601
      %v5706 = vunpack.c.l.b16 %v5602
      %v5707 = vunpack.c.l.b16 %v5603
      %v5708 = vunpack.c.l.b16 %v5604
      %v5709 = vunpack.c.l.b16 %v5605
      %v5710 = vunpack.c.l.b16 %v5606
      %v5711 = vunpack.c.l.b16 %v5607
      %v5712 = vunpack.c.l.b16 %v5608
      %v5713 = vpack.c.b16 %v5698, %v5697
      %v5714 = vpack.c.b16 %v5700, %v5699
      %v5715 = vpack.c.b16 %v5702, %v5701
      %v5716 = vpack.c.b16 %v5704, %v5703
      %v5717 = vpack.c.b16 %v5706, %v5705
      %v5718 = vpack.c.b16 %v5708, %v5707
      %v5719 = vpack.c.b16 %v5710, %v5709
      %v5720 = vpack.c.b16 %v5712, %v5711
      %5729 = vmatprep.subr.bf16.mxu0 0
      %5730 = vmatpush1.bf16.msra.mxu0 %v5713
      %5731 = vmatprep.subr.bf16.mxu0 0
      %5732 = vmatpush1.bf16.msra.mxu0 %v5714
      %5733 = vmatprep.subr.bf16.mxu0 0
      %5734 = vmatpush1.bf16.msra.mxu0 %v5715
      %5735 = vmatprep.subr.bf16.mxu0 0
      %5736 = vmatpush1.bf16.msra.mxu0 %v5716
      %5737 = vmatprep.subr.bf16.mxu0 0
      %5738 = vmatpush1.bf16.msra.mxu0 %v5717
      %5739 = vmatprep.subr.bf16.mxu0 0
      %5740 = vmatpush1.bf16.msra.mxu0 %v5718
      %5741 = vmatprep.subr.bf16.mxu0 0
      %5742 = vmatpush1.bf16.msra.mxu0 %v5719
      %5743 = vmatprep.subr.bf16.mxu0 0
      %5744 = vmatpush1.bf16.msra.mxu0 %v5720
      %5745 = vmatprep.subr.bf16.mxu0 0
      %5746 = vmatpush1.bf16.msra.mxu0 0
      %5747 = vmatprep.subr.bf16.mxu0 0
      %5748 = vmatpush1.bf16.msra.mxu0 0
      %5749 = vmatprep.subr.bf16.mxu0 0
      %5750 = vmatpush1.bf16.msra.mxu0 0
      %5751 = vmatprep.subr.bf16.mxu0 0
      %5752 = vmatpush1.bf16.msra.mxu0 0
      %5753 = vmatprep.subr.bf16.mxu0 0
      %5754 = vmatpush1.bf16.msra.mxu0 0
      %5755 = vmatprep.subr.bf16.mxu0 0
      %5756 = vmatpush1.bf16.msra.mxu0 0
      %5757 = vmatprep.subr.bf16.mxu0 0
      %5758 = vmatpush1.bf16.msra.mxu0 0
      %5759 = vmatprep.subr.bf16.mxu0 0
      %5760 = vmatpush1.bf16.msra.mxu0 0
      %5761 = vmatprep.mubr.bf16.mxu0 0
      %5762 = vmatmul.mubr.bf16.gmra.mrb[0].mxu0 %v5645
      %v5763 = vpop.f32.mrb[0].mxu0
      %v5764 = vadd.f32 0.0, %v5763
      %v5765 = vpop.f32.mrb[0].mxu0
      %v5766 = vpop.f32.mrb[0].mxu0
      %v5767 = vadd.f32 0.0, %v5766
      %v5768 = vpop.f32.mrb[0].mxu0
      %5769 = vmatprep.mubr.bf16.mxu0 0
      %5770 = vmatmul.mubr.bf16.gmra.mrb[0].mxu0 %v5646
      %v5771 = vpop.f32.mrb[0].mxu0
      %v5772 = vadd.f32 0.0, %v5771
      %v5773 = vpop.f32.mrb[0].mxu0
      %v5774 = vpop.f32.mrb[0].mxu0
      %v5775 = vadd.f32 0.0, %v5774
      %v5776 = vpop.f32.mrb[0].mxu0
      %5777 = vmatprep.mubr.bf16.mxu0 0
      %5778 = vmatmul.mubr.bf16.gmra.mrb[0].mxu0 %v5647
      %v5779 = vpop.f32.mrb[0].mxu0
      %v5780 = vadd.f32 0.0, %v5779
      %v5781 = vpop.f32.mrb[0].mxu0
      %v5782 = vpop.f32.mrb[0].mxu0
      %v5783 = vadd.f32 0.0, %v5782
      %v5784 = vpop.f32.mrb[0].mxu0
      %5785 = vmatprep.mubr.bf16.mxu0 0
      %5786 = vmatmul.mubr.bf16.gmra.mrb[0].mxu0 %v5648
      %v5787 = vpop.f32.mrb[0].mxu0
      %v5788 = vadd.f32 0.0, %v5787
      %v5789 = vpop.f32.mrb[0].mxu0
      %v5790 = vpop.f32.mrb[0].mxu0
      %v5791 = vadd.f32 0.0, %v5790
      %v5792 = vpop.f32.mrb[0].mxu0
      %5793 = vmatprep.mubr.bf16.mxu0 0
      %5794 = vmatmul.mubr.bf16.gmra.mrb[0].mxu0 %v5649
      %v5795 = vpop.f32.mrb[0].mxu0
      %v5796 = vadd.f32 0.0, %v5795
      %v5797 = vpop.f32.mrb[0].mxu0
      %v5798 = vpop.f32.mrb[0].mxu0
      %v5799 = vadd.f32 0.0, %v5798
      %v5800 = vpop.f32.mrb[0].mxu0
      %5801 = vmatprep.mubr.bf16.mxu0 0
      %5802 = vmatmul.mubr.bf16.gmra.mrb[0].mxu0 %v5650
      %v5803 = vpop.f32.mrb[0].mxu0
      %v5804 = vadd.f32 0.0, %v5803
      %v5805 = vpop.f32.mrb[0].mxu0
      %v5806 = vpop.f32.mrb[0].mxu0
      %v5807 = vadd.f32 0.0, %v5806
      %v5808 = vpop.f32.mrb[0].mxu0
      %5809 = vmatprep.mubr.bf16.mxu0 0
      %5810 = vmatmul.mubr.bf16.gmra.mrb[0].mxu0 %v5651
      %v5811 = vpop.f32.mrb[0].mxu0
      %v5812 = vadd.f32 0.0, %v5811
      %v5813 = vpop.f32.mrb[0].mxu0
      %v5814 = vpop.f32.mrb[0].mxu0
      %v5815 = vadd.f32 0.0, %v5814
      %v5816 = vpop.f32.mrb[0].mxu0
      %5817 = vmatprep.mubr.bf16.mxu0 0
      %5818 = vmatmul.mubr.bf16.gmra.mrb[0].mxu0 %v5652
      %v5819 = vpop.f32.mrb[0].mxu0
      %v5820 = vadd.f32 0.0, %v5819
      %v5821 = vpop.f32.mrb[0].mxu0
      %v5822 = vpop.f32.mrb[0].mxu0
      %v5823 = vadd.f32 0.0, %v5822
      %v5824 = vpop.f32.mrb[0].mxu0
      %5825 = vmatprep.mubr.bf16.mxu0 0
      %5826 = vmatmul.mubr.bf16.gmra.mrb[0].mxu0 %v5653
      %v5827 = vpop.f32.mrb[0].mxu0
      %v5828 = vadd.f32 0.0, %v5827
      %v5829 = vpop.f32.mrb[0].mxu0
      %v5830 = vpop.f32.mrb[0].mxu0
      %v5831 = vadd.f32 0.0, %v5830
      %v5832 = vpop.f32.mrb[0].mxu0
      %5833 = vmatprep.mubr.bf16.mxu0 0
      %5834 = vmatmul.mubr.bf16.gmra.mrb[0].mxu0 %v5654
      %v5835 = vpop.f32.mrb[0].mxu0
      %v5836 = vadd.f32 0.0, %v5835
      %v5837 = vpop.f32.mrb[0].mxu0
      %v5838 = vpop.f32.mrb[0].mxu0
      %v5839 = vadd.f32 0.0, %v5838
      %v5840 = vpop.f32.mrb[0].mxu0
      %5841 = vmatprep.mubr.bf16.mxu0 0
      %5842 = vmatmul.mubr.bf16.gmra.mrb[0].mxu0 %v5655
      %v5843 = vpop.f32.mrb[0].mxu0
      %v5844 = vadd.f32 0.0, %v5843
      %v5845 = vpop.f32.mrb[0].mxu0
      %v5846 = vpop.f32.mrb[0].mxu0
      %v5847 = vadd.f32 0.0, %v5846
      %v5848 = vpop.f32.mrb[0].mxu0
      %5849 = vmatprep.mubr.bf16.mxu0 0
      %5850 = vmatmul.mubr.bf16.gmra.mrb[0].mxu0 %v5656
      %v5851 = vpop.f32.mrb[0].mxu0
      %v5852 = vadd.f32 0.0, %v5851
      %v5853 = vpop.f32.mrb[0].mxu0
      %v5854 = vpop.f32.mrb[0].mxu0
      %v5855 = vadd.f32 0.0, %v5854
      %v5856 = vpop.f32.mrb[0].mxu0
      %5857 = vmatprep.mubr.bf16.mxu0 0
      %5858 = vmatmul.mubr.bf16.gmra.mrb[0].mxu0 %v5657
      %v5859 = vpop.f32.mrb[0].mxu0
      %v5860 = vadd.f32 0.0, %v5859
      %v5861 = vpop.f32.mrb[0].mxu0
      %v5862 = vpop.f32.mrb[0].mxu0
      %v5863 = vadd.f32 0.0, %v5862
      %v5864 = vpop.f32.mrb[0].mxu0
      %5865 = vmatprep.mubr.bf16.mxu0 0
      %5866 = vmatmul.mubr.bf16.gmra.mrb[0].mxu0 %v5658
      %v5867 = vpop.f32.mrb[0].mxu0
      %v5868 = vadd.f32 0.0, %v5867
      %v5869 = vpop.f32.mrb[0].mxu0
      %v5870 = vpop.f32.mrb[0].mxu0
      %v5871 = vadd.f32 0.0, %v5870
      %v5872 = vpop.f32.mrb[0].mxu0
      %5873 = vmatprep.mubr.bf16.mxu0 0
      %5874 = vmatmul.mubr.bf16.gmra.mrb[0].mxu0 %v5659
      %v5875 = vpop.f32.mrb[0].mxu0
      %v5876 = vadd.f32 0.0, %v5875
      %v5877 = vpop.f32.mrb[0].mxu0
      %v5878 = vpop.f32.mrb[0].mxu0
      %v5879 = vadd.f32 0.0, %v5878
      %v5880 = vpop.f32.mrb[0].mxu0
      %5881 = vmatprep.mubr.bf16.mxu0 0
      %5882 = vmatmul.mubr.bf16.gmra.mrb[0].mxu0 %v5660
      %v5883 = vpop.f32.mrb[0].mxu0
      %v5884 = vadd.f32 0.0, %v5883
      %v5885 = vpop.f32.mrb[0].mxu0
      %v5886 = vpop.f32.mrb[0].mxu0
      %v5887 = vadd.f32 0.0, %v5886
      %v5888 = vpop.f32.mrb[0].mxu0
      %5889 = vmatprep.mubr.bf16.mxu0 0
      %5890 = vmatmul.mubr.bf16.gmra.mrb[0].mxu0 %v5661
      %v5891 = vpop.f32.mrb[0].mxu0
      %v5892 = vadd.f32 0.0, %v5891
      %v5893 = vpop.f32.mrb[0].mxu0
      %v5894 = vpop.f32.mrb[0].mxu0
      %v5895 = vadd.f32 0.0, %v5894
      %v5896 = vpop.f32.mrb[0].mxu0
      %5897 = vmatprep.mubr.bf16.mxu0 0
      %5898 = vmatmul.mubr.bf16.gmra.mrb[0].mxu0 %v5662
      %v5899 = vpop.f32.mrb[0].mxu0
      %v5900 = vadd.f32 0.0, %v5899
      %v5901 = vpop.f32.mrb[0].mxu0
      %v5902 = vpop.f32.mrb[0].mxu0
      %v5903 = vadd.f32 0.0, %v5902
      %v5904 = vpop.f32.mrb[0].mxu0
      %5905 = vdwg.mxu0
      %v5906 = vadd.f32 %v5358, %v5764
      %v5907 = vadd.f32 %v5359, %v5767
      %v5908 = vadd.f32 %v5360, %v5772
      %v5909 = vadd.f32 %v5361, %v5775
      %v5910 = vadd.f32 %v5362, %v5780
      %v5911 = vadd.f32 %v5363, %v5783
      %v5912 = vadd.f32 %v5364, %v5788
      %v5913 = vadd.f32 %v5365, %v5791
      %v5914 = vadd.f32 %v5366, %v5796
      %v5915 = vadd.f32 %v5367, %v5799
      %v5916 = vadd.f32 %v5368, %v5804
      %v5917 = vadd.f32 %v5369, %v5807
      %v5918 = vadd.f32 %v5370, %v5812
      %v5919 = vadd.f32 %v5371, %v5815
      %v5920 = vadd.f32 %v5372, %v5820
      %v5921 = vadd.f32 %v5373, %v5823
      %v5922 = vadd.f32 %v5374, %v5828
      %v5923 = vadd.f32 %v5375, %v5831
      %v5924 = vadd.f32 %v5376, %v5836
      %v5925 = vadd.f32 %v5377, %v5839
      %v5926 = vadd.f32 %v5378, %v5844
      %v5927 = vadd.f32 %v5379, %v5847
      %v5928 = vadd.f32 %v5380, %v5852
      %v5929 = vadd.f32 %v5381, %v5855
      %v5930 = vadd.f32 %v5382, %v5860
      %v5931 = vadd.f32 %v5383, %v5863
      %v5932 = vadd.f32 %v5384, %v5868
      %v5933 = vadd.f32 %v5385, %v5871
      %v5934 = vadd.f32 %v5386, %v5876
      %v5935 = vadd.f32 %v5387, %v5879
      %v5936 = vadd.f32 %v5388, %v5884
      %v5937 = vadd.f32 %v5389, %v5887
      %v5938 = vadd.f32 %v5390, %v5892
      %v5939 = vadd.f32 %v5391, %v5895
      %v5940 = vadd.f32 %v5392, %v5900
      %v5941 = vadd.f32 %v5393, %v5903
      %v5942 = vld [vmem:[%s4557 + $0x8] sm:$0x3]
      %v5943 = vld [vmem:[%s4557 + $0x14] sm:$0x3]
      %v5944 = vld [vmem:[%s4557 + $0x20] sm:$0x3]
      %v5945 = vld [vmem:[%s4557 + $0x2c] sm:$0x3]
      %v5946 = vld [vmem:[%s4557 + $0x38] sm:$0x3]
      %v5947 = vld [vmem:[%s4557 + $0x44] sm:$0x3]
      %v5948 = vld [vmem:[%s4557 + $0x50] sm:$0x3]
      %v5949 = vld [vmem:[%s4557 + $0x5c] sm:$0x3]
      %v5950 = vld [vmem:[%s4557 + $0x68] sm:$0x3]
      %v5951 = vld [vmem:[%s4557 + $0x74] sm:$0x3]
      %v5952 = vld [vmem:[%s4557 + $0x80] sm:$0x3]
      %v5953 = vld [vmem:[%s4557 + $0x8c] sm:$0x3]
      %v5954 = vld [vmem:[%s4557 + $0x98] sm:$0x3]
      %v5955 = vld [vmem:[%s4557 + $0xa4] sm:$0x3]
      %v5956 = vld [vmem:[%s4557 + $0xb0] sm:$0x3]
      %v5957 = vld [vmem:[%s4557 + $0xbc] sm:$0x3]
      %v5958 = vld [vmem:[%s4557 + $0xc8] sm:$0x3]
      %v5959 = vld [vmem:[%s4557 + $0xd4] sm:$0x3]
      %v5961 = vshrl.u32 %v5394, 16
      %v5963 = vrot.slane %v5961, 5
      %v5964 = vshll.u32 %v5394, 16
      %v5966 = vrot.slane %v5964, 6
      %v5967 = vor.u32 %v5963, %v5966
      %v5968 = vrot.slane %v5967, 4
      %v5969 = vrot.slane %v4626, 5
      %v5970 = vrot.slane %v4622, 6
      %v5971 = vor.u32 %v5969, %v5970
      %v5972 = vsel %vm1619, %v5968, %v5971
      %v5973 = vrot.slane %v5971, 4
      %v5975 = vshrl.u32 %v5942, 16
      %v5977 = vrot.slane %v5975, 5
      %v5978 = vshll.u32 %v5942, 16
      %v5980 = vrot.slane %v5978, 6
      %v5981 = vor.u32 %v5977, %v5980
      %v5982 = vsel %vm1619, %v5973, %v5981
      %v5984 = vshrl.u32 %v5395, 16
      %v5986 = vrot.slane %v5984, 5
      %v5987 = vshll.u32 %v5395, 16
      %v5989 = vrot.slane %v5987, 6
      %v5990 = vor.u32 %v5986, %v5989
      %v5991 = vrot.slane %v5990, 4
      %v5992 = vrot.slane %v4650, 5
      %v5993 = vrot.slane %v4646, 6
      %v5994 = vor.u32 %v5992, %v5993
      %v5995 = vsel %vm1619, %v5991, %v5994
      %v5996 = vrot.slane %v5994, 4
      %v5998 = vshrl.u32 %v5943, 16
      %v6000 = vrot.slane %v5998, 5
      %v6001 = vshll.u32 %v5943, 16
      %v6003 = vrot.slane %v6001, 6
      %v6004 = vor.u32 %v6000, %v6003
      %v6005 = vsel %vm1619, %v5996, %v6004
      %v6007 = vshrl.u32 %v5396, 16
      %v6009 = vrot.slane %v6007, 5
      %v6010 = vshll.u32 %v5396, 16
      %v6012 = vrot.slane %v6010, 6
      %v6013 = vor.u32 %v6009, %v6012
      %v6014 = vrot.slane %v6013, 4
      %v6015 = vrot.slane %v4674, 5
      %v6016 = vrot.slane %v4670, 6
      %v6017 = vor.u32 %v6015, %v6016
      %v6018 = vsel %vm1619, %v6014, %v6017
      %v6019 = vrot.slane %v6017, 4
      %v6021 = vshrl.u32 %v5944, 16
      %v6023 = vrot.slane %v6021, 5
      %v6024 = vshll.u32 %v5944, 16
      %v6026 = vrot.slane %v6024, 6
      %v6027 = vor.u32 %v6023, %v6026
      %v6028 = vsel %vm1619, %v6019, %v6027
      %v6030 = vshrl.u32 %v5397, 16
      %v6032 = vrot.slane %v6030, 5
      %v6033 = vshll.u32 %v5397, 16
      %v6035 = vrot.slane %v6033, 6
      %v6036 = vor.u32 %v6032, %v6035
      %v6037 = vrot.slane %v6036, 4
      %v6038 = vrot.slane %v4698, 5
      %v6039 = vrot.slane %v4694, 6
      %v6040 = vor.u32 %v6038, %v6039
      %v6041 = vsel %vm1619, %v6037, %v6040
      %v6042 = vrot.slane %v6040, 4
      %v6044 = vshrl.u32 %v5945, 16
      %v6046 = vrot.slane %v6044, 5
      %v6047 = vshll.u32 %v5945, 16
      %v6049 = vrot.slane %v6047, 6
      %v6050 = vor.u32 %v6046, %v6049
      %v6051 = vsel %vm1619, %v6042, %v6050
      %v6053 = vshrl.u32 %v5398, 16
      %v6055 = vrot.slane %v6053, 5
      %v6056 = vshll.u32 %v5398, 16
      %v6058 = vrot.slane %v6056, 6
      %v6059 = vor.u32 %v6055, %v6058
      %v6060 = vrot.slane %v6059, 4
      %v6061 = vrot.slane %v4722, 5
      %v6062 = vrot.slane %v4718, 6
      %v6063 = vor.u32 %v6061, %v6062
      %v6064 = vsel %vm1619, %v6060, %v6063
      %v6065 = vrot.slane %v6063, 4
      %v6067 = vshrl.u32 %v5946, 16
      %v6069 = vrot.slane %v6067, 5
      %v6070 = vshll.u32 %v5946, 16
      %v6072 = vrot.slane %v6070, 6
      %v6073 = vor.u32 %v6069, %v6072
      %v6074 = vsel %vm1619, %v6065, %v6073
      %v6076 = vshrl.u32 %v5399, 16
      %v6078 = vrot.slane %v6076, 5
      %v6079 = vshll.u32 %v5399, 16
      %v6081 = vrot.slane %v6079, 6
      %v6082 = vor.u32 %v6078, %v6081
      %v6083 = vrot.slane %v6082, 4
      %v6084 = vrot.slane %v4746, 5
      %v6085 = vrot.slane %v4742, 6
      %v6086 = vor.u32 %v6084, %v6085
      %v6087 = vsel %vm1619, %v6083, %v6086
      %v6088 = vrot.slane %v6086, 4
      %v6090 = vshrl.u32 %v5947, 16
      %v6092 = vrot.slane %v6090, 5
      %v6093 = vshll.u32 %v5947, 16
      %v6095 = vrot.slane %v6093, 6
      %v6096 = vor.u32 %v6092, %v6095
      %v6097 = vsel %vm1619, %v6088, %v6096
      %v6099 = vshrl.u32 %v5400, 16
      %v6101 = vrot.slane %v6099, 5
      %v6102 = vshll.u32 %v5400, 16
      %v6104 = vrot.slane %v6102, 6
      %v6105 = vor.u32 %v6101, %v6104
      %v6106 = vrot.slane %v6105, 4
      %v6107 = vrot.slane %v4770, 5
      %v6108 = vrot.slane %v4766, 6
      %v6109 = vor.u32 %v6107, %v6108
      %v6110 = vsel %vm1619, %v6106, %v6109
      %v6111 = vrot.slane %v6109, 4
      %v6113 = vshrl.u32 %v5948, 16
      %v6115 = vrot.slane %v6113, 5
      %v6116 = vshll.u32 %v5948, 16
      %v6118 = vrot.slane %v6116, 6
      %v6119 = vor.u32 %v6115, %v6118
      %v6120 = vsel %vm1619, %v6111, %v6119
      %v6122 = vshrl.u32 %v5401, 16
      %v6124 = vrot.slane %v6122, 5
      %v6125 = vshll.u32 %v5401, 16
      %v6127 = vrot.slane %v6125, 6
      %v6128 = vor.u32 %v6124, %v6127
      %v6129 = vrot.slane %v6128, 4
      %v6130 = vrot.slane %v4794, 5
      %v6131 = vrot.slane %v4790, 6
      %v6132 = vor.u32 %v6130, %v6131
      %v6133 = vsel %vm1619, %v6129, %v6132
      %v6134 = vrot.slane %v6132, 4
      %v6136 = vshrl.u32 %v5949, 16
      %v6138 = vrot.slane %v6136, 5
      %v6139 = vshll.u32 %v5949, 16
      %v6141 = vrot.slane %v6139, 6
      %v6142 = vor.u32 %v6138, %v6141
      %v6143 = vsel %vm1619, %v6134, %v6142
      %v6145 = vshrl.u32 %v5402, 16
      %v6147 = vrot.slane %v6145, 5
      %v6148 = vshll.u32 %v5402, 16
      %v6150 = vrot.slane %v6148, 6
      %v6151 = vor.u32 %v6147, %v6150
      %v6152 = vrot.slane %v6151, 4
      %v6153 = vrot.slane %v4818, 5
      %v6154 = vrot.slane %v4814, 6
      %v6155 = vor.u32 %v6153, %v6154
      %v6156 = vsel %vm1619, %v6152, %v6155
      %v6157 = vrot.slane %v6155, 4
      %v6159 = vshrl.u32 %v5950, 16
      %v6161 = vrot.slane %v6159, 5
      %v6162 = vshll.u32 %v5950, 16
      %v6164 = vrot.slane %v6162, 6
      %v6165 = vor.u32 %v6161, %v6164
      %v6166 = vsel %vm1619, %v6157, %v6165
      %v6168 = vshrl.u32 %v5403, 16
      %v6170 = vrot.slane %v6168, 5
      %v6171 = vshll.u32 %v5403, 16
      %v6173 = vrot.slane %v6171, 6
      %v6174 = vor.u32 %v6170, %v6173
      %v6175 = vrot.slane %v6174, 4
      %v6176 = vrot.slane %v4842, 5
      %v6177 = vrot.slane %v4838, 6
      %v6178 = vor.u32 %v6176, %v6177
      %v6179 = vsel %vm1619, %v6175, %v6178
      %v6180 = vrot.slane %v6178, 4
      %v6182 = vshrl.u32 %v5951, 16
      %v6184 = vrot.slane %v6182, 5
      %v6185 = vshll.u32 %v5951, 16
      %v6187 = vrot.slane %v6185, 6
      %v6188 = vor.u32 %v6184, %v6187
      %v6189 = vsel %vm1619, %v6180, %v6188
      %v6191 = vshrl.u32 %v5404, 16
      %v6193 = vrot.slane %v6191, 5
      %v6194 = vshll.u32 %v5404, 16
      %v6196 = vrot.slane %v6194, 6
      %v6197 = vor.u32 %v6193, %v6196
      %v6198 = vrot.slane %v6197, 4
      %v6199 = vrot.slane %v4866, 5
      %v6200 = vrot.slane %v4862, 6
      %v6201 = vor.u32 %v6199, %v6200
      %v6202 = vsel %vm1619, %v6198, %v6201
      %v6203 = vrot.slane %v6201, 4
      %v6205 = vshrl.u32 %v5952, 16
      %v6207 = vrot.slane %v6205, 5
      %v6208 = vshll.u32 %v5952, 16
      %v6210 = vrot.slane %v6208, 6
      %v6211 = vor.u32 %v6207, %v6210
      %v6212 = vsel %vm1619, %v6203, %v6211
      %v6214 = vshrl.u32 %v5405, 16
      %v6216 = vrot.slane %v6214, 5
      %v6217 = vshll.u32 %v5405, 16
      %v6219 = vrot.slane %v6217, 6
      %v6220 = vor.u32 %v6216, %v6219
      %v6221 = vrot.slane %v6220, 4
      %v6222 = vrot.slane %v4890, 5
      %v6223 = vrot.slane %v4886, 6
      %v6224 = vor.u32 %v6222, %v6223
      %v6225 = vsel %vm1619, %v6221, %v6224
      %v6226 = vrot.slane %v6224, 4
      %v6228 = vshrl.u32 %v5953, 16
      %v6230 = vrot.slane %v6228, 5
      %v6231 = vshll.u32 %v5953, 16
      %v6233 = vrot.slane %v6231, 6
      %v6234 = vor.u32 %v6230, %v6233
      %v6235 = vsel %vm1619, %v6226, %v6234
      %v6237 = vshrl.u32 %v5406, 16
      %v6239 = vrot.slane %v6237, 5
      %v6240 = vshll.u32 %v5406, 16
      %v6242 = vrot.slane %v6240, 6
      %v6243 = vor.u32 %v6239, %v6242
      %v6244 = vrot.slane %v6243, 4
      %v6245 = vrot.slane %v4914, 5
      %v6246 = vrot.slane %v4910, 6
      %v6247 = vor.u32 %v6245, %v6246
      %v6248 = vsel %vm1619, %v6244, %v6247
      %v6249 = vrot.slane %v6247, 4
      %v6251 = vshrl.u32 %v5954, 16
      %v6253 = vrot.slane %v6251, 5
      %v6254 = vshll.u32 %v5954, 16
      %v6256 = vrot.slane %v6254, 6
      %v6257 = vor.u32 %v6253, %v6256
      %v6258 = vsel %vm1619, %v6249, %v6257
      %v6260 = vshrl.u32 %v5407, 16
      %v6262 = vrot.slane %v6260, 5
      %v6263 = vshll.u32 %v5407, 16
      %v6265 = vrot.slane %v6263, 6
      %v6266 = vor.u32 %v6262, %v6265
      %v6267 = vrot.slane %v6266, 4
      %v6268 = vrot.slane %v4938, 5
      %v6269 = vrot.slane %v4934, 6
      %v6270 = vor.u32 %v6268, %v6269
      %v6271 = vsel %vm1619, %v6267, %v6270
      %v6272 = vrot.slane %v6270, 4
      %v6274 = vshrl.u32 %v5955, 16
      %v6276 = vrot.slane %v6274, 5
      %v6277 = vshll.u32 %v5955, 16
      %v6279 = vrot.slane %v6277, 6
      %v6280 = vor.u32 %v6276, %v6279
      %v6281 = vsel %vm1619, %v6272, %v6280
      %v6283 = vshrl.u32 %v5408, 16
      %v6285 = vrot.slane %v6283, 5
      %v6286 = vshll.u32 %v5408, 16
      %v6288 = vrot.slane %v6286, 6
      %v6289 = vor.u32 %v6285, %v6288
      %v6290 = vrot.slane %v6289, 4
      %v6291 = vrot.slane %v4962, 5
      %v6292 = vrot.slane %v4958, 6
      %v6293 = vor.u32 %v6291, %v6292
      %v6294 = vsel %vm1619, %v6290, %v6293
      %v6295 = vrot.slane %v6293, 4
      %v6297 = vshrl.u32 %v5956, 16
      %v6299 = vrot.slane %v6297, 5
      %v6300 = vshll.u32 %v5956, 16
      %v6302 = vrot.slane %v6300, 6
      %v6303 = vor.u32 %v6299, %v6302
      %v6304 = vsel %vm1619, %v6295, %v6303
      %v6306 = vshrl.u32 %v5409, 16
      %v6308 = vrot.slane %v6306, 5
      %v6309 = vshll.u32 %v5409, 16
      %v6311 = vrot.slane %v6309, 6
      %v6312 = vor.u32 %v6308, %v6311
      %v6313 = vrot.slane %v6312, 4
      %v6314 = vrot.slane %v4986, 5
      %v6315 = vrot.slane %v4982, 6
      %v6316 = vor.u32 %v6314, %v6315
      %v6317 = vsel %vm1619, %v6313, %v6316
      %v6318 = vrot.slane %v6316, 4
      %v6320 = vshrl.u32 %v5957, 16
      %v6322 = vrot.slane %v6320, 5
      %v6323 = vshll.u32 %v5957, 16
      %v6325 = vrot.slane %v6323, 6
      %v6326 = vor.u32 %v6322, %v6325
      %v6327 = vsel %vm1619, %v6318, %v6326
      %v6329 = vshrl.u32 %v5410, 16
      %v6331 = vrot.slane %v6329, 5
      %v6332 = vshll.u32 %v5410, 16
      %v6334 = vrot.slane %v6332, 6
      %v6335 = vor.u32 %v6331, %v6334
      %v6336 = vrot.slane %v6335, 4
      %v6337 = vrot.slane %v5010, 5
      %v6338 = vrot.slane %v5006, 6
      %v6339 = vor.u32 %v6337, %v6338
      %v6340 = vsel %vm1619, %v6336, %v6339
      %v6341 = vrot.slane %v6339, 4
      %v6343 = vshrl.u32 %v5958, 16
      %v6345 = vrot.slane %v6343, 5
      %v6346 = vshll.u32 %v5958, 16
      %v6348 = vrot.slane %v6346, 6
      %v6349 = vor.u32 %v6345, %v6348
      %v6350 = vsel %vm1619, %v6341, %v6349
      %v6352 = vshrl.u32 %v5411, 16
      %v6354 = vrot.slane %v6352, 5
      %v6355 = vshll.u32 %v5411, 16
      %v6357 = vrot.slane %v6355, 6
      %v6358 = vor.u32 %v6354, %v6357
      %v6359 = vrot.slane %v6358, 4
      %v6360 = vrot.slane %v5034, 5
      %v6361 = vrot.slane %v5030, 6
      %v6362 = vor.u32 %v6360, %v6361
      %v6363 = vsel %vm1619, %v6359, %v6362
      %v6364 = vrot.slane %v6362, 4
      %v6366 = vshrl.u32 %v5959, 16
      %v6368 = vrot.slane %v6366, 5
      %v6369 = vshll.u32 %v5959, 16
      %v6371 = vrot.slane %v6369, 6
      %v6372 = vor.u32 %v6368, %v6371
      %v6373 = vsel %vm1619, %v6364, %v6372
      %s6374 = scalar_lea.vmem %s1, 512
      %v6375 = vld [vmem:[%s6374] sm:$0xf]
      %v6376 = vld [vmem:[%s6374 + $0x4] sm:$0xf]
      %v6377 = vld [vmem:[%s6374 + $0x8] sm:$0xf]
      %v6378 = vld [vmem:[%s6374 + $0xc] sm:$0xf]
      %v6379 = vld [vmem:[%s6374 + $0x10] sm:$0xf]
      %v6380 = vld [vmem:[%s6374 + $0x14] sm:$0xf]
      %v6381 = vld [vmem:[%s6374 + $0x18] sm:$0xf]
      %v6382 = vld [vmem:[%s6374 + $0x1c] sm:$0xf]
      %v6383 = vld [vmem:[%s6374 + $0x20] sm:$0xf]
      %v6384 = vld [vmem:[%s6374 + $0x24] sm:$0xf]
      %v6385 = vld [vmem:[%s6374 + $0x28] sm:$0xf]
      %v6386 = vld [vmem:[%s6374 + $0x2c] sm:$0xf]
      %v6387 = vld [vmem:[%s6374 + $0x30] sm:$0xf]
      %v6388 = vld [vmem:[%s6374 + $0x34] sm:$0xf]
      %v6389 = vld [vmem:[%s6374 + $0x38] sm:$0xf]
      %v6390 = vld [vmem:[%s6374 + $0x3c] sm:$0xf]
      %v6391 = vunpack.c.l.b16 %v5972
      %v6392 = vunpack.c.l.b16 %v5982
      %v6393 = vunpack.c.l.b16 %v5995
      %v6394 = vunpack.c.l.b16 %v6005
      %v6395 = vunpack.c.l.b16 %v6018
      %v6396 = vunpack.c.l.b16 %v6028
      %v6397 = vunpack.c.l.b16 %v6041
      %v6398 = vunpack.c.l.b16 %v6051
      %v6399 = vunpack.c.l.b16 %v6064
      %v6400 = vunpack.c.l.b16 %v6074
      %v6401 = vunpack.c.l.b16 %v6087
      %v6402 = vunpack.c.l.b16 %v6097
      %v6403 = vunpack.c.l.b16 %v6110
      %v6404 = vunpack.c.l.b16 %v6120
      %v6405 = vunpack.c.l.b16 %v6133
      %v6406 = vunpack.c.l.b16 %v6143
      %v6407 = vunpack.c.l.b16 %v6156
      %v6408 = vunpack.c.l.b16 %v6166
      %v6409 = vunpack.c.l.b16 %v6179
      %v6410 = vunpack.c.l.b16 %v6189
      %v6411 = vunpack.c.l.b16 %v6202
      %v6412 = vunpack.c.l.b16 %v6212
      %v6413 = vunpack.c.l.b16 %v6225
      %v6414 = vunpack.c.l.b16 %v6235
      %v6415 = vunpack.c.l.b16 %v6248
      %v6416 = vunpack.c.l.b16 %v6258
      %v6417 = vunpack.c.l.b16 %v6271
      %v6418 = vunpack.c.l.b16 %v6281
      %v6419 = vunpack.c.l.b16 %v6294
      %v6420 = vunpack.c.l.b16 %v6304
      %v6421 = vunpack.c.l.b16 %v6317
      %v6422 = vunpack.c.l.b16 %v6327
      %v6423 = vunpack.c.l.b16 %v6340
      %v6424 = vunpack.c.l.b16 %v6350
      %v6425 = vunpack.c.l.b16 %v6363
      %v6426 = vunpack.c.l.b16 %v6373
      %v6427 = vpack.c.b16 %v6392, %v6391
      %v6428 = vpack.c.b16 %v6394, %v6393
      %v6429 = vpack.c.b16 %v6396, %v6395
      %v6430 = vpack.c.b16 %v6398, %v6397
      %v6431 = vpack.c.b16 %v6400, %v6399
      %v6432 = vpack.c.b16 %v6402, %v6401
      %v6433 = vpack.c.b16 %v6404, %v6403
      %v6434 = vpack.c.b16 %v6406, %v6405
      %v6435 = vpack.c.b16 %v6408, %v6407
      %v6436 = vpack.c.b16 %v6410, %v6409
      %v6437 = vpack.c.b16 %v6412, %v6411
      %v6438 = vpack.c.b16 %v6414, %v6413
      %v6439 = vpack.c.b16 %v6416, %v6415
      %v6440 = vpack.c.b16 %v6418, %v6417
      %v6441 = vpack.c.b16 %v6420, %v6419
      %v6442 = vpack.c.b16 %v6422, %v6421
      %v6443 = vpack.c.b16 %v6424, %v6423
      %v6444 = vpack.c.b16 %v6426, %v6425
      %v6479 = vunpack.c.l.b16 %v6375
      %v6480 = vunpack.c.l.b16 %v6376
      %v6481 = vunpack.c.l.b16 %v6377
      %v6482 = vunpack.c.l.b16 %v6378
      %v6483 = vunpack.c.l.b16 %v6379
      %v6484 = vunpack.c.l.b16 %v6380
      %v6485 = vunpack.c.l.b16 %v6381
      %v6486 = vunpack.c.l.b16 %v6382
      %v6487 = vunpack.c.l.b16 %v6383
      %v6488 = vunpack.c.l.b16 %v6384
      %v6489 = vunpack.c.l.b16 %v6385
      %v6490 = vunpack.c.l.b16 %v6386
      %v6491 = vunpack.c.l.b16 %v6387
      %v6492 = vunpack.c.l.b16 %v6388
      %v6493 = vunpack.c.l.b16 %v6389
      %v6494 = vunpack.c.l.b16 %v6390
      %v6495 = vpack.c.b16 %v6480, %v6479
      %v6496 = vpack.c.b16 %v6482, %v6481
      %v6497 = vpack.c.b16 %v6484, %v6483
      %v6498 = vpack.c.b16 %v6486, %v6485
      %v6499 = vpack.c.b16 %v6488, %v6487
      %v6500 = vpack.c.b16 %v6490, %v6489
      %v6501 = vpack.c.b16 %v6492, %v6491
      %v6502 = vpack.c.b16 %v6494, %v6493
      %6511 = vmatprep.subr.bf16.mxu0 0
      %6512 = vmatpush1.bf16.msra.mxu0 %v6495
      %6513 = vmatprep.subr.bf16.mxu0 0
      %6514 = vmatpush1.bf16.msra.mxu0 %v6496
      %6515 = vmatprep.subr.bf16.mxu0 0
      %6516 = vmatpush1.bf16.msra.mxu0 %v6497
      %6517 = vmatprep.subr.bf16.mxu0 0
      %6518 = vmatpush1.bf16.msra.mxu0 %v6498
      %6519 = vmatprep.subr.bf16.mxu0 0
      %6520 = vmatpush1.bf16.msra.mxu0 %v6499
      %6521 = vmatprep.subr.bf16.mxu0 0
      %6522 = vmatpush1.bf16.msra.mxu0 %v6500
      %6523 = vmatprep.subr.bf16.mxu0 0
      %6524 = vmatpush1.bf16.msra.mxu0 %v6501
      %6525 = vmatprep.subr.bf16.mxu0 0
      %6526 = vmatpush1.bf16.msra.mxu0 %v6502
      %6527 = vmatprep.subr.bf16.mxu0 0
      %6528 = vmatpush1.bf16.msra.mxu0 0
      %6529 = vmatprep.subr.bf16.mxu0 0
      %6530 = vmatpush1.bf16.msra.mxu0 0
      %6531 = vmatprep.subr.bf16.mxu0 0
      %6532 = vmatpush1.bf16.msra.mxu0 0
      %6533 = vmatprep.subr.bf16.mxu0 0
      %6534 = vmatpush1.bf16.msra.mxu0 0
      %6535 = vmatprep.subr.bf16.mxu0 0
      %6536 = vmatpush1.bf16.msra.mxu0 0
      %6537 = vmatprep.subr.bf16.mxu0 0
      %6538 = vmatpush1.bf16.msra.mxu0 0
      %6539 = vmatprep.subr.bf16.mxu0 0
      %6540 = vmatpush1.bf16.msra.mxu0 0
      %6541 = vmatprep.subr.bf16.mxu0 0
      %6542 = vmatpush1.bf16.msra.mxu0 0
      %6543 = vmatprep.mubr.bf16.mxu0 0
      %6544 = vmatmul.mubr.bf16.gmra.mrb[0].mxu0 %v6427
      %v6545 = vpop.f32.mrb[0].mxu0
      %v6546 = vadd.f32 0.0, %v6545
      %v6547 = vpop.f32.mrb[0].mxu0
      %v6548 = vpop.f32.mrb[0].mxu0
      %v6549 = vadd.f32 0.0, %v6548
      %v6550 = vpop.f32.mrb[0].mxu0
      %6551 = vmatprep.mubr.bf16.mxu0 0
      %6552 = vmatmul.mubr.bf16.gmra.mrb[0].mxu0 %v6428
      %v6553 = vpop.f32.mrb[0].mxu0
      %v6554 = vadd.f32 0.0, %v6553
      %v6555 = vpop.f32.mrb[0].mxu0
      %v6556 = vpop.f32.mrb[0].mxu0
      %v6557 = vadd.f32 0.0, %v6556
      %v6558 = vpop.f32.mrb[0].mxu0
      %6559 = vmatprep.mubr.bf16.mxu0 0
      %6560 = vmatmul.mubr.bf16.gmra.mrb[0].mxu0 %v6429
      %v6561 = vpop.f32.mrb[0].mxu0
      %v6562 = vadd.f32 0.0, %v6561
      %v6563 = vpop.f32.mrb[0].mxu0
      %v6564 = vpop.f32.mrb[0].mxu0
      %v6565 = vadd.f32 0.0, %v6564
      %v6566 = vpop.f32.mrb[0].mxu0
      %6567 = vmatprep.mubr.bf16.mxu0 0
      %6568 = vmatmul.mubr.bf16.gmra.mrb[0].mxu0 %v6430
      %v6569 = vpop.f32.mrb[0].mxu0
      %v6570 = vadd.f32 0.0, %v6569
      %v6571 = vpop.f32.mrb[0].mxu0
      %v6572 = vpop.f32.mrb[0].mxu0
      %v6573 = vadd.f32 0.0, %v6572
      %v6574 = vpop.f32.mrb[0].mxu0
      %6575 = vmatprep.mubr.bf16.mxu0 0
      %6576 = vmatmul.mubr.bf16.gmra.mrb[0].mxu0 %v6431
      %v6577 = vpop.f32.mrb[0].mxu0
      %v6578 = vadd.f32 0.0, %v6577
      %v6579 = vpop.f32.mrb[0].mxu0
      %v6580 = vpop.f32.mrb[0].mxu0
      %v6581 = vadd.f32 0.0, %v6580
      %v6582 = vpop.f32.mrb[0].mxu0
      %6583 = vmatprep.mubr.bf16.mxu0 0
      %6584 = vmatmul.mubr.bf16.gmra.mrb[0].mxu0 %v6432
      %v6585 = vpop.f32.mrb[0].mxu0
      %v6586 = vadd.f32 0.0, %v6585
      %v6587 = vpop.f32.mrb[0].mxu0
      %v6588 = vpop.f32.mrb[0].mxu0
      %v6589 = vadd.f32 0.0, %v6588
      %v6590 = vpop.f32.mrb[0].mxu0
      %6591 = vmatprep.mubr.bf16.mxu0 0
      %6592 = vmatmul.mubr.bf16.gmra.mrb[0].mxu0 %v6433
      %v6593 = vpop.f32.mrb[0].mxu0
      %v6594 = vadd.f32 0.0, %v6593
      %v6595 = vpop.f32.mrb[0].mxu0
      %v6596 = vpop.f32.mrb[0].mxu0
      %v6597 = vadd.f32 0.0, %v6596
      %v6598 = vpop.f32.mrb[0].mxu0
      %6599 = vmatprep.mubr.bf16.mxu0 0
      %6600 = vmatmul.mubr.bf16.gmra.mrb[0].mxu0 %v6434
      %v6601 = vpop.f32.mrb[0].mxu0
      %v6602 = vadd.f32 0.0, %v6601
      %v6603 = vpop.f32.mrb[0].mxu0
      %v6604 = vpop.f32.mrb[0].mxu0
      %v6605 = vadd.f32 0.0, %v6604
      %v6606 = vpop.f32.mrb[0].mxu0
      %6607 = vmatprep.mubr.bf16.mxu0 0
      %6608 = vmatmul.mubr.bf16.gmra.mrb[0].mxu0 %v6435
      %v6609 = vpop.f32.mrb[0].mxu0
      %v6610 = vadd.f32 0.0, %v6609
      %v6611 = vpop.f32.mrb[0].mxu0
      %v6612 = vpop.f32.mrb[0].mxu0
      %v6613 = vadd.f32 0.0, %v6612
      %v6614 = vpop.f32.mrb[0].mxu0
      %6615 = vmatprep.mubr.bf16.mxu0 0
      %6616 = vmatmul.mubr.bf16.gmra.mrb[0].mxu0 %v6436
      %v6617 = vpop.f32.mrb[0].mxu0
      %v6618 = vadd.f32 0.0, %v6617
      %v6619 = vpop.f32.mrb[0].mxu0
      %v6620 = vpop.f32.mrb[0].mxu0
      %v6621 = vadd.f32 0.0, %v6620
      %v6622 = vpop.f32.mrb[0].mxu0
      %6623 = vmatprep.mubr.bf16.mxu0 0
      %6624 = vmatmul.mubr.bf16.gmra.mrb[0].mxu0 %v6437
      %v6625 = vpop.f32.mrb[0].mxu0
      %v6626 = vadd.f32 0.0, %v6625
      %v6627 = vpop.f32.mrb[0].mxu0
      %v6628 = vpop.f32.mrb[0].mxu0
      %v6629 = vadd.f32 0.0, %v6628
      %v6630 = vpop.f32.mrb[0].mxu0
      %6631 = vmatprep.mubr.bf16.mxu0 0
      %6632 = vmatmul.mubr.bf16.gmra.mrb[0].mxu0 %v6438
      %v6633 = vpop.f32.mrb[0].mxu0
      %v6634 = vadd.f32 0.0, %v6633
      %v6635 = vpop.f32.mrb[0].mxu0
      %v6636 = vpop.f32.mrb[0].mxu0
      %v6637 = vadd.f32 0.0, %v6636
      %v6638 = vpop.f32.mrb[0].mxu0
      %6639 = vmatprep.mubr.bf16.mxu0 0
      %6640 = vmatmul.mubr.bf16.gmra.mrb[0].mxu0 %v6439
      %v6641 = vpop.f32.mrb[0].mxu0
      %v6642 = vadd.f32 0.0, %v6641
      %v6643 = vpop.f32.mrb[0].mxu0
      %v6644 = vpop.f32.mrb[0].mxu0
      %v6645 = vadd.f32 0.0, %v6644
      %v6646 = vpop.f32.mrb[0].mxu0
      %6647 = vmatprep.mubr.bf16.mxu0 0
      %6648 = vmatmul.mubr.bf16.gmra.mrb[0].mxu0 %v6440
      %v6649 = vpop.f32.mrb[0].mxu0
      %v6650 = vadd.f32 0.0, %v6649
      %v6651 = vpop.f32.mrb[0].mxu0
      %v6652 = vpop.f32.mrb[0].mxu0
      %v6653 = vadd.f32 0.0, %v6652
      %v6654 = vpop.f32.mrb[0].mxu0
      %6655 = vmatprep.mubr.bf16.mxu0 0
      %6656 = vmatmul.mubr.bf16.gmra.mrb[0].mxu0 %v6441
      %v6657 = vpop.f32.mrb[0].mxu0
      %v6658 = vadd.f32 0.0, %v6657
      %v6659 = vpop.f32.mrb[0].mxu0
      %v6660 = vpop.f32.mrb[0].mxu0
      %v6661 = vadd.f32 0.0, %v6660
      %v6662 = vpop.f32.mrb[0].mxu0
      %6663 = vmatprep.mubr.bf16.mxu0 0
      %6664 = vmatmul.mubr.bf16.gmra.mrb[0].mxu0 %v6442
      %v6665 = vpop.f32.mrb[0].mxu0
      %v6666 = vadd.f32 0.0, %v6665
      %v6667 = vpop.f32.mrb[0].mxu0
      %v6668 = vpop.f32.mrb[0].mxu0
      %v6669 = vadd.f32 0.0, %v6668
      %v6670 = vpop.f32.mrb[0].mxu0
      %6671 = vmatprep.mubr.bf16.mxu0 0
      %6672 = vmatmul.mubr.bf16.gmra.mrb[0].mxu0 %v6443
      %v6673 = vpop.f32.mrb[0].mxu0
      %v6674 = vadd.f32 0.0, %v6673
      %v6675 = vpop.f32.mrb[0].mxu0
      %v6676 = vpop.f32.mrb[0].mxu0
      %v6677 = vadd.f32 0.0, %v6676
      %v6678 = vpop.f32.mrb[0].mxu0
      %6679 = vmatprep.mubr.bf16.mxu0 0
      %6680 = vmatmul.mubr.bf16.gmra.mrb[0].mxu0 %v6444
      %v6681 = vpop.f32.mrb[0].mxu0
      %v6682 = vadd.f32 0.0, %v6681
      %v6683 = vpop.f32.mrb[0].mxu0
      %v6684 = vpop.f32.mrb[0].mxu0
      %v6685 = vadd.f32 0.0, %v6684
      %v6686 = vpop.f32.mrb[0].mxu0
      %6687 = vdwg.mxu0
      %v6688 = vadd.f32 %v5906, %v6546
      %v6689 = vadd.f32 %v5907, %v6549
      %v6690 = vadd.f32 %v5908, %v6554
      %v6691 = vadd.f32 %v5909, %v6557
      %v6692 = vadd.f32 %v5910, %v6562
      %v6693 = vadd.f32 %v5911, %v6565
      %v6694 = vadd.f32 %v5912, %v6570
      %v6695 = vadd.f32 %v5913, %v6573
      %v6696 = vadd.f32 %v5914, %v6578
      %v6697 = vadd.f32 %v5915, %v6581
      %v6698 = vadd.f32 %v5916, %v6586
      %v6699 = vadd.f32 %v5917, %v6589
      %v6700 = vadd.f32 %v5918, %v6594
      %v6701 = vadd.f32 %v5919, %v6597
      %v6702 = vadd.f32 %v5920, %v6602
      %v6703 = vadd.f32 %v5921, %v6605
      %v6704 = vadd.f32 %v5922, %v6610
      %v6705 = vadd.f32 %v5923, %v6613
      %v6706 = vadd.f32 %v5924, %v6618
      %v6707 = vadd.f32 %v5925, %v6621
      %v6708 = vadd.f32 %v5926, %v6626
      %v6709 = vadd.f32 %v5927, %v6629
      %v6710 = vadd.f32 %v5928, %v6634
      %v6711 = vadd.f32 %v5929, %v6637
      %v6712 = vadd.f32 %v5930, %v6642
      %v6713 = vadd.f32 %v5931, %v6645
      %v6714 = vadd.f32 %v5932, %v6650
      %v6715 = vadd.f32 %v5933, %v6653
      %v6716 = vadd.f32 %v5934, %v6658
      %v6717 = vadd.f32 %v5935, %v6661
      %v6718 = vadd.f32 %v5936, %v6666
      %v6719 = vadd.f32 %v5937, %v6669
      %v6720 = vadd.f32 %v5938, %v6674
      %v6721 = vadd.f32 %v5939, %v6677
      %v6722 = vadd.f32 %v5940, %v6682
      %v6723 = vadd.f32 %v5941, %v6685
      %v6724 = vld [vmem:[%s2] sm:$0x1]
      %v6726 = vlaneseq
      %v6727 = vshrl.u32 %v6726, 7
      %v6728 = vsub.s32 0, %v6727
      %v6729 = vrot.slane %v6724, %v6728
      %v6731 = vadd.f32 %v6688, %v6729
      %v6732 = vadd.f32 %v6689, %v6729
      %v6733 = vadd.f32 %v6690, %v6729
      %v6734 = vadd.f32 %v6691, %v6729
      %v6735 = vadd.f32 %v6692, %v6729
      %v6736 = vadd.f32 %v6693, %v6729
      %v6737 = vadd.f32 %v6694, %v6729
      %v6738 = vadd.f32 %v6695, %v6729
      %v6739 = vadd.f32 %v6696, %v6729
      %v6740 = vadd.f32 %v6697, %v6729
      %v6741 = vadd.f32 %v6698, %v6729
      %v6742 = vadd.f32 %v6699, %v6729
      %v6743 = vadd.f32 %v6700, %v6729
      %v6744 = vadd.f32 %v6701, %v6729
      %v6745 = vadd.f32 %v6702, %v6729
      %v6746 = vadd.f32 %v6703, %v6729
      %v6747 = vadd.f32 %v6704, %v6729
      %v6748 = vadd.f32 %v6705, %v6729
      %v6749 = vadd.f32 %v6706, %v6729
      %v6750 = vadd.f32 %v6707, %v6729
      %v6751 = vadd.f32 %v6708, %v6729
      %v6752 = vadd.f32 %v6709, %v6729
      %v6753 = vadd.f32 %v6710, %v6729
      %v6754 = vadd.f32 %v6711, %v6729
      %v6755 = vadd.f32 %v6712, %v6729
      %v6756 = vadd.f32 %v6713, %v6729
      %v6757 = vadd.f32 %v6714, %v6729
      %v6758 = vadd.f32 %v6715, %v6729
      %v6759 = vadd.f32 %v6716, %v6729
      %v6760 = vadd.f32 %v6717, %v6729
      %v6761 = vadd.f32 %v6718, %v6729
      %v6762 = vadd.f32 %v6719, %v6729
      %v6763 = vadd.f32 %v6720, %v6729
      %v6764 = vadd.f32 %v6721, %v6729
      %v6765 = vadd.f32 %v6722, %v6729
      %v6766 = vadd.f32 %v6723, %v6729
      %v6767 = vmax.f32 %v6731, 0.0
      %v6768 = vmax.f32 %v6732, 0.0
      %v6769 = vmax.f32 %v6733, 0.0
      %v6770 = vmax.f32 %v6734, 0.0
      %v6771 = vmax.f32 %v6735, 0.0
      %v6772 = vmax.f32 %v6736, 0.0
      %v6773 = vmax.f32 %v6737, 0.0
      %v6774 = vmax.f32 %v6738, 0.0
      %v6775 = vmax.f32 %v6739, 0.0
      %v6776 = vmax.f32 %v6740, 0.0
      %v6777 = vmax.f32 %v6741, 0.0
      %v6778 = vmax.f32 %v6742, 0.0
      %v6779 = vmax.f32 %v6743, 0.0
      %v6780 = vmax.f32 %v6744, 0.0
      %v6781 = vmax.f32 %v6745, 0.0
      %v6782 = vmax.f32 %v6746, 0.0
      %v6783 = vmax.f32 %v6747, 0.0
      %v6784 = vmax.f32 %v6748, 0.0
      %v6785 = vmax.f32 %v6749, 0.0
      %v6786 = vmax.f32 %v6750, 0.0
      %v6787 = vmax.f32 %v6751, 0.0
      %v6788 = vmax.f32 %v6752, 0.0
      %v6789 = vmax.f32 %v6753, 0.0
      %v6790 = vmax.f32 %v6754, 0.0
      %v6791 = vmax.f32 %v6755, 0.0
      %v6792 = vmax.f32 %v6756, 0.0
      %v6793 = vmax.f32 %v6757, 0.0
      %v6794 = vmax.f32 %v6758, 0.0
      %v6795 = vmax.f32 %v6759, 0.0
      %v6796 = vmax.f32 %v6760, 0.0
      %v6797 = vmax.f32 %v6761, 0.0
      %v6798 = vmax.f32 %v6762, 0.0
      %v6799 = vmax.f32 %v6763, 0.0
      %v6800 = vmax.f32 %v6764, 0.0
      %v6801 = vmax.f32 %v6765, 0.0
      %v6802 = vmax.f32 %v6766, 0.0
      %vm6803 = vcmask 1043459
      %vm6804 = vsmask.f32 7950
      %vm6805 = vmand %vm6803, %vm6804
      %v6806 = vld [vmem:[#allocation2] sm:$0x8]
      %v6807 = vsel %vm6805, 0, %v6806
      %6808 = vst [vmem:[#allocation2] sm:$0x8] %v6807
      %v6809 = vld [vmem:[#allocation2 + $0x10] sm:$0x8]
      %v6810 = vsel %vm6805, 0, %v6809
      %6811 = vst [vmem:[#allocation2 + $0x10] sm:$0x8] %v6810
      %v6812 = vld [vmem:[#allocation2 + $0x20] sm:$0x8]
      %v6813 = vsel %vm6805, 0, %v6812
      %6814 = vst [vmem:[#allocation2 + $0x20] sm:$0x8] %v6813
      %v6815 = vld [vmem:[#allocation2 + $0x30] sm:$0x8]
      %v6816 = vsel %vm6805, 0, %v6815
      %6817 = vst [vmem:[#allocation2 + $0x30] sm:$0x8] %v6816
      %v6818 = vld [vmem:[#allocation2 + $0x40] sm:$0x8]
      %v6819 = vsel %vm6805, 0, %v6818
      %6820 = vst [vmem:[#allocation2 + $0x40] sm:$0x8] %v6819
      %v6821 = vld [vmem:[#allocation2 + $0x50] sm:$0x8]
      %v6822 = vsel %vm6805, 0, %v6821
      %6823 = vst [vmem:[#allocation2 + $0x50] sm:$0x8] %v6822
      %v6824 = vld [vmem:[#allocation2 + $0x60] sm:$0x8]
      %v6825 = vsel %vm6805, 0, %v6824
      %6826 = vst [vmem:[#allocation2 + $0x60] sm:$0x8] %v6825
      %v6827 = vld [vmem:[#allocation2 + $0x70] sm:$0x8]
      %v6828 = vsel %vm6805, 0, %v6827
      %6829 = vst [vmem:[#allocation2 + $0x70] sm:$0x8] %v6828
      %v6830 = vld [vmem:[#allocation2 + $0x80] sm:$0x8]
      %v6831 = vsel %vm6805, 0, %v6830
      %6832 = vst [vmem:[#allocation2 + $0x80] sm:$0x8] %v6831
      %v6833 = vld [vmem:[#allocation2 + $0x90] sm:$0x8]
      %v6834 = vsel %vm6805, 0, %v6833
      %6835 = vst [vmem:[#allocation2 + $0x90] sm:$0x8] %v6834
      %v6836 = vld [vmem:[#allocation2 + $0xa0] sm:$0x8]
      %v6837 = vsel %vm6805, 0, %v6836
      %6838 = vst [vmem:[#allocation2 + $0xa0] sm:$0x8] %v6837
      %v6839 = vld [vmem:[#allocation2 + $0xb0] sm:$0x8]
      %v6840 = vsel %vm6805, 0, %v6839
      %6841 = vst [vmem:[#allocation2 + $0xb0] sm:$0x8] %v6840
      %v6842 = vld [vmem:[#allocation2 + $0xc0] sm:$0x8]
      %v6843 = vsel %vm6805, 0, %v6842
      %6844 = vst [vmem:[#allocation2 + $0xc0] sm:$0x8] %v6843
      %v6845 = vld [vmem:[#allocation2 + $0xd0] sm:$0x8]
      %v6846 = vsel %vm6805, 0, %v6845
      %6847 = vst [vmem:[#allocation2 + $0xd0] sm:$0x8] %v6846
      %v6848 = vld [vmem:[#allocation2 + $0xe0] sm:$0x8]
      %v6849 = vsel %vm6805, 0, %v6848
      %6850 = vst [vmem:[#allocation2 + $0xe0] sm:$0x8] %v6849
      %v6851 = vld [vmem:[#allocation2 + $0xf0] sm:$0x8]
      %v6852 = vsel %vm6805, 0, %v6851
      %6853 = vst [vmem:[#allocation2 + $0xf0] sm:$0x8] %v6852
      %v6854 = vld [vmem:[#allocation2 + $0x100] sm:$0x8]
      %v6855 = vsel %vm6805, 0, %v6854
      %6856 = vst [vmem:[#allocation2 + $0x100] sm:$0x8] %v6855
      %v6857 = vld [vmem:[#allocation2 + $0x110] sm:$0x8]
      %v6858 = vsel %vm6805, 0, %v6857
      %6859 = vst [vmem:[#allocation2 + $0x110] sm:$0x8] %v6858
      %vm6860 = vcmask 1040384
      %vm6861 = vsmask.f32 256
      %vm6862 = vmand %vm6860, %vm6861
      %v6863 = vld [vmem:[#allocation2 + $0xc] sm:$0x1]
      %v6864 = vsel %vm6862, 0, %v6863
      %6865 = vst [vmem:[#allocation2 + $0xc] sm:$0x1] %v6864
      %v6866 = vld [vmem:[#allocation2 + $0x1c] sm:$0x1]
      %v6867 = vsel %vm6862, 0, %v6866
      %6868 = vst [vmem:[#allocation2 + $0x1c] sm:$0x1] %v6867
      %v6869 = vld [vmem:[#allocation2 + $0x2c] sm:$0x1]
      %v6870 = vsel %vm6862, 0, %v6869
      %6871 = vst [vmem:[#allocation2 + $0x2c] sm:$0x1] %v6870
      %v6872 = vld [vmem:[#allocation2 + $0x3c] sm:$0x1]
      %v6873 = vsel %vm6862, 0, %v6872
      %6874 = vst [vmem:[#allocation2 + $0x3c] sm:$0x1] %v6873
      %v6875 = vld [vmem:[#allocation2 + $0x4c] sm:$0x1]
      %v6876 = vsel %vm6862, 0, %v6875
      %6877 = vst [vmem:[#allocation2 + $0x4c] sm:$0x1] %v6876
      %v6878 = vld [vmem:[#allocation2 + $0x5c] sm:$0x1]
      %v6879 = vsel %vm6862, 0, %v6878
      %6880 = vst [vmem:[#allocation2 + $0x5c] sm:$0x1] %v6879
      %v6881 = vld [vmem:[#allocation2 + $0x6c] sm:$0x1]
      %v6882 = vsel %vm6862, 0, %v6881
      %6883 = vst [vmem:[#allocation2 + $0x6c] sm:$0x1] %v6882
      %v6884 = vld [vmem:[#allocation2 + $0x7c] sm:$0x1]
      %v6885 = vsel %vm6862, 0, %v6884
      %6886 = vst [vmem:[#allocation2 + $0x7c] sm:$0x1] %v6885
      %v6887 = vld [vmem:[#allocation2 + $0x8c] sm:$0x1]
      %v6888 = vsel %vm6862, 0, %v6887
      %6889 = vst [vmem:[#allocation2 + $0x8c] sm:$0x1] %v6888
      %v6890 = vld [vmem:[#allocation2 + $0x9c] sm:$0x1]
      %v6891 = vsel %vm6862, 0, %v6890
      %6892 = vst [vmem:[#allocation2 + $0x9c] sm:$0x1] %v6891
      %v6893 = vld [vmem:[#allocation2 + $0xac] sm:$0x1]
      %v6894 = vsel %vm6862, 0, %v6893
      %6895 = vst [vmem:[#allocation2 + $0xac] sm:$0x1] %v6894
      %v6896 = vld [vmem:[#allocation2 + $0xbc] sm:$0x1]
      %v6897 = vsel %vm6862, 0, %v6896
      %6898 = vst [vmem:[#allocation2 + $0xbc] sm:$0x1] %v6897
      %v6899 = vld [vmem:[#allocation2 + $0xcc] sm:$0x1]
      %v6900 = vsel %vm6862, 0, %v6899
      %6901 = vst [vmem:[#allocation2 + $0xcc] sm:$0x1] %v6900
      %v6902 = vld [vmem:[#allocation2 + $0xdc] sm:$0x1]
      %v6903 = vsel %vm6862, 0, %v6902
      %6904 = vst [vmem:[#allocation2 + $0xdc] sm:$0x1] %v6903
      %v6905 = vld [vmem:[#allocation2 + $0xec] sm:$0x1]
      %v6906 = vsel %vm6862, 0, %v6905
      %6907 = vst [vmem:[#allocation2 + $0xec] sm:$0x1] %v6906
      %v6908 = vld [vmem:[#allocation2 + $0xfc] sm:$0x1]
      %v6909 = vsel %vm6862, 0, %v6908
      %6910 = vst [vmem:[#allocation2 + $0xfc] sm:$0x1] %v6909
      %v6911 = vld [vmem:[#allocation2 + $0x10c] sm:$0x1]
      %v6912 = vsel %vm6862, 0, %v6911
      %6913 = vst [vmem:[#allocation2 + $0x10c] sm:$0x1] %v6912
      %v6914 = vld [vmem:[#allocation2 + $0x11c] sm:$0x1]
      %v6915 = vsel %vm6862, 0, %v6914
      %6916 = vst [vmem:[#allocation2 + $0x11c] sm:$0x1] %v6915
      %v6917 = vpack.c.bf16 %v6768, %v6767
      %v6918 = vpack.c.bf16 %v6770, %v6769
      %v6919 = vpack.c.bf16 %v6772, %v6771
      %v6920 = vpack.c.bf16 %v6774, %v6773
      %v6921 = vpack.c.bf16 %v6776, %v6775
      %v6922 = vpack.c.bf16 %v6778, %v6777
      %v6923 = vpack.c.bf16 %v6780, %v6779
      %v6924 = vpack.c.bf16 %v6782, %v6781
      %v6925 = vpack.c.bf16 %v6784, %v6783
      %v6926 = vpack.c.bf16 %v6786, %v6785
      %v6927 = vpack.c.bf16 %v6788, %v6787
      %v6928 = vpack.c.bf16 %v6790, %v6789
      %v6929 = vpack.c.bf16 %v6792, %v6791
      %v6930 = vpack.c.bf16 %v6794, %v6793
      %v6931 = vpack.c.bf16 %v6796, %v6795
      %v6932 = vpack.c.bf16 %v6798, %v6797
      %v6933 = vpack.c.bf16 %v6800, %v6799
      %v6934 = vpack.c.bf16 %v6802, %v6801
      %v6953 = vunpack.c.l.b16 %v6917
      %v6954 = vunpack.c.h.b16 %v6917
      %v6955 = vunpack.c.l.b16 %v6918
      %v6956 = vunpack.c.h.b16 %v6918
      %v6957 = vunpack.c.l.b16 %v6919
      %v6958 = vunpack.c.h.b16 %v6919
      %v6959 = vunpack.c.l.b16 %v6920
      %v6960 = vunpack.c.h.b16 %v6920
      %v6961 = vunpack.c.l.b16 %v6921
      %v6962 = vunpack.c.h.b16 %v6921
      %v6963 = vunpack.c.l.b16 %v6922
      %v6964 = vunpack.c.h.b16 %v6922
      %v6965 = vunpack.c.l.b16 %v6923
      %v6966 = vunpack.c.h.b16 %v6923
      %v6967 = vunpack.c.l.b16 %v6924
      %v6968 = vunpack.c.h.b16 %v6924
      %v6969 = vunpack.c.l.b16 %v6925
      %v6970 = vunpack.c.h.b16 %v6925
      %v6971 = vunpack.c.l.b16 %v6926
      %v6972 = vunpack.c.h.b16 %v6926
      %v6973 = vunpack.c.l.b16 %v6927
      %v6974 = vunpack.c.h.b16 %v6927
      %v6975 = vunpack.c.l.b16 %v6928
      %v6976 = vunpack.c.h.b16 %v6928
      %v6977 = vunpack.c.l.b16 %v6929
      %v6978 = vunpack.c.h.b16 %v6929
      %v6979 = vunpack.c.l.b16 %v6930
      %v6980 = vunpack.c.h.b16 %v6930
      %v6981 = vunpack.c.l.b16 %v6931
      %v6982 = vunpack.c.h.b16 %v6931
      %v6983 = vunpack.c.l.b16 %v6932
      %v6984 = vunpack.c.h.b16 %v6932
      %v6985 = vunpack.c.l.b16 %v6933
      %v6986 = vunpack.c.h.b16 %v6933
      %v6987 = vunpack.c.l.b16 %v6934
      %v6988 = vunpack.c.h.b16 %v6934
      %v6989 = vpack.c.b16 %v6953, %v6953
      %v6990 = vpack.c.b16 %v6954, %v6954
      %v6991 = vpack.c.b16 %v6955, %v6955
      %v6992 = vpack.c.b16 %v6956, %v6956
      %v6993 = vpack.c.b16 %v6957, %v6957
      %v6994 = vpack.c.b16 %v6958, %v6958
      %v6995 = vpack.c.b16 %v6959, %v6959
      %v6996 = vpack.c.b16 %v6960, %v6960
      %v6997 = vpack.c.b16 %v6961, %v6961
      %v6998 = vpack.c.b16 %v6962, %v6962
      %v6999 = vpack.c.b16 %v6963, %v6963
      %v7000 = vpack.c.b16 %v6964, %v6964
      %v7001 = vpack.c.b16 %v6965, %v6965
      %v7002 = vpack.c.b16 %v6966, %v6966
      %v7003 = vpack.c.b16 %v6967, %v6967
      %v7004 = vpack.c.b16 %v6968, %v6968
      %v7005 = vpack.c.b16 %v6969, %v6969
      %v7006 = vpack.c.b16 %v6970, %v6970
      %v7007 = vpack.c.b16 %v6971, %v6971
      %v7008 = vpack.c.b16 %v6972, %v6972
      %v7009 = vpack.c.b16 %v6973, %v6973
      %v7010 = vpack.c.b16 %v6974, %v6974
      %v7011 = vpack.c.b16 %v6975, %v6975
      %v7012 = vpack.c.b16 %v6976, %v6976
      %v7013 = vpack.c.b16 %v6977, %v6977
      %v7014 = vpack.c.b16 %v6978, %v6978
      %v7015 = vpack.c.b16 %v6979, %v6979
      %v7016 = vpack.c.b16 %v6980, %v6980
      %v7017 = vpack.c.b16 %v6981, %v6981
      %v7018 = vpack.c.b16 %v6982, %v6982
      %v7019 = vpack.c.b16 %v6983, %v6983
      %v7020 = vpack.c.b16 %v6984, %v6984
      %v7021 = vpack.c.b16 %v6985, %v6985
      %v7022 = vpack.c.b16 %v6986, %v6986
      %v7023 = vpack.c.b16 %v6987, %v6987
      %v7024 = vpack.c.b16 %v6988, %v6988
      %7061 = vst [vmem:[#allocation2 + $0x4] sm:$0xf] %v6989
      %7062 = vst [vmem:[#allocation2 + $0x8] sm:$0xf] %v6990
      %7063 = vst [vmem:[#allocation2 + $0x14] sm:$0xf] %v6991
      %7064 = vst [vmem:[#allocation2 + $0x18] sm:$0xf] %v6992
      %7065 = vst [vmem:[#allocation2 + $0x24] sm:$0xf] %v6993
      %7066 = vst [vmem:[#allocation2 + $0x28] sm:$0xf] %v6994
      %7067 = vst [vmem:[#allocation2 + $0x34] sm:$0xf] %v6995
      %7068 = vst [vmem:[#allocation2 + $0x38] sm:$0xf] %v6996
      %7069 = vst [vmem:[#allocation2 + $0x44] sm:$0xf] %v6997
      %7070 = vst [vmem:[#allocation2 + $0x48] sm:$0xf] %v6998
      %7071 = vst [vmem:[#allocation2 + $0x54] sm:$0xf] %v6999
      %7072 = vst [vmem:[#allocation2 + $0x58] sm:$0xf] %v7000
      %7073 = vst [vmem:[#allocation2 + $0x64] sm:$0xf] %v7001
      %7074 = vst [vmem:[#allocation2 + $0x68] sm:$0xf] %v7002
      %7075 = vst [vmem:[#allocation2 + $0x74] sm:$0xf] %v7003
      %7076 = vst [vmem:[#allocation2 + $0x78] sm:$0xf] %v7004
      %7077 = vst [vmem:[#allocation2 + $0x84] sm:$0xf] %v7005
      %7078 = vst [vmem:[#allocation2 + $0x88] sm:$0xf] %v7006
      %7079 = vst [vmem:[#allocation2 + $0x94] sm:$0xf] %v7007
      %7080 = vst [vmem:[#allocation2 + $0x98] sm:$0xf] %v7008
      %7081 = vst [vmem:[#allocation2 + $0xa4] sm:$0xf] %v7009
      %7082 = vst [vmem:[#allocation2 + $0xa8] sm:$0xf] %v7010
      %7083 = vst [vmem:[#allocation2 + $0xb4] sm:$0xf] %v7011
      %7084 = vst [vmem:[#allocation2 + $0xb8] sm:$0xf] %v7012
      %7085 = vst [vmem:[#allocation2 + $0xc4] sm:$0xf] %v7013
      %7086 = vst [vmem:[#allocation2 + $0xc8] sm:$0xf] %v7014
      %7087 = vst [vmem:[#allocation2 + $0xd4] sm:$0xf] %v7015
      %7088 = vst [vmem:[#allocation2 + $0xd8] sm:$0xf] %v7016
      %7089 = vst [vmem:[#allocation2 + $0xe4] sm:$0xf] %v7017
      %7090 = vst [vmem:[#allocation2 + $0xe8] sm:$0xf] %v7018
      %7091 = vst [vmem:[#allocation2 + $0xf4] sm:$0xf] %v7019
      %7092 = vst [vmem:[#allocation2 + $0xf8] sm:$0xf] %v7020
      %7093 = vst [vmem:[#allocation2 + $0x104] sm:$0xf] %v7021
      %7094 = vst [vmem:[#allocation2 + $0x108] sm:$0xf] %v7022
      %7095 = vst [vmem:[#allocation2 + $0x114] sm:$0xf] %v7023
      %7096 = vst [vmem:[#allocation2 + $0x118] sm:$0xf] %v7024
      %p7097 = scmp.eq.s32.totalorder %s22, 0
      // Predicated region
      $region45: #{basic_block_forward.1} parent=43 // pred_check
        %p7098 = pneg %p7097
      $region46: #{basic_block_forward.1} parent=43 // pred_check_branch
        %7100 = sbr.rel (%p7098) target = $region48
      $region47: #{basic_block_forward.1} parent=43 // pred_region
        %7101 = vst [vmem:[#allocation2] sm:$0xf] 0
        %7102 = vst [vmem:[#allocation2 + $0x4] sm:$0xf] 0
        %7103 = vst [vmem:[#allocation2 + $0x8] sm:$0xf] 0
        %v7104 = vld [vmem:[#allocation2 + $0xc] sm:$0x1]
        %v7105 = vsel %vm6862, 0, %v7104
        %7106 = vst [vmem:[#allocation2 + $0xc] sm:$0x1] %v7105
        %s7107 = scalar_lea.vmem [#allocation2], 272
        %7108 = vst [vmem:[%s7107] sm:$0xf] 0
        %7109 = vst [vmem:[%s7107 + $0x4] sm:$0xf] 0
        %7110 = vst [vmem:[%s7107 + $0x8] sm:$0xf] 0
        %v7111 = vld [vmem:[%s7107 + $0xc] sm:$0x1]
        %v7112 = vsel %vm6862, 0, %v7111
        %7113 = vst [vmem:[%s7107 + $0xc] sm:$0x1] %v7112
      $region48: #{basic_block_forward.1} parent=43 // pred_fallthru
        _
      %v7114 = vld [vmem:[#allocation2] sm:$0x8]
      %v7115 = vld [vmem:[#allocation2 + $0x4] sm:$0xf]
      %v7116 = vld [vmem:[#allocation2 + $0x8] sm:$0xf]
      %v7117 = vld [vmem:[#allocation2 + $0x10] sm:$0x8]
      %v7118 = vld [vmem:[#allocation2 + $0x14] sm:$0xf]
      %v7119 = vld [vmem:[#allocation2 + $0x18] sm:$0xf]
      %v7120 = vld [vmem:[#allocation2 + $0x20] sm:$0x8]
      %v7121 = vld [vmem:[#allocation2 + $0x24] sm:$0xf]
      %v7122 = vld [vmem:[#allocation2 + $0x28] sm:$0xf]
      %v7123 = vld [vmem:[#allocation2 + $0x30] sm:$0x8]
      %v7124 = vld [vmem:[#allocation2 + $0x34] sm:$0xf]
      %v7125 = vld [vmem:[#allocation2 + $0x38] sm:$0xf]
      %v7126 = vld [vmem:[#allocation2 + $0x40] sm:$0x8]
      %v7127 = vld [vmem:[#allocation2 + $0x44] sm:$0xf]
      %v7128 = vld [vmem:[#allocation2 + $0x48] sm:$0xf]
      %v7129 = vld [vmem:[#allocation2 + $0x50] sm:$0x8]
      %v7130 = vld [vmem:[#allocation2 + $0x54] sm:$0xf]
      %v7131 = vld [vmem:[#allocation2 + $0x58] sm:$0xf]
      %v7132 = vld [vmem:[#allocation2 + $0x60] sm:$0x8]
      %v7133 = vld [vmem:[#allocation2 + $0x64] sm:$0xf]
      %v7134 = vld [vmem:[#allocation2 + $0x68] sm:$0xf]
      %v7135 = vld [vmem:[#allocation2 + $0x70] sm:$0x8]
      %v7136 = vld [vmem:[#allocation2 + $0x74] sm:$0xf]
      %v7137 = vld [vmem:[#allocation2 + $0x78] sm:$0xf]
      %v7138 = vld [vmem:[#allocation2 + $0x80] sm:$0x8]
      %v7139 = vld [vmem:[#allocation2 + $0x84] sm:$0xf]
      %v7140 = vld [vmem:[#allocation2 + $0x88] sm:$0xf]
      %v7141 = vld [vmem:[#allocation2 + $0x90] sm:$0x8]
      %v7142 = vld [vmem:[#allocation2 + $0x94] sm:$0xf]
      %v7143 = vld [vmem:[#allocation2 + $0x98] sm:$0xf]
      %v7144 = vld [vmem:[#allocation2 + $0xa0] sm:$0x8]
      %v7145 = vld [vmem:[#allocation2 + $0xa4] sm:$0xf]
      %v7146 = vld [vmem:[#allocation2 + $0xa8] sm:$0xf]
      %v7147 = vld [vmem:[#allocation2 + $0xb0] sm:$0x8]
      %v7148 = vld [vmem:[#allocation2 + $0xb4] sm:$0xf]
      %v7149 = vld [vmem:[#allocation2 + $0xb8] sm:$0xf]
      %v7150 = vld [vmem:[#allocation2 + $0xc0] sm:$0x8]
      %v7151 = vld [vmem:[#allocation2 + $0xc4] sm:$0xf]
      %v7152 = vld [vmem:[#allocation2 + $0xc8] sm:$0xf]
      %v7153 = vld [vmem:[#allocation2 + $0xd0] sm:$0x8]
      %v7154 = vld [vmem:[#allocation2 + $0xd4] sm:$0xf]
      %v7155 = vld [vmem:[#allocation2 + $0xd8] sm:$0xf]
      %v7156 = vld [vmem:[#allocation2 + $0xe0] sm:$0x8]
      %v7157 = vld [vmem:[#allocation2 + $0xe4] sm:$0xf]
      %v7158 = vld [vmem:[#allocation2 + $0xe8] sm:$0xf]
      %v7159 = vld [vmem:[#allocation2 + $0xf0] sm:$0x8]
      %v7160 = vld [vmem:[#allocation2 + $0xf4] sm:$0xf]
      %v7161 = vld [vmem:[#allocation2 + $0xf8] sm:$0xf]
      %vm7162 = vsmask.f32 4368
      %vm7163 = vmor %vm6861, %vm7162
      %v7165 = vshrl.u32 %v7114, 16
      %v7167 = vrot.slane %v7165, 7
      %v7168 = vrot.slane %v7167, 4
      %v7170 = vshrl.u32 %v7115, 16
      %v7172 = vrot.slane %v7170, 7
      %v7173 = vshll.u32 %v7115, 16
      %v7175 = vor.u32 %v7172, %v7173
      %v7176 = vsel %vm7163, %v7168, %v7175
      %v7177 = vrot.slane %v7172, 4
      %v7179 = vshrl.u32 %v7116, 16
      %v7181 = vrot.slane %v7179, 7
      %v7182 = vshll.u32 %v7116, 16
      %v7184 = vor.u32 %v7181, %v7182
      %v7185 = vsel %vm7163, %v7177, %v7184
      %v7187 = vshrl.u32 %v7117, 16
      %v7189 = vrot.slane %v7187, 7
      %v7190 = vrot.slane %v7189, 4
      %v7192 = vshrl.u32 %v7118, 16
      %v7194 = vrot.slane %v7192, 7
      %v7195 = vshll.u32 %v7118, 16
      %v7197 = vor.u32 %v7194, %v7195
      %v7198 = vsel %vm7163, %v7190, %v7197
      %v7199 = vrot.slane %v7194, 4
      %v7201 = vshrl.u32 %v7119, 16
      %v7203 = vrot.slane %v7201, 7
      %v7204 = vshll.u32 %v7119, 16
      %v7206 = vor.u32 %v7203, %v7204
      %v7207 = vsel %vm7163, %v7199, %v7206
      %v7209 = vshrl.u32 %v7120, 16
      %v7211 = vrot.slane %v7209, 7
      %v7212 = vrot.slane %v7211, 4
      %v7214 = vshrl.u32 %v7121, 16
      %v7216 = vrot.slane %v7214, 7
      %v7217 = vshll.u32 %v7121, 16
      %v7219 = vor.u32 %v7216, %v7217
      %v7220 = vsel %vm7163, %v7212, %v7219
      %v7221 = vrot.slane %v7216, 4
      %v7223 = vshrl.u32 %v7122, 16
      %v7225 = vrot.slane %v7223, 7
      %v7226 = vshll.u32 %v7122, 16
      %v7228 = vor.u32 %v7225, %v7226
      %v7229 = vsel %vm7163, %v7221, %v7228
      %v7231 = vshrl.u32 %v7123, 16
      %v7233 = vrot.slane %v7231, 7
      %v7234 = vrot.slane %v7233, 4
      %v7236 = vshrl.u32 %v7124, 16
      %v7238 = vrot.slane %v7236, 7
      %v7239 = vshll.u32 %v7124, 16
      %v7241 = vor.u32 %v7238, %v7239
      %v7242 = vsel %vm7163, %v7234, %v7241
      %v7243 = vrot.slane %v7238, 4
      %v7245 = vshrl.u32 %v7125, 16
      %v7247 = vrot.slane %v7245, 7
      %v7248 = vshll.u32 %v7125, 16
      %v7250 = vor.u32 %v7247, %v7248
      %v7251 = vsel %vm7163, %v7243, %v7250
      %v7253 = vshrl.u32 %v7126, 16
      %v7255 = vrot.slane %v7253, 7
      %v7256 = vrot.slane %v7255, 4
      %v7258 = vshrl.u32 %v7127, 16
      %v7260 = vrot.slane %v7258, 7
      %v7261 = vshll.u32 %v7127, 16
      %v7263 = vor.u32 %v7260, %v7261
      %v7264 = vsel %vm7163, %v7256, %v7263
      %v7265 = vrot.slane %v7260, 4
      %v7267 = vshrl.u32 %v7128, 16
      %v7269 = vrot.slane %v7267, 7
      %v7270 = vshll.u32 %v7128, 16
      %v7272 = vor.u32 %v7269, %v7270
      %v7273 = vsel %vm7163, %v7265, %v7272
      %v7275 = vshrl.u32 %v7129, 16
      %v7277 = vrot.slane %v7275, 7
      %v7278 = vrot.slane %v7277, 4
      %v7280 = vshrl.u32 %v7130, 16
      %v7282 = vrot.slane %v7280, 7
      %v7283 = vshll.u32 %v7130, 16
      %v7285 = vor.u32 %v7282, %v7283
      %v7286 = vsel %vm7163, %v7278, %v7285
      %v7287 = vrot.slane %v7282, 4
      %v7289 = vshrl.u32 %v7131, 16
      %v7291 = vrot.slane %v7289, 7
      %v7292 = vshll.u32 %v7131, 16
      %v7294 = vor.u32 %v7291, %v7292
      %v7295 = vsel %vm7163, %v7287, %v7294
      %v7297 = vshrl.u32 %v7132, 16
      %v7299 = vrot.slane %v7297, 7
      %v7300 = vrot.slane %v7299, 4
      %v7302 = vshrl.u32 %v7133, 16
      %v7304 = vrot.slane %v7302, 7
      %v7305 = vshll.u32 %v7133, 16
      %v7307 = vor.u32 %v7304, %v7305
      %v7308 = vsel %vm7163, %v7300, %v7307
      %v7309 = vrot.slane %v7304, 4
      %v7311 = vshrl.u32 %v7134, 16
      %v7313 = vrot.slane %v7311, 7
      %v7314 = vshll.u32 %v7134, 16
      %v7316 = vor.u32 %v7313, %v7314
      %v7317 = vsel %vm7163, %v7309, %v7316
      %v7319 = vshrl.u32 %v7135, 16
      %v7321 = vrot.slane %v7319, 7
      %v7322 = vrot.slane %v7321, 4
      %v7324 = vshrl.u32 %v7136, 16
      %v7326 = vrot.slane %v7324, 7
      %v7327 = vshll.u32 %v7136, 16
      %v7329 = vor.u32 %v7326, %v7327
      %v7330 = vsel %vm7163, %v7322, %v7329
      %v7331 = vrot.slane %v7326, 4
      %v7333 = vshrl.u32 %v7137, 16
      %v7335 = vrot.slane %v7333, 7
      %v7336 = vshll.u32 %v7137, 16
      %v7338 = vor.u32 %v7335, %v7336
      %v7339 = vsel %vm7163, %v7331, %v7338
      %v7341 = vshrl.u32 %v7138, 16
      %v7343 = vrot.slane %v7341, 7
      %v7344 = vrot.slane %v7343, 4
      %v7346 = vshrl.u32 %v7139, 16
      %v7348 = vrot.slane %v7346, 7
      %v7349 = vshll.u32 %v7139, 16
      %v7351 = vor.u32 %v7348, %v7349
      %v7352 = vsel %vm7163, %v7344, %v7351
      %v7353 = vrot.slane %v7348, 4
      %v7355 = vshrl.u32 %v7140, 16
      %v7357 = vrot.slane %v7355, 7
      %v7358 = vshll.u32 %v7140, 16
      %v7360 = vor.u32 %v7357, %v7358
      %v7361 = vsel %vm7163, %v7353, %v7360
      %v7363 = vshrl.u32 %v7141, 16
      %v7365 = vrot.slane %v7363, 7
      %v7366 = vrot.slane %v7365, 4
      %v7368 = vshrl.u32 %v7142, 16
      %v7370 = vrot.slane %v7368, 7
      %v7371 = vshll.u32 %v7142, 16
      %v7373 = vor.u32 %v7370, %v7371
      %v7374 = vsel %vm7163, %v7366, %v7373
      %v7375 = vrot.slane %v7370, 4
      %v7377 = vshrl.u32 %v7143, 16
      %v7379 = vrot.slane %v7377, 7
      %v7380 = vshll.u32 %v7143, 16
      %v7382 = vor.u32 %v7379, %v7380
      %v7383 = vsel %vm7163, %v7375, %v7382
      %v7385 = vshrl.u32 %v7144, 16
      %v7387 = vrot.slane %v7385, 7
      %v7388 = vrot.slane %v7387, 4
      %v7390 = vshrl.u32 %v7145, 16
      %v7392 = vrot.slane %v7390, 7
      %v7393 = vshll.u32 %v7145, 16
      %v7395 = vor.u32 %v7392, %v7393
      %v7396 = vsel %vm7163, %v7388, %v7395
      %v7397 = vrot.slane %v7392, 4
      %v7399 = vshrl.u32 %v7146, 16
      %v7401 = vrot.slane %v7399, 7
      %v7402 = vshll.u32 %v7146, 16
      %v7404 = vor.u32 %v7401, %v7402
      %v7405 = vsel %vm7163, %v7397, %v7404
      %v7407 = vshrl.u32 %v7147, 16
      %v7409 = vrot.slane %v7407, 7
      %v7410 = vrot.slane %v7409, 4
      %v7412 = vshrl.u32 %v7148, 16
      %v7414 = vrot.slane %v7412, 7
      %v7415 = vshll.u32 %v7148, 16
      %v7417 = vor.u32 %v7414, %v7415
      %v7418 = vsel %vm7163, %v7410, %v7417
      %v7419 = vrot.slane %v7414, 4
      %v7421 = vshrl.u32 %v7149, 16
      %v7423 = vrot.slane %v7421, 7
      %v7424 = vshll.u32 %v7149, 16
      %v7426 = vor.u32 %v7423, %v7424
      %v7427 = vsel %vm7163, %v7419, %v7426
      %v7429 = vshrl.u32 %v7150, 16
      %v7431 = vrot.slane %v7429, 7
      %v7432 = vrot.slane %v7431, 4
      %v7434 = vshrl.u32 %v7151, 16
      %v7436 = vrot.slane %v7434, 7
      %v7437 = vshll.u32 %v7151, 16
      %v7439 = vor.u32 %v7436, %v7437
      %v7440 = vsel %vm7163, %v7432, %v7439
      %v7441 = vrot.slane %v7436, 4
      %v7443 = vshrl.u32 %v7152, 16
      %v7445 = vrot.slane %v7443, 7
      %v7446 = vshll.u32 %v7152, 16
      %v7448 = vor.u32 %v7445, %v7446
      %v7449 = vsel %vm7163, %v7441, %v7448
      %v7451 = vshrl.u32 %v7153, 16
      %v7453 = vrot.slane %v7451, 7
      %v7454 = vrot.slane %v7453, 4
      %v7456 = vshrl.u32 %v7154, 16
      %v7458 = vrot.slane %v7456, 7
      %v7459 = vshll.u32 %v7154, 16
      %v7461 = vor.u32 %v7458, %v7459
      %v7462 = vsel %vm7163, %v7454, %v7461
      %v7463 = vrot.slane %v7458, 4
      %v7465 = vshrl.u32 %v7155, 16
      %v7467 = vrot.slane %v7465, 7
      %v7468 = vshll.u32 %v7155, 16
      %v7470 = vor.u32 %v7467, %v7468
      %v7471 = vsel %vm7163, %v7463, %v7470
      %v7473 = vshrl.u32 %v7156, 16
      %v7475 = vrot.slane %v7473, 7
      %v7476 = vrot.slane %v7475, 4
      %v7478 = vshrl.u32 %v7157, 16
      %v7480 = vrot.slane %v7478, 7
      %v7481 = vshll.u32 %v7157, 16
      %v7483 = vor.u32 %v7480, %v7481
      %v7484 = vsel %vm7163, %v7476, %v7483
      %v7485 = vrot.slane %v7480, 4
      %v7487 = vshrl.u32 %v7158, 16
      %v7489 = vrot.slane %v7487, 7
      %v7490 = vshll.u32 %v7158, 16
      %v7492 = vor.u32 %v7489, %v7490
      %v7493 = vsel %vm7163, %v7485, %v7492
      %v7495 = vshrl.u32 %v7159, 16
      %v7497 = vrot.slane %v7495, 7
      %v7498 = vrot.slane %v7497, 4
      %v7500 = vshrl.u32 %v7160, 16
      %v7502 = vrot.slane %v7500, 7
      %v7503 = vshll.u32 %v7160, 16
      %v7505 = vor.u32 %v7502, %v7503
      %v7506 = vsel %vm7163, %v7498, %v7505
      %v7507 = vrot.slane %v7502, 4
      %v7509 = vshrl.u32 %v7161, 16
      %v7511 = vrot.slane %v7509, 7
      %v7512 = vshll.u32 %v7161, 16
      %v7514 = vor.u32 %v7511, %v7512
      %v7515 = vsel %vm7163, %v7507, %v7514
      %v7516 = vld [vmem:[%s3] sm:$0xf]
      %v7517 = vld [vmem:[%s3 + $0x4] sm:$0xf]
      %v7518 = vld [vmem:[%s3 + $0x8] sm:$0xf]
      %v7519 = vld [vmem:[%s3 + $0xc] sm:$0xf]
      %v7520 = vld [vmem:[%s3 + $0x10] sm:$0xf]
      %v7521 = vld [vmem:[%s3 + $0x14] sm:$0xf]
      %v7522 = vld [vmem:[%s3 + $0x18] sm:$0xf]
      %v7523 = vld [vmem:[%s3 + $0x1c] sm:$0xf]
      %v7524 = vld [vmem:[%s3 + $0x20] sm:$0xf]
      %v7525 = vld [vmem:[%s3 + $0x24] sm:$0xf]
      %v7526 = vld [vmem:[%s3 + $0x28] sm:$0xf]
      %v7527 = vld [vmem:[%s3 + $0x2c] sm:$0xf]
      %v7528 = vld [vmem:[%s3 + $0x30] sm:$0xf]
      %v7529 = vld [vmem:[%s3 + $0x34] sm:$0xf]
      %v7530 = vld [vmem:[%s3 + $0x38] sm:$0xf]
      %v7531 = vld [vmem:[%s3 + $0x3c] sm:$0xf]
      %s7532 = scalar_lea.vmem %s3, 64
      %v7533 = vld [vmem:[%s7532] sm:$0xf]
      %v7534 = vld [vmem:[%s7532 + $0x4] sm:$0xf]
      %v7535 = vld [vmem:[%s7532 + $0x8] sm:$0xf]
      %v7536 = vld [vmem:[%s7532 + $0xc] sm:$0xf]
      %v7537 = vld [vmem:[%s7532 + $0x10] sm:$0xf]
      %v7538 = vld [vmem:[%s7532 + $0x14] sm:$0xf]
      %v7539 = vld [vmem:[%s7532 + $0x18] sm:$0xf]
      %v7540 = vld [vmem:[%s7532 + $0x1c] sm:$0xf]
      %v7541 = vld [vmem:[%s7532 + $0x20] sm:$0xf]
      %v7542 = vld [vmem:[%s7532 + $0x24] sm:$0xf]
      %v7543 = vld [vmem:[%s7532 + $0x28] sm:$0xf]
      %v7544 = vld [vmem:[%s7532 + $0x2c] sm:$0xf]
      %v7545 = vld [vmem:[%s7532 + $0x30] sm:$0xf]
      %v7546 = vld [vmem:[%s7532 + $0x34] sm:$0xf]
      %v7547 = vld [vmem:[%s7532 + $0x38] sm:$0xf]
      %v7548 = vld [vmem:[%s7532 + $0x3c] sm:$0xf]
      %v7581 = vunpack.c.l.b16 %v7115
      %v7582 = vunpack.c.l.b16 %v7116
      %v7583 = vunpack.c.l.b16 %v7118
      %v7584 = vunpack.c.l.b16 %v7119
      %v7585 = vunpack.c.l.b16 %v7121
      %v7586 = vunpack.c.l.b16 %v7122
      %v7587 = vunpack.c.l.b16 %v7124
      %v7588 = vunpack.c.l.b16 %v7125
      %v7589 = vunpack.c.l.b16 %v7127
      %v7590 = vunpack.c.l.b16 %v7128
      %v7591 = vunpack.c.l.b16 %v7130
      %v7592 = vunpack.c.l.b16 %v7131
      %v7593 = vunpack.c.l.b16 %v7133
      %v7594 = vunpack.c.l.b16 %v7134
      %v7595 = vunpack.c.l.b16 %v7136
      %v7596 = vunpack.c.l.b16 %v7137
      %v7597 = vunpack.c.l.b16 %v7139
      %v7598 = vunpack.c.l.b16 %v7140
      %v7599 = vunpack.c.l.b16 %v7142
      %v7600 = vunpack.c.l.b16 %v7143
      %v7601 = vunpack.c.l.b16 %v7145
      %v7602 = vunpack.c.l.b16 %v7146
      %v7603 = vunpack.c.l.b16 %v7148
      %v7604 = vunpack.c.l.b16 %v7149
      %v7605 = vunpack.c.l.b16 %v7151
      %v7606 = vunpack.c.l.b16 %v7152
      %v7607 = vunpack.c.l.b16 %v7154
      %v7608 = vunpack.c.l.b16 %v7155
      %v7609 = vunpack.c.l.b16 %v7157
      %v7610 = vunpack.c.l.b16 %v7158
      %v7611 = vunpack.c.l.b16 %v7160
      %v7612 = vunpack.c.l.b16 %v7161
      %v7613 = vpack.c.b16 %v7582, %v7581
      %v7614 = vpack.c.b16 %v7584, %v7583
      %v7615 = vpack.c.b16 %v7586, %v7585
      %v7616 = vpack.c.b16 %v7588, %v7587
      %v7617 = vpack.c.b16 %v7590, %v7589
      %v7618 = vpack.c.b16 %v7592, %v7591
      %v7619 = vpack.c.b16 %v7594, %v7593
      %v7620 = vpack.c.b16 %v7596, %v7595
      %v7621 = vpack.c.b16 %v7598, %v7597
      %v7622 = vpack.c.b16 %v7600, %v7599
      %v7623 = vpack.c.b16 %v7602, %v7601
      %v7624 = vpack.c.b16 %v7604, %v7603
      %v7625 = vpack.c.b16 %v7606, %v7605
      %v7626 = vpack.c.b16 %v7608, %v7607
      %v7627 = vpack.c.b16 %v7610, %v7609
      %v7628 = vpack.c.b16 %v7612, %v7611
      %v7661 = vunpack.c.l.b16 %v7533
      %v7662 = vunpack.c.l.b16 %v7534
      %v7663 = vunpack.c.l.b16 %v7535
      %v7664 = vunpack.c.l.b16 %v7536
      %v7665 = vunpack.c.l.b16 %v7537
      %v7666 = vunpack.c.l.b16 %v7538
      %v7667 = vunpack.c.l.b16 %v7539
      %v7668 = vunpack.c.l.b16 %v7540
      %v7669 = vunpack.c.l.b16 %v7541
      %v7670 = vunpack.c.l.b16 %v7542
      %v7671 = vunpack.c.l.b16 %v7543
      %v7672 = vunpack.c.l.b16 %v7544
      %v7673 = vunpack.c.l.b16 %v7545
      %v7674 = vunpack.c.l.b16 %v7546
      %v7675 = vunpack.c.l.b16 %v7547
      %v7676 = vunpack.c.l.b16 %v7548
      %v7677 = vpack.c.b16 %v7662, %v7661
      %v7678 = vpack.c.b16 %v7664, %v7663
      %v7679 = vpack.c.b16 %v7666, %v7665
      %v7680 = vpack.c.b16 %v7668, %v7667
      %v7681 = vpack.c.b16 %v7670, %v7669
      %v7682 = vpack.c.b16 %v7672, %v7671
      %v7683 = vpack.c.b16 %v7674, %v7673
      %v7684 = vpack.c.b16 %v7676, %v7675
      %7693 = vmatprep.subr.bf16.mxu0 0
      %7694 = vmatpush1.bf16.msra.mxu0 %v7677
      %7695 = vmatprep.subr.bf16.mxu0 0
      %7696 = vmatpush1.bf16.msra.mxu0 %v7678
      %7697 = vmatprep.subr.bf16.mxu0 0
      %7698 = vmatpush1.bf16.msra.mxu0 %v7679
      %7699 = vmatprep.subr.bf16.mxu0 0
      %7700 = vmatpush1.bf16.msra.mxu0 %v7680
      %7701 = vmatprep.subr.bf16.mxu0 0
      %7702 = vmatpush1.bf16.msra.mxu0 %v7681
      %7703 = vmatprep.subr.bf16.mxu0 0
      %7704 = vmatpush1.bf16.msra.mxu0 %v7682
      %7705 = vmatprep.subr.bf16.mxu0 0
      %7706 = vmatpush1.bf16.msra.mxu0 %v7683
      %7707 = vmatprep.subr.bf16.mxu0 0
      %7708 = vmatpush1.bf16.msra.mxu0 %v7684
      %7709 = vmatprep.subr.bf16.mxu0 0
      %7710 = vmatpush1.bf16.msra.mxu0 0
      %7711 = vmatprep.subr.bf16.mxu0 0
      %7712 = vmatpush1.bf16.msra.mxu0 0
      %7713 = vmatprep.subr.bf16.mxu0 0
      %7714 = vmatpush1.bf16.msra.mxu0 0
      %7715 = vmatprep.subr.bf16.mxu0 0
      %7716 = vmatpush1.bf16.msra.mxu0 0
      %7717 = vmatprep.subr.bf16.mxu0 0
      %7718 = vmatpush1.bf16.msra.mxu0 0
      %7719 = vmatprep.subr.bf16.mxu0 0
      %7720 = vmatpush1.bf16.msra.mxu0 0
      %7721 = vmatprep.subr.bf16.mxu0 0
      %7722 = vmatpush1.bf16.msra.mxu0 0
      %7723 = vmatprep.subr.bf16.mxu0 0
      %7724 = vmatpush1.bf16.msra.mxu0 0
      %7725 = vmatprep.mubr.bf16.mxu0 0
      %7726 = vmatmul.mubr.bf16.gmra.mrb[0].mxu0 %v7613
      %v7727 = vpop.f32.mrb[0].mxu0
      %v7728 = vadd.f32 0.0, %v7727
      %v7729 = vpop.f32.mrb[0].mxu0
      %v7730 = vpop.f32.mrb[0].mxu0
      %v7731 = vadd.f32 0.0, %v7730
      %v7732 = vpop.f32.mrb[0].mxu0
      %7733 = vmatprep.mubr.bf16.mxu0 0
      %7734 = vmatmul.mubr.bf16.gmra.mrb[0].mxu0 %v7614
      %v7735 = vpop.f32.mrb[0].mxu0
      %v7736 = vadd.f32 0.0, %v7735
      %v7737 = vpop.f32.mrb[0].mxu0
      %v7738 = vpop.f32.mrb[0].mxu0
      %v7739 = vadd.f32 0.0, %v7738
      %v7740 = vpop.f32.mrb[0].mxu0
      %7741 = vmatprep.mubr.bf16.mxu0 0
      %7742 = vmatmul.mubr.bf16.gmra.mrb[0].mxu0 %v7615
      %v7743 = vpop.f32.mrb[0].mxu0
      %v7744 = vadd.f32 0.0, %v7743
      %v7745 = vpop.f32.mrb[0].mxu0
      %v7746 = vpop.f32.mrb[0].mxu0
      %v7747 = vadd.f32 0.0, %v7746
      %v7748 = vpop.f32.mrb[0].mxu0
      %7749 = vmatprep.mubr.bf16.mxu0 0
      %7750 = vmatmul.mubr.bf16.gmra.mrb[0].mxu0 %v7616
      %v7751 = vpop.f32.mrb[0].mxu0
      %v7752 = vadd.f32 0.0, %v7751
      %v7753 = vpop.f32.mrb[0].mxu0
      %v7754 = vpop.f32.mrb[0].mxu0
      %v7755 = vadd.f32 0.0, %v7754
      %v7756 = vpop.f32.mrb[0].mxu0
      %7757 = vmatprep.mubr.bf16.mxu0 0
      %7758 = vmatmul.mubr.bf16.gmra.mrb[0].mxu0 %v7617
      %v7759 = vpop.f32.mrb[0].mxu0
      %v7760 = vadd.f32 0.0, %v7759
      %v7761 = vpop.f32.mrb[0].mxu0
      %v7762 = vpop.f32.mrb[0].mxu0
      %v7763 = vadd.f32 0.0, %v7762
      %v7764 = vpop.f32.mrb[0].mxu0
      %7765 = vmatprep.mubr.bf16.mxu0 0
      %7766 = vmatmul.mubr.bf16.gmra.mrb[0].mxu0 %v7618
      %v7767 = vpop.f32.mrb[0].mxu0
      %v7768 = vadd.f32 0.0, %v7767
      %v7769 = vpop.f32.mrb[0].mxu0
      %v7770 = vpop.f32.mrb[0].mxu0
      %v7771 = vadd.f32 0.0, %v7770
      %v7772 = vpop.f32.mrb[0].mxu0
      %7773 = vmatprep.mubr.bf16.mxu0 0
      %7774 = vmatmul.mubr.bf16.gmra.mrb[0].mxu0 %v7619
      %v7775 = vpop.f32.mrb[0].mxu0
      %v7776 = vadd.f32 0.0, %v7775
      %v7777 = vpop.f32.mrb[0].mxu0
      %v7778 = vpop.f32.mrb[0].mxu0
      %v7779 = vadd.f32 0.0, %v7778
      %v7780 = vpop.f32.mrb[0].mxu0
      %7781 = vmatprep.mubr.bf16.mxu0 0
      %7782 = vmatmul.mubr.bf16.gmra.mrb[0].mxu0 %v7620
      %v7783 = vpop.f32.mrb[0].mxu0
      %v7784 = vadd.f32 0.0, %v7783
      %v7785 = vpop.f32.mrb[0].mxu0
      %v7786 = vpop.f32.mrb[0].mxu0
      %v7787 = vadd.f32 0.0, %v7786
      %v7788 = vpop.f32.mrb[0].mxu0
      %7789 = vmatprep.mubr.bf16.mxu0 0
      %7790 = vmatmul.mubr.bf16.gmra.mrb[0].mxu0 %v7621
      %v7791 = vpop.f32.mrb[0].mxu0
      %v7792 = vadd.f32 0.0, %v7791
      %v7793 = vpop.f32.mrb[0].mxu0
      %v7794 = vpop.f32.mrb[0].mxu0
      %v7795 = vadd.f32 0.0, %v7794
      %v7796 = vpop.f32.mrb[0].mxu0
      %7797 = vmatprep.mubr.bf16.mxu0 0
      %7798 = vmatmul.mubr.bf16.gmra.mrb[0].mxu0 %v7622
      %v7799 = vpop.f32.mrb[0].mxu0
      %v7800 = vadd.f32 0.0, %v7799
      %v7801 = vpop.f32.mrb[0].mxu0
      %v7802 = vpop.f32.mrb[0].mxu0
      %v7803 = vadd.f32 0.0, %v7802
      %v7804 = vpop.f32.mrb[0].mxu0
      %7805 = vmatprep.mubr.bf16.mxu0 0
      %7806 = vmatmul.mubr.bf16.gmra.mrb[0].mxu0 %v7623
      %v7807 = vpop.f32.mrb[0].mxu0
      %v7808 = vadd.f32 0.0, %v7807
      %v7809 = vpop.f32.mrb[0].mxu0
      %v7810 = vpop.f32.mrb[0].mxu0
      %v7811 = vadd.f32 0.0, %v7810
      %v7812 = vpop.f32.mrb[0].mxu0
      %7813 = vmatprep.mubr.bf16.mxu0 0
      %7814 = vmatmul.mubr.bf16.gmra.mrb[0].mxu0 %v7624
      %v7815 = vpop.f32.mrb[0].mxu0
      %v7816 = vadd.f32 0.0, %v7815
      %v7817 = vpop.f32.mrb[0].mxu0
      %v7818 = vpop.f32.mrb[0].mxu0
      %v7819 = vadd.f32 0.0, %v7818
      %v7820 = vpop.f32.mrb[0].mxu0
      %7821 = vmatprep.mubr.bf16.mxu0 0
      %7822 = vmatmul.mubr.bf16.gmra.mrb[0].mxu0 %v7625
      %v7823 = vpop.f32.mrb[0].mxu0
      %v7824 = vadd.f32 0.0, %v7823
      %v7825 = vpop.f32.mrb[0].mxu0
      %v7826 = vpop.f32.mrb[0].mxu0
      %v7827 = vadd.f32 0.0, %v7826
      %v7828 = vpop.f32.mrb[0].mxu0
      %7829 = vmatprep.mubr.bf16.mxu0 0
      %7830 = vmatmul.mubr.bf16.gmra.mrb[0].mxu0 %v7626
      %v7831 = vpop.f32.mrb[0].mxu0
      %v7832 = vadd.f32 0.0, %v7831
      %v7833 = vpop.f32.mrb[0].mxu0
      %v7834 = vpop.f32.mrb[0].mxu0
      %v7835 = vadd.f32 0.0, %v7834
      %v7836 = vpop.f32.mrb[0].mxu0
      %7837 = vmatprep.mubr.bf16.mxu0 0
      %7838 = vmatmul.mubr.bf16.gmra.mrb[0].mxu0 %v7627
      %v7839 = vpop.f32.mrb[0].mxu0
      %v7840 = vadd.f32 0.0, %v7839
      %v7841 = vpop.f32.mrb[0].mxu0
      %v7842 = vpop.f32.mrb[0].mxu0
      %v7843 = vadd.f32 0.0, %v7842
      %v7844 = vpop.f32.mrb[0].mxu0
      %7845 = vmatprep.mubr.bf16.mxu0 0
      %7846 = vmatmul.mubr.bf16.gmra.mrb[0].mxu0 %v7628
      %v7847 = vpop.f32.mrb[0].mxu0
      %v7848 = vadd.f32 0.0, %v7847
      %v7849 = vpop.f32.mrb[0].mxu0
      %v7850 = vpop.f32.mrb[0].mxu0
      %v7851 = vadd.f32 0.0, %v7850
      %v7852 = vpop.f32.mrb[0].mxu0
      %7853 = vdwg.mxu0
      %v7854 = vunpack.c.l.b16 %v7176
      %v7855 = vunpack.c.l.b16 %v7185
      %v7856 = vunpack.c.l.b16 %v7198
      %v7857 = vunpack.c.l.b16 %v7207
      %v7858 = vunpack.c.l.b16 %v7220
      %v7859 = vunpack.c.l.b16 %v7229
      %v7860 = vunpack.c.l.b16 %v7242
      %v7861 = vunpack.c.l.b16 %v7251
      %v7862 = vunpack.c.l.b16 %v7264
      %v7863 = vunpack.c.l.b16 %v7273
      %v7864 = vunpack.c.l.b16 %v7286
      %v7865 = vunpack.c.l.b16 %v7295
      %v7866 = vunpack.c.l.b16 %v7308
      %v7867 = vunpack.c.l.b16 %v7317
      %v7868 = vunpack.c.l.b16 %v7330
      %v7869 = vunpack.c.l.b16 %v7339
      %v7870 = vunpack.c.l.b16 %v7352
      %v7871 = vunpack.c.l.b16 %v7361
      %v7872 = vunpack.c.l.b16 %v7374
      %v7873 = vunpack.c.l.b16 %v7383
      %v7874 = vunpack.c.l.b16 %v7396
      %v7875 = vunpack.c.l.b16 %v7405
      %v7876 = vunpack.c.l.b16 %v7418
      %v7877 = vunpack.c.l.b16 %v7427
      %v7878 = vunpack.c.l.b16 %v7440
      %v7879 = vunpack.c.l.b16 %v7449
      %v7880 = vunpack.c.l.b16 %v7462
      %v7881 = vunpack.c.l.b16 %v7471
      %v7882 = vunpack.c.l.b16 %v7484
      %v7883 = vunpack.c.l.b16 %v7493
      %v7884 = vunpack.c.l.b16 %v7506
      %v7885 = vunpack.c.l.b16 %v7515
      %v7886 = vpack.c.b16 %v7855, %v7854
      %v7887 = vpack.c.b16 %v7857, %v7856
      %v7888 = vpack.c.b16 %v7859, %v7858
      %v7889 = vpack.c.b16 %v7861, %v7860
      %v7890 = vpack.c.b16 %v7863, %v7862
      %v7891 = vpack.c.b16 %v7865, %v7864
      %v7892 = vpack.c.b16 %v7867, %v7866
      %v7893 = vpack.c.b16 %v7869, %v7868
      %v7894 = vpack.c.b16 %v7871, %v7870
      %v7895 = vpack.c.b16 %v7873, %v7872
      %v7896 = vpack.c.b16 %v7875, %v7874
      %v7897 = vpack.c.b16 %v7877, %v7876
      %v7898 = vpack.c.b16 %v7879, %v7878
      %v7899 = vpack.c.b16 %v7881, %v7880
      %v7900 = vpack.c.b16 %v7883, %v7882
      %v7901 = vpack.c.b16 %v7885, %v7884
      %v7934 = vunpack.c.l.b16 %v7516
      %v7935 = vunpack.c.l.b16 %v7517
      %v7936 = vunpack.c.l.b16 %v7518
      %v7937 = vunpack.c.l.b16 %v7519
      %v7938 = vunpack.c.l.b16 %v7520
      %v7939 = vunpack.c.l.b16 %v7521
      %v7940 = vunpack.c.l.b16 %v7522
      %v7941 = vunpack.c.l.b16 %v7523
      %v7942 = vunpack.c.l.b16 %v7524
      %v7943 = vunpack.c.l.b16 %v7525
      %v7944 = vunpack.c.l.b16 %v7526
      %v7945 = vunpack.c.l.b16 %v7527
      %v7946 = vunpack.c.l.b16 %v7528
      %v7947 = vunpack.c.l.b16 %v7529
      %v7948 = vunpack.c.l.b16 %v7530
      %v7949 = vunpack.c.l.b16 %v7531
      %v7950 = vpack.c.b16 %v7935, %v7934
      %v7951 = vpack.c.b16 %v7937, %v7936
      %v7952 = vpack.c.b16 %v7939, %v7938
      %v7953 = vpack.c.b16 %v7941, %v7940
      %v7954 = vpack.c.b16 %v7943, %v7942
      %v7955 = vpack.c.b16 %v7945, %v7944
      %v7956 = vpack.c.b16 %v7947, %v7946
      %v7957 = vpack.c.b16 %v7949, %v7948
      %7966 = vmatprep.subr.bf16.mxu0 0
      %7967 = vmatpush1.bf16.msra.mxu0 %v7950
      %7968 = vmatprep.subr.bf16.mxu0 0
      %7969 = vmatpush1.bf16.msra.mxu0 %v7951
      %7970 = vmatprep.subr.bf16.mxu0 0
      %7971 = vmatpush1.bf16.msra.mxu0 %v7952
      %7972 = vmatprep.subr.bf16.mxu0 0
      %7973 = vmatpush1.bf16.msra.mxu0 %v7953
      %7974 = vmatprep.subr.bf16.mxu0 0
      %7975 = vmatpush1.bf16.msra.mxu0 %v7954
      %7976 = vmatprep.subr.bf16.mxu0 0
      %7977 = vmatpush1.bf16.msra.mxu0 %v7955
      %7978 = vmatprep.subr.bf16.mxu0 0
      %7979 = vmatpush1.bf16.msra.mxu0 %v7956
      %7980 = vmatprep.subr.bf16.mxu0 0
      %7981 = vmatpush1.bf16.msra.mxu0 %v7957
      %7982 = vmatprep.subr.bf16.mxu0 0
      %7983 = vmatpush1.bf16.msra.mxu0 0
      %7984 = vmatprep.subr.bf16.mxu0 0
      %7985 = vmatpush1.bf16.msra.mxu0 0
      %7986 = vmatprep.subr.bf16.mxu0 0
      %7987 = vmatpush1.bf16.msra.mxu0 0
      %7988 = vmatprep.subr.bf16.mxu0 0
      %7989 = vmatpush1.bf16.msra.mxu0 0
      %7990 = vmatprep.subr.bf16.mxu0 0
      %7991 = vmatpush1.bf16.msra.mxu0 0
      %7992 = vmatprep.subr.bf16.mxu0 0
      %7993 = vmatpush1.bf16.msra.mxu0 0
      %7994 = vmatprep.subr.bf16.mxu0 0
      %7995 = vmatpush1.bf16.msra.mxu0 0
      %7996 = vmatprep.subr.bf16.mxu0 0
      %7997 = vmatpush1.bf16.msra.mxu0 0
      %7998 = vmatprep.mubr.bf16.mxu0 0
      %7999 = vmatmul.mubr.bf16.gmra.mrb[0].mxu0 %v7886
      %v8000 = vpop.f32.mrb[0].mxu0
      %v8001 = vadd.f32 %v7728, %v8000
      %v8002 = vpop.f32.mrb[0].mxu0
      %v8003 = vpop.f32.mrb[0].mxu0
      %v8004 = vadd.f32 %v7731, %v8003
      %v8005 = vpop.f32.mrb[0].mxu0
      %8006 = vmatprep.mubr.bf16.mxu0 0
      %8007 = vmatmul.mubr.bf16.gmra.mrb[0].mxu0 %v7887
      %v8008 = vpop.f32.mrb[0].mxu0
      %v8009 = vadd.f32 %v7736, %v8008
      %v8010 = vpop.f32.mrb[0].mxu0
      %v8011 = vpop.f32.mrb[0].mxu0
      %v8012 = vadd.f32 %v7739, %v8011
      %v8013 = vpop.f32.mrb[0].mxu0
      %8014 = vmatprep.mubr.bf16.mxu0 0
      %8015 = vmatmul.mubr.bf16.gmra.mrb[0].mxu0 %v7888
      %v8016 = vpop.f32.mrb[0].mxu0
      %v8017 = vadd.f32 %v7744, %v8016
      %v8018 = vpop.f32.mrb[0].mxu0
      %v8019 = vpop.f32.mrb[0].mxu0
      %v8020 = vadd.f32 %v7747, %v8019
      %v8021 = vpop.f32.mrb[0].mxu0
      %8022 = vmatprep.mubr.bf16.mxu0 0
      %8023 = vmatmul.mubr.bf16.gmra.mrb[0].mxu0 %v7889
      %v8024 = vpop.f32.mrb[0].mxu0
      %v8025 = vadd.f32 %v7752, %v8024
      %v8026 = vpop.f32.mrb[0].mxu0
      %v8027 = vpop.f32.mrb[0].mxu0
      %v8028 = vadd.f32 %v7755, %v8027
      %v8029 = vpop.f32.mrb[0].mxu0
      %8030 = vmatprep.mubr.bf16.mxu0 0
      %8031 = vmatmul.mubr.bf16.gmra.mrb[0].mxu0 %v7890
      %v8032 = vpop.f32.mrb[0].mxu0
      %v8033 = vadd.f32 %v7760, %v8032
      %v8034 = vpop.f32.mrb[0].mxu0
      %v8035 = vpop.f32.mrb[0].mxu0
      %v8036 = vadd.f32 %v7763, %v8035
      %v8037 = vpop.f32.mrb[0].mxu0
      %8038 = vmatprep.mubr.bf16.mxu0 0
      %8039 = vmatmul.mubr.bf16.gmra.mrb[0].mxu0 %v7891
      %v8040 = vpop.f32.mrb[0].mxu0
      %v8041 = vadd.f32 %v7768, %v8040
      %v8042 = vpop.f32.mrb[0].mxu0
      %v8043 = vpop.f32.mrb[0].mxu0
      %v8044 = vadd.f32 %v7771, %v8043
      %v8045 = vpop.f32.mrb[0].mxu0
      %8046 = vmatprep.mubr.bf16.mxu0 0
      %8047 = vmatmul.mubr.bf16.gmra.mrb[0].mxu0 %v7892
      %v8048 = vpop.f32.mrb[0].mxu0
      %v8049 = vadd.f32 %v7776, %v8048
      %v8050 = vpop.f32.mrb[0].mxu0
      %v8051 = vpop.f32.mrb[0].mxu0
      %v8052 = vadd.f32 %v7779, %v8051
      %v8053 = vpop.f32.mrb[0].mxu0
      %8054 = vmatprep.mubr.bf16.mxu0 0
      %8055 = vmatmul.mubr.bf16.gmra.mrb[0].mxu0 %v7893
      %v8056 = vpop.f32.mrb[0].mxu0
      %v8057 = vadd.f32 %v7784, %v8056
      %v8058 = vpop.f32.mrb[0].mxu0
      %v8059 = vpop.f32.mrb[0].mxu0
      %v8060 = vadd.f32 %v7787, %v8059
      %v8061 = vpop.f32.mrb[0].mxu0
      %8062 = vmatprep.mubr.bf16.mxu0 0
      %8063 = vmatmul.mubr.bf16.gmra.mrb[0].mxu0 %v7894
      %v8064 = vpop.f32.mrb[0].mxu0
      %v8065 = vadd.f32 %v7792, %v8064
      %v8066 = vpop.f32.mrb[0].mxu0
      %v8067 = vpop.f32.mrb[0].mxu0
      %v8068 = vadd.f32 %v7795, %v8067
      %v8069 = vpop.f32.mrb[0].mxu0
      %8070 = vmatprep.mubr.bf16.mxu0 0
      %8071 = vmatmul.mubr.bf16.gmra.mrb[0].mxu0 %v7895
      %v8072 = vpop.f32.mrb[0].mxu0
      %v8073 = vadd.f32 %v7800, %v8072
      %v8074 = vpop.f32.mrb[0].mxu0
      %v8075 = vpop.f32.mrb[0].mxu0
      %v8076 = vadd.f32 %v7803, %v8075
      %v8077 = vpop.f32.mrb[0].mxu0
      %8078 = vmatprep.mubr.bf16.mxu0 0
      %8079 = vmatmul.mubr.bf16.gmra.mrb[0].mxu0 %v7896
      %v8080 = vpop.f32.mrb[0].mxu0
      %v8081 = vadd.f32 %v7808, %v8080
      %v8082 = vpop.f32.mrb[0].mxu0
      %v8083 = vpop.f32.mrb[0].mxu0
      %v8084 = vadd.f32 %v7811, %v8083
      %v8085 = vpop.f32.mrb[0].mxu0
      %8086 = vmatprep.mubr.bf16.mxu0 0
      %8087 = vmatmul.mubr.bf16.gmra.mrb[0].mxu0 %v7897
      %v8088 = vpop.f32.mrb[0].mxu0
      %v8089 = vadd.f32 %v7816, %v8088
      %v8090 = vpop.f32.mrb[0].mxu0
      %v8091 = vpop.f32.mrb[0].mxu0
      %v8092 = vadd.f32 %v7819, %v8091
      %v8093 = vpop.f32.mrb[0].mxu0
      %8094 = vmatprep.mubr.bf16.mxu0 0
      %8095 = vmatmul.mubr.bf16.gmra.mrb[0].mxu0 %v7898
      %v8096 = vpop.f32.mrb[0].mxu0
      %v8097 = vadd.f32 %v7824, %v8096
      %v8098 = vpop.f32.mrb[0].mxu0
      %v8099 = vpop.f32.mrb[0].mxu0
      %v8100 = vadd.f32 %v7827, %v8099
      %v8101 = vpop.f32.mrb[0].mxu0
      %8102 = vmatprep.mubr.bf16.mxu0 0
      %8103 = vmatmul.mubr.bf16.gmra.mrb[0].mxu0 %v7899
      %v8104 = vpop.f32.mrb[0].mxu0
      %v8105 = vadd.f32 %v7832, %v8104
      %v8106 = vpop.f32.mrb[0].mxu0
      %v8107 = vpop.f32.mrb[0].mxu0
      %v8108 = vadd.f32 %v7835, %v8107
      %v8109 = vpop.f32.mrb[0].mxu0
      %8110 = vmatprep.mubr.bf16.mxu0 0
      %8111 = vmatmul.mubr.bf16.gmra.mrb[0].mxu0 %v7900
      %v8112 = vpop.f32.mrb[0].mxu0
      %v8113 = vadd.f32 %v7840, %v8112
      %v8114 = vpop.f32.mrb[0].mxu0
      %v8115 = vpop.f32.mrb[0].mxu0
      %v8116 = vadd.f32 %v7843, %v8115
      %v8117 = vpop.f32.mrb[0].mxu0
      %8118 = vmatprep.mubr.bf16.mxu0 0
      %8119 = vmatmul.mubr.bf16.gmra.mrb[0].mxu0 %v7901
      %v8120 = vpop.f32.mrb[0].mxu0
      %v8121 = vadd.f32 %v7848, %v8120
      %v8122 = vpop.f32.mrb[0].mxu0
      %v8123 = vpop.f32.mrb[0].mxu0
      %v8124 = vadd.f32 %v7851, %v8123
      %v8125 = vpop.f32.mrb[0].mxu0
      %8126 = vdwg.mxu0
      %v8127 = vld [vmem:[#allocation2 + $0x4] sm:$0xf]
      %v8128 = vld [vmem:[#allocation2 + $0x8] sm:$0xf]
      %v8129 = vld [vmem:[#allocation2 + $0xc] sm:$0x1]
      %v8130 = vld [vmem:[#allocation2 + $0x14] sm:$0xf]
      %v8131 = vld [vmem:[#allocation2 + $0x18] sm:$0xf]
      %v8132 = vld [vmem:[#allocation2 + $0x1c] sm:$0x1]
      %v8133 = vld [vmem:[#allocation2 + $0x24] sm:$0xf]
      %v8134 = vld [vmem:[#allocation2 + $0x28] sm:$0xf]
      %v8135 = vld [vmem:[#allocation2 + $0x2c] sm:$0x1]
      %v8136 = vld [vmem:[#allocation2 + $0x34] sm:$0xf]
      %v8137 = vld [vmem:[#allocation2 + $0x38] sm:$0xf]
      %v8138 = vld [vmem:[#allocation2 + $0x3c] sm:$0x1]
      %v8139 = vld [vmem:[#allocation2 + $0x44] sm:$0xf]
      %v8140 = vld [vmem:[#allocation2 + $0x48] sm:$0xf]
      %v8141 = vld [vmem:[#allocation2 + $0x4c] sm:$0x1]
      %v8142 = vld [vmem:[#allocation2 + $0x54] sm:$0xf]
      %v8143 = vld [vmem:[#allocation2 + $0x58] sm:$0xf]
      %v8144 = vld [vmem:[#allocation2 + $0x5c] sm:$0x1]
      %v8145 = vld [vmem:[#allocation2 + $0x64] sm:$0xf]
      %v8146 = vld [vmem:[#allocation2 + $0x68] sm:$0xf]
      %v8147 = vld [vmem:[#allocation2 + $0x6c] sm:$0x1]
      %v8148 = vld [vmem:[#allocation2 + $0x74] sm:$0xf]
      %v8149 = vld [vmem:[#allocation2 + $0x78] sm:$0xf]
      %v8150 = vld [vmem:[#allocation2 + $0x7c] sm:$0x1]
      %v8151 = vld [vmem:[#allocation2 + $0x84] sm:$0xf]
      %v8152 = vld [vmem:[#allocation2 + $0x88] sm:$0xf]
      %v8153 = vld [vmem:[#allocation2 + $0x8c] sm:$0x1]
      %v8154 = vld [vmem:[#allocation2 + $0x94] sm:$0xf]
      %v8155 = vld [vmem:[#allocation2 + $0x98] sm:$0xf]
      %v8156 = vld [vmem:[#allocation2 + $0x9c] sm:$0x1]
      %v8157 = vld [vmem:[#allocation2 + $0xa4] sm:$0xf]
      %v8158 = vld [vmem:[#allocation2 + $0xa8] sm:$0xf]
      %v8159 = vld [vmem:[#allocation2 + $0xac] sm:$0x1]
      %v8160 = vld [vmem:[#allocation2 + $0xb4] sm:$0xf]
      %v8161 = vld [vmem:[#allocation2 + $0xb8] sm:$0xf]
      %v8162 = vld [vmem:[#allocation2 + $0xbc] sm:$0x1]
      %v8163 = vld [vmem:[#allocation2 + $0xc4] sm:$0xf]
      %v8164 = vld [vmem:[#allocation2 + $0xc8] sm:$0xf]
      %v8165 = vld [vmem:[#allocation2 + $0xcc] sm:$0x1]
      %v8166 = vld [vmem:[#allocation2 + $0xd4] sm:$0xf]
      %v8167 = vld [vmem:[#allocation2 + $0xd8] sm:$0xf]
      %v8168 = vld [vmem:[#allocation2 + $0xdc] sm:$0x1]
      %v8169 = vld [vmem:[#allocation2 + $0xe4] sm:$0xf]
      %v8170 = vld [vmem:[#allocation2 + $0xe8] sm:$0xf]
      %v8171 = vld [vmem:[#allocation2 + $0xec] sm:$0x1]
      %v8172 = vld [vmem:[#allocation2 + $0xf4] sm:$0xf]
      %v8173 = vld [vmem:[#allocation2 + $0xf8] sm:$0xf]
      %v8174 = vld [vmem:[#allocation2 + $0xfc] sm:$0x1]
      %v8176 = vshrl.u32 %v8127, 16
      %v8178 = vrot.slane %v8176, 4
      %v8179 = vshll.u32 %v8127, 16
      %v8181 = vrot.slane %v8179, 5
      %v8182 = vor.u32 %v8178, %v8181
      %v8183 = vrot.slane %v8182, 4
      %v8185 = vshll.u32 %v8128, 16
      %v8187 = vrot.slane %v8185, 5
      %v8188 = vsel %vm338, %v8183, %v8187
      %v8189 = vshrl.u32 %v8128, 16
      %v8191 = vrot.slane %v8189, 4
      %v8192 = vor.u32 %v8191, %v8187
      %v8193 = vrot.slane %v8192, 4
      %v8195 = vshll.u32 %v8129, 16
      %v8197 = vrot.slane %v8195, 5
      %v8198 = vsel %vm338, %v8193, %v8197
      %v8200 = vshrl.u32 %v8130, 16
      %v8202 = vrot.slane %v8200, 4
      %v8203 = vshll.u32 %v8130, 16
      %v8205 = vrot.slane %v8203, 5
      %v8206 = vor.u32 %v8202, %v8205
      %v8207 = vrot.slane %v8206, 4
      %v8209 = vshll.u32 %v8131, 16
      %v8211 = vrot.slane %v8209, 5
      %v8212 = vsel %vm338, %v8207, %v8211
      %v8213 = vshrl.u32 %v8131, 16
      %v8215 = vrot.slane %v8213, 4
      %v8216 = vor.u32 %v8215, %v8211
      %v8217 = vrot.slane %v8216, 4
      %v8219 = vshll.u32 %v8132, 16
      %v8221 = vrot.slane %v8219, 5
      %v8222 = vsel %vm338, %v8217, %v8221
      %v8224 = vshrl.u32 %v8133, 16
      %v8226 = vrot.slane %v8224, 4
      %v8227 = vshll.u32 %v8133, 16
      %v8229 = vrot.slane %v8227, 5
      %v8230 = vor.u32 %v8226, %v8229
      %v8231 = vrot.slane %v8230, 4
      %v8233 = vshll.u32 %v8134, 16
      %v8235 = vrot.slane %v8233, 5
      %v8236 = vsel %vm338, %v8231, %v8235
      %v8237 = vshrl.u32 %v8134, 16
      %v8239 = vrot.slane %v8237, 4
      %v8240 = vor.u32 %v8239, %v8235
      %v8241 = vrot.slane %v8240, 4
      %v8243 = vshll.u32 %v8135, 16
      %v8245 = vrot.slane %v8243, 5
      %v8246 = vsel %vm338, %v8241, %v8245
      %v8248 = vshrl.u32 %v8136, 16
      %v8250 = vrot.slane %v8248, 4
      %v8251 = vshll.u32 %v8136, 16
      %v8253 = vrot.slane %v8251, 5
      %v8254 = vor.u32 %v8250, %v8253
      %v8255 = vrot.slane %v8254, 4
      %v8257 = vshll.u32 %v8137, 16
      %v8259 = vrot.slane %v8257, 5
      %v8260 = vsel %vm338, %v8255, %v8259
      %v8261 = vshrl.u32 %v8137, 16
      %v8263 = vrot.slane %v8261, 4
      %v8264 = vor.u32 %v8263, %v8259
      %v8265 = vrot.slane %v8264, 4
      %v8267 = vshll.u32 %v8138, 16
      %v8269 = vrot.slane %v8267, 5
      %v8270 = vsel %vm338, %v8265, %v8269
      %v8272 = vshrl.u32 %v8139, 16
      %v8274 = vrot.slane %v8272, 4
      %v8275 = vshll.u32 %v8139, 16
      %v8277 = vrot.slane %v8275, 5
      %v8278 = vor.u32 %v8274, %v8277
      %v8279 = vrot.slane %v8278, 4
      %v8281 = vshll.u32 %v8140, 16
      %v8283 = vrot.slane %v8281, 5
      %v8284 = vsel %vm338, %v8279, %v8283
      %v8285 = vshrl.u32 %v8140, 16
      %v8287 = vrot.slane %v8285, 4
      %v8288 = vor.u32 %v8287, %v8283
      %v8289 = vrot.slane %v8288, 4
      %v8291 = vshll.u32 %v8141, 16
      %v8293 = vrot.slane %v8291, 5
      %v8294 = vsel %vm338, %v8289, %v8293
      %v8296 = vshrl.u32 %v8142, 16
      %v8298 = vrot.slane %v8296, 4
      %v8299 = vshll.u32 %v8142, 16
      %v8301 = vrot.slane %v8299, 5
      %v8302 = vor.u32 %v8298, %v8301
      %v8303 = vrot.slane %v8302, 4
      %v8305 = vshll.u32 %v8143, 16
      %v8307 = vrot.slane %v8305, 5
      %v8308 = vsel %vm338, %v8303, %v8307
      %v8309 = vshrl.u32 %v8143, 16
      %v8311 = vrot.slane %v8309, 4
      %v8312 = vor.u32 %v8311, %v8307
      %v8313 = vrot.slane %v8312, 4
      %v8315 = vshll.u32 %v8144, 16
      %v8317 = vrot.slane %v8315, 5
      %v8318 = vsel %vm338, %v8313, %v8317
      %v8320 = vshrl.u32 %v8145, 16
      %v8322 = vrot.slane %v8320, 4
      %v8323 = vshll.u32 %v8145, 16
      %v8325 = vrot.slane %v8323, 5
      %v8326 = vor.u32 %v8322, %v8325
      %v8327 = vrot.slane %v8326, 4
      %v8329 = vshll.u32 %v8146, 16
      %v8331 = vrot.slane %v8329, 5
      %v8332 = vsel %vm338, %v8327, %v8331
      %v8333 = vshrl.u32 %v8146, 16
      %v8335 = vrot.slane %v8333, 4
      %v8336 = vor.u32 %v8335, %v8331
      %v8337 = vrot.slane %v8336, 4
      %v8339 = vshll.u32 %v8147, 16
      %v8341 = vrot.slane %v8339, 5
      %v8342 = vsel %vm338, %v8337, %v8341
      %v8344 = vshrl.u32 %v8148, 16
      %v8346 = vrot.slane %v8344, 4
      %v8347 = vshll.u32 %v8148, 16
      %v8349 = vrot.slane %v8347, 5
      %v8350 = vor.u32 %v8346, %v8349
      %v8351 = vrot.slane %v8350, 4
      %v8353 = vshll.u32 %v8149, 16
      %v8355 = vrot.slane %v8353, 5
      %v8356 = vsel %vm338, %v8351, %v8355
      %v8357 = vshrl.u32 %v8149, 16
      %v8359 = vrot.slane %v8357, 4
      %v8360 = vor.u32 %v8359, %v8355
      %v8361 = vrot.slane %v8360, 4
      %v8363 = vshll.u32 %v8150, 16
      %v8365 = vrot.slane %v8363, 5
      %v8366 = vsel %vm338, %v8361, %v8365
      %v8368 = vshrl.u32 %v8151, 16
      %v8370 = vrot.slane %v8368, 4
      %v8371 = vshll.u32 %v8151, 16
      %v8373 = vrot.slane %v8371, 5
      %v8374 = vor.u32 %v8370, %v8373
      %v8375 = vrot.slane %v8374, 4
      %v8377 = vshll.u32 %v8152, 16
      %v8379 = vrot.slane %v8377, 5
      %v8380 = vsel %vm338, %v8375, %v8379
      %v8381 = vshrl.u32 %v8152, 16
      %v8383 = vrot.slane %v8381, 4
      %v8384 = vor.u32 %v8383, %v8379
      %v8385 = vrot.slane %v8384, 4
      %v8387 = vshll.u32 %v8153, 16
      %v8389 = vrot.slane %v8387, 5
      %v8390 = vsel %vm338, %v8385, %v8389
      %v8392 = vshrl.u32 %v8154, 16
      %v8394 = vrot.slane %v8392, 4
      %v8395 = vshll.u32 %v8154, 16
      %v8397 = vrot.slane %v8395, 5
      %v8398 = vor.u32 %v8394, %v8397
      %v8399 = vrot.slane %v8398, 4
      %v8401 = vshll.u32 %v8155, 16
      %v8403 = vrot.slane %v8401, 5
      %v8404 = vsel %vm338, %v8399, %v8403
      %v8405 = vshrl.u32 %v8155, 16
      %v8407 = vrot.slane %v8405, 4
      %v8408 = vor.u32 %v8407, %v8403
      %v8409 = vrot.slane %v8408, 4
      %v8411 = vshll.u32 %v8156, 16
      %v8413 = vrot.slane %v8411, 5
      %v8414 = vsel %vm338, %v8409, %v8413
      %v8416 = vshrl.u32 %v8157, 16
      %v8418 = vrot.slane %v8416, 4
      %v8419 = vshll.u32 %v8157, 16
      %v8421 = vrot.slane %v8419, 5
      %v8422 = vor.u32 %v8418, %v8421
      %v8423 = vrot.slane %v8422, 4
      %v8425 = vshll.u32 %v8158, 16
      %v8427 = vrot.slane %v8425, 5
      %v8428 = vsel %vm338, %v8423, %v8427
      %v8429 = vshrl.u32 %v8158, 16
      %v8431 = vrot.slane %v8429, 4
      %v8432 = vor.u32 %v8431, %v8427
      %v8433 = vrot.slane %v8432, 4
      %v8435 = vshll.u32 %v8159, 16
      %v8437 = vrot.slane %v8435, 5
      %v8438 = vsel %vm338, %v8433, %v8437
      %v8440 = vshrl.u32 %v8160, 16
      %v8442 = vrot.slane %v8440, 4
      %v8443 = vshll.u32 %v8160, 16
      %v8445 = vrot.slane %v8443, 5
      %v8446 = vor.u32 %v8442, %v8445
      %v8447 = vrot.slane %v8446, 4
      %v8449 = vshll.u32 %v8161, 16
      %v8451 = vrot.slane %v8449, 5
      %v8452 = vsel %vm338, %v8447, %v8451
      %v8453 = vshrl.u32 %v8161, 16
      %v8455 = vrot.slane %v8453, 4
      %v8456 = vor.u32 %v8455, %v8451
      %v8457 = vrot.slane %v8456, 4
      %v8459 = vshll.u32 %v8162, 16
      %v8461 = vrot.slane %v8459, 5
      %v8462 = vsel %vm338, %v8457, %v8461
      %v8464 = vshrl.u32 %v8163, 16
      %v8466 = vrot.slane %v8464, 4
      %v8467 = vshll.u32 %v8163, 16
      %v8469 = vrot.slane %v8467, 5
      %v8470 = vor.u32 %v8466, %v8469
      %v8471 = vrot.slane %v8470, 4
      %v8473 = vshll.u32 %v8164, 16
      %v8475 = vrot.slane %v8473, 5
      %v8476 = vsel %vm338, %v8471, %v8475
      %v8477 = vshrl.u32 %v8164, 16
      %v8479 = vrot.slane %v8477, 4
      %v8480 = vor.u32 %v8479, %v8475
      %v8481 = vrot.slane %v8480, 4
      %v8483 = vshll.u32 %v8165, 16
      %v8485 = vrot.slane %v8483, 5
      %v8486 = vsel %vm338, %v8481, %v8485
      %v8488 = vshrl.u32 %v8166, 16
      %v8490 = vrot.slane %v8488, 4
      %v8491 = vshll.u32 %v8166, 16
      %v8493 = vrot.slane %v8491, 5
      %v8494 = vor.u32 %v8490, %v8493
      %v8495 = vrot.slane %v8494, 4
      %v8497 = vshll.u32 %v8167, 16
      %v8499 = vrot.slane %v8497, 5
      %v8500 = vsel %vm338, %v8495, %v8499
      %v8501 = vshrl.u32 %v8167, 16
      %v8503 = vrot.slane %v8501, 4
      %v8504 = vor.u32 %v8503, %v8499
      %v8505 = vrot.slane %v8504, 4
      %v8507 = vshll.u32 %v8168, 16
      %v8509 = vrot.slane %v8507, 5
      %v8510 = vsel %vm338, %v8505, %v8509
      %v8512 = vshrl.u32 %v8169, 16
      %v8514 = vrot.slane %v8512, 4
      %v8515 = vshll.u32 %v8169, 16
      %v8517 = vrot.slane %v8515, 5
      %v8518 = vor.u32 %v8514, %v8517
      %v8519 = vrot.slane %v8518, 4
      %v8521 = vshll.u32 %v8170, 16
      %v8523 = vrot.slane %v8521, 5
      %v8524 = vsel %vm338, %v8519, %v8523
      %v8525 = vshrl.u32 %v8170, 16
      %v8527 = vrot.slane %v8525, 4
      %v8528 = vor.u32 %v8527, %v8523
      %v8529 = vrot.slane %v8528, 4
      %v8531 = vshll.u32 %v8171, 16
      %v8533 = vrot.slane %v8531, 5
      %v8534 = vsel %vm338, %v8529, %v8533
      %v8536 = vshrl.u32 %v8172, 16
      %v8538 = vrot.slane %v8536, 4
      %v8539 = vshll.u32 %v8172, 16
      %v8541 = vrot.slane %v8539, 5
      %v8542 = vor.u32 %v8538, %v8541
      %v8543 = vrot.slane %v8542, 4
      %v8545 = vshll.u32 %v8173, 16
      %v8547 = vrot.slane %v8545, 5
      %v8548 = vsel %vm338, %v8543, %v8547
      %v8549 = vshrl.u32 %v8173, 16
      %v8551 = vrot.slane %v8549, 4
      %v8552 = vor.u32 %v8551, %v8547
      %v8553 = vrot.slane %v8552, 4
      %v8555 = vshll.u32 %v8174, 16
      %v8557 = vrot.slane %v8555, 5
      %v8558 = vsel %vm338, %v8553, %v8557
      %s8559 = scalar_lea.vmem %s3, 128
      %v8560 = vld [vmem:[%s8559] sm:$0xf]
      %v8561 = vld [vmem:[%s8559 + $0x4] sm:$0xf]
      %v8562 = vld [vmem:[%s8559 + $0x8] sm:$0xf]
      %v8563 = vld [vmem:[%s8559 + $0xc] sm:$0xf]
      %v8564 = vld [vmem:[%s8559 + $0x10] sm:$0xf]
      %v8565 = vld [vmem:[%s8559 + $0x14] sm:$0xf]
      %v8566 = vld [vmem:[%s8559 + $0x18] sm:$0xf]
      %v8567 = vld [vmem:[%s8559 + $0x1c] sm:$0xf]
      %v8568 = vld [vmem:[%s8559 + $0x20] sm:$0xf]
      %v8569 = vld [vmem:[%s8559 + $0x24] sm:$0xf]
      %v8570 = vld [vmem:[%s8559 + $0x28] sm:$0xf]
      %v8571 = vld [vmem:[%s8559 + $0x2c] sm:$0xf]
      %v8572 = vld [vmem:[%s8559 + $0x30] sm:$0xf]
      %v8573 = vld [vmem:[%s8559 + $0x34] sm:$0xf]
      %v8574 = vld [vmem:[%s8559 + $0x38] sm:$0xf]
      %v8575 = vld [vmem:[%s8559 + $0x3c] sm:$0xf]
      %v8576 = vunpack.c.l.b16 %v8188
      %v8577 = vunpack.c.l.b16 %v8198
      %v8578 = vunpack.c.l.b16 %v8212
      %v8579 = vunpack.c.l.b16 %v8222
      %v8580 = vunpack.c.l.b16 %v8236
      %v8581 = vunpack.c.l.b16 %v8246
      %v8582 = vunpack.c.l.b16 %v8260
      %v8583 = vunpack.c.l.b16 %v8270
      %v8584 = vunpack.c.l.b16 %v8284
      %v8585 = vunpack.c.l.b16 %v8294
      %v8586 = vunpack.c.l.b16 %v8308
      %v8587 = vunpack.c.l.b16 %v8318
      %v8588 = vunpack.c.l.b16 %v8332
      %v8589 = vunpack.c.l.b16 %v8342
      %v8590 = vunpack.c.l.b16 %v8356
      %v8591 = vunpack.c.l.b16 %v8366
      %v8592 = vunpack.c.l.b16 %v8380
      %v8593 = vunpack.c.l.b16 %v8390
      %v8594 = vunpack.c.l.b16 %v8404
      %v8595 = vunpack.c.l.b16 %v8414
      %v8596 = vunpack.c.l.b16 %v8428
      %v8597 = vunpack.c.l.b16 %v8438
      %v8598 = vunpack.c.l.b16 %v8452
      %v8599 = vunpack.c.l.b16 %v8462
      %v8600 = vunpack.c.l.b16 %v8476
      %v8601 = vunpack.c.l.b16 %v8486
      %v8602 = vunpack.c.l.b16 %v8500
      %v8603 = vunpack.c.l.b16 %v8510
      %v8604 = vunpack.c.l.b16 %v8524
      %v8605 = vunpack.c.l.b16 %v8534
      %v8606 = vunpack.c.l.b16 %v8548
      %v8607 = vunpack.c.l.b16 %v8558
      %v8608 = vpack.c.b16 %v8577, %v8576
      %v8609 = vpack.c.b16 %v8579, %v8578
      %v8610 = vpack.c.b16 %v8581, %v8580
      %v8611 = vpack.c.b16 %v8583, %v8582
      %v8612 = vpack.c.b16 %v8585, %v8584
      %v8613 = vpack.c.b16 %v8587, %v8586
      %v8614 = vpack.c.b16 %v8589, %v8588
      %v8615 = vpack.c.b16 %v8591, %v8590
      %v8616 = vpack.c.b16 %v8593, %v8592
      %v8617 = vpack.c.b16 %v8595, %v8594
      %v8618 = vpack.c.b16 %v8597, %v8596
      %v8619 = vpack.c.b16 %v8599, %v8598
      %v8620 = vpack.c.b16 %v8601, %v8600
      %v8621 = vpack.c.b16 %v8603, %v8602
      %v8622 = vpack.c.b16 %v8605, %v8604
      %v8623 = vpack.c.b16 %v8607, %v8606
      %v8656 = vunpack.c.l.b16 %v8560
      %v8657 = vunpack.c.l.b16 %v8561
      %v8658 = vunpack.c.l.b16 %v8562
      %v8659 = vunpack.c.l.b16 %v8563
      %v8660 = vunpack.c.l.b16 %v8564
      %v8661 = vunpack.c.l.b16 %v8565
      %v8662 = vunpack.c.l.b16 %v8566
      %v8663 = vunpack.c.l.b16 %v8567
      %v8664 = vunpack.c.l.b16 %v8568
      %v8665 = vunpack.c.l.b16 %v8569
      %v8666 = vunpack.c.l.b16 %v8570
      %v8667 = vunpack.c.l.b16 %v8571
      %v8668 = vunpack.c.l.b16 %v8572
      %v8669 = vunpack.c.l.b16 %v8573
      %v8670 = vunpack.c.l.b16 %v8574
      %v8671 = vunpack.c.l.b16 %v8575
      %v8672 = vpack.c.b16 %v8657, %v8656
      %v8673 = vpack.c.b16 %v8659, %v8658
      %v8674 = vpack.c.b16 %v8661, %v8660
      %v8675 = vpack.c.b16 %v8663, %v8662
      %v8676 = vpack.c.b16 %v8665, %v8664
      %v8677 = vpack.c.b16 %v8667, %v8666
      %v8678 = vpack.c.b16 %v8669, %v8668
      %v8679 = vpack.c.b16 %v8671, %v8670
      %8688 = vmatprep.subr.bf16.mxu0 0
      %8689 = vmatpush1.bf16.msra.mxu0 %v8672
      %8690 = vmatprep.subr.bf16.mxu0 0
      %8691 = vmatpush1.bf16.msra.mxu0 %v8673
      %8692 = vmatprep.subr.bf16.mxu0 0
      %8693 = vmatpush1.bf16.msra.mxu0 %v8674
      %8694 = vmatprep.subr.bf16.mxu0 0
      %8695 = vmatpush1.bf16.msra.mxu0 %v8675
      %8696 = vmatprep.subr.bf16.mxu0 0
      %8697 = vmatpush1.bf16.msra.mxu0 %v8676
      %8698 = vmatprep.subr.bf16.mxu0 0
      %8699 = vmatpush1.bf16.msra.mxu0 %v8677
      %8700 = vmatprep.subr.bf16.mxu0 0
      %8701 = vmatpush1.bf16.msra.mxu0 %v8678
      %8702 = vmatprep.subr.bf16.mxu0 0
      %8703 = vmatpush1.bf16.msra.mxu0 %v8679
      %8704 = vmatprep.subr.bf16.mxu0 0
      %8705 = vmatpush1.bf16.msra.mxu0 0
      %8706 = vmatprep.subr.bf16.mxu0 0
      %8707 = vmatpush1.bf16.msra.mxu0 0
      %8708 = vmatprep.subr.bf16.mxu0 0
      %8709 = vmatpush1.bf16.msra.mxu0 0
      %8710 = vmatprep.subr.bf16.mxu0 0
      %8711 = vmatpush1.bf16.msra.mxu0 0
      %8712 = vmatprep.subr.bf16.mxu0 0
      %8713 = vmatpush1.bf16.msra.mxu0 0
      %8714 = vmatprep.subr.bf16.mxu0 0
      %8715 = vmatpush1.bf16.msra.mxu0 0
      %8716 = vmatprep.subr.bf16.mxu0 0
      %8717 = vmatpush1.bf16.msra.mxu0 0
      %8718 = vmatprep.subr.bf16.mxu0 0
      %8719 = vmatpush1.bf16.msra.mxu0 0
      %8720 = vmatprep.mubr.bf16.mxu0 0
      %8721 = vmatmul.mubr.bf16.gmra.mrb[0].mxu0 %v8608
      %v8722 = vpop.f32.mrb[0].mxu0
      %v8723 = vadd.f32 0.0, %v8722
      %v8724 = vpop.f32.mrb[0].mxu0
      %v8725 = vpop.f32.mrb[0].mxu0
      %v8726 = vadd.f32 0.0, %v8725
      %v8727 = vpop.f32.mrb[0].mxu0
      %8728 = vmatprep.mubr.bf16.mxu0 0
      %8729 = vmatmul.mubr.bf16.gmra.mrb[0].mxu0 %v8609
      %v8730 = vpop.f32.mrb[0].mxu0
      %v8731 = vadd.f32 0.0, %v8730
      %v8732 = vpop.f32.mrb[0].mxu0
      %v8733 = vpop.f32.mrb[0].mxu0
      %v8734 = vadd.f32 0.0, %v8733
      %v8735 = vpop.f32.mrb[0].mxu0
      %8736 = vmatprep.mubr.bf16.mxu0 0
      %8737 = vmatmul.mubr.bf16.gmra.mrb[0].mxu0 %v8610
      %v8738 = vpop.f32.mrb[0].mxu0
      %v8739 = vadd.f32 0.0, %v8738
      %v8740 = vpop.f32.mrb[0].mxu0
      %v8741 = vpop.f32.mrb[0].mxu0
      %v8742 = vadd.f32 0.0, %v8741
      %v8743 = vpop.f32.mrb[0].mxu0
      %8744 = vmatprep.mubr.bf16.mxu0 0
      %8745 = vmatmul.mubr.bf16.gmra.mrb[0].mxu0 %v8611
      %v8746 = vpop.f32.mrb[0].mxu0
      %v8747 = vadd.f32 0.0, %v8746
      %v8748 = vpop.f32.mrb[0].mxu0
      %v8749 = vpop.f32.mrb[0].mxu0
      %v8750 = vadd.f32 0.0, %v8749
      %v8751 = vpop.f32.mrb[0].mxu0
      %8752 = vmatprep.mubr.bf16.mxu0 0
      %8753 = vmatmul.mubr.bf16.gmra.mrb[0].mxu0 %v8612
      %v8754 = vpop.f32.mrb[0].mxu0
      %v8755 = vadd.f32 0.0, %v8754
      %v8756 = vpop.f32.mrb[0].mxu0
      %v8757 = vpop.f32.mrb[0].mxu0
      %v8758 = vadd.f32 0.0, %v8757
      %v8759 = vpop.f32.mrb[0].mxu0
      %8760 = vmatprep.mubr.bf16.mxu0 0
      %8761 = vmatmul.mubr.bf16.gmra.mrb[0].mxu0 %v8613
      %v8762 = vpop.f32.mrb[0].mxu0
      %v8763 = vadd.f32 0.0, %v8762
      %v8764 = vpop.f32.mrb[0].mxu0
      %v8765 = vpop.f32.mrb[0].mxu0
      %v8766 = vadd.f32 0.0, %v8765
      %v8767 = vpop.f32.mrb[0].mxu0
      %8768 = vmatprep.mubr.bf16.mxu0 0
      %8769 = vmatmul.mubr.bf16.gmra.mrb[0].mxu0 %v8614
      %v8770 = vpop.f32.mrb[0].mxu0
      %v8771 = vadd.f32 0.0, %v8770
      %v8772 = vpop.f32.mrb[0].mxu0
      %v8773 = vpop.f32.mrb[0].mxu0
      %v8774 = vadd.f32 0.0, %v8773
      %v8775 = vpop.f32.mrb[0].mxu0
      %8776 = vmatprep.mubr.bf16.mxu0 0
      %8777 = vmatmul.mubr.bf16.gmra.mrb[0].mxu0 %v8615
      %v8778 = vpop.f32.mrb[0].mxu0
      %v8779 = vadd.f32 0.0, %v8778
      %v8780 = vpop.f32.mrb[0].mxu0
      %v8781 = vpop.f32.mrb[0].mxu0
      %v8782 = vadd.f32 0.0, %v8781
      %v8783 = vpop.f32.mrb[0].mxu0
      %8784 = vmatprep.mubr.bf16.mxu0 0
      %8785 = vmatmul.mubr.bf16.gmra.mrb[0].mxu0 %v8616
      %v8786 = vpop.f32.mrb[0].mxu0
      %v8787 = vadd.f32 0.0, %v8786
      %v8788 = vpop.f32.mrb[0].mxu0
      %v8789 = vpop.f32.mrb[0].mxu0
      %v8790 = vadd.f32 0.0, %v8789
      %v8791 = vpop.f32.mrb[0].mxu0
      %8792 = vmatprep.mubr.bf16.mxu0 0
      %8793 = vmatmul.mubr.bf16.gmra.mrb[0].mxu0 %v8617
      %v8794 = vpop.f32.mrb[0].mxu0
      %v8795 = vadd.f32 0.0, %v8794
      %v8796 = vpop.f32.mrb[0].mxu0
      %v8797 = vpop.f32.mrb[0].mxu0
      %v8798 = vadd.f32 0.0, %v8797
      %v8799 = vpop.f32.mrb[0].mxu0
      %8800 = vmatprep.mubr.bf16.mxu0 0
      %8801 = vmatmul.mubr.bf16.gmra.mrb[0].mxu0 %v8618
      %v8802 = vpop.f32.mrb[0].mxu0
      %v8803 = vadd.f32 0.0, %v8802
      %v8804 = vpop.f32.mrb[0].mxu0
      %v8805 = vpop.f32.mrb[0].mxu0
      %v8806 = vadd.f32 0.0, %v8805
      %v8807 = vpop.f32.mrb[0].mxu0
      %8808 = vmatprep.mubr.bf16.mxu0 0
      %8809 = vmatmul.mubr.bf16.gmra.mrb[0].mxu0 %v8619
      %v8810 = vpop.f32.mrb[0].mxu0
      %v8811 = vadd.f32 0.0, %v8810
      %v8812 = vpop.f32.mrb[0].mxu0
      %v8813 = vpop.f32.mrb[0].mxu0
      %v8814 = vadd.f32 0.0, %v8813
      %v8815 = vpop.f32.mrb[0].mxu0
      %8816 = vmatprep.mubr.bf16.mxu0 0
      %8817 = vmatmul.mubr.bf16.gmra.mrb[0].mxu0 %v8620
      %v8818 = vpop.f32.mrb[0].mxu0
      %v8819 = vadd.f32 0.0, %v8818
      %v8820 = vpop.f32.mrb[0].mxu0
      %v8821 = vpop.f32.mrb[0].mxu0
      %v8822 = vadd.f32 0.0, %v8821
      %v8823 = vpop.f32.mrb[0].mxu0
      %8824 = vmatprep.mubr.bf16.mxu0 0
      %8825 = vmatmul.mubr.bf16.gmra.mrb[0].mxu0 %v8621
      %v8826 = vpop.f32.mrb[0].mxu0
      %v8827 = vadd.f32 0.0, %v8826
      %v8828 = vpop.f32.mrb[0].mxu0
      %v8829 = vpop.f32.mrb[0].mxu0
      %v8830 = vadd.f32 0.0, %v8829
      %v8831 = vpop.f32.mrb[0].mxu0
      %8832 = vmatprep.mubr.bf16.mxu0 0
      %8833 = vmatmul.mubr.bf16.gmra.mrb[0].mxu0 %v8622
      %v8834 = vpop.f32.mrb[0].mxu0
      %v8835 = vadd.f32 0.0, %v8834
      %v8836 = vpop.f32.mrb[0].mxu0
      %v8837 = vpop.f32.mrb[0].mxu0
      %v8838 = vadd.f32 0.0, %v8837
      %v8839 = vpop.f32.mrb[0].mxu0
      %8840 = vmatprep.mubr.bf16.mxu0 0
      %8841 = vmatmul.mubr.bf16.gmra.mrb[0].mxu0 %v8623
      %v8842 = vpop.f32.mrb[0].mxu0
      %v8843 = vadd.f32 0.0, %v8842
      %v8844 = vpop.f32.mrb[0].mxu0
      %v8845 = vpop.f32.mrb[0].mxu0
      %v8846 = vadd.f32 0.0, %v8845
      %v8847 = vpop.f32.mrb[0].mxu0
      %8848 = vdwg.mxu0
      %v8849 = vadd.f32 %v8001, %v8723
      %v8850 = vadd.f32 %v8004, %v8726
      %v8851 = vadd.f32 %v8009, %v8731
      %v8852 = vadd.f32 %v8012, %v8734
      %v8853 = vadd.f32 %v8017, %v8739
      %v8854 = vadd.f32 %v8020, %v8742
      %v8855 = vadd.f32 %v8025, %v8747
      %v8856 = vadd.f32 %v8028, %v8750
      %v8857 = vadd.f32 %v8033, %v8755
      %v8858 = vadd.f32 %v8036, %v8758
      %v8859 = vadd.f32 %v8041, %v8763
      %v8860 = vadd.f32 %v8044, %v8766
      %v8861 = vadd.f32 %v8049, %v8771
      %v8862 = vadd.f32 %v8052, %v8774
      %v8863 = vadd.f32 %v8057, %v8779
      %v8864 = vadd.f32 %v8060, %v8782
      %v8865 = vadd.f32 %v8065, %v8787
      %v8866 = vadd.f32 %v8068, %v8790
      %v8867 = vadd.f32 %v8073, %v8795
      %v8868 = vadd.f32 %v8076, %v8798
      %v8869 = vadd.f32 %v8081, %v8803
      %v8870 = vadd.f32 %v8084, %v8806
      %v8871 = vadd.f32 %v8089, %v8811
      %v8872 = vadd.f32 %v8092, %v8814
      %v8873 = vadd.f32 %v8097, %v8819
      %v8874 = vadd.f32 %v8100, %v8822
      %v8875 = vadd.f32 %v8105, %v8827
      %v8876 = vadd.f32 %v8108, %v8830
      %v8877 = vadd.f32 %v8113, %v8835
      %v8878 = vadd.f32 %v8116, %v8838
      %v8879 = vadd.f32 %v8121, %v8843
      %v8880 = vadd.f32 %v8124, %v8846
      %s8881 = scalar_lea.vmem [#allocation2], 16
      %v8882 = vld [vmem:[%s8881] sm:$0x8]
      %v8883 = vld [vmem:[%s8881 + $0x4] sm:$0xf]
      %v8884 = vld [vmem:[%s8881 + $0x8] sm:$0xf]
      %v8885 = vld [vmem:[%s8881 + $0x10] sm:$0x8]
      %v8886 = vld [vmem:[%s8881 + $0x14] sm:$0xf]
      %v8887 = vld [vmem:[%s8881 + $0x18] sm:$0xf]
      %v8888 = vld [vmem:[%s8881 + $0x20] sm:$0x8]
      %v8889 = vld [vmem:[%s8881 + $0x24] sm:$0xf]
      %v8890 = vld [vmem:[%s8881 + $0x28] sm:$0xf]
      %v8891 = vld [vmem:[%s8881 + $0x30] sm:$0x8]
      %v8892 = vld [vmem:[%s8881 + $0x34] sm:$0xf]
      %v8893 = vld [vmem:[%s8881 + $0x38] sm:$0xf]
      %v8894 = vld [vmem:[%s8881 + $0x40] sm:$0x8]
      %v8895 = vld [vmem:[%s8881 + $0x44] sm:$0xf]
      %v8896 = vld [vmem:[%s8881 + $0x48] sm:$0xf]
      %v8897 = vld [vmem:[%s8881 + $0x50] sm:$0x8]
      %v8898 = vld [vmem:[%s8881 + $0x54] sm:$0xf]
      %v8899 = vld [vmem:[%s8881 + $0x58] sm:$0xf]
      %v8900 = vld [vmem:[%s8881 + $0x60] sm:$0x8]
      %v8901 = vld [vmem:[%s8881 + $0x64] sm:$0xf]
      %v8902 = vld [vmem:[%s8881 + $0x68] sm:$0xf]
      %v8903 = vld [vmem:[%s8881 + $0x70] sm:$0x8]
      %v8904 = vld [vmem:[%s8881 + $0x74] sm:$0xf]
      %v8905 = vld [vmem:[%s8881 + $0x78] sm:$0xf]
      %v8906 = vld [vmem:[%s8881 + $0x80] sm:$0x8]
      %v8907 = vld [vmem:[%s8881 + $0x84] sm:$0xf]
      %v8908 = vld [vmem:[%s8881 + $0x88] sm:$0xf]
      %v8909 = vld [vmem:[%s8881 + $0x90] sm:$0x8]
      %v8910 = vld [vmem:[%s8881 + $0x94] sm:$0xf]
      %v8911 = vld [vmem:[%s8881 + $0x98] sm:$0xf]
      %v8912 = vld [vmem:[%s8881 + $0xa0] sm:$0x8]
      %v8913 = vld [vmem:[%s8881 + $0xa4] sm:$0xf]
      %v8914 = vld [vmem:[%s8881 + $0xa8] sm:$0xf]
      %v8915 = vld [vmem:[%s8881 + $0xb0] sm:$0x8]
      %v8916 = vld [vmem:[%s8881 + $0xb4] sm:$0xf]
      %v8917 = vld [vmem:[%s8881 + $0xb8] sm:$0xf]
      %v8918 = vld [vmem:[%s8881 + $0xc0] sm:$0x8]
      %v8919 = vld [vmem:[%s8881 + $0xc4] sm:$0xf]
      %v8920 = vld [vmem:[%s8881 + $0xc8] sm:$0xf]
      %v8921 = vld [vmem:[%s8881 + $0xd0] sm:$0x8]
      %v8922 = vld [vmem:[%s8881 + $0xd4] sm:$0xf]
      %v8923 = vld [vmem:[%s8881 + $0xd8] sm:$0xf]
      %v8924 = vld [vmem:[%s8881 + $0xe0] sm:$0x8]
      %v8925 = vld [vmem:[%s8881 + $0xe4] sm:$0xf]
      %v8926 = vld [vmem:[%s8881 + $0xe8] sm:$0xf]
      %v8927 = vld [vmem:[%s8881 + $0xf0] sm:$0x8]
      %v8928 = vld [vmem:[%s8881 + $0xf4] sm:$0xf]
      %v8929 = vld [vmem:[%s8881 + $0xf8] sm:$0xf]
      %v8931 = vshrl.u32 %v8882, 16
      %v8933 = vrot.slane %v8931, 7
      %v8934 = vrot.slane %v8933, 4
      %v8936 = vshrl.u32 %v8883, 16
      %v8938 = vrot.slane %v8936, 7
      %v8939 = vshll.u32 %v8883, 16
      %v8941 = vor.u32 %v8938, %v8939
      %v8942 = vsel %vm7163, %v8934, %v8941
      %v8943 = vrot.slane %v8938, 4
      %v8945 = vshrl.u32 %v8884, 16
      %v8947 = vrot.slane %v8945, 7
      %v8948 = vshll.u32 %v8884, 16
      %v8950 = vor.u32 %v8947, %v8948
      %v8951 = vsel %vm7163, %v8943, %v8950
      %v8953 = vshrl.u32 %v8885, 16
      %v8955 = vrot.slane %v8953, 7
      %v8956 = vrot.slane %v8955, 4
      %v8958 = vshrl.u32 %v8886, 16
      %v8960 = vrot.slane %v8958, 7
      %v8961 = vshll.u32 %v8886, 16
      %v8963 = vor.u32 %v8960, %v8961
      %v8964 = vsel %vm7163, %v8956, %v8963
      %v8965 = vrot.slane %v8960, 4
      %v8967 = vshrl.u32 %v8887, 16
      %v8969 = vrot.slane %v8967, 7
      %v8970 = vshll.u32 %v8887, 16
      %v8972 = vor.u32 %v8969, %v8970
      %v8973 = vsel %vm7163, %v8965, %v8972
      %v8975 = vshrl.u32 %v8888, 16
      %v8977 = vrot.slane %v8975, 7
      %v8978 = vrot.slane %v8977, 4
      %v8980 = vshrl.u32 %v8889, 16
      %v8982 = vrot.slane %v8980, 7
      %v8983 = vshll.u32 %v8889, 16
      %v8985 = vor.u32 %v8982, %v8983
      %v8986 = vsel %vm7163, %v8978, %v8985
      %v8987 = vrot.slane %v8982, 4
      %v8989 = vshrl.u32 %v8890, 16
      %v8991 = vrot.slane %v8989, 7
      %v8992 = vshll.u32 %v8890, 16
      %v8994 = vor.u32 %v8991, %v8992
      %v8995 = vsel %vm7163, %v8987, %v8994
      %v8997 = vshrl.u32 %v8891, 16
      %v8999 = vrot.slane %v8997, 7
      %v9000 = vrot.slane %v8999, 4
      %v9002 = vshrl.u32 %v8892, 16
      %v9004 = vrot.slane %v9002, 7
      %v9005 = vshll.u32 %v8892, 16
      %v9007 = vor.u32 %v9004, %v9005
      %v9008 = vsel %vm7163, %v9000, %v9007
      %v9009 = vrot.slane %v9004, 4
      %v9011 = vshrl.u32 %v8893, 16
      %v9013 = vrot.slane %v9011, 7
      %v9014 = vshll.u32 %v8893, 16
      %v9016 = vor.u32 %v9013, %v9014
      %v9017 = vsel %vm7163, %v9009, %v9016
      %v9019 = vshrl.u32 %v8894, 16
      %v9021 = vrot.slane %v9019, 7
      %v9022 = vrot.slane %v9021, 4
      %v9024 = vshrl.u32 %v8895, 16
      %v9026 = vrot.slane %v9024, 7
      %v9027 = vshll.u32 %v8895, 16
      %v9029 = vor.u32 %v9026, %v9027
      %v9030 = vsel %vm7163, %v9022, %v9029
      %v9031 = vrot.slane %v9026, 4
      %v9033 = vshrl.u32 %v8896, 16
      %v9035 = vrot.slane %v9033, 7
      %v9036 = vshll.u32 %v8896, 16
      %v9038 = vor.u32 %v9035, %v9036
      %v9039 = vsel %vm7163, %v9031, %v9038
      %v9041 = vshrl.u32 %v8897, 16
      %v9043 = vrot.slane %v9041, 7
      %v9044 = vrot.slane %v9043, 4
      %v9046 = vshrl.u32 %v8898, 16
      %v9048 = vrot.slane %v9046, 7
      %v9049 = vshll.u32 %v8898, 16
      %v9051 = vor.u32 %v9048, %v9049
      %v9052 = vsel %vm7163, %v9044, %v9051
      %v9053 = vrot.slane %v9048, 4
      %v9055 = vshrl.u32 %v8899, 16
      %v9057 = vrot.slane %v9055, 7
      %v9058 = vshll.u32 %v8899, 16
      %v9060 = vor.u32 %v9057, %v9058
      %v9061 = vsel %vm7163, %v9053, %v9060
      %v9063 = vshrl.u32 %v8900, 16
      %v9065 = vrot.slane %v9063, 7
      %v9066 = vrot.slane %v9065, 4
      %v9068 = vshrl.u32 %v8901, 16
      %v9070 = vrot.slane %v9068, 7
      %v9071 = vshll.u32 %v8901, 16
      %v9073 = vor.u32 %v9070, %v9071
      %v9074 = vsel %vm7163, %v9066, %v9073
      %v9075 = vrot.slane %v9070, 4
      %v9077 = vshrl.u32 %v8902, 16
      %v9079 = vrot.slane %v9077, 7
      %v9080 = vshll.u32 %v8902, 16
      %v9082 = vor.u32 %v9079, %v9080
      %v9083 = vsel %vm7163, %v9075, %v9082
      %v9085 = vshrl.u32 %v8903, 16
      %v9087 = vrot.slane %v9085, 7
      %v9088 = vrot.slane %v9087, 4
      %v9090 = vshrl.u32 %v8904, 16
      %v9092 = vrot.slane %v9090, 7
      %v9093 = vshll.u32 %v8904, 16
      %v9095 = vor.u32 %v9092, %v9093
      %v9096 = vsel %vm7163, %v9088, %v9095
      %v9097 = vrot.slane %v9092, 4
      %v9099 = vshrl.u32 %v8905, 16
      %v9101 = vrot.slane %v9099, 7
      %v9102 = vshll.u32 %v8905, 16
      %v9104 = vor.u32 %v9101, %v9102
      %v9105 = vsel %vm7163, %v9097, %v9104
      %v9107 = vshrl.u32 %v8906, 16
      %v9109 = vrot.slane %v9107, 7
      %v9110 = vrot.slane %v9109, 4
      %v9112 = vshrl.u32 %v8907, 16
      %v9114 = vrot.slane %v9112, 7
      %v9115 = vshll.u32 %v8907, 16
      %v9117 = vor.u32 %v9114, %v9115
      %v9118 = vsel %vm7163, %v9110, %v9117
      %v9119 = vrot.slane %v9114, 4
      %v9121 = vshrl.u32 %v8908, 16
      %v9123 = vrot.slane %v9121, 7
      %v9124 = vshll.u32 %v8908, 16
      %v9126 = vor.u32 %v9123, %v9124
      %v9127 = vsel %vm7163, %v9119, %v9126
      %v9129 = vshrl.u32 %v8909, 16
      %v9131 = vrot.slane %v9129, 7
      %v9132 = vrot.slane %v9131, 4
      %v9134 = vshrl.u32 %v8910, 16
      %v9136 = vrot.slane %v9134, 7
      %v9137 = vshll.u32 %v8910, 16
      %v9139 = vor.u32 %v9136, %v9137
      %v9140 = vsel %vm7163, %v9132, %v9139
      %v9141 = vrot.slane %v9136, 4
      %v9143 = vshrl.u32 %v8911, 16
      %v9145 = vrot.slane %v9143, 7
      %v9146 = vshll.u32 %v8911, 16
      %v9148 = vor.u32 %v9145, %v9146
      %v9149 = vsel %vm7163, %v9141, %v9148
      %v9151 = vshrl.u32 %v8912, 16
      %v9153 = vrot.slane %v9151, 7
      %v9154 = vrot.slane %v9153, 4
      %v9156 = vshrl.u32 %v8913, 16
      %v9158 = vrot.slane %v9156, 7
      %v9159 = vshll.u32 %v8913, 16
      %v9161 = vor.u32 %v9158, %v9159
      %v9162 = vsel %vm7163, %v9154, %v9161
      %v9163 = vrot.slane %v9158, 4
      %v9165 = vshrl.u32 %v8914, 16
      %v9167 = vrot.slane %v9165, 7
      %v9168 = vshll.u32 %v8914, 16
      %v9170 = vor.u32 %v9167, %v9168
      %v9171 = vsel %vm7163, %v9163, %v9170
      %v9173 = vshrl.u32 %v8915, 16
      %v9175 = vrot.slane %v9173, 7
      %v9176 = vrot.slane %v9175, 4
      %v9178 = vshrl.u32 %v8916, 16
      %v9180 = vrot.slane %v9178, 7
      %v9181 = vshll.u32 %v8916, 16
      %v9183 = vor.u32 %v9180, %v9181
      %v9184 = vsel %vm7163, %v9176, %v9183
      %v9185 = vrot.slane %v9180, 4
      %v9187 = vshrl.u32 %v8917, 16
      %v9189 = vrot.slane %v9187, 7
      %v9190 = vshll.u32 %v8917, 16
      %v9192 = vor.u32 %v9189, %v9190
      %v9193 = vsel %vm7163, %v9185, %v9192
      %v9195 = vshrl.u32 %v8918, 16
      %v9197 = vrot.slane %v9195, 7
      %v9198 = vrot.slane %v9197, 4
      %v9200 = vshrl.u32 %v8919, 16
      %v9202 = vrot.slane %v9200, 7
      %v9203 = vshll.u32 %v8919, 16
      %v9205 = vor.u32 %v9202, %v9203
      %v9206 = vsel %vm7163, %v9198, %v9205
      %v9207 = vrot.slane %v9202, 4
      %v9209 = vshrl.u32 %v8920, 16
      %v9211 = vrot.slane %v9209, 7
      %v9212 = vshll.u32 %v8920, 16
      %v9214 = vor.u32 %v9211, %v9212
      %v9215 = vsel %vm7163, %v9207, %v9214
      %v9217 = vshrl.u32 %v8921, 16
      %v9219 = vrot.slane %v9217, 7
      %v9220 = vrot.slane %v9219, 4
      %v9222 = vshrl.u32 %v8922, 16
      %v9224 = vrot.slane %v9222, 7
      %v9225 = vshll.u32 %v8922, 16
      %v9227 = vor.u32 %v9224, %v9225
      %v9228 = vsel %vm7163, %v9220, %v9227
      %v9229 = vrot.slane %v9224, 4
      %v9231 = vshrl.u32 %v8923, 16
      %v9233 = vrot.slane %v9231, 7
      %v9234 = vshll.u32 %v8923, 16
      %v9236 = vor.u32 %v9233, %v9234
      %v9237 = vsel %vm7163, %v9229, %v9236
      %v9239 = vshrl.u32 %v8924, 16
      %v9241 = vrot.slane %v9239, 7
      %v9242 = vrot.slane %v9241, 4
      %v9244 = vshrl.u32 %v8925, 16
      %v9246 = vrot.slane %v9244, 7
      %v9247 = vshll.u32 %v8925, 16
      %v9249 = vor.u32 %v9246, %v9247
      %v9250 = vsel %vm7163, %v9242, %v9249
      %v9251 = vrot.slane %v9246, 4
      %v9253 = vshrl.u32 %v8926, 16
      %v9255 = vrot.slane %v9253, 7
      %v9256 = vshll.u32 %v8926, 16
      %v9258 = vor.u32 %v9255, %v9256
      %v9259 = vsel %vm7163, %v9251, %v9258
      %v9261 = vshrl.u32 %v8927, 16
      %v9263 = vrot.slane %v9261, 7
      %v9264 = vrot.slane %v9263, 4
      %v9266 = vshrl.u32 %v8928, 16
      %v9268 = vrot.slane %v9266, 7
      %v9269 = vshll.u32 %v8928, 16
      %v9271 = vor.u32 %v9268, %v9269
      %v9272 = vsel %vm7163, %v9264, %v9271
      %v9273 = vrot.slane %v9268, 4
      %v9275 = vshrl.u32 %v8929, 16
      %v9277 = vrot.slane %v9275, 7
      %v9278 = vshll.u32 %v8929, 16
      %v9280 = vor.u32 %v9277, %v9278
      %v9281 = vsel %vm7163, %v9273, %v9280
      %s9282 = scalar_lea.vmem %s3, 192
      %v9283 = vld [vmem:[%s9282] sm:$0xf]
      %v9284 = vld [vmem:[%s9282 + $0x4] sm:$0xf]
      %v9285 = vld [vmem:[%s9282 + $0x8] sm:$0xf]
      %v9286 = vld [vmem:[%s9282 + $0xc] sm:$0xf]
      %v9287 = vld [vmem:[%s9282 + $0x10] sm:$0xf]
      %v9288 = vld [vmem:[%s9282 + $0x14] sm:$0xf]
      %v9289 = vld [vmem:[%s9282 + $0x18] sm:$0xf]
      %v9290 = vld [vmem:[%s9282 + $0x1c] sm:$0xf]
      %v9291 = vld [vmem:[%s9282 + $0x20] sm:$0xf]
      %v9292 = vld [vmem:[%s9282 + $0x24] sm:$0xf]
      %v9293 = vld [vmem:[%s9282 + $0x28] sm:$0xf]
      %v9294 = vld [vmem:[%s9282 + $0x2c] sm:$0xf]
      %v9295 = vld [vmem:[%s9282 + $0x30] sm:$0xf]
      %v9296 = vld [vmem:[%s9282 + $0x34] sm:$0xf]
      %v9297 = vld [vmem:[%s9282 + $0x38] sm:$0xf]
      %v9298 = vld [vmem:[%s9282 + $0x3c] sm:$0xf]
      %v9299 = vunpack.c.l.b16 %v8942
      %v9300 = vunpack.c.l.b16 %v8951
      %v9301 = vunpack.c.l.b16 %v8964
      %v9302 = vunpack.c.l.b16 %v8973
      %v9303 = vunpack.c.l.b16 %v8986
      %v9304 = vunpack.c.l.b16 %v8995
      %v9305 = vunpack.c.l.b16 %v9008
      %v9306 = vunpack.c.l.b16 %v9017
      %v9307 = vunpack.c.l.b16 %v9030
      %v9308 = vunpack.c.l.b16 %v9039
      %v9309 = vunpack.c.l.b16 %v9052
      %v9310 = vunpack.c.l.b16 %v9061
      %v9311 = vunpack.c.l.b16 %v9074
      %v9312 = vunpack.c.l.b16 %v9083
      %v9313 = vunpack.c.l.b16 %v9096
      %v9314 = vunpack.c.l.b16 %v9105
      %v9315 = vunpack.c.l.b16 %v9118
      %v9316 = vunpack.c.l.b16 %v9127
      %v9317 = vunpack.c.l.b16 %v9140
      %v9318 = vunpack.c.l.b16 %v9149
      %v9319 = vunpack.c.l.b16 %v9162
      %v9320 = vunpack.c.l.b16 %v9171
      %v9321 = vunpack.c.l.b16 %v9184
      %v9322 = vunpack.c.l.b16 %v9193
      %v9323 = vunpack.c.l.b16 %v9206
      %v9324 = vunpack.c.l.b16 %v9215
      %v9325 = vunpack.c.l.b16 %v9228
      %v9326 = vunpack.c.l.b16 %v9237
      %v9327 = vunpack.c.l.b16 %v9250
      %v9328 = vunpack.c.l.b16 %v9259
      %v9329 = vunpack.c.l.b16 %v9272
      %v9330 = vunpack.c.l.b16 %v9281
      %v9331 = vpack.c.b16 %v9300, %v9299
      %v9332 = vpack.c.b16 %v9302, %v9301
      %v9333 = vpack.c.b16 %v9304, %v9303
      %v9334 = vpack.c.b16 %v9306, %v9305
      %v9335 = vpack.c.b16 %v9308, %v9307
      %v9336 = vpack.c.b16 %v9310, %v9309
      %v9337 = vpack.c.b16 %v9312, %v9311
      %v9338 = vpack.c.b16 %v9314, %v9313
      %v9339 = vpack.c.b16 %v9316, %v9315
      %v9340 = vpack.c.b16 %v9318, %v9317
      %v9341 = vpack.c.b16 %v9320, %v9319
      %v9342 = vpack.c.b16 %v9322, %v9321
      %v9343 = vpack.c.b16 %v9324, %v9323
      %v9344 = vpack.c.b16 %v9326, %v9325
      %v9345 = vpack.c.b16 %v9328, %v9327
      %v9346 = vpack.c.b16 %v9330, %v9329
      %v9379 = vunpack.c.l.b16 %v9283
      %v9380 = vunpack.c.l.b16 %v9284
      %v9381 = vunpack.c.l.b16 %v9285
      %v9382 = vunpack.c.l.b16 %v9286
      %v9383 = vunpack.c.l.b16 %v9287
      %v9384 = vunpack.c.l.b16 %v9288
      %v9385 = vunpack.c.l.b16 %v9289
      %v9386 = vunpack.c.l.b16 %v9290
      %v9387 = vunpack.c.l.b16 %v9291
      %v9388 = vunpack.c.l.b16 %v9292
      %v9389 = vunpack.c.l.b16 %v9293
      %v9390 = vunpack.c.l.b16 %v9294
      %v9391 = vunpack.c.l.b16 %v9295
      %v9392 = vunpack.c.l.b16 %v9296
      %v9393 = vunpack.c.l.b16 %v9297
      %v9394 = vunpack.c.l.b16 %v9298
      %v9395 = vpack.c.b16 %v9380, %v9379
      %v9396 = vpack.c.b16 %v9382, %v9381
      %v9397 = vpack.c.b16 %v9384, %v9383
      %v9398 = vpack.c.b16 %v9386, %v9385
      %v9399 = vpack.c.b16 %v9388, %v9387
      %v9400 = vpack.c.b16 %v9390, %v9389
      %v9401 = vpack.c.b16 %v9392, %v9391
      %v9402 = vpack.c.b16 %v9394, %v9393
      %9411 = vmatprep.subr.bf16.mxu0 0
      %9412 = vmatpush1.bf16.msra.mxu0 %v9395
      %9413 = vmatprep.subr.bf16.mxu0 0
      %9414 = vmatpush1.bf16.msra.mxu0 %v9396
      %9415 = vmatprep.subr.bf16.mxu0 0
      %9416 = vmatpush1.bf16.msra.mxu0 %v9397
      %9417 = vmatprep.subr.bf16.mxu0 0
      %9418 = vmatpush1.bf16.msra.mxu0 %v9398
      %9419 = vmatprep.subr.bf16.mxu0 0
      %9420 = vmatpush1.bf16.msra.mxu0 %v9399
      %9421 = vmatprep.subr.bf16.mxu0 0
      %9422 = vmatpush1.bf16.msra.mxu0 %v9400
      %9423 = vmatprep.subr.bf16.mxu0 0
      %9424 = vmatpush1.bf16.msra.mxu0 %v9401
      %9425 = vmatprep.subr.bf16.mxu0 0
      %9426 = vmatpush1.bf16.msra.mxu0 %v9402
      %9427 = vmatprep.subr.bf16.mxu0 0
      %9428 = vmatpush1.bf16.msra.mxu0 0
      %9429 = vmatprep.subr.bf16.mxu0 0
      %9430 = vmatpush1.bf16.msra.mxu0 0
      %9431 = vmatprep.subr.bf16.mxu0 0
      %9432 = vmatpush1.bf16.msra.mxu0 0
      %9433 = vmatprep.subr.bf16.mxu0 0
      %9434 = vmatpush1.bf16.msra.mxu0 0
      %9435 = vmatprep.subr.bf16.mxu0 0
      %9436 = vmatpush1.bf16.msra.mxu0 0
      %9437 = vmatprep.subr.bf16.mxu0 0
      %9438 = vmatpush1.bf16.msra.mxu0 0
      %9439 = vmatprep.subr.bf16.mxu0 0
      %9440 = vmatpush1.bf16.msra.mxu0 0
      %9441 = vmatprep.subr.bf16.mxu0 0
      %9442 = vmatpush1.bf16.msra.mxu0 0
      %9443 = vmatprep.mubr.bf16.mxu0 0
      %9444 = vmatmul.mubr.bf16.gmra.mrb[0].mxu0 %v9331
      %v9445 = vpop.f32.mrb[0].mxu0
      %v9446 = vadd.f32 0.0, %v9445
      %v9447 = vpop.f32.mrb[0].mxu0
      %v9448 = vpop.f32.mrb[0].mxu0
      %v9449 = vadd.f32 0.0, %v9448
      %v9450 = vpop.f32.mrb[0].mxu0
      %9451 = vmatprep.mubr.bf16.mxu0 0
      %9452 = vmatmul.mubr.bf16.gmra.mrb[0].mxu0 %v9332
      %v9453 = vpop.f32.mrb[0].mxu0
      %v9454 = vadd.f32 0.0, %v9453
      %v9455 = vpop.f32.mrb[0].mxu0
      %v9456 = vpop.f32.mrb[0].mxu0
      %v9457 = vadd.f32 0.0, %v9456
      %v9458 = vpop.f32.mrb[0].mxu0
      %9459 = vmatprep.mubr.bf16.mxu0 0
      %9460 = vmatmul.mubr.bf16.gmra.mrb[0].mxu0 %v9333
      %v9461 = vpop.f32.mrb[0].mxu0
      %v9462 = vadd.f32 0.0, %v9461
      %v9463 = vpop.f32.mrb[0].mxu0
      %v9464 = vpop.f32.mrb[0].mxu0
      %v9465 = vadd.f32 0.0, %v9464
      %v9466 = vpop.f32.mrb[0].mxu0
      %9467 = vmatprep.mubr.bf16.mxu0 0
      %9468 = vmatmul.mubr.bf16.gmra.mrb[0].mxu0 %v9334
      %v9469 = vpop.f32.mrb[0].mxu0
      %v9470 = vadd.f32 0.0, %v9469
      %v9471 = vpop.f32.mrb[0].mxu0
      %v9472 = vpop.f32.mrb[0].mxu0
      %v9473 = vadd.f32 0.0, %v9472
      %v9474 = vpop.f32.mrb[0].mxu0
      %9475 = vmatprep.mubr.bf16.mxu0 0
      %9476 = vmatmul.mubr.bf16.gmra.mrb[0].mxu0 %v9335
      %v9477 = vpop.f32.mrb[0].mxu0
      %v9478 = vadd.f32 0.0, %v9477
      %v9479 = vpop.f32.mrb[0].mxu0
      %v9480 = vpop.f32.mrb[0].mxu0
      %v9481 = vadd.f32 0.0, %v9480
      %v9482 = vpop.f32.mrb[0].mxu0
      %9483 = vmatprep.mubr.bf16.mxu0 0
      %9484 = vmatmul.mubr.bf16.gmra.mrb[0].mxu0 %v9336
      %v9485 = vpop.f32.mrb[0].mxu0
      %v9486 = vadd.f32 0.0, %v9485
      %v9487 = vpop.f32.mrb[0].mxu0
      %v9488 = vpop.f32.mrb[0].mxu0
      %v9489 = vadd.f32 0.0, %v9488
      %v9490 = vpop.f32.mrb[0].mxu0
      %9491 = vmatprep.mubr.bf16.mxu0 0
      %9492 = vmatmul.mubr.bf16.gmra.mrb[0].mxu0 %v9337
      %v9493 = vpop.f32.mrb[0].mxu0
      %v9494 = vadd.f32 0.0, %v9493
      %v9495 = vpop.f32.mrb[0].mxu0
      %v9496 = vpop.f32.mrb[0].mxu0
      %v9497 = vadd.f32 0.0, %v9496
      %v9498 = vpop.f32.mrb[0].mxu0
      %9499 = vmatprep.mubr.bf16.mxu0 0
      %9500 = vmatmul.mubr.bf16.gmra.mrb[0].mxu0 %v9338
      %v9501 = vpop.f32.mrb[0].mxu0
      %v9502 = vadd.f32 0.0, %v9501
      %v9503 = vpop.f32.mrb[0].mxu0
      %v9504 = vpop.f32.mrb[0].mxu0
      %v9505 = vadd.f32 0.0, %v9504
      %v9506 = vpop.f32.mrb[0].mxu0
      %9507 = vmatprep.mubr.bf16.mxu0 0
      %9508 = vmatmul.mubr.bf16.gmra.mrb[0].mxu0 %v9339
      %v9509 = vpop.f32.mrb[0].mxu0
      %v9510 = vadd.f32 0.0, %v9509
      %v9511 = vpop.f32.mrb[0].mxu0
      %v9512 = vpop.f32.mrb[0].mxu0
      %v9513 = vadd.f32 0.0, %v9512
      %v9514 = vpop.f32.mrb[0].mxu0
      %9515 = vmatprep.mubr.bf16.mxu0 0
      %9516 = vmatmul.mubr.bf16.gmra.mrb[0].mxu0 %v9340
      %v9517 = vpop.f32.mrb[0].mxu0
      %v9518 = vadd.f32 0.0, %v9517
      %v9519 = vpop.f32.mrb[0].mxu0
      %v9520 = vpop.f32.mrb[0].mxu0
      %v9521 = vadd.f32 0.0, %v9520
      %v9522 = vpop.f32.mrb[0].mxu0
      %9523 = vmatprep.mubr.bf16.mxu0 0
      %9524 = vmatmul.mubr.bf16.gmra.mrb[0].mxu0 %v9341
      %v9525 = vpop.f32.mrb[0].mxu0
      %v9526 = vadd.f32 0.0, %v9525
      %v9527 = vpop.f32.mrb[0].mxu0
      %v9528 = vpop.f32.mrb[0].mxu0
      %v9529 = vadd.f32 0.0, %v9528
      %v9530 = vpop.f32.mrb[0].mxu0
      %9531 = vmatprep.mubr.bf16.mxu0 0
      %9532 = vmatmul.mubr.bf16.gmra.mrb[0].mxu0 %v9342
      %v9533 = vpop.f32.mrb[0].mxu0
      %v9534 = vadd.f32 0.0, %v9533
      %v9535 = vpop.f32.mrb[0].mxu0
      %v9536 = vpop.f32.mrb[0].mxu0
      %v9537 = vadd.f32 0.0, %v9536
      %v9538 = vpop.f32.mrb[0].mxu0
      %9539 = vmatprep.mubr.bf16.mxu0 0
      %9540 = vmatmul.mubr.bf16.gmra.mrb[0].mxu0 %v9343
      %v9541 = vpop.f32.mrb[0].mxu0
      %v9542 = vadd.f32 0.0, %v9541
      %v9543 = vpop.f32.mrb[0].mxu0
      %v9544 = vpop.f32.mrb[0].mxu0
      %v9545 = vadd.f32 0.0, %v9544
      %v9546 = vpop.f32.mrb[0].mxu0
      %9547 = vmatprep.mubr.bf16.mxu0 0
      %9548 = vmatmul.mubr.bf16.gmra.mrb[0].mxu0 %v9344
      %v9549 = vpop.f32.mrb[0].mxu0
      %v9550 = vadd.f32 0.0, %v9549
      %v9551 = vpop.f32.mrb[0].mxu0
      %v9552 = vpop.f32.mrb[0].mxu0
      %v9553 = vadd.f32 0.0, %v9552
      %v9554 = vpop.f32.mrb[0].mxu0
      %9555 = vmatprep.mubr.bf16.mxu0 0
      %9556 = vmatmul.mubr.bf16.gmra.mrb[0].mxu0 %v9345
      %v9557 = vpop.f32.mrb[0].mxu0
      %v9558 = vadd.f32 0.0, %v9557
      %v9559 = vpop.f32.mrb[0].mxu0
      %v9560 = vpop.f32.mrb[0].mxu0
      %v9561 = vadd.f32 0.0, %v9560
      %v9562 = vpop.f32.mrb[0].mxu0
      %9563 = vmatprep.mubr.bf16.mxu0 0
      %9564 = vmatmul.mubr.bf16.gmra.mrb[0].mxu0 %v9346
      %v9565 = vpop.f32.mrb[0].mxu0
      %v9566 = vadd.f32 0.0, %v9565
      %v9567 = vpop.f32.mrb[0].mxu0
      %v9568 = vpop.f32.mrb[0].mxu0
      %v9569 = vadd.f32 0.0, %v9568
      %v9570 = vpop.f32.mrb[0].mxu0
      %9571 = vdwg.mxu0
      %v9572 = vadd.f32 %v8849, %v9446
      %v9573 = vadd.f32 %v8850, %v9449
      %v9574 = vadd.f32 %v8851, %v9454
      %v9575 = vadd.f32 %v8852, %v9457
      %v9576 = vadd.f32 %v8853, %v9462
      %v9577 = vadd.f32 %v8854, %v9465
      %v9578 = vadd.f32 %v8855, %v9470
      %v9579 = vadd.f32 %v8856, %v9473
      %v9580 = vadd.f32 %v8857, %v9478
      %v9581 = vadd.f32 %v8858, %v9481
      %v9582 = vadd.f32 %v8859, %v9486
      %v9583 = vadd.f32 %v8860, %v9489
      %v9584 = vadd.f32 %v8861, %v9494
      %v9585 = vadd.f32 %v8862, %v9497
      %v9586 = vadd.f32 %v8863, %v9502
      %v9587 = vadd.f32 %v8864, %v9505
      %v9588 = vadd.f32 %v8865, %v9510
      %v9589 = vadd.f32 %v8866, %v9513
      %v9590 = vadd.f32 %v8867, %v9518
      %v9591 = vadd.f32 %v8868, %v9521
      %v9592 = vadd.f32 %v8869, %v9526
      %v9593 = vadd.f32 %v8870, %v9529
      %v9594 = vadd.f32 %v8871, %v9534
      %v9595 = vadd.f32 %v8872, %v9537
      %v9596 = vadd.f32 %v8873, %v9542
      %v9597 = vadd.f32 %v8874, %v9545
      %v9598 = vadd.f32 %v8875, %v9550
      %v9599 = vadd.f32 %v8876, %v9553
      %v9600 = vadd.f32 %v8877, %v9558
      %v9601 = vadd.f32 %v8878, %v9561
      %v9602 = vadd.f32 %v8879, %v9566
      %v9603 = vadd.f32 %v8880, %v9569
      %s9604 = scalar_lea.vmem %s3, 256
      %v9605 = vld [vmem:[%s9604] sm:$0xf]
      %v9606 = vld [vmem:[%s9604 + $0x4] sm:$0xf]
      %v9607 = vld [vmem:[%s9604 + $0x8] sm:$0xf]
      %v9608 = vld [vmem:[%s9604 + $0xc] sm:$0xf]
      %v9609 = vld [vmem:[%s9604 + $0x10] sm:$0xf]
      %v9610 = vld [vmem:[%s9604 + $0x14] sm:$0xf]
      %v9611 = vld [vmem:[%s9604 + $0x18] sm:$0xf]
      %v9612 = vld [vmem:[%s9604 + $0x1c] sm:$0xf]
      %v9613 = vld [vmem:[%s9604 + $0x20] sm:$0xf]
      %v9614 = vld [vmem:[%s9604 + $0x24] sm:$0xf]
      %v9615 = vld [vmem:[%s9604 + $0x28] sm:$0xf]
      %v9616 = vld [vmem:[%s9604 + $0x2c] sm:$0xf]
      %v9617 = vld [vmem:[%s9604 + $0x30] sm:$0xf]
      %v9618 = vld [vmem:[%s9604 + $0x34] sm:$0xf]
      %v9619 = vld [vmem:[%s9604 + $0x38] sm:$0xf]
      %v9620 = vld [vmem:[%s9604 + $0x3c] sm:$0xf]
      %v9653 = vunpack.c.l.b16 %v8883
      %v9654 = vunpack.c.l.b16 %v8884
      %v9655 = vunpack.c.l.b16 %v8886
      %v9656 = vunpack.c.l.b16 %v8887
      %v9657 = vunpack.c.l.b16 %v8889
      %v9658 = vunpack.c.l.b16 %v8890
      %v9659 = vunpack.c.l.b16 %v8892
      %v9660 = vunpack.c.l.b16 %v8893
      %v9661 = vunpack.c.l.b16 %v8895
      %v9662 = vunpack.c.l.b16 %v8896
      %v9663 = vunpack.c.l.b16 %v8898
      %v9664 = vunpack.c.l.b16 %v8899
      %v9665 = vunpack.c.l.b16 %v8901
      %v9666 = vunpack.c.l.b16 %v8902
      %v9667 = vunpack.c.l.b16 %v8904
      %v9668 = vunpack.c.l.b16 %v8905
      %v9669 = vunpack.c.l.b16 %v8907
      %v9670 = vunpack.c.l.b16 %v8908
      %v9671 = vunpack.c.l.b16 %v8910
      %v9672 = vunpack.c.l.b16 %v8911
      %v9673 = vunpack.c.l.b16 %v8913
      %v9674 = vunpack.c.l.b16 %v8914
      %v9675 = vunpack.c.l.b16 %v8916
      %v9676 = vunpack.c.l.b16 %v8917
      %v9677 = vunpack.c.l.b16 %v8919
      %v9678 = vunpack.c.l.b16 %v8920
      %v9679 = vunpack.c.l.b16 %v8922
      %v9680 = vunpack.c.l.b16 %v8923
      %v9681 = vunpack.c.l.b16 %v8925
      %v9682 = vunpack.c.l.b16 %v8926
      %v9683 = vunpack.c.l.b16 %v8928
      %v9684 = vunpack.c.l.b16 %v8929
      %v9685 = vpack.c.b16 %v9654, %v9653
      %v9686 = vpack.c.b16 %v9656, %v9655
      %v9687 = vpack.c.b16 %v9658, %v9657
      %v9688 = vpack.c.b16 %v9660, %v9659
      %v9689 = vpack.c.b16 %v9662, %v9661
      %v9690 = vpack.c.b16 %v9664, %v9663
      %v9691 = vpack.c.b16 %v9666, %v9665
      %v9692 = vpack.c.b16 %v9668, %v9667
      %v9693 = vpack.c.b16 %v9670, %v9669
      %v9694 = vpack.c.b16 %v9672, %v9671
      %v9695 = vpack.c.b16 %v9674, %v9673
      %v9696 = vpack.c.b16 %v9676, %v9675
      %v9697 = vpack.c.b16 %v9678, %v9677
      %v9698 = vpack.c.b16 %v9680, %v9679
      %v9699 = vpack.c.b16 %v9682, %v9681
      %v9700 = vpack.c.b16 %v9684, %v9683
      %v9733 = vunpack.c.l.b16 %v9605
      %v9734 = vunpack.c.l.b16 %v9606
      %v9735 = vunpack.c.l.b16 %v9607
      %v9736 = vunpack.c.l.b16 %v9608
      %v9737 = vunpack.c.l.b16 %v9609
      %v9738 = vunpack.c.l.b16 %v9610
      %v9739 = vunpack.c.l.b16 %v9611
      %v9740 = vunpack.c.l.b16 %v9612
      %v9741 = vunpack.c.l.b16 %v9613
      %v9742 = vunpack.c.l.b16 %v9614
      %v9743 = vunpack.c.l.b16 %v9615
      %v9744 = vunpack.c.l.b16 %v9616
      %v9745 = vunpack.c.l.b16 %v9617
      %v9746 = vunpack.c.l.b16 %v9618
      %v9747 = vunpack.c.l.b16 %v9619
      %v9748 = vunpack.c.l.b16 %v9620
      %v9749 = vpack.c.b16 %v9734, %v9733
      %v9750 = vpack.c.b16 %v9736, %v9735
      %v9751 = vpack.c.b16 %v9738, %v9737
      %v9752 = vpack.c.b16 %v9740, %v9739
      %v9753 = vpack.c.b16 %v9742, %v9741
      %v9754 = vpack.c.b16 %v9744, %v9743
      %v9755 = vpack.c.b16 %v9746, %v9745
      %v9756 = vpack.c.b16 %v9748, %v9747
      %9765 = vmatprep.subr.bf16.mxu0 0
      %9766 = vmatpush1.bf16.msra.mxu0 %v9749
      %9767 = vmatprep.subr.bf16.mxu0 0
      %9768 = vmatpush1.bf16.msra.mxu0 %v9750
      %9769 = vmatprep.subr.bf16.mxu0 0
      %9770 = vmatpush1.bf16.msra.mxu0 %v9751
      %9771 = vmatprep.subr.bf16.mxu0 0
      %9772 = vmatpush1.bf16.msra.mxu0 %v9752
      %9773 = vmatprep.subr.bf16.mxu0 0
      %9774 = vmatpush1.bf16.msra.mxu0 %v9753
      %9775 = vmatprep.subr.bf16.mxu0 0
      %9776 = vmatpush1.bf16.msra.mxu0 %v9754
      %9777 = vmatprep.subr.bf16.mxu0 0
      %9778 = vmatpush1.bf16.msra.mxu0 %v9755
      %9779 = vmatprep.subr.bf16.mxu0 0
      %9780 = vmatpush1.bf16.msra.mxu0 %v9756
      %9781 = vmatprep.subr.bf16.mxu0 0
      %9782 = vmatpush1.bf16.msra.mxu0 0
      %9783 = vmatprep.subr.bf16.mxu0 0
      %9784 = vmatpush1.bf16.msra.mxu0 0
      %9785 = vmatprep.subr.bf16.mxu0 0
      %9786 = vmatpush1.bf16.msra.mxu0 0
      %9787 = vmatprep.subr.bf16.mxu0 0
      %9788 = vmatpush1.bf16.msra.mxu0 0
      %9789 = vmatprep.subr.bf16.mxu0 0
      %9790 = vmatpush1.bf16.msra.mxu0 0
      %9791 = vmatprep.subr.bf16.mxu0 0
      %9792 = vmatpush1.bf16.msra.mxu0 0
      %9793 = vmatprep.subr.bf16.mxu0 0
      %9794 = vmatpush1.bf16.msra.mxu0 0
      %9795 = vmatprep.subr.bf16.mxu0 0
      %9796 = vmatpush1.bf16.msra.mxu0 0
      %9797 = vmatprep.mubr.bf16.mxu0 0
      %9798 = vmatmul.mubr.bf16.gmra.mrb[0].mxu0 %v9685
      %v9799 = vpop.f32.mrb[0].mxu0
      %v9800 = vadd.f32 0.0, %v9799
      %v9801 = vpop.f32.mrb[0].mxu0
      %v9802 = vpop.f32.mrb[0].mxu0
      %v9803 = vadd.f32 0.0, %v9802
      %v9804 = vpop.f32.mrb[0].mxu0
      %9805 = vmatprep.mubr.bf16.mxu0 0
      %9806 = vmatmul.mubr.bf16.gmra.mrb[0].mxu0 %v9686
      %v9807 = vpop.f32.mrb[0].mxu0
      %v9808 = vadd.f32 0.0, %v9807
      %v9809 = vpop.f32.mrb[0].mxu0
      %v9810 = vpop.f32.mrb[0].mxu0
      %v9811 = vadd.f32 0.0, %v9810
      %v9812 = vpop.f32.mrb[0].mxu0
      %9813 = vmatprep.mubr.bf16.mxu0 0
      %9814 = vmatmul.mubr.bf16.gmra.mrb[0].mxu0 %v9687
      %v9815 = vpop.f32.mrb[0].mxu0
      %v9816 = vadd.f32 0.0, %v9815
      %v9817 = vpop.f32.mrb[0].mxu0
      %v9818 = vpop.f32.mrb[0].mxu0
      %v9819 = vadd.f32 0.0, %v9818
      %v9820 = vpop.f32.mrb[0].mxu0
      %9821 = vmatprep.mubr.bf16.mxu0 0
      %9822 = vmatmul.mubr.bf16.gmra.mrb[0].mxu0 %v9688
      %v9823 = vpop.f32.mrb[0].mxu0
      %v9824 = vadd.f32 0.0, %v9823
      %v9825 = vpop.f32.mrb[0].mxu0
      %v9826 = vpop.f32.mrb[0].mxu0
      %v9827 = vadd.f32 0.0, %v9826
      %v9828 = vpop.f32.mrb[0].mxu0
      %9829 = vmatprep.mubr.bf16.mxu0 0
      %9830 = vmatmul.mubr.bf16.gmra.mrb[0].mxu0 %v9689
      %v9831 = vpop.f32.mrb[0].mxu0
      %v9832 = vadd.f32 0.0, %v9831
      %v9833 = vpop.f32.mrb[0].mxu0
      %v9834 = vpop.f32.mrb[0].mxu0
      %v9835 = vadd.f32 0.0, %v9834
      %v9836 = vpop.f32.mrb[0].mxu0
      %9837 = vmatprep.mubr.bf16.mxu0 0
      %9838 = vmatmul.mubr.bf16.gmra.mrb[0].mxu0 %v9690
      %v9839 = vpop.f32.mrb[0].mxu0
      %v9840 = vadd.f32 0.0, %v9839
      %v9841 = vpop.f32.mrb[0].mxu0
      %v9842 = vpop.f32.mrb[0].mxu0
      %v9843 = vadd.f32 0.0, %v9842
      %v9844 = vpop.f32.mrb[0].mxu0
      %9845 = vmatprep.mubr.bf16.mxu0 0
      %9846 = vmatmul.mubr.bf16.gmra.mrb[0].mxu0 %v9691
      %v9847 = vpop.f32.mrb[0].mxu0
      %v9848 = vadd.f32 0.0, %v9847
      %v9849 = vpop.f32.mrb[0].mxu0
      %v9850 = vpop.f32.mrb[0].mxu0
      %v9851 = vadd.f32 0.0, %v9850
      %v9852 = vpop.f32.mrb[0].mxu0
      %9853 = vmatprep.mubr.bf16.mxu0 0
      %9854 = vmatmul.mubr.bf16.gmra.mrb[0].mxu0 %v9692
      %v9855 = vpop.f32.mrb[0].mxu0
      %v9856 = vadd.f32 0.0, %v9855
      %v9857 = vpop.f32.mrb[0].mxu0
      %v9858 = vpop.f32.mrb[0].mxu0
      %v9859 = vadd.f32 0.0, %v9858
      %v9860 = vpop.f32.mrb[0].mxu0
      %9861 = vmatprep.mubr.bf16.mxu0 0
      %9862 = vmatmul.mubr.bf16.gmra.mrb[0].mxu0 %v9693
      %v9863 = vpop.f32.mrb[0].mxu0
      %v9864 = vadd.f32 0.0, %v9863
      %v9865 = vpop.f32.mrb[0].mxu0
      %v9866 = vpop.f32.mrb[0].mxu0
      %v9867 = vadd.f32 0.0, %v9866
      %v9868 = vpop.f32.mrb[0].mxu0
      %9869 = vmatprep.mubr.bf16.mxu0 0
      %9870 = vmatmul.mubr.bf16.gmra.mrb[0].mxu0 %v9694
      %v9871 = vpop.f32.mrb[0].mxu0
      %v9872 = vadd.f32 0.0, %v9871
      %v9873 = vpop.f32.mrb[0].mxu0
      %v9874 = vpop.f32.mrb[0].mxu0
      %v9875 = vadd.f32 0.0, %v9874
      %v9876 = vpop.f32.mrb[0].mxu0
      %9877 = vmatprep.mubr.bf16.mxu0 0
      %9878 = vmatmul.mubr.bf16.gmra.mrb[0].mxu0 %v9695
      %v9879 = vpop.f32.mrb[0].mxu0
      %v9880 = vadd.f32 0.0, %v9879
      %v9881 = vpop.f32.mrb[0].mxu0
      %v9882 = vpop.f32.mrb[0].mxu0
      %v9883 = vadd.f32 0.0, %v9882
      %v9884 = vpop.f32.mrb[0].mxu0
      %9885 = vmatprep.mubr.bf16.mxu0 0
      %9886 = vmatmul.mubr.bf16.gmra.mrb[0].mxu0 %v9696
      %v9887 = vpop.f32.mrb[0].mxu0
      %v9888 = vadd.f32 0.0, %v9887
      %v9889 = vpop.f32.mrb[0].mxu0
      %v9890 = vpop.f32.mrb[0].mxu0
      %v9891 = vadd.f32 0.0, %v9890
      %v9892 = vpop.f32.mrb[0].mxu0
      %9893 = vmatprep.mubr.bf16.mxu0 0
      %9894 = vmatmul.mubr.bf16.gmra.mrb[0].mxu0 %v9697
      %v9895 = vpop.f32.mrb[0].mxu0
      %v9896 = vadd.f32 0.0, %v9895
      %v9897 = vpop.f32.mrb[0].mxu0
      %v9898 = vpop.f32.mrb[0].mxu0
      %v9899 = vadd.f32 0.0, %v9898
      %v9900 = vpop.f32.mrb[0].mxu0
      %9901 = vmatprep.mubr.bf16.mxu0 0
      %9902 = vmatmul.mubr.bf16.gmra.mrb[0].mxu0 %v9698
      %v9903 = vpop.f32.mrb[0].mxu0
      %v9904 = vadd.f32 0.0, %v9903
      %v9905 = vpop.f32.mrb[0].mxu0
      %v9906 = vpop.f32.mrb[0].mxu0
      %v9907 = vadd.f32 0.0, %v9906
      %v9908 = vpop.f32.mrb[0].mxu0
      %9909 = vmatprep.mubr.bf16.mxu0 0
      %9910 = vmatmul.mubr.bf16.gmra.mrb[0].mxu0 %v9699
      %v9911 = vpop.f32.mrb[0].mxu0
      %v9912 = vadd.f32 0.0, %v9911
      %v9913 = vpop.f32.mrb[0].mxu0
      %v9914 = vpop.f32.mrb[0].mxu0
      %v9915 = vadd.f32 0.0, %v9914
      %v9916 = vpop.f32.mrb[0].mxu0
      %9917 = vmatprep.mubr.bf16.mxu0 0
      %9918 = vmatmul.mubr.bf16.gmra.mrb[0].mxu0 %v9700
      %v9919 = vpop.f32.mrb[0].mxu0
      %v9920 = vadd.f32 0.0, %v9919
      %v9921 = vpop.f32.mrb[0].mxu0
      %v9922 = vpop.f32.mrb[0].mxu0
      %v9923 = vadd.f32 0.0, %v9922
      %v9924 = vpop.f32.mrb[0].mxu0
      %9925 = vdwg.mxu0
      %v9926 = vadd.f32 %v9572, %v9800
      %v9927 = vadd.f32 %v9573, %v9803
      %v9928 = vadd.f32 %v9574, %v9808
      %v9929 = vadd.f32 %v9575, %v9811
      %v9930 = vadd.f32 %v9576, %v9816
      %v9931 = vadd.f32 %v9577, %v9819
      %v9932 = vadd.f32 %v9578, %v9824
      %v9933 = vadd.f32 %v9579, %v9827
      %v9934 = vadd.f32 %v9580, %v9832
      %v9935 = vadd.f32 %v9581, %v9835
      %v9936 = vadd.f32 %v9582, %v9840
      %v9937 = vadd.f32 %v9583, %v9843
      %v9938 = vadd.f32 %v9584, %v9848
      %v9939 = vadd.f32 %v9585, %v9851
      %v9940 = vadd.f32 %v9586, %v9856
      %v9941 = vadd.f32 %v9587, %v9859
      %v9942 = vadd.f32 %v9588, %v9864
      %v9943 = vadd.f32 %v9589, %v9867
      %v9944 = vadd.f32 %v9590, %v9872
      %v9945 = vadd.f32 %v9591, %v9875
      %v9946 = vadd.f32 %v9592, %v9880
      %v9947 = vadd.f32 %v9593, %v9883
      %v9948 = vadd.f32 %v9594, %v9888
      %v9949 = vadd.f32 %v9595, %v9891
      %v9950 = vadd.f32 %v9596, %v9896
      %v9951 = vadd.f32 %v9597, %v9899
      %v9952 = vadd.f32 %v9598, %v9904
      %v9953 = vadd.f32 %v9599, %v9907
      %v9954 = vadd.f32 %v9600, %v9912
      %v9955 = vadd.f32 %v9601, %v9915
      %v9956 = vadd.f32 %v9602, %v9920
      %v9957 = vadd.f32 %v9603, %v9923
      %v9958 = vld [vmem:[%s8881 + $0x4] sm:$0xf]
      %v9959 = vld [vmem:[%s8881 + $0x8] sm:$0xf]
      %v9960 = vld [vmem:[%s8881 + $0xc] sm:$0x1]
      %v9961 = vld [vmem:[%s8881 + $0x14] sm:$0xf]
      %v9962 = vld [vmem:[%s8881 + $0x18] sm:$0xf]
      %v9963 = vld [vmem:[%s8881 + $0x1c] sm:$0x1]
      %v9964 = vld [vmem:[%s8881 + $0x24] sm:$0xf]
      %v9965 = vld [vmem:[%s8881 + $0x28] sm:$0xf]
      %v9966 = vld [vmem:[%s8881 + $0x2c] sm:$0x1]
      %v9967 = vld [vmem:[%s8881 + $0x34] sm:$0xf]
      %v9968 = vld [vmem:[%s8881 + $0x38] sm:$0xf]
      %v9969 = vld [vmem:[%s8881 + $0x3c] sm:$0x1]
      %v9970 = vld [vmem:[%s8881 + $0x44] sm:$0xf]
      %v9971 = vld [vmem:[%s8881 + $0x48] sm:$0xf]
      %v9972 = vld [vmem:[%s8881 + $0x4c] sm:$0x1]
      %v9973 = vld [vmem:[%s8881 + $0x54] sm:$0xf]
      %v9974 = vld [vmem:[%s8881 + $0x58] sm:$0xf]
      %v9975 = vld [vmem:[%s8881 + $0x5c] sm:$0x1]
      %v9976 = vld [vmem:[%s8881 + $0x64] sm:$0xf]
      %v9977 = vld [vmem:[%s8881 + $0x68] sm:$0xf]
      %v9978 = vld [vmem:[%s8881 + $0x6c] sm:$0x1]
      %v9979 = vld [vmem:[%s8881 + $0x74] sm:$0xf]
      %v9980 = vld [vmem:[%s8881 + $0x78] sm:$0xf]
      %v9981 = vld [vmem:[%s8881 + $0x7c] sm:$0x1]
      %v9982 = vld [vmem:[%s8881 + $0x84] sm:$0xf]
      %v9983 = vld [vmem:[%s8881 + $0x88] sm:$0xf]
      %v9984 = vld [vmem:[%s8881 + $0x8c] sm:$0x1]
      %v9985 = vld [vmem:[%s8881 + $0x94] sm:$0xf]
      %v9986 = vld [vmem:[%s8881 + $0x98] sm:$0xf]
      %v9987 = vld [vmem:[%s8881 + $0x9c] sm:$0x1]
      %v9988 = vld [vmem:[%s8881 + $0xa4] sm:$0xf]
      %v9989 = vld [vmem:[%s8881 + $0xa8] sm:$0xf]
      %v9990 = vld [vmem:[%s8881 + $0xac] sm:$0x1]
      %v9991 = vld [vmem:[%s8881 + $0xb4] sm:$0xf]
      %v9992 = vld [vmem:[%s8881 + $0xb8] sm:$0xf]
      %v9993 = vld [vmem:[%s8881 + $0xbc] sm:$0x1]
      %v9994 = vld [vmem:[%s8881 + $0xc4] sm:$0xf]
      %v9995 = vld [vmem:[%s8881 + $0xc8] sm:$0xf]
      %v9996 = vld [vmem:[%s8881 + $0xcc] sm:$0x1]
      %v9997 = vld [vmem:[%s8881 + $0xd4] sm:$0xf]
      %v9998 = vld [vmem:[%s8881 + $0xd8] sm:$0xf]
      %v9999 = vld [vmem:[%s8881 + $0xdc] sm:$0x1]
      %v10000 = vld [vmem:[%s8881 + $0xe4] sm:$0xf]
      %v10001 = vld [vmem:[%s8881 + $0xe8] sm:$0xf]
      %v10002 = vld [vmem:[%s8881 + $0xec] sm:$0x1]
      %v10003 = vld [vmem:[%s8881 + $0xf4] sm:$0xf]
      %v10004 = vld [vmem:[%s8881 + $0xf8] sm:$0xf]
      %v10005 = vld [vmem:[%s8881 + $0xfc] sm:$0x1]
      %v10007 = vshrl.u32 %v9958, 16
      %v10009 = vrot.slane %v10007, 4
      %v10010 = vshll.u32 %v9958, 16
      %v10012 = vrot.slane %v10010, 5
      %v10013 = vor.u32 %v10009, %v10012
      %v10014 = vrot.slane %v10013, 4
      %v10016 = vshll.u32 %v9959, 16
      %v10018 = vrot.slane %v10016, 5
      %v10019 = vsel %vm338, %v10014, %v10018
      %v10020 = vshrl.u32 %v9959, 16
      %v10022 = vrot.slane %v10020, 4
      %v10023 = vor.u32 %v10022, %v10018
      %v10024 = vrot.slane %v10023, 4
      %v10026 = vshll.u32 %v9960, 16
      %v10028 = vrot.slane %v10026, 5
      %v10029 = vsel %vm338, %v10024, %v10028
      %v10031 = vshrl.u32 %v9961, 16
      %v10033 = vrot.slane %v10031, 4
      %v10034 = vshll.u32 %v9961, 16
      %v10036 = vrot.slane %v10034, 5
      %v10037 = vor.u32 %v10033, %v10036
      %v10038 = vrot.slane %v10037, 4
      %v10040 = vshll.u32 %v9962, 16
      %v10042 = vrot.slane %v10040, 5
      %v10043 = vsel %vm338, %v10038, %v10042
      %v10044 = vshrl.u32 %v9962, 16
      %v10046 = vrot.slane %v10044, 4
      %v10047 = vor.u32 %v10046, %v10042
      %v10048 = vrot.slane %v10047, 4
      %v10050 = vshll.u32 %v9963, 16
      %v10052 = vrot.slane %v10050, 5
      %v10053 = vsel %vm338, %v10048, %v10052
      %v10055 = vshrl.u32 %v9964, 16
      %v10057 = vrot.slane %v10055, 4
      %v10058 = vshll.u32 %v9964, 16
      %v10060 = vrot.slane %v10058, 5
      %v10061 = vor.u32 %v10057, %v10060
      %v10062 = vrot.slane %v10061, 4
      %v10064 = vshll.u32 %v9965, 16
      %v10066 = vrot.slane %v10064, 5
      %v10067 = vsel %vm338, %v10062, %v10066
      %v10068 = vshrl.u32 %v9965, 16
      %v10070 = vrot.slane %v10068, 4
      %v10071 = vor.u32 %v10070, %v10066
      %v10072 = vrot.slane %v10071, 4
      %v10074 = vshll.u32 %v9966, 16
      %v10076 = vrot.slane %v10074, 5
      %v10077 = vsel %vm338, %v10072, %v10076
      %v10079 = vshrl.u32 %v9967, 16
      %v10081 = vrot.slane %v10079, 4
      %v10082 = vshll.u32 %v9967, 16
      %v10084 = vrot.slane %v10082, 5
      %v10085 = vor.u32 %v10081, %v10084
      %v10086 = vrot.slane %v10085, 4
      %v10088 = vshll.u32 %v9968, 16
      %v10090 = vrot.slane %v10088, 5
      %v10091 = vsel %vm338, %v10086, %v10090
      %v10092 = vshrl.u32 %v9968, 16
      %v10094 = vrot.slane %v10092, 4
      %v10095 = vor.u32 %v10094, %v10090
      %v10096 = vrot.slane %v10095, 4
      %v10098 = vshll.u32 %v9969, 16
      %v10100 = vrot.slane %v10098, 5
      %v10101 = vsel %vm338, %v10096, %v10100
      %v10103 = vshrl.u32 %v9970, 16
      %v10105 = vrot.slane %v10103, 4
      %v10106 = vshll.u32 %v9970, 16
      %v10108 = vrot.slane %v10106, 5
      %v10109 = vor.u32 %v10105, %v10108
      %v10110 = vrot.slane %v10109, 4
      %v10112 = vshll.u32 %v9971, 16
      %v10114 = vrot.slane %v10112, 5
      %v10115 = vsel %vm338, %v10110, %v10114
      %v10116 = vshrl.u32 %v9971, 16
      %v10118 = vrot.slane %v10116, 4
      %v10119 = vor.u32 %v10118, %v10114
      %v10120 = vrot.slane %v10119, 4
      %v10122 = vshll.u32 %v9972, 16
      %v10124 = vrot.slane %v10122, 5
      %v10125 = vsel %vm338, %v10120, %v10124
      %v10127 = vshrl.u32 %v9973, 16
      %v10129 = vrot.slane %v10127, 4
      %v10130 = vshll.u32 %v9973, 16
      %v10132 = vrot.slane %v10130, 5
      %v10133 = vor.u32 %v10129, %v10132
      %v10134 = vrot.slane %v10133, 4
      %v10136 = vshll.u32 %v9974, 16
      %v10138 = vrot.slane %v10136, 5
      %v10139 = vsel %vm338, %v10134, %v10138
      %v10140 = vshrl.u32 %v9974, 16
      %v10142 = vrot.slane %v10140, 4
      %v10143 = vor.u32 %v10142, %v10138
      %v10144 = vrot.slane %v10143, 4
      %v10146 = vshll.u32 %v9975, 16
      %v10148 = vrot.slane %v10146, 5
      %v10149 = vsel %vm338, %v10144, %v10148
      %v10151 = vshrl.u32 %v9976, 16
      %v10153 = vrot.slane %v10151, 4
      %v10154 = vshll.u32 %v9976, 16
      %v10156 = vrot.slane %v10154, 5
      %v10157 = vor.u32 %v10153, %v10156
      %v10158 = vrot.slane %v10157, 4
      %v10160 = vshll.u32 %v9977, 16
      %v10162 = vrot.slane %v10160, 5
      %v10163 = vsel %vm338, %v10158, %v10162
      %v10164 = vshrl.u32 %v9977, 16
      %v10166 = vrot.slane %v10164, 4
      %v10167 = vor.u32 %v10166, %v10162
      %v10168 = vrot.slane %v10167, 4
      %v10170 = vshll.u32 %v9978, 16
      %v10172 = vrot.slane %v10170, 5
      %v10173 = vsel %vm338, %v10168, %v10172
      %v10175 = vshrl.u32 %v9979, 16
      %v10177 = vrot.slane %v10175, 4
      %v10178 = vshll.u32 %v9979, 16
      %v10180 = vrot.slane %v10178, 5
      %v10181 = vor.u32 %v10177, %v10180
      %v10182 = vrot.slane %v10181, 4
      %v10184 = vshll.u32 %v9980, 16
      %v10186 = vrot.slane %v10184, 5
      %v10187 = vsel %vm338, %v10182, %v10186
      %v10188 = vshrl.u32 %v9980, 16
      %v10190 = vrot.slane %v10188, 4
      %v10191 = vor.u32 %v10190, %v10186
      %v10192 = vrot.slane %v10191, 4
      %v10194 = vshll.u32 %v9981, 16
      %v10196 = vrot.slane %v10194, 5
      %v10197 = vsel %vm338, %v10192, %v10196
      %v10199 = vshrl.u32 %v9982, 16
      %v10201 = vrot.slane %v10199, 4
      %v10202 = vshll.u32 %v9982, 16
      %v10204 = vrot.slane %v10202, 5
      %v10205 = vor.u32 %v10201, %v10204
      %v10206 = vrot.slane %v10205, 4
      %v10208 = vshll.u32 %v9983, 16
      %v10210 = vrot.slane %v10208, 5
      %v10211 = vsel %vm338, %v10206, %v10210
      %v10212 = vshrl.u32 %v9983, 16
      %v10214 = vrot.slane %v10212, 4
      %v10215 = vor.u32 %v10214, %v10210
      %v10216 = vrot.slane %v10215, 4
      %v10218 = vshll.u32 %v9984, 16
      %v10220 = vrot.slane %v10218, 5
      %v10221 = vsel %vm338, %v10216, %v10220
      %v10223 = vshrl.u32 %v9985, 16
      %v10225 = vrot.slane %v10223, 4
      %v10226 = vshll.u32 %v9985, 16
      %v10228 = vrot.slane %v10226, 5
      %v10229 = vor.u32 %v10225, %v10228
      %v10230 = vrot.slane %v10229, 4
      %v10232 = vshll.u32 %v9986, 16
      %v10234 = vrot.slane %v10232, 5
      %v10235 = vsel %vm338, %v10230, %v10234
      %v10236 = vshrl.u32 %v9986, 16
      %v10238 = vrot.slane %v10236, 4
      %v10239 = vor.u32 %v10238, %v10234
      %v10240 = vrot.slane %v10239, 4
      %v10242 = vshll.u32 %v9987, 16
      %v10244 = vrot.slane %v10242, 5
      %v10245 = vsel %vm338, %v10240, %v10244
      %v10247 = vshrl.u32 %v9988, 16
      %v10249 = vrot.slane %v10247, 4
      %v10250 = vshll.u32 %v9988, 16
      %v10252 = vrot.slane %v10250, 5
      %v10253 = vor.u32 %v10249, %v10252
      %v10254 = vrot.slane %v10253, 4
      %v10256 = vshll.u32 %v9989, 16
      %v10258 = vrot.slane %v10256, 5
      %v10259 = vsel %vm338, %v10254, %v10258
      %v10260 = vshrl.u32 %v9989, 16
      %v10262 = vrot.slane %v10260, 4
      %v10263 = vor.u32 %v10262, %v10258
      %v10264 = vrot.slane %v10263, 4
      %v10266 = vshll.u32 %v9990, 16
      %v10268 = vrot.slane %v10266, 5
      %v10269 = vsel %vm338, %v10264, %v10268
      %v10271 = vshrl.u32 %v9991, 16
      %v10273 = vrot.slane %v10271, 4
      %v10274 = vshll.u32 %v9991, 16
      %v10276 = vrot.slane %v10274, 5
      %v10277 = vor.u32 %v10273, %v10276
      %v10278 = vrot.slane %v10277, 4
      %v10280 = vshll.u32 %v9992, 16
      %v10282 = vrot.slane %v10280, 5
      %v10283 = vsel %vm338, %v10278, %v10282
      %v10284 = vshrl.u32 %v9992, 16
      %v10286 = vrot.slane %v10284, 4
      %v10287 = vor.u32 %v10286, %v10282
      %v10288 = vrot.slane %v10287, 4
      %v10290 = vshll.u32 %v9993, 16
      %v10292 = vrot.slane %v10290, 5
      %v10293 = vsel %vm338, %v10288, %v10292
      %v10295 = vshrl.u32 %v9994, 16
      %v10297 = vrot.slane %v10295, 4
      %v10298 = vshll.u32 %v9994, 16
      %v10300 = vrot.slane %v10298, 5
      %v10301 = vor.u32 %v10297, %v10300
      %v10302 = vrot.slane %v10301, 4
      %v10304 = vshll.u32 %v9995, 16
      %v10306 = vrot.slane %v10304, 5
      %v10307 = vsel %vm338, %v10302, %v10306
      %v10308 = vshrl.u32 %v9995, 16
      %v10310 = vrot.slane %v10308, 4
      %v10311 = vor.u32 %v10310, %v10306
      %v10312 = vrot.slane %v10311, 4
      %v10314 = vshll.u32 %v9996, 16
      %v10316 = vrot.slane %v10314, 5
      %v10317 = vsel %vm338, %v10312, %v10316
      %v10319 = vshrl.u32 %v9997, 16
      %v10321 = vrot.slane %v10319, 4
      %v10322 = vshll.u32 %v9997, 16
      %v10324 = vrot.slane %v10322, 5
      %v10325 = vor.u32 %v10321, %v10324
      %v10326 = vrot.slane %v10325, 4
      %v10328 = vshll.u32 %v9998, 16
      %v10330 = vrot.slane %v10328, 5
      %v10331 = vsel %vm338, %v10326, %v10330
      %v10332 = vshrl.u32 %v9998, 16
      %v10334 = vrot.slane %v10332, 4
      %v10335 = vor.u32 %v10334, %v10330
      %v10336 = vrot.slane %v10335, 4
      %v10338 = vshll.u32 %v9999, 16
      %v10340 = vrot.slane %v10338, 5
      %v10341 = vsel %vm338, %v10336, %v10340
      %v10343 = vshrl.u32 %v10000, 16
      %v10345 = vrot.slane %v10343, 4
      %v10346 = vshll.u32 %v10000, 16
      %v10348 = vrot.slane %v10346, 5
      %v10349 = vor.u32 %v10345, %v10348
      %v10350 = vrot.slane %v10349, 4
      %v10352 = vshll.u32 %v10001, 16
      %v10354 = vrot.slane %v10352, 5
      %v10355 = vsel %vm338, %v10350, %v10354
      %v10356 = vshrl.u32 %v10001, 16
      %v10358 = vrot.slane %v10356, 4
      %v10359 = vor.u32 %v10358, %v10354
      %v10360 = vrot.slane %v10359, 4
      %v10362 = vshll.u32 %v10002, 16
      %v10364 = vrot.slane %v10362, 5
      %v10365 = vsel %vm338, %v10360, %v10364
      %v10367 = vshrl.u32 %v10003, 16
      %v10369 = vrot.slane %v10367, 4
      %v10370 = vshll.u32 %v10003, 16
      %v10372 = vrot.slane %v10370, 5
      %v10373 = vor.u32 %v10369, %v10372
      %v10374 = vrot.slane %v10373, 4
      %v10376 = vshll.u32 %v10004, 16
      %v10378 = vrot.slane %v10376, 5
      %v10379 = vsel %vm338, %v10374, %v10378
      %v10380 = vshrl.u32 %v10004, 16
      %v10382 = vrot.slane %v10380, 4
      %v10383 = vor.u32 %v10382, %v10378
      %v10384 = vrot.slane %v10383, 4
      %v10386 = vshll.u32 %v10005, 16
      %v10388 = vrot.slane %v10386, 5
      %v10389 = vsel %vm338, %v10384, %v10388
      %s10390 = scalar_lea.vmem %s3, 320
      %v10391 = vld [vmem:[%s10390] sm:$0xf]
      %v10392 = vld [vmem:[%s10390 + $0x4] sm:$0xf]
      %v10393 = vld [vmem:[%s10390 + $0x8] sm:$0xf]
      %v10394 = vld [vmem:[%s10390 + $0xc] sm:$0xf]
      %v10395 = vld [vmem:[%s10390 + $0x10] sm:$0xf]
      %v10396 = vld [vmem:[%s10390 + $0x14] sm:$0xf]
      %v10397 = vld [vmem:[%s10390 + $0x18] sm:$0xf]
      %v10398 = vld [vmem:[%s10390 + $0x1c] sm:$0xf]
      %v10399 = vld [vmem:[%s10390 + $0x20] sm:$0xf]
      %v10400 = vld [vmem:[%s10390 + $0x24] sm:$0xf]
      %v10401 = vld [vmem:[%s10390 + $0x28] sm:$0xf]
      %v10402 = vld [vmem:[%s10390 + $0x2c] sm:$0xf]
      %v10403 = vld [vmem:[%s10390 + $0x30] sm:$0xf]
      %v10404 = vld [vmem:[%s10390 + $0x34] sm:$0xf]
      %v10405 = vld [vmem:[%s10390 + $0x38] sm:$0xf]
      %v10406 = vld [vmem:[%s10390 + $0x3c] sm:$0xf]
      %v10407 = vunpack.c.l.b16 %v10019
      %v10408 = vunpack.c.l.b16 %v10029
      %v10409 = vunpack.c.l.b16 %v10043
      %v10410 = vunpack.c.l.b16 %v10053
      %v10411 = vunpack.c.l.b16 %v10067
      %v10412 = vunpack.c.l.b16 %v10077
      %v10413 = vunpack.c.l.b16 %v10091
      %v10414 = vunpack.c.l.b16 %v10101
      %v10415 = vunpack.c.l.b16 %v10115
      %v10416 = vunpack.c.l.b16 %v10125
      %v10417 = vunpack.c.l.b16 %v10139
      %v10418 = vunpack.c.l.b16 %v10149
      %v10419 = vunpack.c.l.b16 %v10163
      %v10420 = vunpack.c.l.b16 %v10173
      %v10421 = vunpack.c.l.b16 %v10187
      %v10422 = vunpack.c.l.b16 %v10197
      %v10423 = vunpack.c.l.b16 %v10211
      %v10424 = vunpack.c.l.b16 %v10221
      %v10425 = vunpack.c.l.b16 %v10235
      %v10426 = vunpack.c.l.b16 %v10245
      %v10427 = vunpack.c.l.b16 %v10259
      %v10428 = vunpack.c.l.b16 %v10269
      %v10429 = vunpack.c.l.b16 %v10283
      %v10430 = vunpack.c.l.b16 %v10293
      %v10431 = vunpack.c.l.b16 %v10307
      %v10432 = vunpack.c.l.b16 %v10317
      %v10433 = vunpack.c.l.b16 %v10331
      %v10434 = vunpack.c.l.b16 %v10341
      %v10435 = vunpack.c.l.b16 %v10355
      %v10436 = vunpack.c.l.b16 %v10365
      %v10437 = vunpack.c.l.b16 %v10379
      %v10438 = vunpack.c.l.b16 %v10389
      %v10439 = vpack.c.b16 %v10408, %v10407
      %v10440 = vpack.c.b16 %v10410, %v10409
      %v10441 = vpack.c.b16 %v10412, %v10411
      %v10442 = vpack.c.b16 %v10414, %v10413
      %v10443 = vpack.c.b16 %v10416, %v10415
      %v10444 = vpack.c.b16 %v10418, %v10417
      %v10445 = vpack.c.b16 %v10420, %v10419
      %v10446 = vpack.c.b16 %v10422, %v10421
      %v10447 = vpack.c.b16 %v10424, %v10423
      %v10448 = vpack.c.b16 %v10426, %v10425
      %v10449 = vpack.c.b16 %v10428, %v10427
      %v10450 = vpack.c.b16 %v10430, %v10429
      %v10451 = vpack.c.b16 %v10432, %v10431
      %v10452 = vpack.c.b16 %v10434, %v10433
      %v10453 = vpack.c.b16 %v10436, %v10435
      %v10454 = vpack.c.b16 %v10438, %v10437
      %v10487 = vunpack.c.l.b16 %v10391
      %v10488 = vunpack.c.l.b16 %v10392
      %v10489 = vunpack.c.l.b16 %v10393
      %v10490 = vunpack.c.l.b16 %v10394
      %v10491 = vunpack.c.l.b16 %v10395
      %v10492 = vunpack.c.l.b16 %v10396
      %v10493 = vunpack.c.l.b16 %v10397
      %v10494 = vunpack.c.l.b16 %v10398
      %v10495 = vunpack.c.l.b16 %v10399
      %v10496 = vunpack.c.l.b16 %v10400
      %v10497 = vunpack.c.l.b16 %v10401
      %v10498 = vunpack.c.l.b16 %v10402
      %v10499 = vunpack.c.l.b16 %v10403
      %v10500 = vunpack.c.l.b16 %v10404
      %v10501 = vunpack.c.l.b16 %v10405
      %v10502 = vunpack.c.l.b16 %v10406
      %v10503 = vpack.c.b16 %v10488, %v10487
      %v10504 = vpack.c.b16 %v10490, %v10489
      %v10505 = vpack.c.b16 %v10492, %v10491
      %v10506 = vpack.c.b16 %v10494, %v10493
      %v10507 = vpack.c.b16 %v10496, %v10495
      %v10508 = vpack.c.b16 %v10498, %v10497
      %v10509 = vpack.c.b16 %v10500, %v10499
      %v10510 = vpack.c.b16 %v10502, %v10501
      %10519 = vmatprep.subr.bf16.mxu0 0
      %10520 = vmatpush1.bf16.msra.mxu0 %v10503
      %10521 = vmatprep.subr.bf16.mxu0 0
      %10522 = vmatpush1.bf16.msra.mxu0 %v10504
      %10523 = vmatprep.subr.bf16.mxu0 0
      %10524 = vmatpush1.bf16.msra.mxu0 %v10505
      %10525 = vmatprep.subr.bf16.mxu0 0
      %10526 = vmatpush1.bf16.msra.mxu0 %v10506
      %10527 = vmatprep.subr.bf16.mxu0 0
      %10528 = vmatpush1.bf16.msra.mxu0 %v10507
      %10529 = vmatprep.subr.bf16.mxu0 0
      %10530 = vmatpush1.bf16.msra.mxu0 %v10508
      %10531 = vmatprep.subr.bf16.mxu0 0
      %10532 = vmatpush1.bf16.msra.mxu0 %v10509
      %10533 = vmatprep.subr.bf16.mxu0 0
      %10534 = vmatpush1.bf16.msra.mxu0 %v10510
      %10535 = vmatprep.subr.bf16.mxu0 0
      %10536 = vmatpush1.bf16.msra.mxu0 0
      %10537 = vmatprep.subr.bf16.mxu0 0
      %10538 = vmatpush1.bf16.msra.mxu0 0
      %10539 = vmatprep.subr.bf16.mxu0 0
      %10540 = vmatpush1.bf16.msra.mxu0 0
      %10541 = vmatprep.subr.bf16.mxu0 0
      %10542 = vmatpush1.bf16.msra.mxu0 0
      %10543 = vmatprep.subr.bf16.mxu0 0
      %10544 = vmatpush1.bf16.msra.mxu0 0
      %10545 = vmatprep.subr.bf16.mxu0 0
      %10546 = vmatpush1.bf16.msra.mxu0 0
      %10547 = vmatprep.subr.bf16.mxu0 0
      %10548 = vmatpush1.bf16.msra.mxu0 0
      %10549 = vmatprep.subr.bf16.mxu0 0
      %10550 = vmatpush1.bf16.msra.mxu0 0
      %10551 = vmatprep.mubr.bf16.mxu0 0
      %10552 = vmatmul.mubr.bf16.gmra.mrb[0].mxu0 %v10439
      %v10553 = vpop.f32.mrb[0].mxu0
      %v10554 = vadd.f32 0.0, %v10553
      %v10555 = vpop.f32.mrb[0].mxu0
      %v10556 = vpop.f32.mrb[0].mxu0
      %v10557 = vadd.f32 0.0, %v10556
      %v10558 = vpop.f32.mrb[0].mxu0
      %10559 = vmatprep.mubr.bf16.mxu0 0
      %10560 = vmatmul.mubr.bf16.gmra.mrb[0].mxu0 %v10440
      %v10561 = vpop.f32.mrb[0].mxu0
      %v10562 = vadd.f32 0.0, %v10561
      %v10563 = vpop.f32.mrb[0].mxu0
      %v10564 = vpop.f32.mrb[0].mxu0
      %v10565 = vadd.f32 0.0, %v10564
      %v10566 = vpop.f32.mrb[0].mxu0
      %10567 = vmatprep.mubr.bf16.mxu0 0
      %10568 = vmatmul.mubr.bf16.gmra.mrb[0].mxu0 %v10441
      %v10569 = vpop.f32.mrb[0].mxu0
      %v10570 = vadd.f32 0.0, %v10569
      %v10571 = vpop.f32.mrb[0].mxu0
      %v10572 = vpop.f32.mrb[0].mxu0
      %v10573 = vadd.f32 0.0, %v10572
      %v10574 = vpop.f32.mrb[0].mxu0
      %10575 = vmatprep.mubr.bf16.mxu0 0
      %10576 = vmatmul.mubr.bf16.gmra.mrb[0].mxu0 %v10442
      %v10577 = vpop.f32.mrb[0].mxu0
      %v10578 = vadd.f32 0.0, %v10577
      %v10579 = vpop.f32.mrb[0].mxu0
      %v10580 = vpop.f32.mrb[0].mxu0
      %v10581 = vadd.f32 0.0, %v10580
      %v10582 = vpop.f32.mrb[0].mxu0
      %10583 = vmatprep.mubr.bf16.mxu0 0
      %10584 = vmatmul.mubr.bf16.gmra.mrb[0].mxu0 %v10443
      %v10585 = vpop.f32.mrb[0].mxu0
      %v10586 = vadd.f32 0.0, %v10585
      %v10587 = vpop.f32.mrb[0].mxu0
      %v10588 = vpop.f32.mrb[0].mxu0
      %v10589 = vadd.f32 0.0, %v10588
      %v10590 = vpop.f32.mrb[0].mxu0
      %10591 = vmatprep.mubr.bf16.mxu0 0
      %10592 = vmatmul.mubr.bf16.gmra.mrb[0].mxu0 %v10444
      %v10593 = vpop.f32.mrb[0].mxu0
      %v10594 = vadd.f32 0.0, %v10593
      %v10595 = vpop.f32.mrb[0].mxu0
      %v10596 = vpop.f32.mrb[0].mxu0
      %v10597 = vadd.f32 0.0, %v10596
      %v10598 = vpop.f32.mrb[0].mxu0
      %10599 = vmatprep.mubr.bf16.mxu0 0
      %10600 = vmatmul.mubr.bf16.gmra.mrb[0].mxu0 %v10445
      %v10601 = vpop.f32.mrb[0].mxu0
      %v10602 = vadd.f32 0.0, %v10601
      %v10603 = vpop.f32.mrb[0].mxu0
      %v10604 = vpop.f32.mrb[0].mxu0
      %v10605 = vadd.f32 0.0, %v10604
      %v10606 = vpop.f32.mrb[0].mxu0
      %10607 = vmatprep.mubr.bf16.mxu0 0
      %10608 = vmatmul.mubr.bf16.gmra.mrb[0].mxu0 %v10446
      %v10609 = vpop.f32.mrb[0].mxu0
      %v10610 = vadd.f32 0.0, %v10609
      %v10611 = vpop.f32.mrb[0].mxu0
      %v10612 = vpop.f32.mrb[0].mxu0
      %v10613 = vadd.f32 0.0, %v10612
      %v10614 = vpop.f32.mrb[0].mxu0
      %10615 = vmatprep.mubr.bf16.mxu0 0
      %10616 = vmatmul.mubr.bf16.gmra.mrb[0].mxu0 %v10447
      %v10617 = vpop.f32.mrb[0].mxu0
      %v10618 = vadd.f32 0.0, %v10617
      %v10619 = vpop.f32.mrb[0].mxu0
      %v10620 = vpop.f32.mrb[0].mxu0
      %v10621 = vadd.f32 0.0, %v10620
      %v10622 = vpop.f32.mrb[0].mxu0
      %10623 = vmatprep.mubr.bf16.mxu0 0
      %10624 = vmatmul.mubr.bf16.gmra.mrb[0].mxu0 %v10448
      %v10625 = vpop.f32.mrb[0].mxu0
      %v10626 = vadd.f32 0.0, %v10625
      %v10627 = vpop.f32.mrb[0].mxu0
      %v10628 = vpop.f32.mrb[0].mxu0
      %v10629 = vadd.f32 0.0, %v10628
      %v10630 = vpop.f32.mrb[0].mxu0
      %10631 = vmatprep.mubr.bf16.mxu0 0
      %10632 = vmatmul.mubr.bf16.gmra.mrb[0].mxu0 %v10449
      %v10633 = vpop.f32.mrb[0].mxu0
      %v10634 = vadd.f32 0.0, %v10633
      %v10635 = vpop.f32.mrb[0].mxu0
      %v10636 = vpop.f32.mrb[0].mxu0
      %v10637 = vadd.f32 0.0, %v10636
      %v10638 = vpop.f32.mrb[0].mxu0
      %10639 = vmatprep.mubr.bf16.mxu0 0
      %10640 = vmatmul.mubr.bf16.gmra.mrb[0].mxu0 %v10450
      %v10641 = vpop.f32.mrb[0].mxu0
      %v10642 = vadd.f32 0.0, %v10641
      %v10643 = vpop.f32.mrb[0].mxu0
      %v10644 = vpop.f32.mrb[0].mxu0
      %v10645 = vadd.f32 0.0, %v10644
      %v10646 = vpop.f32.mrb[0].mxu0
      %10647 = vmatprep.mubr.bf16.mxu0 0
      %10648 = vmatmul.mubr.bf16.gmra.mrb[0].mxu0 %v10451
      %v10649 = vpop.f32.mrb[0].mxu0
      %v10650 = vadd.f32 0.0, %v10649
      %v10651 = vpop.f32.mrb[0].mxu0
      %v10652 = vpop.f32.mrb[0].mxu0
      %v10653 = vadd.f32 0.0, %v10652
      %v10654 = vpop.f32.mrb[0].mxu0
      %10655 = vmatprep.mubr.bf16.mxu0 0
      %10656 = vmatmul.mubr.bf16.gmra.mrb[0].mxu0 %v10452
      %v10657 = vpop.f32.mrb[0].mxu0
      %v10658 = vadd.f32 0.0, %v10657
      %v10659 = vpop.f32.mrb[0].mxu0
      %v10660 = vpop.f32.mrb[0].mxu0
      %v10661 = vadd.f32 0.0, %v10660
      %v10662 = vpop.f32.mrb[0].mxu0
      %10663 = vmatprep.mubr.bf16.mxu0 0
      %10664 = vmatmul.mubr.bf16.gmra.mrb[0].mxu0 %v10453
      %v10665 = vpop.f32.mrb[0].mxu0
      %v10666 = vadd.f32 0.0, %v10665
      %v10667 = vpop.f32.mrb[0].mxu0
      %v10668 = vpop.f32.mrb[0].mxu0
      %v10669 = vadd.f32 0.0, %v10668
      %v10670 = vpop.f32.mrb[0].mxu0
      %10671 = vmatprep.mubr.bf16.mxu0 0
      %10672 = vmatmul.mubr.bf16.gmra.mrb[0].mxu0 %v10454
      %v10673 = vpop.f32.mrb[0].mxu0
      %v10674 = vadd.f32 0.0, %v10673
      %v10675 = vpop.f32.mrb[0].mxu0
      %v10676 = vpop.f32.mrb[0].mxu0
      %v10677 = vadd.f32 0.0, %v10676
      %v10678 = vpop.f32.mrb[0].mxu0
      %10679 = vdwg.mxu0
      %v10680 = vadd.f32 %v9926, %v10554
      %v10681 = vadd.f32 %v9927, %v10557
      %v10682 = vadd.f32 %v9928, %v10562
      %v10683 = vadd.f32 %v9929, %v10565
      %v10684 = vadd.f32 %v9930, %v10570
      %v10685 = vadd.f32 %v9931, %v10573
      %v10686 = vadd.f32 %v9932, %v10578
      %v10687 = vadd.f32 %v9933, %v10581
      %v10688 = vadd.f32 %v9934, %v10586
      %v10689 = vadd.f32 %v9935, %v10589
      %v10690 = vadd.f32 %v9936, %v10594
      %v10691 = vadd.f32 %v9937, %v10597
      %v10692 = vadd.f32 %v9938, %v10602
      %v10693 = vadd.f32 %v9939, %v10605
      %v10694 = vadd.f32 %v9940, %v10610
      %v10695 = vadd.f32 %v9941, %v10613
      %v10696 = vadd.f32 %v9942, %v10618
      %v10697 = vadd.f32 %v9943, %v10621
      %v10698 = vadd.f32 %v9944, %v10626
      %v10699 = vadd.f32 %v9945, %v10629
      %v10700 = vadd.f32 %v9946, %v10634
      %v10701 = vadd.f32 %v9947, %v10637
      %v10702 = vadd.f32 %v9948, %v10642
      %v10703 = vadd.f32 %v9949, %v10645
      %v10704 = vadd.f32 %v9950, %v10650
      %v10705 = vadd.f32 %v9951, %v10653
      %v10706 = vadd.f32 %v9952, %v10658
      %v10707 = vadd.f32 %v9953, %v10661
      %v10708 = vadd.f32 %v9954, %v10666
      %v10709 = vadd.f32 %v9955, %v10669
      %v10710 = vadd.f32 %v9956, %v10674
      %v10711 = vadd.f32 %v9957, %v10677
      %s10712 = scalar_lea.vmem [#allocation2], 32
      %v10713 = vld [vmem:[%s10712] sm:$0x8]
      %v10714 = vld [vmem:[%s10712 + $0x4] sm:$0xf]
      %v10715 = vld [vmem:[%s10712 + $0x8] sm:$0xf]
      %v10716 = vld [vmem:[%s10712 + $0x10] sm:$0x8]
      %v10717 = vld [vmem:[%s10712 + $0x14] sm:$0xf]
      %v10718 = vld [vmem:[%s10712 + $0x18] sm:$0xf]
      %v10719 = vld [vmem:[%s10712 + $0x20] sm:$0x8]
      %v10720 = vld [vmem:[%s10712 + $0x24] sm:$0xf]
      %v10721 = vld [vmem:[%s10712 + $0x28] sm:$0xf]
      %v10722 = vld [vmem:[%s10712 + $0x30] sm:$0x8]
      %v10723 = vld [vmem:[%s10712 + $0x34] sm:$0xf]
      %v10724 = vld [vmem:[%s10712 + $0x38] sm:$0xf]
      %v10725 = vld [vmem:[%s10712 + $0x40] sm:$0x8]
      %v10726 = vld [vmem:[%s10712 + $0x44] sm:$0xf]
      %v10727 = vld [vmem:[%s10712 + $0x48] sm:$0xf]
      %v10728 = vld [vmem:[%s10712 + $0x50] sm:$0x8]
      %v10729 = vld [vmem:[%s10712 + $0x54] sm:$0xf]
      %v10730 = vld [vmem:[%s10712 + $0x58] sm:$0xf]
      %v10731 = vld [vmem:[%s10712 + $0x60] sm:$0x8]
      %v10732 = vld [vmem:[%s10712 + $0x64] sm:$0xf]
      %v10733 = vld [vmem:[%s10712 + $0x68] sm:$0xf]
      %v10734 = vld [vmem:[%s10712 + $0x70] sm:$0x8]
      %v10735 = vld [vmem:[%s10712 + $0x74] sm:$0xf]
      %v10736 = vld [vmem:[%s10712 + $0x78] sm:$0xf]
      %v10737 = vld [vmem:[%s10712 + $0x80] sm:$0x8]
      %v10738 = vld [vmem:[%s10712 + $0x84] sm:$0xf]
      %v10739 = vld [vmem:[%s10712 + $0x88] sm:$0xf]
      %v10740 = vld [vmem:[%s10712 + $0x90] sm:$0x8]
      %v10741 = vld [vmem:[%s10712 + $0x94] sm:$0xf]
      %v10742 = vld [vmem:[%s10712 + $0x98] sm:$0xf]
      %v10743 = vld [vmem:[%s10712 + $0xa0] sm:$0x8]
      %v10744 = vld [vmem:[%s10712 + $0xa4] sm:$0xf]
      %v10745 = vld [vmem:[%s10712 + $0xa8] sm:$0xf]
      %v10746 = vld [vmem:[%s10712 + $0xb0] sm:$0x8]
      %v10747 = vld [vmem:[%s10712 + $0xb4] sm:$0xf]
      %v10748 = vld [vmem:[%s10712 + $0xb8] sm:$0xf]
      %v10749 = vld [vmem:[%s10712 + $0xc0] sm:$0x8]
      %v10750 = vld [vmem:[%s10712 + $0xc4] sm:$0xf]
      %v10751 = vld [vmem:[%s10712 + $0xc8] sm:$0xf]
      %v10752 = vld [vmem:[%s10712 + $0xd0] sm:$0x8]
      %v10753 = vld [vmem:[%s10712 + $0xd4] sm:$0xf]
      %v10754 = vld [vmem:[%s10712 + $0xd8] sm:$0xf]
      %v10755 = vld [vmem:[%s10712 + $0xe0] sm:$0x8]
      %v10756 = vld [vmem:[%s10712 + $0xe4] sm:$0xf]
      %v10757 = vld [vmem:[%s10712 + $0xe8] sm:$0xf]
      %v10758 = vld [vmem:[%s10712 + $0xf0] sm:$0x8]
      %v10759 = vld [vmem:[%s10712 + $0xf4] sm:$0xf]
      %v10760 = vld [vmem:[%s10712 + $0xf8] sm:$0xf]
      %v10762 = vshrl.u32 %v10713, 16
      %v10764 = vrot.slane %v10762, 7
      %v10765 = vrot.slane %v10764, 4
      %v10767 = vshrl.u32 %v10714, 16
      %v10769 = vrot.slane %v10767, 7
      %v10770 = vshll.u32 %v10714, 16
      %v10772 = vor.u32 %v10769, %v10770
      %v10773 = vsel %vm7163, %v10765, %v10772
      %v10774 = vrot.slane %v10769, 4
      %v10776 = vshrl.u32 %v10715, 16
      %v10778 = vrot.slane %v10776, 7
      %v10779 = vshll.u32 %v10715, 16
      %v10781 = vor.u32 %v10778, %v10779
      %v10782 = vsel %vm7163, %v10774, %v10781
      %v10784 = vshrl.u32 %v10716, 16
      %v10786 = vrot.slane %v10784, 7
      %v10787 = vrot.slane %v10786, 4
      %v10789 = vshrl.u32 %v10717, 16
      %v10791 = vrot.slane %v10789, 7
      %v10792 = vshll.u32 %v10717, 16
      %v10794 = vor.u32 %v10791, %v10792
      %v10795 = vsel %vm7163, %v10787, %v10794
      %v10796 = vrot.slane %v10791, 4
      %v10798 = vshrl.u32 %v10718, 16
      %v10800 = vrot.slane %v10798, 7
      %v10801 = vshll.u32 %v10718, 16
      %v10803 = vor.u32 %v10800, %v10801
      %v10804 = vsel %vm7163, %v10796, %v10803
      %v10806 = vshrl.u32 %v10719, 16
      %v10808 = vrot.slane %v10806, 7
      %v10809 = vrot.slane %v10808, 4
      %v10811 = vshrl.u32 %v10720, 16
      %v10813 = vrot.slane %v10811, 7
      %v10814 = vshll.u32 %v10720, 16
      %v10816 = vor.u32 %v10813, %v10814
      %v10817 = vsel %vm7163, %v10809, %v10816
      %v10818 = vrot.slane %v10813, 4
      %v10820 = vshrl.u32 %v10721, 16
      %v10822 = vrot.slane %v10820, 7
      %v10823 = vshll.u32 %v10721, 16
      %v10825 = vor.u32 %v10822, %v10823
      %v10826 = vsel %vm7163, %v10818, %v10825
      %v10828 = vshrl.u32 %v10722, 16
      %v10830 = vrot.slane %v10828, 7
      %v10831 = vrot.slane %v10830, 4
      %v10833 = vshrl.u32 %v10723, 16
      %v10835 = vrot.slane %v10833, 7
      %v10836 = vshll.u32 %v10723, 16
      %v10838 = vor.u32 %v10835, %v10836
      %v10839 = vsel %vm7163, %v10831, %v10838
      %v10840 = vrot.slane %v10835, 4
      %v10842 = vshrl.u32 %v10724, 16
      %v10844 = vrot.slane %v10842, 7
      %v10845 = vshll.u32 %v10724, 16
      %v10847 = vor.u32 %v10844, %v10845
      %v10848 = vsel %vm7163, %v10840, %v10847
      %v10850 = vshrl.u32 %v10725, 16
      %v10852 = vrot.slane %v10850, 7
      %v10853 = vrot.slane %v10852, 4
      %v10855 = vshrl.u32 %v10726, 16
      %v10857 = vrot.slane %v10855, 7
      %v10858 = vshll.u32 %v10726, 16
      %v10860 = vor.u32 %v10857, %v10858
      %v10861 = vsel %vm7163, %v10853, %v10860
      %v10862 = vrot.slane %v10857, 4
      %v10864 = vshrl.u32 %v10727, 16
      %v10866 = vrot.slane %v10864, 7
      %v10867 = vshll.u32 %v10727, 16
      %v10869 = vor.u32 %v10866, %v10867
      %v10870 = vsel %vm7163, %v10862, %v10869
      %v10872 = vshrl.u32 %v10728, 16
      %v10874 = vrot.slane %v10872, 7
      %v10875 = vrot.slane %v10874, 4
      %v10877 = vshrl.u32 %v10729, 16
      %v10879 = vrot.slane %v10877, 7
      %v10880 = vshll.u32 %v10729, 16
      %v10882 = vor.u32 %v10879, %v10880
      %v10883 = vsel %vm7163, %v10875, %v10882
      %v10884 = vrot.slane %v10879, 4
      %v10886 = vshrl.u32 %v10730, 16
      %v10888 = vrot.slane %v10886, 7
      %v10889 = vshll.u32 %v10730, 16
      %v10891 = vor.u32 %v10888, %v10889
      %v10892 = vsel %vm7163, %v10884, %v10891
      %v10894 = vshrl.u32 %v10731, 16
      %v10896 = vrot.slane %v10894, 7
      %v10897 = vrot.slane %v10896, 4
      %v10899 = vshrl.u32 %v10732, 16
      %v10901 = vrot.slane %v10899, 7
      %v10902 = vshll.u32 %v10732, 16
      %v10904 = vor.u32 %v10901, %v10902
      %v10905 = vsel %vm7163, %v10897, %v10904
      %v10906 = vrot.slane %v10901, 4
      %v10908 = vshrl.u32 %v10733, 16
      %v10910 = vrot.slane %v10908, 7
      %v10911 = vshll.u32 %v10733, 16
      %v10913 = vor.u32 %v10910, %v10911
      %v10914 = vsel %vm7163, %v10906, %v10913
      %v10916 = vshrl.u32 %v10734, 16
      %v10918 = vrot.slane %v10916, 7
      %v10919 = vrot.slane %v10918, 4
      %v10921 = vshrl.u32 %v10735, 16
      %v10923 = vrot.slane %v10921, 7
      %v10924 = vshll.u32 %v10735, 16
      %v10926 = vor.u32 %v10923, %v10924
      %v10927 = vsel %vm7163, %v10919, %v10926
      %v10928 = vrot.slane %v10923, 4
      %v10930 = vshrl.u32 %v10736, 16
      %v10932 = vrot.slane %v10930, 7
      %v10933 = vshll.u32 %v10736, 16
      %v10935 = vor.u32 %v10932, %v10933
      %v10936 = vsel %vm7163, %v10928, %v10935
      %v10938 = vshrl.u32 %v10737, 16
      %v10940 = vrot.slane %v10938, 7
      %v10941 = vrot.slane %v10940, 4
      %v10943 = vshrl.u32 %v10738, 16
      %v10945 = vrot.slane %v10943, 7
      %v10946 = vshll.u32 %v10738, 16
      %v10948 = vor.u32 %v10945, %v10946
      %v10949 = vsel %vm7163, %v10941, %v10948
      %v10950 = vrot.slane %v10945, 4
      %v10952 = vshrl.u32 %v10739, 16
      %v10954 = vrot.slane %v10952, 7
      %v10955 = vshll.u32 %v10739, 16
      %v10957 = vor.u32 %v10954, %v10955
      %v10958 = vsel %vm7163, %v10950, %v10957
      %v10960 = vshrl.u32 %v10740, 16
      %v10962 = vrot.slane %v10960, 7
      %v10963 = vrot.slane %v10962, 4
      %v10965 = vshrl.u32 %v10741, 16
      %v10967 = vrot.slane %v10965, 7
      %v10968 = vshll.u32 %v10741, 16
      %v10970 = vor.u32 %v10967, %v10968
      %v10971 = vsel %vm7163, %v10963, %v10970
      %v10972 = vrot.slane %v10967, 4
      %v10974 = vshrl.u32 %v10742, 16
      %v10976 = vrot.slane %v10974, 7
      %v10977 = vshll.u32 %v10742, 16
      %v10979 = vor.u32 %v10976, %v10977
      %v10980 = vsel %vm7163, %v10972, %v10979
      %v10982 = vshrl.u32 %v10743, 16
      %v10984 = vrot.slane %v10982, 7
      %v10985 = vrot.slane %v10984, 4
      %v10987 = vshrl.u32 %v10744, 16
      %v10989 = vrot.slane %v10987, 7
      %v10990 = vshll.u32 %v10744, 16
      %v10992 = vor.u32 %v10989, %v10990
      %v10993 = vsel %vm7163, %v10985, %v10992
      %v10994 = vrot.slane %v10989, 4
      %v10996 = vshrl.u32 %v10745, 16
      %v10998 = vrot.slane %v10996, 7
      %v10999 = vshll.u32 %v10745, 16
      %v11001 = vor.u32 %v10998, %v10999
      %v11002 = vsel %vm7163, %v10994, %v11001
      %v11004 = vshrl.u32 %v10746, 16
      %v11006 = vrot.slane %v11004, 7
      %v11007 = vrot.slane %v11006, 4
      %v11009 = vshrl.u32 %v10747, 16
      %v11011 = vrot.slane %v11009, 7
      %v11012 = vshll.u32 %v10747, 16
      %v11014 = vor.u32 %v11011, %v11012
      %v11015 = vsel %vm7163, %v11007, %v11014
      %v11016 = vrot.slane %v11011, 4
      %v11018 = vshrl.u32 %v10748, 16
      %v11020 = vrot.slane %v11018, 7
      %v11021 = vshll.u32 %v10748, 16
      %v11023 = vor.u32 %v11020, %v11021
      %v11024 = vsel %vm7163, %v11016, %v11023
      %v11026 = vshrl.u32 %v10749, 16
      %v11028 = vrot.slane %v11026, 7
      %v11029 = vrot.slane %v11028, 4
      %v11031 = vshrl.u32 %v10750, 16
      %v11033 = vrot.slane %v11031, 7
      %v11034 = vshll.u32 %v10750, 16
      %v11036 = vor.u32 %v11033, %v11034
      %v11037 = vsel %vm7163, %v11029, %v11036
      %v11038 = vrot.slane %v11033, 4
      %v11040 = vshrl.u32 %v10751, 16
      %v11042 = vrot.slane %v11040, 7
      %v11043 = vshll.u32 %v10751, 16
      %v11045 = vor.u32 %v11042, %v11043
      %v11046 = vsel %vm7163, %v11038, %v11045
      %v11048 = vshrl.u32 %v10752, 16
      %v11050 = vrot.slane %v11048, 7
      %v11051 = vrot.slane %v11050, 4
      %v11053 = vshrl.u32 %v10753, 16
      %v11055 = vrot.slane %v11053, 7
      %v11056 = vshll.u32 %v10753, 16
      %v11058 = vor.u32 %v11055, %v11056
      %v11059 = vsel %vm7163, %v11051, %v11058
      %v11060 = vrot.slane %v11055, 4
      %v11062 = vshrl.u32 %v10754, 16
      %v11064 = vrot.slane %v11062, 7
      %v11065 = vshll.u32 %v10754, 16
      %v11067 = vor.u32 %v11064, %v11065
      %v11068 = vsel %vm7163, %v11060, %v11067
      %v11070 = vshrl.u32 %v10755, 16
      %v11072 = vrot.slane %v11070, 7
      %v11073 = vrot.slane %v11072, 4
      %v11075 = vshrl.u32 %v10756, 16
      %v11077 = vrot.slane %v11075, 7
      %v11078 = vshll.u32 %v10756, 16
      %v11080 = vor.u32 %v11077, %v11078
      %v11081 = vsel %vm7163, %v11073, %v11080
      %v11082 = vrot.slane %v11077, 4
      %v11084 = vshrl.u32 %v10757, 16
      %v11086 = vrot.slane %v11084, 7
      %v11087 = vshll.u32 %v10757, 16
      %v11089 = vor.u32 %v11086, %v11087
      %v11090 = vsel %vm7163, %v11082, %v11089
      %v11092 = vshrl.u32 %v10758, 16
      %v11094 = vrot.slane %v11092, 7
      %v11095 = vrot.slane %v11094, 4
      %v11097 = vshrl.u32 %v10759, 16
      %v11099 = vrot.slane %v11097, 7
      %v11100 = vshll.u32 %v10759, 16
      %v11102 = vor.u32 %v11099, %v11100
      %v11103 = vsel %vm7163, %v11095, %v11102
      %v11104 = vrot.slane %v11099, 4
      %v11106 = vshrl.u32 %v10760, 16
      %v11108 = vrot.slane %v11106, 7
      %v11109 = vshll.u32 %v10760, 16
      %v11111 = vor.u32 %v11108, %v11109
      %v11112 = vsel %vm7163, %v11104, %v11111
      %s11113 = scalar_lea.vmem %s3, 384
      %v11114 = vld [vmem:[%s11113] sm:$0xf]
      %v11115 = vld [vmem:[%s11113 + $0x4] sm:$0xf]
      %v11116 = vld [vmem:[%s11113 + $0x8] sm:$0xf]
      %v11117 = vld [vmem:[%s11113 + $0xc] sm:$0xf]
      %v11118 = vld [vmem:[%s11113 + $0x10] sm:$0xf]
      %v11119 = vld [vmem:[%s11113 + $0x14] sm:$0xf]
      %v11120 = vld [vmem:[%s11113 + $0x18] sm:$0xf]
      %v11121 = vld [vmem:[%s11113 + $0x1c] sm:$0xf]
      %v11122 = vld [vmem:[%s11113 + $0x20] sm:$0xf]
      %v11123 = vld [vmem:[%s11113 + $0x24] sm:$0xf]
      %v11124 = vld [vmem:[%s11113 + $0x28] sm:$0xf]
      %v11125 = vld [vmem:[%s11113 + $0x2c] sm:$0xf]
      %v11126 = vld [vmem:[%s11113 + $0x30] sm:$0xf]
      %v11127 = vld [vmem:[%s11113 + $0x34] sm:$0xf]
      %v11128 = vld [vmem:[%s11113 + $0x38] sm:$0xf]
      %v11129 = vld [vmem:[%s11113 + $0x3c] sm:$0xf]
      %v11130 = vunpack.c.l.b16 %v10773
      %v11131 = vunpack.c.l.b16 %v10782
      %v11132 = vunpack.c.l.b16 %v10795
      %v11133 = vunpack.c.l.b16 %v10804
      %v11134 = vunpack.c.l.b16 %v10817
      %v11135 = vunpack.c.l.b16 %v10826
      %v11136 = vunpack.c.l.b16 %v10839
      %v11137 = vunpack.c.l.b16 %v10848
      %v11138 = vunpack.c.l.b16 %v10861
      %v11139 = vunpack.c.l.b16 %v10870
      %v11140 = vunpack.c.l.b16 %v10883
      %v11141 = vunpack.c.l.b16 %v10892
      %v11142 = vunpack.c.l.b16 %v10905
      %v11143 = vunpack.c.l.b16 %v10914
      %v11144 = vunpack.c.l.b16 %v10927
      %v11145 = vunpack.c.l.b16 %v10936
      %v11146 = vunpack.c.l.b16 %v10949
      %v11147 = vunpack.c.l.b16 %v10958
      %v11148 = vunpack.c.l.b16 %v10971
      %v11149 = vunpack.c.l.b16 %v10980
      %v11150 = vunpack.c.l.b16 %v10993
      %v11151 = vunpack.c.l.b16 %v11002
      %v11152 = vunpack.c.l.b16 %v11015
      %v11153 = vunpack.c.l.b16 %v11024
      %v11154 = vunpack.c.l.b16 %v11037
      %v11155 = vunpack.c.l.b16 %v11046
      %v11156 = vunpack.c.l.b16 %v11059
      %v11157 = vunpack.c.l.b16 %v11068
      %v11158 = vunpack.c.l.b16 %v11081
      %v11159 = vunpack.c.l.b16 %v11090
      %v11160 = vunpack.c.l.b16 %v11103
      %v11161 = vunpack.c.l.b16 %v11112
      %v11162 = vpack.c.b16 %v11131, %v11130
      %v11163 = vpack.c.b16 %v11133, %v11132
      %v11164 = vpack.c.b16 %v11135, %v11134
      %v11165 = vpack.c.b16 %v11137, %v11136
      %v11166 = vpack.c.b16 %v11139, %v11138
      %v11167 = vpack.c.b16 %v11141, %v11140
      %v11168 = vpack.c.b16 %v11143, %v11142
      %v11169 = vpack.c.b16 %v11145, %v11144
      %v11170 = vpack.c.b16 %v11147, %v11146
      %v11171 = vpack.c.b16 %v11149, %v11148
      %v11172 = vpack.c.b16 %v11151, %v11150
      %v11173 = vpack.c.b16 %v11153, %v11152
      %v11174 = vpack.c.b16 %v11155, %v11154
      %v11175 = vpack.c.b16 %v11157, %v11156
      %v11176 = vpack.c.b16 %v11159, %v11158
      %v11177 = vpack.c.b16 %v11161, %v11160
      %v11210 = vunpack.c.l.b16 %v11114
      %v11211 = vunpack.c.l.b16 %v11115
      %v11212 = vunpack.c.l.b16 %v11116
      %v11213 = vunpack.c.l.b16 %v11117
      %v11214 = vunpack.c.l.b16 %v11118
      %v11215 = vunpack.c.l.b16 %v11119
      %v11216 = vunpack.c.l.b16 %v11120
      %v11217 = vunpack.c.l.b16 %v11121
      %v11218 = vunpack.c.l.b16 %v11122
      %v11219 = vunpack.c.l.b16 %v11123
      %v11220 = vunpack.c.l.b16 %v11124
      %v11221 = vunpack.c.l.b16 %v11125
      %v11222 = vunpack.c.l.b16 %v11126
      %v11223 = vunpack.c.l.b16 %v11127
      %v11224 = vunpack.c.l.b16 %v11128
      %v11225 = vunpack.c.l.b16 %v11129
      %v11226 = vpack.c.b16 %v11211, %v11210
      %v11227 = vpack.c.b16 %v11213, %v11212
      %v11228 = vpack.c.b16 %v11215, %v11214
      %v11229 = vpack.c.b16 %v11217, %v11216
      %v11230 = vpack.c.b16 %v11219, %v11218
      %v11231 = vpack.c.b16 %v11221, %v11220
      %v11232 = vpack.c.b16 %v11223, %v11222
      %v11233 = vpack.c.b16 %v11225, %v11224
      %11242 = vmatprep.subr.bf16.mxu0 0
      %11243 = vmatpush1.bf16.msra.mxu0 %v11226
      %11244 = vmatprep.subr.bf16.mxu0 0
      %11245 = vmatpush1.bf16.msra.mxu0 %v11227
      %11246 = vmatprep.subr.bf16.mxu0 0
      %11247 = vmatpush1.bf16.msra.mxu0 %v11228
      %11248 = vmatprep.subr.bf16.mxu0 0
      %11249 = vmatpush1.bf16.msra.mxu0 %v11229
      %11250 = vmatprep.subr.bf16.mxu0 0
      %11251 = vmatpush1.bf16.msra.mxu0 %v11230
      %11252 = vmatprep.subr.bf16.mxu0 0
      %11253 = vmatpush1.bf16.msra.mxu0 %v11231
      %11254 = vmatprep.subr.bf16.mxu0 0
      %11255 = vmatpush1.bf16.msra.mxu0 %v11232
      %11256 = vmatprep.subr.bf16.mxu0 0
      %11257 = vmatpush1.bf16.msra.mxu0 %v11233
      %11258 = vmatprep.subr.bf16.mxu0 0
      %11259 = vmatpush1.bf16.msra.mxu0 0
      %11260 = vmatprep.subr.bf16.mxu0 0
      %11261 = vmatpush1.bf16.msra.mxu0 0
      %11262 = vmatprep.subr.bf16.mxu0 0
      %11263 = vmatpush1.bf16.msra.mxu0 0
      %11264 = vmatprep.subr.bf16.mxu0 0
      %11265 = vmatpush1.bf16.msra.mxu0 0
      %11266 = vmatprep.subr.bf16.mxu0 0
      %11267 = vmatpush1.bf16.msra.mxu0 0
      %11268 = vmatprep.subr.bf16.mxu0 0
      %11269 = vmatpush1.bf16.msra.mxu0 0
      %11270 = vmatprep.subr.bf16.mxu0 0
      %11271 = vmatpush1.bf16.msra.mxu0 0
      %11272 = vmatprep.subr.bf16.mxu0 0
      %11273 = vmatpush1.bf16.msra.mxu0 0
      %11274 = vmatprep.mubr.bf16.mxu0 0
      %11275 = vmatmul.mubr.bf16.gmra.mrb[0].mxu0 %v11162
      %v11276 = vpop.f32.mrb[0].mxu0
      %v11277 = vadd.f32 0.0, %v11276
      %v11278 = vpop.f32.mrb[0].mxu0
      %v11279 = vpop.f32.mrb[0].mxu0
      %v11280 = vadd.f32 0.0, %v11279
      %v11281 = vpop.f32.mrb[0].mxu0
      %11282 = vmatprep.mubr.bf16.mxu0 0
      %11283 = vmatmul.mubr.bf16.gmra.mrb[0].mxu0 %v11163
      %v11284 = vpop.f32.mrb[0].mxu0
      %v11285 = vadd.f32 0.0, %v11284
      %v11286 = vpop.f32.mrb[0].mxu0
      %v11287 = vpop.f32.mrb[0].mxu0
      %v11288 = vadd.f32 0.0, %v11287
      %v11289 = vpop.f32.mrb[0].mxu0
      %11290 = vmatprep.mubr.bf16.mxu0 0
      %11291 = vmatmul.mubr.bf16.gmra.mrb[0].mxu0 %v11164
      %v11292 = vpop.f32.mrb[0].mxu0
      %v11293 = vadd.f32 0.0, %v11292
      %v11294 = vpop.f32.mrb[0].mxu0
      %v11295 = vpop.f32.mrb[0].mxu0
      %v11296 = vadd.f32 0.0, %v11295
      %v11297 = vpop.f32.mrb[0].mxu0
      %11298 = vmatprep.mubr.bf16.mxu0 0
      %11299 = vmatmul.mubr.bf16.gmra.mrb[0].mxu0 %v11165
      %v11300 = vpop.f32.mrb[0].mxu0
      %v11301 = vadd.f32 0.0, %v11300
      %v11302 = vpop.f32.mrb[0].mxu0
      %v11303 = vpop.f32.mrb[0].mxu0
      %v11304 = vadd.f32 0.0, %v11303
      %v11305 = vpop.f32.mrb[0].mxu0
      %11306 = vmatprep.mubr.bf16.mxu0 0
      %11307 = vmatmul.mubr.bf16.gmra.mrb[0].mxu0 %v11166
      %v11308 = vpop.f32.mrb[0].mxu0
      %v11309 = vadd.f32 0.0, %v11308
      %v11310 = vpop.f32.mrb[0].mxu0
      %v11311 = vpop.f32.mrb[0].mxu0
      %v11312 = vadd.f32 0.0, %v11311
      %v11313 = vpop.f32.mrb[0].mxu0
      %11314 = vmatprep.mubr.bf16.mxu0 0
      %11315 = vmatmul.mubr.bf16.gmra.mrb[0].mxu0 %v11167
      %v11316 = vpop.f32.mrb[0].mxu0
      %v11317 = vadd.f32 0.0, %v11316
      %v11318 = vpop.f32.mrb[0].mxu0
      %v11319 = vpop.f32.mrb[0].mxu0
      %v11320 = vadd.f32 0.0, %v11319
      %v11321 = vpop.f32.mrb[0].mxu0
      %11322 = vmatprep.mubr.bf16.mxu0 0
      %11323 = vmatmul.mubr.bf16.gmra.mrb[0].mxu0 %v11168
      %v11324 = vpop.f32.mrb[0].mxu0
      %v11325 = vadd.f32 0.0, %v11324
      %v11326 = vpop.f32.mrb[0].mxu0
      %v11327 = vpop.f32.mrb[0].mxu0
      %v11328 = vadd.f32 0.0, %v11327
      %v11329 = vpop.f32.mrb[0].mxu0
      %11330 = vmatprep.mubr.bf16.mxu0 0
      %11331 = vmatmul.mubr.bf16.gmra.mrb[0].mxu0 %v11169
      %v11332 = vpop.f32.mrb[0].mxu0
      %v11333 = vadd.f32 0.0, %v11332
      %v11334 = vpop.f32.mrb[0].mxu0
      %v11335 = vpop.f32.mrb[0].mxu0
      %v11336 = vadd.f32 0.0, %v11335
      %v11337 = vpop.f32.mrb[0].mxu0
      %11338 = vmatprep.mubr.bf16.mxu0 0
      %11339 = vmatmul.mubr.bf16.gmra.mrb[0].mxu0 %v11170
      %v11340 = vpop.f32.mrb[0].mxu0
      %v11341 = vadd.f32 0.0, %v11340
      %v11342 = vpop.f32.mrb[0].mxu0
      %v11343 = vpop.f32.mrb[0].mxu0
      %v11344 = vadd.f32 0.0, %v11343
      %v11345 = vpop.f32.mrb[0].mxu0
      %11346 = vmatprep.mubr.bf16.mxu0 0
      %11347 = vmatmul.mubr.bf16.gmra.mrb[0].mxu0 %v11171
      %v11348 = vpop.f32.mrb[0].mxu0
      %v11349 = vadd.f32 0.0, %v11348
      %v11350 = vpop.f32.mrb[0].mxu0
      %v11351 = vpop.f32.mrb[0].mxu0
      %v11352 = vadd.f32 0.0, %v11351
      %v11353 = vpop.f32.mrb[0].mxu0
      %11354 = vmatprep.mubr.bf16.mxu0 0
      %11355 = vmatmul.mubr.bf16.gmra.mrb[0].mxu0 %v11172
      %v11356 = vpop.f32.mrb[0].mxu0
      %v11357 = vadd.f32 0.0, %v11356
      %v11358 = vpop.f32.mrb[0].mxu0
      %v11359 = vpop.f32.mrb[0].mxu0
      %v11360 = vadd.f32 0.0, %v11359
      %v11361 = vpop.f32.mrb[0].mxu0
      %11362 = vmatprep.mubr.bf16.mxu0 0
      %11363 = vmatmul.mubr.bf16.gmra.mrb[0].mxu0 %v11173
      %v11364 = vpop.f32.mrb[0].mxu0
      %v11365 = vadd.f32 0.0, %v11364
      %v11366 = vpop.f32.mrb[0].mxu0
      %v11367 = vpop.f32.mrb[0].mxu0
      %v11368 = vadd.f32 0.0, %v11367
      %v11369 = vpop.f32.mrb[0].mxu0
      %11370 = vmatprep.mubr.bf16.mxu0 0
      %11371 = vmatmul.mubr.bf16.gmra.mrb[0].mxu0 %v11174
      %v11372 = vpop.f32.mrb[0].mxu0
      %v11373 = vadd.f32 0.0, %v11372
      %v11374 = vpop.f32.mrb[0].mxu0
      %v11375 = vpop.f32.mrb[0].mxu0
      %v11376 = vadd.f32 0.0, %v11375
      %v11377 = vpop.f32.mrb[0].mxu0
      %11378 = vmatprep.mubr.bf16.mxu0 0
      %11379 = vmatmul.mubr.bf16.gmra.mrb[0].mxu0 %v11175
      %v11380 = vpop.f32.mrb[0].mxu0
      %v11381 = vadd.f32 0.0, %v11380
      %v11382 = vpop.f32.mrb[0].mxu0
      %v11383 = vpop.f32.mrb[0].mxu0
      %v11384 = vadd.f32 0.0, %v11383
      %v11385 = vpop.f32.mrb[0].mxu0
      %11386 = vmatprep.mubr.bf16.mxu0 0
      %11387 = vmatmul.mubr.bf16.gmra.mrb[0].mxu0 %v11176
      %v11388 = vpop.f32.mrb[0].mxu0
      %v11389 = vadd.f32 0.0, %v11388
      %v11390 = vpop.f32.mrb[0].mxu0
      %v11391 = vpop.f32.mrb[0].mxu0
      %v11392 = vadd.f32 0.0, %v11391
      %v11393 = vpop.f32.mrb[0].mxu0
      %11394 = vmatprep.mubr.bf16.mxu0 0
      %11395 = vmatmul.mubr.bf16.gmra.mrb[0].mxu0 %v11177
      %v11396 = vpop.f32.mrb[0].mxu0
      %v11397 = vadd.f32 0.0, %v11396
      %v11398 = vpop.f32.mrb[0].mxu0
      %v11399 = vpop.f32.mrb[0].mxu0
      %v11400 = vadd.f32 0.0, %v11399
      %v11401 = vpop.f32.mrb[0].mxu0
      %11402 = vdwg.mxu0
      %v11403 = vadd.f32 %v10680, %v11277
      %v11404 = vadd.f32 %v10681, %v11280
      %v11405 = vadd.f32 %v10682, %v11285
      %v11406 = vadd.f32 %v10683, %v11288
      %v11407 = vadd.f32 %v10684, %v11293
      %v11408 = vadd.f32 %v10685, %v11296
      %v11409 = vadd.f32 %v10686, %v11301
      %v11410 = vadd.f32 %v10687, %v11304
      %v11411 = vadd.f32 %v10688, %v11309
      %v11412 = vadd.f32 %v10689, %v11312
      %v11413 = vadd.f32 %v10690, %v11317
      %v11414 = vadd.f32 %v10691, %v11320
      %v11415 = vadd.f32 %v10692, %v11325
      %v11416 = vadd.f32 %v10693, %v11328
      %v11417 = vadd.f32 %v10694, %v11333
      %v11418 = vadd.f32 %v10695, %v11336
      %v11419 = vadd.f32 %v10696, %v11341
      %v11420 = vadd.f32 %v10697, %v11344
      %v11421 = vadd.f32 %v10698, %v11349
      %v11422 = vadd.f32 %v10699, %v11352
      %v11423 = vadd.f32 %v10700, %v11357
      %v11424 = vadd.f32 %v10701, %v11360
      %v11425 = vadd.f32 %v10702, %v11365
      %v11426 = vadd.f32 %v10703, %v11368
      %v11427 = vadd.f32 %v10704, %v11373
      %v11428 = vadd.f32 %v10705, %v11376
      %v11429 = vadd.f32 %v10706, %v11381
      %v11430 = vadd.f32 %v10707, %v11384
      %v11431 = vadd.f32 %v10708, %v11389
      %v11432 = vadd.f32 %v10709, %v11392
      %v11433 = vadd.f32 %v10710, %v11397
      %v11434 = vadd.f32 %v10711, %v11400
      %s11435 = scalar_lea.vmem %s3, 448
      %v11436 = vld [vmem:[%s11435] sm:$0xf]
      %v11437 = vld [vmem:[%s11435 + $0x4] sm:$0xf]
      %v11438 = vld [vmem:[%s11435 + $0x8] sm:$0xf]
      %v11439 = vld [vmem:[%s11435 + $0xc] sm:$0xf]
      %v11440 = vld [vmem:[%s11435 + $0x10] sm:$0xf]
      %v11441 = vld [vmem:[%s11435 + $0x14] sm:$0xf]
      %v11442 = vld [vmem:[%s11435 + $0x18] sm:$0xf]
      %v11443 = vld [vmem:[%s11435 + $0x1c] sm:$0xf]
      %v11444 = vld [vmem:[%s11435 + $0x20] sm:$0xf]
      %v11445 = vld [vmem:[%s11435 + $0x24] sm:$0xf]
      %v11446 = vld [vmem:[%s11435 + $0x28] sm:$0xf]
      %v11447 = vld [vmem:[%s11435 + $0x2c] sm:$0xf]
      %v11448 = vld [vmem:[%s11435 + $0x30] sm:$0xf]
      %v11449 = vld [vmem:[%s11435 + $0x34] sm:$0xf]
      %v11450 = vld [vmem:[%s11435 + $0x38] sm:$0xf]
      %v11451 = vld [vmem:[%s11435 + $0x3c] sm:$0xf]
      %v11484 = vunpack.c.l.b16 %v10714
      %v11485 = vunpack.c.l.b16 %v10715
      %v11486 = vunpack.c.l.b16 %v10717
      %v11487 = vunpack.c.l.b16 %v10718
      %v11488 = vunpack.c.l.b16 %v10720
      %v11489 = vunpack.c.l.b16 %v10721
      %v11490 = vunpack.c.l.b16 %v10723
      %v11491 = vunpack.c.l.b16 %v10724
      %v11492 = vunpack.c.l.b16 %v10726
      %v11493 = vunpack.c.l.b16 %v10727
      %v11494 = vunpack.c.l.b16 %v10729
      %v11495 = vunpack.c.l.b16 %v10730
      %v11496 = vunpack.c.l.b16 %v10732
      %v11497 = vunpack.c.l.b16 %v10733
      %v11498 = vunpack.c.l.b16 %v10735
      %v11499 = vunpack.c.l.b16 %v10736
      %v11500 = vunpack.c.l.b16 %v10738
      %v11501 = vunpack.c.l.b16 %v10739
      %v11502 = vunpack.c.l.b16 %v10741
      %v11503 = vunpack.c.l.b16 %v10742
      %v11504 = vunpack.c.l.b16 %v10744
      %v11505 = vunpack.c.l.b16 %v10745
      %v11506 = vunpack.c.l.b16 %v10747
      %v11507 = vunpack.c.l.b16 %v10748
      %v11508 = vunpack.c.l.b16 %v10750
      %v11509 = vunpack.c.l.b16 %v10751
      %v11510 = vunpack.c.l.b16 %v10753
      %v11511 = vunpack.c.l.b16 %v10754
      %v11512 = vunpack.c.l.b16 %v10756
      %v11513 = vunpack.c.l.b16 %v10757
      %v11514 = vunpack.c.l.b16 %v10759
      %v11515 = vunpack.c.l.b16 %v10760
      %v11516 = vpack.c.b16 %v11485, %v11484
      %v11517 = vpack.c.b16 %v11487, %v11486
      %v11518 = vpack.c.b16 %v11489, %v11488
      %v11519 = vpack.c.b16 %v11491, %v11490
      %v11520 = vpack.c.b16 %v11493, %v11492
      %v11521 = vpack.c.b16 %v11495, %v11494
      %v11522 = vpack.c.b16 %v11497, %v11496
      %v11523 = vpack.c.b16 %v11499, %v11498
      %v11524 = vpack.c.b16 %v11501, %v11500
      %v11525 = vpack.c.b16 %v11503, %v11502
      %v11526 = vpack.c.b16 %v11505, %v11504
      %v11527 = vpack.c.b16 %v11507, %v11506
      %v11528 = vpack.c.b16 %v11509, %v11508
      %v11529 = vpack.c.b16 %v11511, %v11510
      %v11530 = vpack.c.b16 %v11513, %v11512
      %v11531 = vpack.c.b16 %v11515, %v11514
      %v11564 = vunpack.c.l.b16 %v11436
      %v11565 = vunpack.c.l.b16 %v11437
      %v11566 = vunpack.c.l.b16 %v11438
      %v11567 = vunpack.c.l.b16 %v11439
      %v11568 = vunpack.c.l.b16 %v11440
      %v11569 = vunpack.c.l.b16 %v11441
      %v11570 = vunpack.c.l.b16 %v11442
      %v11571 = vunpack.c.l.b16 %v11443
      %v11572 = vunpack.c.l.b16 %v11444
      %v11573 = vunpack.c.l.b16 %v11445
      %v11574 = vunpack.c.l.b16 %v11446
      %v11575 = vunpack.c.l.b16 %v11447
      %v11576 = vunpack.c.l.b16 %v11448
      %v11577 = vunpack.c.l.b16 %v11449
      %v11578 = vunpack.c.l.b16 %v11450
      %v11579 = vunpack.c.l.b16 %v11451
      %v11580 = vpack.c.b16 %v11565, %v11564
      %v11581 = vpack.c.b16 %v11567, %v11566
      %v11582 = vpack.c.b16 %v11569, %v11568
      %v11583 = vpack.c.b16 %v11571, %v11570
      %v11584 = vpack.c.b16 %v11573, %v11572
      %v11585 = vpack.c.b16 %v11575, %v11574
      %v11586 = vpack.c.b16 %v11577, %v11576
      %v11587 = vpack.c.b16 %v11579, %v11578
      %11596 = vmatprep.subr.bf16.mxu0 0
      %11597 = vmatpush1.bf16.msra.mxu0 %v11580
      %11598 = vmatprep.subr.bf16.mxu0 0
      %11599 = vmatpush1.bf16.msra.mxu0 %v11581
      %11600 = vmatprep.subr.bf16.mxu0 0
      %11601 = vmatpush1.bf16.msra.mxu0 %v11582
      %11602 = vmatprep.subr.bf16.mxu0 0
      %11603 = vmatpush1.bf16.msra.mxu0 %v11583
      %11604 = vmatprep.subr.bf16.mxu0 0
      %11605 = vmatpush1.bf16.msra.mxu0 %v11584
      %11606 = vmatprep.subr.bf16.mxu0 0
      %11607 = vmatpush1.bf16.msra.mxu0 %v11585
      %11608 = vmatprep.subr.bf16.mxu0 0
      %11609 = vmatpush1.bf16.msra.mxu0 %v11586
      %11610 = vmatprep.subr.bf16.mxu0 0
      %11611 = vmatpush1.bf16.msra.mxu0 %v11587
      %11612 = vmatprep.subr.bf16.mxu0 0
      %11613 = vmatpush1.bf16.msra.mxu0 0
      %11614 = vmatprep.subr.bf16.mxu0 0
      %11615 = vmatpush1.bf16.msra.mxu0 0
      %11616 = vmatprep.subr.bf16.mxu0 0
      %11617 = vmatpush1.bf16.msra.mxu0 0
      %11618 = vmatprep.subr.bf16.mxu0 0
      %11619 = vmatpush1.bf16.msra.mxu0 0
      %11620 = vmatprep.subr.bf16.mxu0 0
      %11621 = vmatpush1.bf16.msra.mxu0 0
      %11622 = vmatprep.subr.bf16.mxu0 0
      %11623 = vmatpush1.bf16.msra.mxu0 0
      %11624 = vmatprep.subr.bf16.mxu0 0
      %11625 = vmatpush1.bf16.msra.mxu0 0
      %11626 = vmatprep.subr.bf16.mxu0 0
      %11627 = vmatpush1.bf16.msra.mxu0 0
      %11628 = vmatprep.mubr.bf16.mxu0 0
      %11629 = vmatmul.mubr.bf16.gmra.mrb[0].mxu0 %v11516
      %v11630 = vpop.f32.mrb[0].mxu0
      %v11631 = vadd.f32 0.0, %v11630
      %v11632 = vpop.f32.mrb[0].mxu0
      %v11633 = vpop.f32.mrb[0].mxu0
      %v11634 = vadd.f32 0.0, %v11633
      %v11635 = vpop.f32.mrb[0].mxu0
      %11636 = vmatprep.mubr.bf16.mxu0 0
      %11637 = vmatmul.mubr.bf16.gmra.mrb[0].mxu0 %v11517
      %v11638 = vpop.f32.mrb[0].mxu0
      %v11639 = vadd.f32 0.0, %v11638
      %v11640 = vpop.f32.mrb[0].mxu0
      %v11641 = vpop.f32.mrb[0].mxu0
      %v11642 = vadd.f32 0.0, %v11641
      %v11643 = vpop.f32.mrb[0].mxu0
      %11644 = vmatprep.mubr.bf16.mxu0 0
      %11645 = vmatmul.mubr.bf16.gmra.mrb[0].mxu0 %v11518
      %v11646 = vpop.f32.mrb[0].mxu0
      %v11647 = vadd.f32 0.0, %v11646
      %v11648 = vpop.f32.mrb[0].mxu0
      %v11649 = vpop.f32.mrb[0].mxu0
      %v11650 = vadd.f32 0.0, %v11649
      %v11651 = vpop.f32.mrb[0].mxu0
      %11652 = vmatprep.mubr.bf16.mxu0 0
      %11653 = vmatmul.mubr.bf16.gmra.mrb[0].mxu0 %v11519
      %v11654 = vpop.f32.mrb[0].mxu0
      %v11655 = vadd.f32 0.0, %v11654
      %v11656 = vpop.f32.mrb[0].mxu0
      %v11657 = vpop.f32.mrb[0].mxu0
      %v11658 = vadd.f32 0.0, %v11657
      %v11659 = vpop.f32.mrb[0].mxu0
      %11660 = vmatprep.mubr.bf16.mxu0 0
      %11661 = vmatmul.mubr.bf16.gmra.mrb[0].mxu0 %v11520
      %v11662 = vpop.f32.mrb[0].mxu0
      %v11663 = vadd.f32 0.0, %v11662
      %v11664 = vpop.f32.mrb[0].mxu0
      %v11665 = vpop.f32.mrb[0].mxu0
      %v11666 = vadd.f32 0.0, %v11665
      %v11667 = vpop.f32.mrb[0].mxu0
      %11668 = vmatprep.mubr.bf16.mxu0 0
      %11669 = vmatmul.mubr.bf16.gmra.mrb[0].mxu0 %v11521
      %v11670 = vpop.f32.mrb[0].mxu0
      %v11671 = vadd.f32 0.0, %v11670
      %v11672 = vpop.f32.mrb[0].mxu0
      %v11673 = vpop.f32.mrb[0].mxu0
      %v11674 = vadd.f32 0.0, %v11673
      %v11675 = vpop.f32.mrb[0].mxu0
      %11676 = vmatprep.mubr.bf16.mxu0 0
      %11677 = vmatmul.mubr.bf16.gmra.mrb[0].mxu0 %v11522
      %v11678 = vpop.f32.mrb[0].mxu0
      %v11679 = vadd.f32 0.0, %v11678
      %v11680 = vpop.f32.mrb[0].mxu0
      %v11681 = vpop.f32.mrb[0].mxu0
      %v11682 = vadd.f32 0.0, %v11681
      %v11683 = vpop.f32.mrb[0].mxu0
      %11684 = vmatprep.mubr.bf16.mxu0 0
      %11685 = vmatmul.mubr.bf16.gmra.mrb[0].mxu0 %v11523
      %v11686 = vpop.f32.mrb[0].mxu0
      %v11687 = vadd.f32 0.0, %v11686
      %v11688 = vpop.f32.mrb[0].mxu0
      %v11689 = vpop.f32.mrb[0].mxu0
      %v11690 = vadd.f32 0.0, %v11689
      %v11691 = vpop.f32.mrb[0].mxu0
      %11692 = vmatprep.mubr.bf16.mxu0 0
      %11693 = vmatmul.mubr.bf16.gmra.mrb[0].mxu0 %v11524
      %v11694 = vpop.f32.mrb[0].mxu0
      %v11695 = vadd.f32 0.0, %v11694
      %v11696 = vpop.f32.mrb[0].mxu0
      %v11697 = vpop.f32.mrb[0].mxu0
      %v11698 = vadd.f32 0.0, %v11697
      %v11699 = vpop.f32.mrb[0].mxu0
      %11700 = vmatprep.mubr.bf16.mxu0 0
      %11701 = vmatmul.mubr.bf16.gmra.mrb[0].mxu0 %v11525
      %v11702 = vpop.f32.mrb[0].mxu0
      %v11703 = vadd.f32 0.0, %v11702
      %v11704 = vpop.f32.mrb[0].mxu0
      %v11705 = vpop.f32.mrb[0].mxu0
      %v11706 = vadd.f32 0.0, %v11705
      %v11707 = vpop.f32.mrb[0].mxu0
      %11708 = vmatprep.mubr.bf16.mxu0 0
      %11709 = vmatmul.mubr.bf16.gmra.mrb[0].mxu0 %v11526
      %v11710 = vpop.f32.mrb[0].mxu0
      %v11711 = vadd.f32 0.0, %v11710
      %v11712 = vpop.f32.mrb[0].mxu0
      %v11713 = vpop.f32.mrb[0].mxu0
      %v11714 = vadd.f32 0.0, %v11713
      %v11715 = vpop.f32.mrb[0].mxu0
      %11716 = vmatprep.mubr.bf16.mxu0 0
      %11717 = vmatmul.mubr.bf16.gmra.mrb[0].mxu0 %v11527
      %v11718 = vpop.f32.mrb[0].mxu0
      %v11719 = vadd.f32 0.0, %v11718
      %v11720 = vpop.f32.mrb[0].mxu0
      %v11721 = vpop.f32.mrb[0].mxu0
      %v11722 = vadd.f32 0.0, %v11721
      %v11723 = vpop.f32.mrb[0].mxu0
      %11724 = vmatprep.mubr.bf16.mxu0 0
      %11725 = vmatmul.mubr.bf16.gmra.mrb[0].mxu0 %v11528
      %v11726 = vpop.f32.mrb[0].mxu0
      %v11727 = vadd.f32 0.0, %v11726
      %v11728 = vpop.f32.mrb[0].mxu0
      %v11729 = vpop.f32.mrb[0].mxu0
      %v11730 = vadd.f32 0.0, %v11729
      %v11731 = vpop.f32.mrb[0].mxu0
      %11732 = vmatprep.mubr.bf16.mxu0 0
      %11733 = vmatmul.mubr.bf16.gmra.mrb[0].mxu0 %v11529
      %v11734 = vpop.f32.mrb[0].mxu0
      %v11735 = vadd.f32 0.0, %v11734
      %v11736 = vpop.f32.mrb[0].mxu0
      %v11737 = vpop.f32.mrb[0].mxu0
      %v11738 = vadd.f32 0.0, %v11737
      %v11739 = vpop.f32.mrb[0].mxu0
      %11740 = vmatprep.mubr.bf16.mxu0 0
      %11741 = vmatmul.mubr.bf16.gmra.mrb[0].mxu0 %v11530
      %v11742 = vpop.f32.mrb[0].mxu0
      %v11743 = vadd.f32 0.0, %v11742
      %v11744 = vpop.f32.mrb[0].mxu0
      %v11745 = vpop.f32.mrb[0].mxu0
      %v11746 = vadd.f32 0.0, %v11745
      %v11747 = vpop.f32.mrb[0].mxu0
      %11748 = vmatprep.mubr.bf16.mxu0 0
      %11749 = vmatmul.mubr.bf16.gmra.mrb[0].mxu0 %v11531
      %v11750 = vpop.f32.mrb[0].mxu0
      %v11751 = vadd.f32 0.0, %v11750
      %v11752 = vpop.f32.mrb[0].mxu0
      %v11753 = vpop.f32.mrb[0].mxu0
      %v11754 = vadd.f32 0.0, %v11753
      %v11755 = vpop.f32.mrb[0].mxu0
      %11756 = vdwg.mxu0
      %v11757 = vadd.f32 %v11403, %v11631
      %v11758 = vadd.f32 %v11404, %v11634
      %v11759 = vadd.f32 %v11405, %v11639
      %v11760 = vadd.f32 %v11406, %v11642
      %v11761 = vadd.f32 %v11407, %v11647
      %v11762 = vadd.f32 %v11408, %v11650
      %v11763 = vadd.f32 %v11409, %v11655
      %v11764 = vadd.f32 %v11410, %v11658
      %v11765 = vadd.f32 %v11411, %v11663
      %v11766 = vadd.f32 %v11412, %v11666
      %v11767 = vadd.f32 %v11413, %v11671
      %v11768 = vadd.f32 %v11414, %v11674
      %v11769 = vadd.f32 %v11415, %v11679
      %v11770 = vadd.f32 %v11416, %v11682
      %v11771 = vadd.f32 %v11417, %v11687
      %v11772 = vadd.f32 %v11418, %v11690
      %v11773 = vadd.f32 %v11419, %v11695
      %v11774 = vadd.f32 %v11420, %v11698
      %v11775 = vadd.f32 %v11421, %v11703
      %v11776 = vadd.f32 %v11422, %v11706
      %v11777 = vadd.f32 %v11423, %v11711
      %v11778 = vadd.f32 %v11424, %v11714
      %v11779 = vadd.f32 %v11425, %v11719
      %v11780 = vadd.f32 %v11426, %v11722
      %v11781 = vadd.f32 %v11427, %v11727
      %v11782 = vadd.f32 %v11428, %v11730
      %v11783 = vadd.f32 %v11429, %v11735
      %v11784 = vadd.f32 %v11430, %v11738
      %v11785 = vadd.f32 %v11431, %v11743
      %v11786 = vadd.f32 %v11432, %v11746
      %v11787 = vadd.f32 %v11433, %v11751
      %v11788 = vadd.f32 %v11434, %v11754
      %v11789 = vld [vmem:[%s10712 + $0x4] sm:$0xf]
      %v11790 = vld [vmem:[%s10712 + $0x8] sm:$0xf]
      %v11791 = vld [vmem:[%s10712 + $0xc] sm:$0x1]
      %v11792 = vld [vmem:[%s10712 + $0x14] sm:$0xf]
      %v11793 = vld [vmem:[%s10712 + $0x18] sm:$0xf]
      %v11794 = vld [vmem:[%s10712 + $0x1c] sm:$0x1]
      %v11795 = vld [vmem:[%s10712 + $0x24] sm:$0xf]
      %v11796 = vld [vmem:[%s10712 + $0x28] sm:$0xf]
      %v11797 = vld [vmem:[%s10712 + $0x2c] sm:$0x1]
      %v11798 = vld [vmem:[%s10712 + $0x34] sm:$0xf]
      %v11799 = vld [vmem:[%s10712 + $0x38] sm:$0xf]
      %v11800 = vld [vmem:[%s10712 + $0x3c] sm:$0x1]
      %v11801 = vld [vmem:[%s10712 + $0x44] sm:$0xf]
      %v11802 = vld [vmem:[%s10712 + $0x48] sm:$0xf]
      %v11803 = vld [vmem:[%s10712 + $0x4c] sm:$0x1]
      %v11804 = vld [vmem:[%s10712 + $0x54] sm:$0xf]
      %v11805 = vld [vmem:[%s10712 + $0x58] sm:$0xf]
      %v11806 = vld [vmem:[%s10712 + $0x5c] sm:$0x1]
      %v11807 = vld [vmem:[%s10712 + $0x64] sm:$0xf]
      %v11808 = vld [vmem:[%s10712 + $0x68] sm:$0xf]
      %v11809 = vld [vmem:[%s10712 + $0x6c] sm:$0x1]
      %v11810 = vld [vmem:[%s10712 + $0x74] sm:$0xf]
      %v11811 = vld [vmem:[%s10712 + $0x78] sm:$0xf]
      %v11812 = vld [vmem:[%s10712 + $0x7c] sm:$0x1]
      %v11813 = vld [vmem:[%s10712 + $0x84] sm:$0xf]
      %v11814 = vld [vmem:[%s10712 + $0x88] sm:$0xf]
      %v11815 = vld [vmem:[%s10712 + $0x8c] sm:$0x1]
      %v11816 = vld [vmem:[%s10712 + $0x94] sm:$0xf]
      %v11817 = vld [vmem:[%s10712 + $0x98] sm:$0xf]
      %v11818 = vld [vmem:[%s10712 + $0x9c] sm:$0x1]
      %v11819 = vld [vmem:[%s10712 + $0xa4] sm:$0xf]
      %v11820 = vld [vmem:[%s10712 + $0xa8] sm:$0xf]
      %v11821 = vld [vmem:[%s10712 + $0xac] sm:$0x1]
      %v11822 = vld [vmem:[%s10712 + $0xb4] sm:$0xf]
      %v11823 = vld [vmem:[%s10712 + $0xb8] sm:$0xf]
      %v11824 = vld [vmem:[%s10712 + $0xbc] sm:$0x1]
      %v11825 = vld [vmem:[%s10712 + $0xc4] sm:$0xf]
      %v11826 = vld [vmem:[%s10712 + $0xc8] sm:$0xf]
      %v11827 = vld [vmem:[%s10712 + $0xcc] sm:$0x1]
      %v11828 = vld [vmem:[%s10712 + $0xd4] sm:$0xf]
      %v11829 = vld [vmem:[%s10712 + $0xd8] sm:$0xf]
      %v11830 = vld [vmem:[%s10712 + $0xdc] sm:$0x1]
      %v11831 = vld [vmem:[%s10712 + $0xe4] sm:$0xf]
      %v11832 = vld [vmem:[%s10712 + $0xe8] sm:$0xf]
      %v11833 = vld [vmem:[%s10712 + $0xec] sm:$0x1]
      %v11834 = vld [vmem:[%s10712 + $0xf4] sm:$0xf]
      %v11835 = vld [vmem:[%s10712 + $0xf8] sm:$0xf]
      %v11836 = vld [vmem:[%s10712 + $0xfc] sm:$0x1]
      %v11838 = vshrl.u32 %v11789, 16
      %v11840 = vrot.slane %v11838, 4
      %v11841 = vshll.u32 %v11789, 16
      %v11843 = vrot.slane %v11841, 5
      %v11844 = vor.u32 %v11840, %v11843
      %v11845 = vrot.slane %v11844, 4
      %v11847 = vshll.u32 %v11790, 16
      %v11849 = vrot.slane %v11847, 5
      %v11850 = vsel %vm338, %v11845, %v11849
      %v11851 = vshrl.u32 %v11790, 16
      %v11853 = vrot.slane %v11851, 4
      %v11854 = vor.u32 %v11853, %v11849
      %v11855 = vrot.slane %v11854, 4
      %v11857 = vshll.u32 %v11791, 16
      %v11859 = vrot.slane %v11857, 5
      %v11860 = vsel %vm338, %v11855, %v11859
      %v11862 = vshrl.u32 %v11792, 16
      %v11864 = vrot.slane %v11862, 4
      %v11865 = vshll.u32 %v11792, 16
      %v11867 = vrot.slane %v11865, 5
      %v11868 = vor.u32 %v11864, %v11867
      %v11869 = vrot.slane %v11868, 4
      %v11871 = vshll.u32 %v11793, 16
      %v11873 = vrot.slane %v11871, 5
      %v11874 = vsel %vm338, %v11869, %v11873
      %v11875 = vshrl.u32 %v11793, 16
      %v11877 = vrot.slane %v11875, 4
      %v11878 = vor.u32 %v11877, %v11873
      %v11879 = vrot.slane %v11878, 4
      %v11881 = vshll.u32 %v11794, 16
      %v11883 = vrot.slane %v11881, 5
      %v11884 = vsel %vm338, %v11879, %v11883
      %v11886 = vshrl.u32 %v11795, 16
      %v11888 = vrot.slane %v11886, 4
      %v11889 = vshll.u32 %v11795, 16
      %v11891 = vrot.slane %v11889, 5
      %v11892 = vor.u32 %v11888, %v11891
      %v11893 = vrot.slane %v11892, 4
      %v11895 = vshll.u32 %v11796, 16
      %v11897 = vrot.slane %v11895, 5
      %v11898 = vsel %vm338, %v11893, %v11897
      %v11899 = vshrl.u32 %v11796, 16
      %v11901 = vrot.slane %v11899, 4
      %v11902 = vor.u32 %v11901, %v11897
      %v11903 = vrot.slane %v11902, 4
      %v11905 = vshll.u32 %v11797, 16
      %v11907 = vrot.slane %v11905, 5
      %v11908 = vsel %vm338, %v11903, %v11907
      %v11910 = vshrl.u32 %v11798, 16
      %v11912 = vrot.slane %v11910, 4
      %v11913 = vshll.u32 %v11798, 16
      %v11915 = vrot.slane %v11913, 5
      %v11916 = vor.u32 %v11912, %v11915
      %v11917 = vrot.slane %v11916, 4
      %v11919 = vshll.u32 %v11799, 16
      %v11921 = vrot.slane %v11919, 5
      %v11922 = vsel %vm338, %v11917, %v11921
      %v11923 = vshrl.u32 %v11799, 16
      %v11925 = vrot.slane %v11923, 4
      %v11926 = vor.u32 %v11925, %v11921
      %v11927 = vrot.slane %v11926, 4
      %v11929 = vshll.u32 %v11800, 16
      %v11931 = vrot.slane %v11929, 5
      %v11932 = vsel %vm338, %v11927, %v11931
      %v11934 = vshrl.u32 %v11801, 16
      %v11936 = vrot.slane %v11934, 4
      %v11937 = vshll.u32 %v11801, 16
      %v11939 = vrot.slane %v11937, 5
      %v11940 = vor.u32 %v11936, %v11939
      %v11941 = vrot.slane %v11940, 4
      %v11943 = vshll.u32 %v11802, 16
      %v11945 = vrot.slane %v11943, 5
      %v11946 = vsel %vm338, %v11941, %v11945
      %v11947 = vshrl.u32 %v11802, 16
      %v11949 = vrot.slane %v11947, 4
      %v11950 = vor.u32 %v11949, %v11945
      %v11951 = vrot.slane %v11950, 4
      %v11953 = vshll.u32 %v11803, 16
      %v11955 = vrot.slane %v11953, 5
      %v11956 = vsel %vm338, %v11951, %v11955
      %v11958 = vshrl.u32 %v11804, 16
      %v11960 = vrot.slane %v11958, 4
      %v11961 = vshll.u32 %v11804, 16
      %v11963 = vrot.slane %v11961, 5
      %v11964 = vor.u32 %v11960, %v11963
      %v11965 = vrot.slane %v11964, 4
      %v11967 = vshll.u32 %v11805, 16
      %v11969 = vrot.slane %v11967, 5
      %v11970 = vsel %vm338, %v11965, %v11969
      %v11971 = vshrl.u32 %v11805, 16
      %v11973 = vrot.slane %v11971, 4
      %v11974 = vor.u32 %v11973, %v11969
      %v11975 = vrot.slane %v11974, 4
      %v11977 = vshll.u32 %v11806, 16
      %v11979 = vrot.slane %v11977, 5
      %v11980 = vsel %vm338, %v11975, %v11979
      %v11982 = vshrl.u32 %v11807, 16
      %v11984 = vrot.slane %v11982, 4
      %v11985 = vshll.u32 %v11807, 16
      %v11987 = vrot.slane %v11985, 5
      %v11988 = vor.u32 %v11984, %v11987
      %v11989 = vrot.slane %v11988, 4
      %v11991 = vshll.u32 %v11808, 16
      %v11993 = vrot.slane %v11991, 5
      %v11994 = vsel %vm338, %v11989, %v11993
      %v11995 = vshrl.u32 %v11808, 16
      %v11997 = vrot.slane %v11995, 4
      %v11998 = vor.u32 %v11997, %v11993
      %v11999 = vrot.slane %v11998, 4
      %v12001 = vshll.u32 %v11809, 16
      %v12003 = vrot.slane %v12001, 5
      %v12004 = vsel %vm338, %v11999, %v12003
      %v12006 = vshrl.u32 %v11810, 16
      %v12008 = vrot.slane %v12006, 4
      %v12009 = vshll.u32 %v11810, 16
      %v12011 = vrot.slane %v12009, 5
      %v12012 = vor.u32 %v12008, %v12011
      %v12013 = vrot.slane %v12012, 4
      %v12015 = vshll.u32 %v11811, 16
      %v12017 = vrot.slane %v12015, 5
      %v12018 = vsel %vm338, %v12013, %v12017
      %v12019 = vshrl.u32 %v11811, 16
      %v12021 = vrot.slane %v12019, 4
      %v12022 = vor.u32 %v12021, %v12017
      %v12023 = vrot.slane %v12022, 4
      %v12025 = vshll.u32 %v11812, 16
      %v12027 = vrot.slane %v12025, 5
      %v12028 = vsel %vm338, %v12023, %v12027
      %v12030 = vshrl.u32 %v11813, 16
      %v12032 = vrot.slane %v12030, 4
      %v12033 = vshll.u32 %v11813, 16
      %v12035 = vrot.slane %v12033, 5
      %v12036 = vor.u32 %v12032, %v12035
      %v12037 = vrot.slane %v12036, 4
      %v12039 = vshll.u32 %v11814, 16
      %v12041 = vrot.slane %v12039, 5
      %v12042 = vsel %vm338, %v12037, %v12041
      %v12043 = vshrl.u32 %v11814, 16
      %v12045 = vrot.slane %v12043, 4
      %v12046 = vor.u32 %v12045, %v12041
      %v12047 = vrot.slane %v12046, 4
      %v12049 = vshll.u32 %v11815, 16
      %v12051 = vrot.slane %v12049, 5
      %v12052 = vsel %vm338, %v12047, %v12051
      %v12054 = vshrl.u32 %v11816, 16
      %v12056 = vrot.slane %v12054, 4
      %v12057 = vshll.u32 %v11816, 16
      %v12059 = vrot.slane %v12057, 5
      %v12060 = vor.u32 %v12056, %v12059
      %v12061 = vrot.slane %v12060, 4
      %v12063 = vshll.u32 %v11817, 16
      %v12065 = vrot.slane %v12063, 5
      %v12066 = vsel %vm338, %v12061, %v12065
      %v12067 = vshrl.u32 %v11817, 16
      %v12069 = vrot.slane %v12067, 4
      %v12070 = vor.u32 %v12069, %v12065
      %v12071 = vrot.slane %v12070, 4
      %v12073 = vshll.u32 %v11818, 16
      %v12075 = vrot.slane %v12073, 5
      %v12076 = vsel %vm338, %v12071, %v12075
      %v12078 = vshrl.u32 %v11819, 16
      %v12080 = vrot.slane %v12078, 4
      %v12081 = vshll.u32 %v11819, 16
      %v12083 = vrot.slane %v12081, 5
      %v12084 = vor.u32 %v12080, %v12083
      %v12085 = vrot.slane %v12084, 4
      %v12087 = vshll.u32 %v11820, 16
      %v12089 = vrot.slane %v12087, 5
      %v12090 = vsel %vm338, %v12085, %v12089
      %v12091 = vshrl.u32 %v11820, 16
      %v12093 = vrot.slane %v12091, 4
      %v12094 = vor.u32 %v12093, %v12089
      %v12095 = vrot.slane %v12094, 4
      %v12097 = vshll.u32 %v11821, 16
      %v12099 = vrot.slane %v12097, 5
      %v12100 = vsel %vm338, %v12095, %v12099
      %v12102 = vshrl.u32 %v11822, 16
      %v12104 = vrot.slane %v12102, 4
      %v12105 = vshll.u32 %v11822, 16
      %v12107 = vrot.slane %v12105, 5
      %v12108 = vor.u32 %v12104, %v12107
      %v12109 = vrot.slane %v12108, 4
      %v12111 = vshll.u32 %v11823, 16
      %v12113 = vrot.slane %v12111, 5
      %v12114 = vsel %vm338, %v12109, %v12113
      %v12115 = vshrl.u32 %v11823, 16
      %v12117 = vrot.slane %v12115, 4
      %v12118 = vor.u32 %v12117, %v12113
      %v12119 = vrot.slane %v12118, 4
      %v12121 = vshll.u32 %v11824, 16
      %v12123 = vrot.slane %v12121, 5
      %v12124 = vsel %vm338, %v12119, %v12123
      %v12126 = vshrl.u32 %v11825, 16
      %v12128 = vrot.slane %v12126, 4
      %v12129 = vshll.u32 %v11825, 16
      %v12131 = vrot.slane %v12129, 5
      %v12132 = vor.u32 %v12128, %v12131
      %v12133 = vrot.slane %v12132, 4
      %v12135 = vshll.u32 %v11826, 16
      %v12137 = vrot.slane %v12135, 5
      %v12138 = vsel %vm338, %v12133, %v12137
      %v12139 = vshrl.u32 %v11826, 16
      %v12141 = vrot.slane %v12139, 4
      %v12142 = vor.u32 %v12141, %v12137
      %v12143 = vrot.slane %v12142, 4
      %v12145 = vshll.u32 %v11827, 16
      %v12147 = vrot.slane %v12145, 5
      %v12148 = vsel %vm338, %v12143, %v12147
      %v12150 = vshrl.u32 %v11828, 16
      %v12152 = vrot.slane %v12150, 4
      %v12153 = vshll.u32 %v11828, 16
      %v12155 = vrot.slane %v12153, 5
      %v12156 = vor.u32 %v12152, %v12155
      %v12157 = vrot.slane %v12156, 4
      %v12159 = vshll.u32 %v11829, 16
      %v12161 = vrot.slane %v12159, 5
      %v12162 = vsel %vm338, %v12157, %v12161
      %v12163 = vshrl.u32 %v11829, 16
      %v12165 = vrot.slane %v12163, 4
      %v12166 = vor.u32 %v12165, %v12161
      %v12167 = vrot.slane %v12166, 4
      %v12169 = vshll.u32 %v11830, 16
      %v12171 = vrot.slane %v12169, 5
      %v12172 = vsel %vm338, %v12167, %v12171
      %v12174 = vshrl.u32 %v11831, 16
      %v12176 = vrot.slane %v12174, 4
      %v12177 = vshll.u32 %v11831, 16
      %v12179 = vrot.slane %v12177, 5
      %v12180 = vor.u32 %v12176, %v12179
      %v12181 = vrot.slane %v12180, 4
      %v12183 = vshll.u32 %v11832, 16
      %v12185 = vrot.slane %v12183, 5
      %v12186 = vsel %vm338, %v12181, %v12185
      %v12187 = vshrl.u32 %v11832, 16
      %v12189 = vrot.slane %v12187, 4
      %v12190 = vor.u32 %v12189, %v12185
      %v12191 = vrot.slane %v12190, 4
      %v12193 = vshll.u32 %v11833, 16
      %v12195 = vrot.slane %v12193, 5
      %v12196 = vsel %vm338, %v12191, %v12195
      %v12198 = vshrl.u32 %v11834, 16
      %v12200 = vrot.slane %v12198, 4
      %v12201 = vshll.u32 %v11834, 16
      %v12203 = vrot.slane %v12201, 5
      %v12204 = vor.u32 %v12200, %v12203
      %v12205 = vrot.slane %v12204, 4
      %v12207 = vshll.u32 %v11835, 16
      %v12209 = vrot.slane %v12207, 5
      %v12210 = vsel %vm338, %v12205, %v12209
      %v12211 = vshrl.u32 %v11835, 16
      %v12213 = vrot.slane %v12211, 4
      %v12214 = vor.u32 %v12213, %v12209
      %v12215 = vrot.slane %v12214, 4
      %v12217 = vshll.u32 %v11836, 16
      %v12219 = vrot.slane %v12217, 5
      %v12220 = vsel %vm338, %v12215, %v12219
      %s12221 = scalar_lea.vmem %s3, 512
      %v12222 = vld [vmem:[%s12221] sm:$0xf]
      %v12223 = vld [vmem:[%s12221 + $0x4] sm:$0xf]
      %v12224 = vld [vmem:[%s12221 + $0x8] sm:$0xf]
      %v12225 = vld [vmem:[%s12221 + $0xc] sm:$0xf]
      %v12226 = vld [vmem:[%s12221 + $0x10] sm:$0xf]
      %v12227 = vld [vmem:[%s12221 + $0x14] sm:$0xf]
      %v12228 = vld [vmem:[%s12221 + $0x18] sm:$0xf]
      %v12229 = vld [vmem:[%s12221 + $0x1c] sm:$0xf]
      %v12230 = vld [vmem:[%s12221 + $0x20] sm:$0xf]
      %v12231 = vld [vmem:[%s12221 + $0x24] sm:$0xf]
      %v12232 = vld [vmem:[%s12221 + $0x28] sm:$0xf]
      %v12233 = vld [vmem:[%s12221 + $0x2c] sm:$0xf]
      %v12234 = vld [vmem:[%s12221 + $0x30] sm:$0xf]
      %v12235 = vld [vmem:[%s12221 + $0x34] sm:$0xf]
      %v12236 = vld [vmem:[%s12221 + $0x38] sm:$0xf]
      %v12237 = vld [vmem:[%s12221 + $0x3c] sm:$0xf]
      %v12238 = vunpack.c.l.b16 %v11850
      %v12239 = vunpack.c.l.b16 %v11860
      %v12240 = vunpack.c.l.b16 %v11874
      %v12241 = vunpack.c.l.b16 %v11884
      %v12242 = vunpack.c.l.b16 %v11898
      %v12243 = vunpack.c.l.b16 %v11908
      %v12244 = vunpack.c.l.b16 %v11922
      %v12245 = vunpack.c.l.b16 %v11932
      %v12246 = vunpack.c.l.b16 %v11946
      %v12247 = vunpack.c.l.b16 %v11956
      %v12248 = vunpack.c.l.b16 %v11970
      %v12249 = vunpack.c.l.b16 %v11980
      %v12250 = vunpack.c.l.b16 %v11994
      %v12251 = vunpack.c.l.b16 %v12004
      %v12252 = vunpack.c.l.b16 %v12018
      %v12253 = vunpack.c.l.b16 %v12028
      %v12254 = vunpack.c.l.b16 %v12042
      %v12255 = vunpack.c.l.b16 %v12052
      %v12256 = vunpack.c.l.b16 %v12066
      %v12257 = vunpack.c.l.b16 %v12076
      %v12258 = vunpack.c.l.b16 %v12090
      %v12259 = vunpack.c.l.b16 %v12100
      %v12260 = vunpack.c.l.b16 %v12114
      %v12261 = vunpack.c.l.b16 %v12124
      %v12262 = vunpack.c.l.b16 %v12138
      %v12263 = vunpack.c.l.b16 %v12148
      %v12264 = vunpack.c.l.b16 %v12162
      %v12265 = vunpack.c.l.b16 %v12172
      %v12266 = vunpack.c.l.b16 %v12186
      %v12267 = vunpack.c.l.b16 %v12196
      %v12268 = vunpack.c.l.b16 %v12210
      %v12269 = vunpack.c.l.b16 %v12220
      %v12270 = vpack.c.b16 %v12239, %v12238
      %v12271 = vpack.c.b16 %v12241, %v12240
      %v12272 = vpack.c.b16 %v12243, %v12242
      %v12273 = vpack.c.b16 %v12245, %v12244
      %v12274 = vpack.c.b16 %v12247, %v12246
      %v12275 = vpack.c.b16 %v12249, %v12248
      %v12276 = vpack.c.b16 %v12251, %v12250
      %v12277 = vpack.c.b16 %v12253, %v12252
      %v12278 = vpack.c.b16 %v12255, %v12254
      %v12279 = vpack.c.b16 %v12257, %v12256
      %v12280 = vpack.c.b16 %v12259, %v12258
      %v12281 = vpack.c.b16 %v12261, %v12260
      %v12282 = vpack.c.b16 %v12263, %v12262
      %v12283 = vpack.c.b16 %v12265, %v12264
      %v12284 = vpack.c.b16 %v12267, %v12266
      %v12285 = vpack.c.b16 %v12269, %v12268
      %v12318 = vunpack.c.l.b16 %v12222
      %v12319 = vunpack.c.l.b16 %v12223
      %v12320 = vunpack.c.l.b16 %v12224
      %v12321 = vunpack.c.l.b16 %v12225
      %v12322 = vunpack.c.l.b16 %v12226
      %v12323 = vunpack.c.l.b16 %v12227
      %v12324 = vunpack.c.l.b16 %v12228
      %v12325 = vunpack.c.l.b16 %v12229
      %v12326 = vunpack.c.l.b16 %v12230
      %v12327 = vunpack.c.l.b16 %v12231
      %v12328 = vunpack.c.l.b16 %v12232
      %v12329 = vunpack.c.l.b16 %v12233
      %v12330 = vunpack.c.l.b16 %v12234
      %v12331 = vunpack.c.l.b16 %v12235
      %v12332 = vunpack.c.l.b16 %v12236
      %v12333 = vunpack.c.l.b16 %v12237
      %v12334 = vpack.c.b16 %v12319, %v12318
      %v12335 = vpack.c.b16 %v12321, %v12320
      %v12336 = vpack.c.b16 %v12323, %v12322
      %v12337 = vpack.c.b16 %v12325, %v12324
      %v12338 = vpack.c.b16 %v12327, %v12326
      %v12339 = vpack.c.b16 %v12329, %v12328
      %v12340 = vpack.c.b16 %v12331, %v12330
      %v12341 = vpack.c.b16 %v12333, %v12332
      %12350 = vmatprep.subr.bf16.mxu0 0
      %12351 = vmatpush1.bf16.msra.mxu0 %v12334
      %12352 = vmatprep.subr.bf16.mxu0 0
      %12353 = vmatpush1.bf16.msra.mxu0 %v12335
      %12354 = vmatprep.subr.bf16.mxu0 0
      %12355 = vmatpush1.bf16.msra.mxu0 %v12336
      %12356 = vmatprep.subr.bf16.mxu0 0
      %12357 = vmatpush1.bf16.msra.mxu0 %v12337
      %12358 = vmatprep.subr.bf16.mxu0 0
      %12359 = vmatpush1.bf16.msra.mxu0 %v12338
      %12360 = vmatprep.subr.bf16.mxu0 0
      %12361 = vmatpush1.bf16.msra.mxu0 %v12339
      %12362 = vmatprep.subr.bf16.mxu0 0
      %12363 = vmatpush1.bf16.msra.mxu0 %v12340
      %12364 = vmatprep.subr.bf16.mxu0 0
      %12365 = vmatpush1.bf16.msra.mxu0 %v12341
      %12366 = vmatprep.subr.bf16.mxu0 0
      %12367 = vmatpush1.bf16.msra.mxu0 0
      %12368 = vmatprep.subr.bf16.mxu0 0
      %12369 = vmatpush1.bf16.msra.mxu0 0
      %12370 = vmatprep.subr.bf16.mxu0 0
      %12371 = vmatpush1.bf16.msra.mxu0 0
      %12372 = vmatprep.subr.bf16.mxu0 0
      %12373 = vmatpush1.bf16.msra.mxu0 0
      %12374 = vmatprep.subr.bf16.mxu0 0
      %12375 = vmatpush1.bf16.msra.mxu0 0
      %12376 = vmatprep.subr.bf16.mxu0 0
      %12377 = vmatpush1.bf16.msra.mxu0 0
      %12378 = vmatprep.subr.bf16.mxu0 0
      %12379 = vmatpush1.bf16.msra.mxu0 0
      %12380 = vmatprep.subr.bf16.mxu0 0
      %12381 = vmatpush1.bf16.msra.mxu0 0
      %12382 = vmatprep.mubr.bf16.mxu0 0
      %12383 = vmatmul.mubr.bf16.gmra.mrb[0].mxu0 %v12270
      %v12384 = vpop.f32.mrb[0].mxu0
      %v12385 = vadd.f32 0.0, %v12384
      %v12386 = vpop.f32.mrb[0].mxu0
      %v12387 = vpop.f32.mrb[0].mxu0
      %v12388 = vadd.f32 0.0, %v12387
      %v12389 = vpop.f32.mrb[0].mxu0
      %12390 = vmatprep.mubr.bf16.mxu0 0
      %12391 = vmatmul.mubr.bf16.gmra.mrb[0].mxu0 %v12271
      %v12392 = vpop.f32.mrb[0].mxu0
      %v12393 = vadd.f32 0.0, %v12392
      %v12394 = vpop.f32.mrb[0].mxu0
      %v12395 = vpop.f32.mrb[0].mxu0
      %v12396 = vadd.f32 0.0, %v12395
      %v12397 = vpop.f32.mrb[0].mxu0
      %12398 = vmatprep.mubr.bf16.mxu0 0
      %12399 = vmatmul.mubr.bf16.gmra.mrb[0].mxu0 %v12272
      %v12400 = vpop.f32.mrb[0].mxu0
      %v12401 = vadd.f32 0.0, %v12400
      %v12402 = vpop.f32.mrb[0].mxu0
      %v12403 = vpop.f32.mrb[0].mxu0
      %v12404 = vadd.f32 0.0, %v12403
      %v12405 = vpop.f32.mrb[0].mxu0
      %12406 = vmatprep.mubr.bf16.mxu0 0
      %12407 = vmatmul.mubr.bf16.gmra.mrb[0].mxu0 %v12273
      %v12408 = vpop.f32.mrb[0].mxu0
      %v12409 = vadd.f32 0.0, %v12408
      %v12410 = vpop.f32.mrb[0].mxu0
      %v12411 = vpop.f32.mrb[0].mxu0
      %v12412 = vadd.f32 0.0, %v12411
      %v12413 = vpop.f32.mrb[0].mxu0
      %12414 = vmatprep.mubr.bf16.mxu0 0
      %12415 = vmatmul.mubr.bf16.gmra.mrb[0].mxu0 %v12274
      %v12416 = vpop.f32.mrb[0].mxu0
      %v12417 = vadd.f32 0.0, %v12416
      %v12418 = vpop.f32.mrb[0].mxu0
      %v12419 = vpop.f32.mrb[0].mxu0
      %v12420 = vadd.f32 0.0, %v12419
      %v12421 = vpop.f32.mrb[0].mxu0
      %12422 = vmatprep.mubr.bf16.mxu0 0
      %12423 = vmatmul.mubr.bf16.gmra.mrb[0].mxu0 %v12275
      %v12424 = vpop.f32.mrb[0].mxu0
      %v12425 = vadd.f32 0.0, %v12424
      %v12426 = vpop.f32.mrb[0].mxu0
      %v12427 = vpop.f32.mrb[0].mxu0
      %v12428 = vadd.f32 0.0, %v12427
      %v12429 = vpop.f32.mrb[0].mxu0
      %12430 = vmatprep.mubr.bf16.mxu0 0
      %12431 = vmatmul.mubr.bf16.gmra.mrb[0].mxu0 %v12276
      %v12432 = vpop.f32.mrb[0].mxu0
      %v12433 = vadd.f32 0.0, %v12432
      %v12434 = vpop.f32.mrb[0].mxu0
      %v12435 = vpop.f32.mrb[0].mxu0
      %v12436 = vadd.f32 0.0, %v12435
      %v12437 = vpop.f32.mrb[0].mxu0
      %12438 = vmatprep.mubr.bf16.mxu0 0
      %12439 = vmatmul.mubr.bf16.gmra.mrb[0].mxu0 %v12277
      %v12440 = vpop.f32.mrb[0].mxu0
      %v12441 = vadd.f32 0.0, %v12440
      %v12442 = vpop.f32.mrb[0].mxu0
      %v12443 = vpop.f32.mrb[0].mxu0
      %v12444 = vadd.f32 0.0, %v12443
      %v12445 = vpop.f32.mrb[0].mxu0
      %12446 = vmatprep.mubr.bf16.mxu0 0
      %12447 = vmatmul.mubr.bf16.gmra.mrb[0].mxu0 %v12278
      %v12448 = vpop.f32.mrb[0].mxu0
      %v12449 = vadd.f32 0.0, %v12448
      %v12450 = vpop.f32.mrb[0].mxu0
      %v12451 = vpop.f32.mrb[0].mxu0
      %v12452 = vadd.f32 0.0, %v12451
      %v12453 = vpop.f32.mrb[0].mxu0
      %12454 = vmatprep.mubr.bf16.mxu0 0
      %12455 = vmatmul.mubr.bf16.gmra.mrb[0].mxu0 %v12279
      %v12456 = vpop.f32.mrb[0].mxu0
      %v12457 = vadd.f32 0.0, %v12456
      %v12458 = vpop.f32.mrb[0].mxu0
      %v12459 = vpop.f32.mrb[0].mxu0
      %v12460 = vadd.f32 0.0, %v12459
      %v12461 = vpop.f32.mrb[0].mxu0
      %12462 = vmatprep.mubr.bf16.mxu0 0
      %12463 = vmatmul.mubr.bf16.gmra.mrb[0].mxu0 %v12280
      %v12464 = vpop.f32.mrb[0].mxu0
      %v12465 = vadd.f32 0.0, %v12464
      %v12466 = vpop.f32.mrb[0].mxu0
      %v12467 = vpop.f32.mrb[0].mxu0
      %v12468 = vadd.f32 0.0, %v12467
      %v12469 = vpop.f32.mrb[0].mxu0
      %12470 = vmatprep.mubr.bf16.mxu0 0
      %12471 = vmatmul.mubr.bf16.gmra.mrb[0].mxu0 %v12281
      %v12472 = vpop.f32.mrb[0].mxu0
      %v12473 = vadd.f32 0.0, %v12472
      %v12474 = vpop.f32.mrb[0].mxu0
      %v12475 = vpop.f32.mrb[0].mxu0
      %v12476 = vadd.f32 0.0, %v12475
      %v12477 = vpop.f32.mrb[0].mxu0
      %12478 = vmatprep.mubr.bf16.mxu0 0
      %12479 = vmatmul.mubr.bf16.gmra.mrb[0].mxu0 %v12282
      %v12480 = vpop.f32.mrb[0].mxu0
      %v12481 = vadd.f32 0.0, %v12480
      %v12482 = vpop.f32.mrb[0].mxu0
      %v12483 = vpop.f32.mrb[0].mxu0
      %v12484 = vadd.f32 0.0, %v12483
      %v12485 = vpop.f32.mrb[0].mxu0
      %12486 = vmatprep.mubr.bf16.mxu0 0
      %12487 = vmatmul.mubr.bf16.gmra.mrb[0].mxu0 %v12283
      %v12488 = vpop.f32.mrb[0].mxu0
      %v12489 = vadd.f32 0.0, %v12488
      %v12490 = vpop.f32.mrb[0].mxu0
      %v12491 = vpop.f32.mrb[0].mxu0
      %v12492 = vadd.f32 0.0, %v12491
      %v12493 = vpop.f32.mrb[0].mxu0
      %12494 = vmatprep.mubr.bf16.mxu0 0
      %12495 = vmatmul.mubr.bf16.gmra.mrb[0].mxu0 %v12284
      %v12496 = vpop.f32.mrb[0].mxu0
      %v12497 = vadd.f32 0.0, %v12496
      %v12498 = vpop.f32.mrb[0].mxu0
      %v12499 = vpop.f32.mrb[0].mxu0
      %v12500 = vadd.f32 0.0, %v12499
      %v12501 = vpop.f32.mrb[0].mxu0
      %12502 = vmatprep.mubr.bf16.mxu0 0
      %12503 = vmatmul.mubr.bf16.gmra.mrb[0].mxu0 %v12285
      %v12504 = vpop.f32.mrb[0].mxu0
      %v12505 = vadd.f32 0.0, %v12504
      %v12506 = vpop.f32.mrb[0].mxu0
      %v12507 = vpop.f32.mrb[0].mxu0
      %v12508 = vadd.f32 0.0, %v12507
      %v12509 = vpop.f32.mrb[0].mxu0
      %12510 = vdwg.mxu0
      %v12511 = vadd.f32 %v11757, %v12385
      %v12512 = vadd.f32 %v11758, %v12388
      %v12513 = vadd.f32 %v11759, %v12393
      %v12514 = vadd.f32 %v11760, %v12396
      %v12515 = vadd.f32 %v11761, %v12401
      %v12516 = vadd.f32 %v11762, %v12404
      %v12517 = vadd.f32 %v11763, %v12409
      %v12518 = vadd.f32 %v11764, %v12412
      %v12519 = vadd.f32 %v11765, %v12417
      %v12520 = vadd.f32 %v11766, %v12420
      %v12521 = vadd.f32 %v11767, %v12425
      %v12522 = vadd.f32 %v11768, %v12428
      %v12523 = vadd.f32 %v11769, %v12433
      %v12524 = vadd.f32 %v11770, %v12436
      %v12525 = vadd.f32 %v11771, %v12441
      %v12526 = vadd.f32 %v11772, %v12444
      %v12527 = vadd.f32 %v11773, %v12449
      %v12528 = vadd.f32 %v11774, %v12452
      %v12529 = vadd.f32 %v11775, %v12457
      %v12530 = vadd.f32 %v11776, %v12460
      %v12531 = vadd.f32 %v11777, %v12465
      %v12532 = vadd.f32 %v11778, %v12468
      %v12533 = vadd.f32 %v11779, %v12473
      %v12534 = vadd.f32 %v11780, %v12476
      %v12535 = vadd.f32 %v11781, %v12481
      %v12536 = vadd.f32 %v11782, %v12484
      %v12537 = vadd.f32 %v11783, %v12489
      %v12538 = vadd.f32 %v11784, %v12492
      %v12539 = vadd.f32 %v11785, %v12497
      %v12540 = vadd.f32 %v11786, %v12500
      %v12541 = vadd.f32 %v11787, %v12505
      %v12542 = vadd.f32 %v11788, %v12508
      %v12543 = vld [vmem:[%s4] sm:$0x1]
      %v12545 = vlaneseq
      %v12546 = vshrl.u32 %v12545, 7
      %v12547 = vsub.s32 0, %v12546
      %v12548 = vrot.slane %v12543, %v12547
      %v12550 = vadd.f32 %v12511, %v12548
      %v12551 = vadd.f32 %v12512, %v12548
      %v12552 = vadd.f32 %v12513, %v12548
      %v12553 = vadd.f32 %v12514, %v12548
      %v12554 = vadd.f32 %v12515, %v12548
      %v12555 = vadd.f32 %v12516, %v12548
      %v12556 = vadd.f32 %v12517, %v12548
      %v12557 = vadd.f32 %v12518, %v12548
      %v12558 = vadd.f32 %v12519, %v12548
      %v12559 = vadd.f32 %v12520, %v12548
      %v12560 = vadd.f32 %v12521, %v12548
      %v12561 = vadd.f32 %v12522, %v12548
      %v12562 = vadd.f32 %v12523, %v12548
      %v12563 = vadd.f32 %v12524, %v12548
      %v12564 = vadd.f32 %v12525, %v12548
      %v12565 = vadd.f32 %v12526, %v12548
      %v12566 = vadd.f32 %v12527, %v12548
      %v12567 = vadd.f32 %v12528, %v12548
      %v12568 = vadd.f32 %v12529, %v12548
      %v12569 = vadd.f32 %v12530, %v12548
      %v12570 = vadd.f32 %v12531, %v12548
      %v12571 = vadd.f32 %v12532, %v12548
      %v12572 = vadd.f32 %v12533, %v12548
      %v12573 = vadd.f32 %v12534, %v12548
      %v12574 = vadd.f32 %v12535, %v12548
      %v12575 = vadd.f32 %v12536, %v12548
      %v12576 = vadd.f32 %v12537, %v12548
      %v12577 = vadd.f32 %v12538, %v12548
      %v12578 = vadd.f32 %v12539, %v12548
      %v12579 = vadd.f32 %v12540, %v12548
      %v12580 = vadd.f32 %v12541, %v12548
      %v12581 = vadd.f32 %v12542, %v12548
      %v12582 = vld [vmem:[%s4557] sm:$0xe]
      %v12583 = vld [vmem:[%s4557 + $0x4] sm:$0xf]
      %v12584 = vld [vmem:[%s4557 + $0x8] sm:$0x1]
      %v12585 = vld [vmem:[%s4557 + $0xc] sm:$0xe]
      %v12586 = vld [vmem:[%s4557 + $0x10] sm:$0xf]
      %v12587 = vld [vmem:[%s4557 + $0x14] sm:$0x1]
      %v12588 = vld [vmem:[%s4557 + $0x18] sm:$0xe]
      %v12589 = vld [vmem:[%s4557 + $0x1c] sm:$0xf]
      %v12590 = vld [vmem:[%s4557 + $0x20] sm:$0x1]
      %v12591 = vld [vmem:[%s4557 + $0x24] sm:$0xe]
      %v12592 = vld [vmem:[%s4557 + $0x28] sm:$0xf]
      %v12593 = vld [vmem:[%s4557 + $0x2c] sm:$0x1]
      %v12594 = vld [vmem:[%s4557 + $0x30] sm:$0xe]
      %v12595 = vld [vmem:[%s4557 + $0x34] sm:$0xf]
      %v12596 = vld [vmem:[%s4557 + $0x38] sm:$0x1]
      %v12597 = vld [vmem:[%s4557 + $0x3c] sm:$0xe]
      %v12598 = vld [vmem:[%s4557 + $0x40] sm:$0xf]
      %v12599 = vld [vmem:[%s4557 + $0x44] sm:$0x1]
      %v12600 = vld [vmem:[%s4557 + $0x48] sm:$0xe]
      %v12601 = vld [vmem:[%s4557 + $0x4c] sm:$0xf]
      %v12602 = vld [vmem:[%s4557 + $0x50] sm:$0x1]
      %v12603 = vld [vmem:[%s4557 + $0x54] sm:$0xe]
      %v12604 = vld [vmem:[%s4557 + $0x58] sm:$0xf]
      %v12605 = vld [vmem:[%s4557 + $0x5c] sm:$0x1]
      %v12606 = vld [vmem:[%s4557 + $0x60] sm:$0xe]
      %v12607 = vld [vmem:[%s4557 + $0x64] sm:$0xf]
      %v12608 = vld [vmem:[%s4557 + $0x68] sm:$0x1]
      %v12609 = vld [vmem:[%s4557 + $0x6c] sm:$0xe]
      %v12610 = vld [vmem:[%s4557 + $0x70] sm:$0xf]
      %v12611 = vld [vmem:[%s4557 + $0x74] sm:$0x1]
      %v12612 = vld [vmem:[%s4557 + $0x78] sm:$0xe]
      %v12613 = vld [vmem:[%s4557 + $0x7c] sm:$0xf]
      %v12614 = vld [vmem:[%s4557 + $0x80] sm:$0x1]
      %v12615 = vld [vmem:[%s4557 + $0x84] sm:$0xe]
      %v12616 = vld [vmem:[%s4557 + $0x88] sm:$0xf]
      %v12617 = vld [vmem:[%s4557 + $0x8c] sm:$0x1]
      %v12618 = vld [vmem:[%s4557 + $0x90] sm:$0xe]
      %v12619 = vld [vmem:[%s4557 + $0x94] sm:$0xf]
      %v12620 = vld [vmem:[%s4557 + $0x98] sm:$0x1]
      %v12621 = vld [vmem:[%s4557 + $0x9c] sm:$0xe]
      %v12622 = vld [vmem:[%s4557 + $0xa0] sm:$0xf]
      %v12623 = vld [vmem:[%s4557 + $0xa4] sm:$0x1]
      %v12624 = vld [vmem:[%s4557 + $0xa8] sm:$0xe]
      %v12625 = vld [vmem:[%s4557 + $0xac] sm:$0xf]
      %v12626 = vld [vmem:[%s4557 + $0xb0] sm:$0x1]
      %v12627 = vld [vmem:[%s4557 + $0xb4] sm:$0xe]
      %v12628 = vld [vmem:[%s4557 + $0xb8] sm:$0xf]
      %v12629 = vld [vmem:[%s4557 + $0xbc] sm:$0x1]
      %v12678 = vrot.slane %v12582, 5
      %v12679 = vrot.slane %v12678, 4
      %v12680 = vrot.slane %v12583, 5
      %v12681 = vsel %vm861, %v12679, %v12680
      %v12682 = vrot.slane %v12680, 4
      %v12683 = vrot.slane %v12584, 5
      %v12684 = vsel %vm861, %v12682, %v12683
      %v12685 = vrot.slane %v12585, 5
      %v12686 = vrot.slane %v12685, 4
      %v12687 = vrot.slane %v12586, 5
      %v12688 = vsel %vm861, %v12686, %v12687
      %v12689 = vrot.slane %v12687, 4
      %v12690 = vrot.slane %v12587, 5
      %v12691 = vsel %vm861, %v12689, %v12690
      %v12692 = vrot.slane %v12588, 5
      %v12693 = vrot.slane %v12692, 4
      %v12694 = vrot.slane %v12589, 5
      %v12695 = vsel %vm861, %v12693, %v12694
      %v12696 = vrot.slane %v12694, 4
      %v12697 = vrot.slane %v12590, 5
      %v12698 = vsel %vm861, %v12696, %v12697
      %v12699 = vrot.slane %v12591, 5
      %v12700 = vrot.slane %v12699, 4
      %v12701 = vrot.slane %v12592, 5
      %v12702 = vsel %vm861, %v12700, %v12701
      %v12703 = vrot.slane %v12701, 4
      %v12704 = vrot.slane %v12593, 5
      %v12705 = vsel %vm861, %v12703, %v12704
      %v12706 = vrot.slane %v12594, 5
      %v12707 = vrot.slane %v12706, 4
      %v12708 = vrot.slane %v12595, 5
      %v12709 = vsel %vm861, %v12707, %v12708
      %v12710 = vrot.slane %v12708, 4
      %v12711 = vrot.slane %v12596, 5
      %v12712 = vsel %vm861, %v12710, %v12711
      %v12713 = vrot.slane %v12597, 5
      %v12714 = vrot.slane %v12713, 4
      %v12715 = vrot.slane %v12598, 5
      %v12716 = vsel %vm861, %v12714, %v12715
      %v12717 = vrot.slane %v12715, 4
      %v12718 = vrot.slane %v12599, 5
      %v12719 = vsel %vm861, %v12717, %v12718
      %v12720 = vrot.slane %v12600, 5
      %v12721 = vrot.slane %v12720, 4
      %v12722 = vrot.slane %v12601, 5
      %v12723 = vsel %vm861, %v12721, %v12722
      %v12724 = vrot.slane %v12722, 4
      %v12725 = vrot.slane %v12602, 5
      %v12726 = vsel %vm861, %v12724, %v12725
      %v12727 = vrot.slane %v12603, 5
      %v12728 = vrot.slane %v12727, 4
      %v12729 = vrot.slane %v12604, 5
      %v12730 = vsel %vm861, %v12728, %v12729
      %v12731 = vrot.slane %v12729, 4
      %v12732 = vrot.slane %v12605, 5
      %v12733 = vsel %vm861, %v12731, %v12732
      %v12734 = vrot.slane %v12606, 5
      %v12735 = vrot.slane %v12734, 4
      %v12736 = vrot.slane %v12607, 5
      %v12737 = vsel %vm861, %v12735, %v12736
      %v12738 = vrot.slane %v12736, 4
      %v12739 = vrot.slane %v12608, 5
      %v12740 = vsel %vm861, %v12738, %v12739
      %v12741 = vrot.slane %v12609, 5
      %v12742 = vrot.slane %v12741, 4
      %v12743 = vrot.slane %v12610, 5
      %v12744 = vsel %vm861, %v12742, %v12743
      %v12745 = vrot.slane %v12743, 4
      %v12746 = vrot.slane %v12611, 5
      %v12747 = vsel %vm861, %v12745, %v12746
      %v12748 = vrot.slane %v12612, 5
      %v12749 = vrot.slane %v12748, 4
      %v12750 = vrot.slane %v12613, 5
      %v12751 = vsel %vm861, %v12749, %v12750
      %v12752 = vrot.slane %v12750, 4
      %v12753 = vrot.slane %v12614, 5
      %v12754 = vsel %vm861, %v12752, %v12753
      %v12755 = vrot.slane %v12615, 5
      %v12756 = vrot.slane %v12755, 4
      %v12757 = vrot.slane %v12616, 5
      %v12758 = vsel %vm861, %v12756, %v12757
      %v12759 = vrot.slane %v12757, 4
      %v12760 = vrot.slane %v12617, 5
      %v12761 = vsel %vm861, %v12759, %v12760
      %v12762 = vrot.slane %v12618, 5
      %v12763 = vrot.slane %v12762, 4
      %v12764 = vrot.slane %v12619, 5
      %v12765 = vsel %vm861, %v12763, %v12764
      %v12766 = vrot.slane %v12764, 4
      %v12767 = vrot.slane %v12620, 5
      %v12768 = vsel %vm861, %v12766, %v12767
      %v12769 = vrot.slane %v12621, 5
      %v12770 = vrot.slane %v12769, 4
      %v12771 = vrot.slane %v12622, 5
      %v12772 = vsel %vm861, %v12770, %v12771
      %v12773 = vrot.slane %v12771, 4
      %v12774 = vrot.slane %v12623, 5
      %v12775 = vsel %vm861, %v12773, %v12774
      %v12776 = vrot.slane %v12624, 5
      %v12777 = vrot.slane %v12776, 4
      %v12778 = vrot.slane %v12625, 5
      %v12779 = vsel %vm861, %v12777, %v12778
      %v12780 = vrot.slane %v12778, 4
      %v12781 = vrot.slane %v12626, 5
      %v12782 = vsel %vm861, %v12780, %v12781
      %v12783 = vrot.slane %v12627, 5
      %v12784 = vrot.slane %v12783, 4
      %v12785 = vrot.slane %v12628, 5
      %v12786 = vsel %vm861, %v12784, %v12785
      %v12787 = vrot.slane %v12785, 4
      %v12788 = vrot.slane %v12629, 5
      %v12789 = vsel %vm861, %v12787, %v12788
      %v12790 = vld [vmem:[%s5] sm:$0xf]
      %v12791 = vld [vmem:[%s5 + $0x4] sm:$0xf]
      %v12792 = vld [vmem:[%s5 + $0x8] sm:$0xf]
      %v12793 = vld [vmem:[%s5 + $0xc] sm:$0xf]
      %v12794 = vld [vmem:[%s5 + $0x10] sm:$0xf]
      %v12795 = vld [vmem:[%s5 + $0x14] sm:$0xf]
      %v12796 = vld [vmem:[%s5 + $0x18] sm:$0xf]
      %v12797 = vld [vmem:[%s5 + $0x1c] sm:$0xf]
      %v12798 = vld [vmem:[%s5 + $0x20] sm:$0xf]
      %v12799 = vld [vmem:[%s5 + $0x24] sm:$0xf]
      %v12800 = vld [vmem:[%s5 + $0x28] sm:$0xf]
      %v12801 = vld [vmem:[%s5 + $0x2c] sm:$0xf]
      %v12802 = vld [vmem:[%s5 + $0x30] sm:$0xf]
      %v12803 = vld [vmem:[%s5 + $0x34] sm:$0xf]
      %v12804 = vld [vmem:[%s5 + $0x38] sm:$0xf]
      %v12805 = vld [vmem:[%s5 + $0x3c] sm:$0xf]
      %v12806 = vunpack.c.l.b16 %v12681
      %v12807 = vunpack.c.l.b16 %v12684
      %v12808 = vunpack.c.l.b16 %v12688
      %v12809 = vunpack.c.l.b16 %v12691
      %v12810 = vunpack.c.l.b16 %v12695
      %v12811 = vunpack.c.l.b16 %v12698
      %v12812 = vunpack.c.l.b16 %v12702
      %v12813 = vunpack.c.l.b16 %v12705
      %v12814 = vunpack.c.l.b16 %v12709
      %v12815 = vunpack.c.l.b16 %v12712
      %v12816 = vunpack.c.l.b16 %v12716
      %v12817 = vunpack.c.l.b16 %v12719
      %v12818 = vunpack.c.l.b16 %v12723
      %v12819 = vunpack.c.l.b16 %v12726
      %v12820 = vunpack.c.l.b16 %v12730
      %v12821 = vunpack.c.l.b16 %v12733
      %v12822 = vunpack.c.l.b16 %v12737
      %v12823 = vunpack.c.l.b16 %v12740
      %v12824 = vunpack.c.l.b16 %v12744
      %v12825 = vunpack.c.l.b16 %v12747
      %v12826 = vunpack.c.l.b16 %v12751
      %v12827 = vunpack.c.l.b16 %v12754
      %v12828 = vunpack.c.l.b16 %v12758
      %v12829 = vunpack.c.l.b16 %v12761
      %v12830 = vunpack.c.l.b16 %v12765
      %v12831 = vunpack.c.l.b16 %v12768
      %v12832 = vunpack.c.l.b16 %v12772
      %v12833 = vunpack.c.l.b16 %v12775
      %v12834 = vunpack.c.l.b16 %v12779
      %v12835 = vunpack.c.l.b16 %v12782
      %v12836 = vunpack.c.l.b16 %v12786
      %v12837 = vunpack.c.l.b16 %v12789
      %v12838 = vpack.c.b16 %v12807, %v12806
      %v12839 = vpack.c.b16 %v12809, %v12808
      %v12840 = vpack.c.b16 %v12811, %v12810
      %v12841 = vpack.c.b16 %v12813, %v12812
      %v12842 = vpack.c.b16 %v12815, %v12814
      %v12843 = vpack.c.b16 %v12817, %v12816
      %v12844 = vpack.c.b16 %v12819, %v12818
      %v12845 = vpack.c.b16 %v12821, %v12820
      %v12846 = vpack.c.b16 %v12823, %v12822
      %v12847 = vpack.c.b16 %v12825, %v12824
      %v12848 = vpack.c.b16 %v12827, %v12826
      %v12849 = vpack.c.b16 %v12829, %v12828
      %v12850 = vpack.c.b16 %v12831, %v12830
      %v12851 = vpack.c.b16 %v12833, %v12832
      %v12852 = vpack.c.b16 %v12835, %v12834
      %v12853 = vpack.c.b16 %v12837, %v12836
      %v12886 = vunpack.c.l.b16 %v12790
      %v12887 = vunpack.c.l.b16 %v12791
      %v12888 = vunpack.c.l.b16 %v12792
      %v12889 = vunpack.c.l.b16 %v12793
      %v12890 = vunpack.c.l.b16 %v12794
      %v12891 = vunpack.c.l.b16 %v12795
      %v12892 = vunpack.c.l.b16 %v12796
      %v12893 = vunpack.c.l.b16 %v12797
      %v12894 = vunpack.c.l.b16 %v12798
      %v12895 = vunpack.c.l.b16 %v12799
      %v12896 = vunpack.c.l.b16 %v12800
      %v12897 = vunpack.c.l.b16 %v12801
      %v12898 = vunpack.c.l.b16 %v12802
      %v12899 = vunpack.c.l.b16 %v12803
      %v12900 = vunpack.c.l.b16 %v12804
      %v12901 = vunpack.c.l.b16 %v12805
      %v12902 = vpack.c.b16 %v12887, %v12886
      %v12903 = vpack.c.b16 %v12889, %v12888
      %v12904 = vpack.c.b16 %v12891, %v12890
      %v12905 = vpack.c.b16 %v12893, %v12892
      %v12906 = vpack.c.b16 %v12895, %v12894
      %v12907 = vpack.c.b16 %v12897, %v12896
      %v12908 = vpack.c.b16 %v12899, %v12898
      %v12909 = vpack.c.b16 %v12901, %v12900
      %12918 = vmatprep.subr.bf16.mxu0 0
      %12919 = vmatpush1.bf16.msra.mxu0 %v12902
      %12920 = vmatprep.subr.bf16.mxu0 0
      %12921 = vmatpush1.bf16.msra.mxu0 %v12903
      %12922 = vmatprep.subr.bf16.mxu0 0
      %12923 = vmatpush1.bf16.msra.mxu0 %v12904
      %12924 = vmatprep.subr.bf16.mxu0 0
      %12925 = vmatpush1.bf16.msra.mxu0 %v12905
      %12926 = vmatprep.subr.bf16.mxu0 0
      %12927 = vmatpush1.bf16.msra.mxu0 %v12906
      %12928 = vmatprep.subr.bf16.mxu0 0
      %12929 = vmatpush1.bf16.msra.mxu0 %v12907
      %12930 = vmatprep.subr.bf16.mxu0 0
      %12931 = vmatpush1.bf16.msra.mxu0 %v12908
      %12932 = vmatprep.subr.bf16.mxu0 0
      %12933 = vmatpush1.bf16.msra.mxu0 %v12909
      %12934 = vmatprep.subr.bf16.mxu0 0
      %12935 = vmatpush1.bf16.msra.mxu0 0
      %12936 = vmatprep.subr.bf16.mxu0 0
      %12937 = vmatpush1.bf16.msra.mxu0 0
      %12938 = vmatprep.subr.bf16.mxu0 0
      %12939 = vmatpush1.bf16.msra.mxu0 0
      %12940 = vmatprep.subr.bf16.mxu0 0
      %12941 = vmatpush1.bf16.msra.mxu0 0
      %12942 = vmatprep.subr.bf16.mxu0 0
      %12943 = vmatpush1.bf16.msra.mxu0 0
      %12944 = vmatprep.subr.bf16.mxu0 0
      %12945 = vmatpush1.bf16.msra.mxu0 0
      %12946 = vmatprep.subr.bf16.mxu0 0
      %12947 = vmatpush1.bf16.msra.mxu0 0
      %12948 = vmatprep.subr.bf16.mxu0 0
      %12949 = vmatpush1.bf16.msra.mxu0 0
      %12950 = vmatprep.mubr.bf16.mxu0 0
      %12951 = vmatmul.mubr.bf16.gmra.mrb[0].mxu0 %v12838
      %v12952 = vpop.f32.mrb[0].mxu0
      %v12953 = vadd.f32 0.0, %v12952
      %v12954 = vpop.f32.mrb[0].mxu0
      %v12955 = vpop.f32.mrb[0].mxu0
      %v12956 = vadd.f32 0.0, %v12955
      %v12957 = vpop.f32.mrb[0].mxu0
      %12958 = vmatprep.mubr.bf16.mxu0 0
      %12959 = vmatmul.mubr.bf16.gmra.mrb[0].mxu0 %v12839
      %v12960 = vpop.f32.mrb[0].mxu0
      %v12961 = vadd.f32 0.0, %v12960
      %v12962 = vpop.f32.mrb[0].mxu0
      %v12963 = vpop.f32.mrb[0].mxu0
      %v12964 = vadd.f32 0.0, %v12963
      %v12965 = vpop.f32.mrb[0].mxu0
      %12966 = vmatprep.mubr.bf16.mxu0 0
      %12967 = vmatmul.mubr.bf16.gmra.mrb[0].mxu0 %v12840
      %v12968 = vpop.f32.mrb[0].mxu0
      %v12969 = vadd.f32 0.0, %v12968
      %v12970 = vpop.f32.mrb[0].mxu0
      %v12971 = vpop.f32.mrb[0].mxu0
      %v12972 = vadd.f32 0.0, %v12971
      %v12973 = vpop.f32.mrb[0].mxu0
      %12974 = vmatprep.mubr.bf16.mxu0 0
      %12975 = vmatmul.mubr.bf16.gmra.mrb[0].mxu0 %v12841
      %v12976 = vpop.f32.mrb[0].mxu0
      %v12977 = vadd.f32 0.0, %v12976
      %v12978 = vpop.f32.mrb[0].mxu0
      %v12979 = vpop.f32.mrb[0].mxu0
      %v12980 = vadd.f32 0.0, %v12979
      %v12981 = vpop.f32.mrb[0].mxu0
      %12982 = vmatprep.mubr.bf16.mxu0 0
      %12983 = vmatmul.mubr.bf16.gmra.mrb[0].mxu0 %v12842
      %v12984 = vpop.f32.mrb[0].mxu0
      %v12985 = vadd.f32 0.0, %v12984
      %v12986 = vpop.f32.mrb[0].mxu0
      %v12987 = vpop.f32.mrb[0].mxu0
      %v12988 = vadd.f32 0.0, %v12987
      %v12989 = vpop.f32.mrb[0].mxu0
      %12990 = vmatprep.mubr.bf16.mxu0 0
      %12991 = vmatmul.mubr.bf16.gmra.mrb[0].mxu0 %v12843
      %v12992 = vpop.f32.mrb[0].mxu0
      %v12993 = vadd.f32 0.0, %v12992
      %v12994 = vpop.f32.mrb[0].mxu0
      %v12995 = vpop.f32.mrb[0].mxu0
      %v12996 = vadd.f32 0.0, %v12995
      %v12997 = vpop.f32.mrb[0].mxu0
      %12998 = vmatprep.mubr.bf16.mxu0 0
      %12999 = vmatmul.mubr.bf16.gmra.mrb[0].mxu0 %v12844
      %v13000 = vpop.f32.mrb[0].mxu0
      %v13001 = vadd.f32 0.0, %v13000
      %v13002 = vpop.f32.mrb[0].mxu0
      %v13003 = vpop.f32.mrb[0].mxu0
      %v13004 = vadd.f32 0.0, %v13003
      %v13005 = vpop.f32.mrb[0].mxu0
      %13006 = vmatprep.mubr.bf16.mxu0 0
      %13007 = vmatmul.mubr.bf16.gmra.mrb[0].mxu0 %v12845
      %v13008 = vpop.f32.mrb[0].mxu0
      %v13009 = vadd.f32 0.0, %v13008
      %v13010 = vpop.f32.mrb[0].mxu0
      %v13011 = vpop.f32.mrb[0].mxu0
      %v13012 = vadd.f32 0.0, %v13011
      %v13013 = vpop.f32.mrb[0].mxu0
      %13014 = vmatprep.mubr.bf16.mxu0 0
      %13015 = vmatmul.mubr.bf16.gmra.mrb[0].mxu0 %v12846
      %v13016 = vpop.f32.mrb[0].mxu0
      %v13017 = vadd.f32 0.0, %v13016
      %v13018 = vpop.f32.mrb[0].mxu0
      %v13019 = vpop.f32.mrb[0].mxu0
      %v13020 = vadd.f32 0.0, %v13019
      %v13021 = vpop.f32.mrb[0].mxu0
      %13022 = vmatprep.mubr.bf16.mxu0 0
      %13023 = vmatmul.mubr.bf16.gmra.mrb[0].mxu0 %v12847
      %v13024 = vpop.f32.mrb[0].mxu0
      %v13025 = vadd.f32 0.0, %v13024
      %v13026 = vpop.f32.mrb[0].mxu0
      %v13027 = vpop.f32.mrb[0].mxu0
      %v13028 = vadd.f32 0.0, %v13027
      %v13029 = vpop.f32.mrb[0].mxu0
      %13030 = vmatprep.mubr.bf16.mxu0 0
      %13031 = vmatmul.mubr.bf16.gmra.mrb[0].mxu0 %v12848
      %v13032 = vpop.f32.mrb[0].mxu0
      %v13033 = vadd.f32 0.0, %v13032
      %v13034 = vpop.f32.mrb[0].mxu0
      %v13035 = vpop.f32.mrb[0].mxu0
      %v13036 = vadd.f32 0.0, %v13035
      %v13037 = vpop.f32.mrb[0].mxu0
      %13038 = vmatprep.mubr.bf16.mxu0 0
      %13039 = vmatmul.mubr.bf16.gmra.mrb[0].mxu0 %v12849
      %v13040 = vpop.f32.mrb[0].mxu0
      %v13041 = vadd.f32 0.0, %v13040
      %v13042 = vpop.f32.mrb[0].mxu0
      %v13043 = vpop.f32.mrb[0].mxu0
      %v13044 = vadd.f32 0.0, %v13043
      %v13045 = vpop.f32.mrb[0].mxu0
      %13046 = vmatprep.mubr.bf16.mxu0 0
      %13047 = vmatmul.mubr.bf16.gmra.mrb[0].mxu0 %v12850
      %v13048 = vpop.f32.mrb[0].mxu0
      %v13049 = vadd.f32 0.0, %v13048
      %v13050 = vpop.f32.mrb[0].mxu0
      %v13051 = vpop.f32.mrb[0].mxu0
      %v13052 = vadd.f32 0.0, %v13051
      %v13053 = vpop.f32.mrb[0].mxu0
      %13054 = vmatprep.mubr.bf16.mxu0 0
      %13055 = vmatmul.mubr.bf16.gmra.mrb[0].mxu0 %v12851
      %v13056 = vpop.f32.mrb[0].mxu0
      %v13057 = vadd.f32 0.0, %v13056
      %v13058 = vpop.f32.mrb[0].mxu0
      %v13059 = vpop.f32.mrb[0].mxu0
      %v13060 = vadd.f32 0.0, %v13059
      %v13061 = vpop.f32.mrb[0].mxu0
      %13062 = vmatprep.mubr.bf16.mxu0 0
      %13063 = vmatmul.mubr.bf16.gmra.mrb[0].mxu0 %v12852
      %v13064 = vpop.f32.mrb[0].mxu0
      %v13065 = vadd.f32 0.0, %v13064
      %v13066 = vpop.f32.mrb[0].mxu0
      %v13067 = vpop.f32.mrb[0].mxu0
      %v13068 = vadd.f32 0.0, %v13067
      %v13069 = vpop.f32.mrb[0].mxu0
      %13070 = vmatprep.mubr.bf16.mxu0 0
      %13071 = vmatmul.mubr.bf16.gmra.mrb[0].mxu0 %v12853
      %v13072 = vpop.f32.mrb[0].mxu0
      %v13073 = vadd.f32 0.0, %v13072
      %v13074 = vpop.f32.mrb[0].mxu0
      %v13075 = vpop.f32.mrb[0].mxu0
      %v13076 = vadd.f32 0.0, %v13075
      %v13077 = vpop.f32.mrb[0].mxu0
      %13078 = vdwg.mxu0
      %v13079 = vadd.f32 %v12550, %v12953
      %v13080 = vadd.f32 %v12551, %v12956
      %v13081 = vadd.f32 %v12552, %v12961
      %v13082 = vadd.f32 %v12553, %v12964
      %v13083 = vadd.f32 %v12554, %v12969
      %v13084 = vadd.f32 %v12555, %v12972
      %v13085 = vadd.f32 %v12556, %v12977
      %v13086 = vadd.f32 %v12557, %v12980
      %v13087 = vadd.f32 %v12558, %v12985
      %v13088 = vadd.f32 %v12559, %v12988
      %v13089 = vadd.f32 %v12560, %v12993
      %v13090 = vadd.f32 %v12561, %v12996
      %v13091 = vadd.f32 %v12562, %v13001
      %v13092 = vadd.f32 %v12563, %v13004
      %v13093 = vadd.f32 %v12564, %v13009
      %v13094 = vadd.f32 %v12565, %v13012
      %v13095 = vadd.f32 %v12566, %v13017
      %v13096 = vadd.f32 %v12567, %v13020
      %v13097 = vadd.f32 %v12568, %v13025
      %v13098 = vadd.f32 %v12569, %v13028
      %v13099 = vadd.f32 %v12570, %v13033
      %v13100 = vadd.f32 %v12571, %v13036
      %v13101 = vadd.f32 %v12572, %v13041
      %v13102 = vadd.f32 %v12573, %v13044
      %v13103 = vadd.f32 %v12574, %v13049
      %v13104 = vadd.f32 %v12575, %v13052
      %v13105 = vadd.f32 %v12576, %v13057
      %v13106 = vadd.f32 %v12577, %v13060
      %v13107 = vadd.f32 %v12578, %v13065
      %v13108 = vadd.f32 %v12579, %v13068
      %v13109 = vadd.f32 %v12580, %v13073
      %v13110 = vadd.f32 %v12581, %v13076
      %v13111 = vmax.f32 %v13079, 0.0
      %v13112 = vmax.f32 %v13080, 0.0
      %v13113 = vmax.f32 %v13081, 0.0
      %v13114 = vmax.f32 %v13082, 0.0
      %v13115 = vmax.f32 %v13083, 0.0
      %v13116 = vmax.f32 %v13084, 0.0
      %v13117 = vmax.f32 %v13085, 0.0
      %v13118 = vmax.f32 %v13086, 0.0
      %v13119 = vmax.f32 %v13087, 0.0
      %v13120 = vmax.f32 %v13088, 0.0
      %v13121 = vmax.f32 %v13089, 0.0
      %v13122 = vmax.f32 %v13090, 0.0
      %v13123 = vmax.f32 %v13091, 0.0
      %v13124 = vmax.f32 %v13092, 0.0
      %v13125 = vmax.f32 %v13093, 0.0
      %v13126 = vmax.f32 %v13094, 0.0
      %v13127 = vmax.f32 %v13095, 0.0
      %v13128 = vmax.f32 %v13096, 0.0
      %v13129 = vmax.f32 %v13097, 0.0
      %v13130 = vmax.f32 %v13098, 0.0
      %v13131 = vmax.f32 %v13099, 0.0
      %v13132 = vmax.f32 %v13100, 0.0
      %v13133 = vmax.f32 %v13101, 0.0
      %v13134 = vmax.f32 %v13102, 0.0
      %v13135 = vmax.f32 %v13103, 0.0
      %v13136 = vmax.f32 %v13104, 0.0
      %v13137 = vmax.f32 %v13105, 0.0
      %v13138 = vmax.f32 %v13106, 0.0
      %v13139 = vmax.f32 %v13107, 0.0
      %v13140 = vmax.f32 %v13108, 0.0
      %v13141 = vmax.f32 %v13109, 0.0
      %v13142 = vmax.f32 %v13110, 0.0
      %13143 = vst [vmem:[%s275] sm:$0xff] %v13111
      %13144 = vst [vmem:[%s275 + $0x8] sm:$0xff] %v13112
      %13145 = vst [vmem:[%s275 + $0x10] sm:$0xff] %v13113
      %13146 = vst [vmem:[%s275 + $0x18] sm:$0xff] %v13114
      %13147 = vst [vmem:[%s275 + $0x20] sm:$0xff] %v13115
      %13148 = vst [vmem:[%s275 + $0x28] sm:$0xff] %v13116
      %13149 = vst [vmem:[%s275 + $0x30] sm:$0xff] %v13117
      %13150 = vst [vmem:[%s275 + $0x38] sm:$0xff] %v13118
      %13151 = vst [vmem:[%s275 + $0x40] sm:$0xff] %v13119
      %13152 = vst [vmem:[%s275 + $0x48] sm:$0xff] %v13120
      %13153 = vst [vmem:[%s275 + $0x50] sm:$0xff] %v13121
      %13154 = vst [vmem:[%s275 + $0x58] sm:$0xff] %v13122
      %13155 = vst [vmem:[%s275 + $0x60] sm:$0xff] %v13123
      %13156 = vst [vmem:[%s275 + $0x68] sm:$0xff] %v13124
      %13157 = vst [vmem:[%s275 + $0x70] sm:$0xff] %v13125
      %13158 = vst [vmem:[%s275 + $0x78] sm:$0xff] %v13126
      %13159 = vst [vmem:[%s275 + $0x80] sm:$0xff] %v13127
      %13160 = vst [vmem:[%s275 + $0x88] sm:$0xff] %v13128
      %13161 = vst [vmem:[%s275 + $0x90] sm:$0xff] %v13129
      %13162 = vst [vmem:[%s275 + $0x98] sm:$0xff] %v13130
      %13163 = vst [vmem:[%s275 + $0xa0] sm:$0xff] %v13131
      %13164 = vst [vmem:[%s275 + $0xa8] sm:$0xff] %v13132
      %13165 = vst [vmem:[%s275 + $0xb0] sm:$0xff] %v13133
      %13166 = vst [vmem:[%s275 + $0xb8] sm:$0xff] %v13134
      %13167 = vst [vmem:[%s275 + $0xc0] sm:$0xff] %v13135
      %13168 = vst [vmem:[%s275 + $0xc8] sm:$0xff] %v13136
      %13169 = vst [vmem:[%s275 + $0xd0] sm:$0xff] %v13137
      %13170 = vst [vmem:[%s275 + $0xd8] sm:$0xff] %v13138
      %13171 = vst [vmem:[%s275 + $0xe0] sm:$0xff] %v13139
      %13172 = vst [vmem:[%s275 + $0xe8] sm:$0xff] %v13140
      %13173 = vst [vmem:[%s275 + $0xf0] sm:$0xff] %v13141
      %13174 = vst [vmem:[%s275 + $0xf8] sm:$0xff] %v13142
      %s13175 = smul.u32 16, %s22
      %p13176 = scmp.lt.s32.totalorder %s21, 1
      %s13177 = scalar_select %p13176, %s21, 1
      %p13178 = scmp.lt.s32.totalorder %s13175, 15
      %s13179 = scalar_select %p13178, %s13175, 15
      %s13180 = smul.addr %s13179, 2
      %s13181 = smul.addr %s13177, 32
      %s13182 = sadd.s32 %s13180, %s13181
      %s13183 = smul.addr %s13182, 8
      %s13184 = scalar_lea.vmem %s6, %s13183
      // Predicated region
      $region49: #{basic_block_forward.1} parent=43 // pred_check
        %p13185 = pneg %p180
      $region50: #{basic_block_forward.1} parent=43 // pred_check_branch
        %13187 = sbr.rel (%p13185) target = $region52
      $region51: #{basic_block_forward.1} parent=43 // pred_region
        %s13188 = smul.u32 16, %s22
      $region52: #{basic_block_forward.1} parent=43 // pred_fallthru
        _
    $region44: #{basic_block_forward.1} parent=5 // pred_fallthru
      _
    %p13189 = scmp.le.s32.totalorder 2, %s12
    // Predicated region
    $region53: #{basic_block_forward.1} parent=5 // pred_check
      %p13190 = pneg %p13189
    $region54: #{basic_block_forward.1} parent=5 // pred_check_branch
      %13192 = sbr.rel (%p13190) target = $region56
    $region55: #{basic_block_forward.1} parent=5 // pred_region
      %s13193 = ssub.s32 %s12, 2
      // Predicated region
      $region57: #{basic_block_forward.1} parent=55 // pred_check
        %p13194 = pneg %p186
      $region58: #{basic_block_forward.1} parent=55 // pred_check_branch
        %13196 = sbr.rel (%p13194) target = $region60
      $region59: #{basic_block_forward.1} parent=55 // pred_region
        %s13197 = smul.u32 16, %s24
        %p13198 = scmp.lt.s32.totalorder %s23, 1
        %s13199 = scalar_select %p13198, %s23, 1
        %p13200 = scmp.lt.s32.totalorder %s13197, 15
        %s13201 = scalar_select %p13200, %s13197, 15
        %s13202 = smul.addr %s13201, 2
        %s13203 = smul.addr %s13199, 32
        %s13204 = sadd.s32 %s13202, %s13203
        %s13205 = smul.addr %s13204, 8
        %s13206 = scalar_lea.vmem %s6, %s13205
      $region60: #{basic_block_forward.1} parent=55 // pred_fallthru
        _
    $region56: #{basic_block_forward.1} parent=5 // pred_fallthru
      _
  $region6: #{basic_block_forward.1} parent=0 // loop_footer
    %s16 = sadd.s32 1, %s12
  $region7: #{basic_block_forward.1} parent=0 // loop_footer_branch
    %11 = sbr.rel target = $region3
  $region8: #{basic_block_forward.1} parent=0 // loop_exit
    _

</llo_original>
